<compile_context>
chip_gen: v6e
topology: v6e:2x2x1
jax: 0.10.0
libtpu: 0.0.40
codegen_flags: <defaults>
</compile_context>

<pallas_src>
import jax
import jax.numpy as jnp
from jax.experimental import pallas as pl
from jax.experimental.pallas import tpu as pltpu


def _make_cluster_attn_kernel(scale):
    def kernel(feat_ref, kg_ref, vg_ref, peidx_ref,
               wq_ref, bq_ref, rk_ref, r_ref, e_ref, eb_ref, pet_ref,
               wp_ref, bp_ref, out_ref):
        # feat_ref  : (TN, c)      token features (compute dtype, e.g. bf16)
        # kg_ref    : (TN, m, c)   gathered neighbour keys   (head-major channels)
        # vg_ref    : (TN, m, c)   gathered neighbour values (head-major channels)
        # peidx_ref : (TN, m)      int32 rows of the extended pos table
        #                          (mask penalty already folded into the index)
        # wq_ref    : (c, c)  W_q^T        bq_ref : (1, c) f32 bias
        # rk_ref    : (c, h)  head-onehot * blank_k   (blank-logit weights)
        # r_ref     : (c, h)  head-onehot "sum channels of head hh"
        # e_ref     : (h, c)  head-onehot "broadcast head hh over its channels"
        # eb_ref    : (h, c)  head-onehot * blank_v   (blank-value weights)
        # pet_ref   : (2T, h) extended pos table (rows T..2T-1 = table - 100)
        # wp_ref    : (c, c)  W_proj^T     bp_ref : (1, c) f32 bias
        tn, m, c = kg_ref.shape
        t2, h = pet_ref.shape
        f32 = jnp.float32
        cdt = kg_ref.dtype

        # ---- fused q projection (+ bias) and scaling (MXU, f32 acc) ------------
        q = jnp.dot(feat_ref[...], wq_ref[...], preferred_element_type=f32)
        q = (q + bq_ref[...]) * scale                                  # (TN, c) f32
        q_c = q.astype(cdt)

        # ---- positional + mask logits via one-hot table matmul ------------------
        iota = jax.lax.broadcasted_iota(jnp.int32, (tn, m, t2), 2)
        onehot = jnp.where(peidx_ref[...][:, :, None] == iota, 1.0, 0.0).astype(cdt)
        pos = jnp.dot(onehot.reshape(tn * m, t2), pet_ref[...],
                      preferred_element_type=f32).reshape(tn, m, h)    # (TN, m, h)

        # ---- QK^T over gathered neighbours; per-head reduce via one-hot matmul --
        prod = q_c[:, None, :] * kg_ref[...]                           # (TN, m, c)
        logits = jnp.dot(prod.reshape(tn * m, c), r_ref[...],
                         preferred_element_type=f32).reshape(tn, m, h)
        logits = logits + pos                                          # +pos (+mask)

        # ---- learned blank-token logit (blank_k folded into rk) -----------------
        blank_logit = jnp.dot(q_c, rk_ref[...], preferred_element_type=f32)  # (TN, h)

        # ---- softmax over (m neighbours + blank slot), per token & head ---------
        row_max = jnp.maximum(jnp.max(logits, axis=1), blank_logit)    # (TN, h)
        p = jnp.exp(logits - row_max[:, None, :])                      # (TN, m, h)
        p_blank = jnp.exp(blank_logit - row_max)                       # (TN, h)
        inv = 1.0 / (jnp.sum(p, axis=1) + p_blank)                     # (TN, h)
        attn = p * inv[:, None, :]                                     # (TN, m, h)
        attn_blank = (p_blank * inv).astype(cdt)                       # (TN, h)

        # ---- AV: weighted sum of gathered values (+ blank value, folded) --------
        attn_c = jnp.dot(attn.astype(cdt).reshape(tn * m, h), e_ref[...],
                         preferred_element_type=f32).reshape(tn, m, c)
        out = jnp.sum(attn_c * vg_ref[...].astype(f32), axis=1)        # (TN, c) f32
        out = out + jnp.dot(attn_blank, eb_ref[...], preferred_element_type=f32)

        # ---- fused output projection (MXU) --------------------------------------
        out = jnp.dot(out.astype(cdt), wp_ref[...], preferred_element_type=f32)
        out_ref[...] = (out + bp_ref[...]).astype(out_ref.dtype)

    return kernel


def _vmem_limit_bytes(block_n, m, c, h, t2, itemsize):
    """Explicit VMEM budget: double-buffered blocks + weights + live temporaries."""
    blocks = 2 * (block_n * c * itemsize            # feat
                  + 2 * block_n * m * c * itemsize  # kg, vg
                  + block_n * m * 4                 # pe_idx (int32)
                  + block_n * c * 4)                # output (f32)
    weights = 2 * ((2 * c * c + 2 * c * h + 2 * h * c + t2 * h) * itemsize + 2 * c * 4)
    temps = (block_n * m * (c * itemsize            # prod
                            + c * 4                 # attn_c (f32)
                            + t2 * itemsize         # one-hot
                            + 6 * h * 4)            # pos/logits/p/attn/...
             + 6 * block_n * c * 4)                 # q / out temporaries
    est = int(1.5 * (blocks + weights + temps))
    return max(32 * 1024 * 1024, min(est, 64 * 1024 * 1024))   # v7x-safe cap


def cluster_attention_forward(feat, member_idx, cluster_mask, pe_idx, pre_table,
                              params, *, num_heads, block_n=128,
                              compute_dtype=jnp.bfloat16, vmem_limit_bytes=None):
    """ClusterAttention forward, local (global_attn=False) path.

    feat:         (b, n, c)   token features
    member_idx:   (b, n, m)   neighbour token indices
    cluster_mask: (b, n, m)   1 if neighbour valid
    pe_idx:       (b, n, m)   rows of the precomputed position table
    pre_table:    (T, 5)      precomputed position features
    """
    b, n, c = feat.shape
    h = num_heads
    c_ = c // h
    m = member_idx.shape[-1]
    t = pre_table.shape[0]
    t2 = 2 * t
    scale = c_ ** (-0.5)
    block_n = min(block_n, n)
    assert n % block_n == 0, "n must be divisible by block_n"

    cdt = jnp.dtype(compute_dtype)
    f32 = jnp.float32
    # High-precision wrapper matmuls only in the f32 accuracy configuration.
    prec = "highest" if cdt == jnp.dtype(jnp.float32) else None

    # ---------------- plain-JAX glue (kv proj, data-dependent gathers) ----------
    kv = jnp.dot(feat, params["w_kv"].T, precision=prec,
                 preferred_element_type=f32) + params["b_kv"]       # (b, n, 2c)
    kv = kv.reshape(b, n, h, 2, c_)
    key = kv[..., 0, :].reshape(b, n, c).astype(cdt)                # head-major channels
    val = kv[..., 1, :].reshape(b, n, c).astype(cdt)
    # TODO(synk): move this gather in-kernel (manual DMA) to avoid the (b,n,m,c) HBM streams.
    k_g = jax.vmap(lambda a, i: a[i])(key, member_idx)              # (b, n, m, c) cdt
    v_g = jax.vmap(lambda a, i: a[i])(val, member_idx)              # (b, n, m, c) cdt

    # Positional table, extended with the mask penalty folded in (rows T.. = table-100).
    pe_table = jnp.dot(pre_table, params["w_pe"].T, precision=prec,
                       preferred_element_type=f32) + params["b_pe"]  # (T, h)
    pe_ext = jnp.concatenate([pe_table, pe_table - 100.0], axis=0).astype(cdt)  # (2T, h)
    pe_idx_i = pe_idx.astype(jnp.int32)
    pe_idx_eff = jnp.where(cluster_mask != 0, pe_idx_i, pe_idx_i + t).astype(jnp.int32)

    # Weights (bf16 MXU operands; f32 biases added post-accumulation).
    feat_c = feat.astype(cdt)
    wq_t = params["w_q"].T.astype(cdt)                              # (c, c)
    wp_t = params["w_proj"].T.astype(cdt)                           # (c, c)
    bq2 = params["b_q"].reshape(1, c).astype(f32)
    bp2 = params["b_proj"].reshape(1, c).astype(f32)

    # Block one-hot head matrices; blank_k / blank_v folded into them.
    head_ids = jnp.arange(c, dtype=jnp.int32) // c_
    r_f32 = (head_ids[:, None] == jnp.arange(h, dtype=jnp.int32)[None, :]).astype(f32)
    e_f32 = r_f32.T
    r_mat = r_f32.astype(cdt)                                       # (c, h) head-sum
    e_mat = e_f32.astype(cdt)                                       # (h, c) head-expand
    rk = (r_f32 * params["blank_k"][:, None]).astype(cdt)           # (c, h)
    e_blank = (e_f32 * params["blank_v"][None, :]).astype(cdt)      # (h, c)

    grid = (b, n // block_n)
    tile_map3 = lambda bi, ni: (bi, ni, 0)
    tile_map4 = lambda bi, ni: (bi, ni, 0, 0)
    const2 = lambda bi, ni: (0, 0)

    in_specs = [
        pl.BlockSpec((None, block_n, c), tile_map3),        # feat
        pl.BlockSpec((None, block_n, m, c), tile_map4),     # gathered keys
        pl.BlockSpec((None, block_n, m, c), tile_map4),     # gathered values
        pl.BlockSpec((None, block_n, m), tile_map3),        # pe_idx (mask folded)
        pl.BlockSpec((c, c), const2),                       # W_q^T
        pl.BlockSpec((1, c), const2),                       # b_q
        pl.BlockSpec((c, h), const2),                       # rk (blank_k * head-onehot)
        pl.BlockSpec((c, h), const2),                       # head-sum matrix
        pl.BlockSpec((h, c), const2),                       # head-expand matrix
        pl.BlockSpec((h, c), const2),                       # e_blank (blank_v * onehot)
        pl.BlockSpec((t2, h), const2),                      # extended pos table
        pl.BlockSpec((c, c), const2),                       # W_proj^T
        pl.BlockSpec((1, c), const2),                       # b_proj
    ]
    out_spec = pl.BlockSpec((None, block_n, c), tile_map3)

    # Scheduler hint (dtype-aware byte counts).
    isz = cdt.itemsize
    flops = int(b * n * (4 * c * c + 2 * m * c * (1 + 2 * h)
                         + 2 * m * t2 * h + 4 * c * h + 8 * m * h))
    bytes_accessed = int(
        isz * (feat_c.size + k_g.size + v_g.size
               + 2 * c * c + 2 * c * h + 2 * h * c + pe_ext.size)
        + 4 * (pe_idx_eff.size + 2 * c + b * n * c))
    cost = pl.CostEstimate(flops=flops,
                           transcendentals=int(b * n * h * (m + 1)),
                           bytes_accessed=bytes_accessed)

    if vmem_limit_bytes is None:
        vmem_limit_bytes = _vmem_limit_bytes(block_n, m, c, h, t2, isz)

    out = pl.pallas_call(
        _make_cluster_attn_kernel(scale),
        out_shape=jax.ShapeDtypeStruct((b, n, c), feat.dtype),
        grid_spec=pltpu.PrefetchScalarGridSpec(
            num_scalar_prefetch=0,
            grid=grid,
            in_specs=in_specs,
            out_specs=out_spec,
        ),
        compiler_params=pltpu.CompilerParams(
            dimension_semantics=("parallel", "parallel"),
            vmem_limit_bytes=vmem_limit_bytes),
        cost_estimate=cost,
    )(feat_c, k_g, v_g, pe_idx_eff, wq_t, bq2, rk, r_mat, e_mat, e_blank,
      pe_ext, wp_t, bp2)
    return out


def _reference(feat, member_idx, cluster_mask, pe_idx, pre_table, params, num_heads):
    """Pure-JAX mirror of the PyTorch forward (local path, dropout = no-op)."""
    hp = jax.lax.Precision.HIGHEST
    b, n, c = feat.shape
    h = num_heads
    c_ = c // h
    m = member_idx.shape[-1]
    scale = c_ ** (-0.5)

    q = (jnp.dot(feat, params["w_q"].T, precision=hp) + params["b_q"]) * scale
    kv = jnp.dot(feat, params["w_kv"].T, precision=hp) + params["b_kv"]
    q = q.reshape(b, n, h, c_).transpose(0, 2, 1, 3)               # (b,h,n,c_)
    kv = kv.reshape(b, n, h, 2, c_).transpose(3, 0, 2, 1, 4)       # (2,b,h,n,c_)
    key, v = kv[0], kv[1]

    key_g = jax.vmap(lambda a, i: a[:, i])(key, member_idx)        # (b,h,n,m,c_)
    attn = jnp.einsum("bhic,bhimc->bhim", q, key_g, precision=hp)

    pe_table = jnp.dot(pre_table, params["w_pe"].T, precision=hp) + params["b_pe"]
    pos = pe_table[pe_idx]                                         # (b,n,m,h)
    attn = attn + pos.transpose(0, 3, 1, 2)
    mask = cluster_mask.astype(feat.dtype).reshape(b, 1, n, m)
    attn = attn + (1.0 - mask) * -100.0

    blank_attn = jnp.einsum("bhic,hc->bhi", q, params["blank_k"].reshape(h, c_),
                            precision=hp)[..., None]
    attn = jnp.concatenate([attn, blank_attn], axis=-1)
    attn = jax.nn.softmax(attn, axis=-1)
    blank_attn = attn[..., -1:]
    attn = attn[..., :-1]
    blank_v_t = blank_attn * params["blank_v"].reshape(1, h, 1, c_)

    v_g = jax.vmap(lambda a, i: a[:, i])(v, member_idx)            # (b,h,n,m,c_)
    out = jnp.einsum("bhim,bhimc->bhic", attn, v_g, precision=hp)
    out = out.transpose(0, 2, 1, 3).reshape(b, n, c)
    out = out + blank_v_t.transpose(0, 2, 1, 3).reshape(b, n, c)
    out = jnp.dot(out, params["w_proj"].T, precision=hp) + params["b_proj"]
    return out


if __name__ == "__main__":
    key = jax.random.PRNGKey(0)
    keys = jax.random.split(key, 16)

    b, n, dim, num_heads, nbhd = 2, 64, 32, 4, 8
    table_size = 81                      # rows of the precomputed (pos_dim+3)=5 table

    feat = jax.random.normal(keys[0], (b, n, dim), dtype=jnp.float32)
    member_idx = jax.random.randint(keys[1], (b, n, nbhd), 0, n, dtype=jnp.int32)
    cluster_mask = (jax.random.uniform(keys[2], (b, n, nbhd)) > 0.2).astype(jnp.float32)
    pe_idx = jax.random.randint(keys[3], (b, n, nbhd), 0, table_size, dtype=jnp.int32)
    pre_table = jax.random.normal(keys[4], (table_size, 5), dtype=jnp.float32)

    def linear_init(kw, kb, out_f, in_f):
        bound = 1.0 / (in_f ** 0.5)
        w = jax.random.uniform(kw, (out_f, in_f), minval=-bound, maxval=bound,
                               dtype=jnp.float32)
        bias = jax.random.uniform(kb, (out_f,), minval=-bound, maxval=bound,
                                  dtype=jnp.float32)
        return w, bias

    w_q, b_q = linear_init(keys[5], keys[6], dim, dim)
    w_kv, b_kv = linear_init(keys[7], keys[8], 2 * dim, dim)
    w_pe, b_pe = linear_init(keys[9], keys[10], num_heads, 5)
    w_proj, b_proj = linear_init(keys[11], keys[12], dim, dim)
    blank_k = jax.random.normal(keys[13], (dim,), dtype=jnp.float32)
    blank_v = jax.random.normal(keys[14], (dim,), dtype=jnp.float32)

    params = dict(w_q=w_q, b_q=b_q, w_kv=w_kv, b_kv=b_kv, w_pe=w_pe, b_pe=b_pe,
                  w_proj=w_proj, b_proj=b_proj, blank_k=blank_k, blank_v=blank_v)

    fwd = jax.jit(cluster_attention_forward,
                  static_argnames=("num_heads", "block_n", "compute_dtype",
                                   "vmem_limit_bytes"))

    # Performance configuration: bf16 streams / MXU operands, f32 accumulation.
    out_bf16 = jax.block_until_ready(
        fwd(feat, member_idx, cluster_mask, pe_idx, pre_table, params,
            num_heads=num_heads, block_n=128, compute_dtype=jnp.bfloat16))

    # Accuracy configuration: full f32 everywhere (tight algorithmic check).
    out_f32 = jax.block_until_ready(
        fwd(feat, member_idx, cluster_mask, pe_idx, pre_table, params,
            num_heads=num_heads, block_n=128, compute_dtype=jnp.float32))

    ref = _reference(feat, member_idx, cluster_mask, pe_idx, pre_table, params,
                     num_heads)
    assert out_bf16.shape == (b, n, dim), out_bf16.shape

    err_f32 = float(jnp.max(jnp.abs(out_f32 - ref)))
    assert jnp.allclose(out_f32, ref, atol=2e-3, rtol=2e-3), f"f32 mismatch: {err_f32}"
    err_bf16 = float(jnp.max(jnp.abs(out_bf16 - ref)))
    assert jnp.allclose(out_bf16, ref, atol=1e-1, rtol=1e-1), f"bf16 mismatch: {err_bf16}"

    print("KERNEL_OK")
</pallas_src>

<mosaic_0001>
module attributes {stable_mosaic.version = 11 : i64} {
  func.func @kernel(%arg0: i32, %arg1: i32, %arg2: memref<1x64x32xbf16, #tpu.memory_space<vmem>>, %arg3: memref<1x64x8x32xbf16, #tpu.memory_space<vmem>>, %arg4: memref<1x64x8x32xbf16, #tpu.memory_space<vmem>>, %arg5: memref<1x64x8xi32, #tpu.memory_space<vmem>>, %arg6: memref<32x32xbf16, #tpu.memory_space<vmem>>, %arg7: memref<1x32xf32, #tpu.memory_space<vmem>>, %arg8: memref<32x4xbf16, #tpu.memory_space<vmem>>, %arg9: memref<32x4xbf16, #tpu.memory_space<vmem>>, %arg10: memref<4x32xbf16, #tpu.memory_space<vmem>>, %arg11: memref<4x32xbf16, #tpu.memory_space<vmem>>, %arg12: memref<162x4xbf16, #tpu.memory_space<vmem>>, %arg13: memref<32x32xbf16, #tpu.memory_space<vmem>>, %arg14: memref<1x32xf32, #tpu.memory_space<vmem>>, %arg15: memref<1x64x32xf32, #tpu.memory_space<vmem>>) attributes {dimension_semantics = [#tpu.dimension_semantics<parallel>, #tpu.dimension_semantics<parallel>], iteration_bounds = array<i64: 2, 1>, scalar_prefetch = 0 : i64, scratch_operands = 0 : i64, tpu.core_type = #tpu.core_type<tc>, window_params = [{transform_indices = @transform_0, window_bounds = array<i64: 1, 64, 32>}, {transform_indices = @transform_1, window_bounds = array<i64: 1, 64, 8, 32>}, {transform_indices = @transform_2, window_bounds = array<i64: 1, 64, 8, 32>}, {transform_indices = @transform_3, window_bounds = array<i64: 1, 64, 8>}, {pipeline_mode = #tpu.pipeline_mode<synchronous>, transform_indices = @transform_4, window_bounds = array<i64: 32, 32>}, {pipeline_mode = #tpu.pipeline_mode<synchronous>, transform_indices = @transform_5, window_bounds = array<i64: 1, 32>}, {pipeline_mode = #tpu.pipeline_mode<synchronous>, transform_indices = @transform_6, window_bounds = array<i64: 32, 4>}, {pipeline_mode = #tpu.pipeline_mode<synchronous>, transform_indices = @transform_7, window_bounds = array<i64: 32, 4>}, {pipeline_mode = #tpu.pipeline_mode<synchronous>, transform_indices = @transform_8, window_bounds = array<i64: 4, 32>}, {pipeline_mode = #tpu.pipeline_mode<synchronous>, transform_indices = @transform_9, window_bounds = array<i64: 4, 32>}, {pipeline_mode = #tpu.pipeline_mode<synchronous>, transform_indices = @transform_10, window_bounds = array<i64: 162, 4>}, {pipeline_mode = #tpu.pipeline_mode<synchronous>, transform_indices = @transform_11, window_bounds = array<i64: 32, 32>}, {pipeline_mode = #tpu.pipeline_mode<synchronous>, transform_indices = @transform_12, window_bounds = array<i64: 1, 32>}, {transform_indices = @transform_13, window_bounds = array<i64: 1, 64, 32>}]} {
    %c0 = arith.constant 0 : index
    %c0_0 = arith.constant 0 : index
    %c0_1 = arith.constant 0 : index
    %0 = vector.load %arg2[%c0, %c0_0, %c0_1] : memref<1x64x32xbf16, #tpu.memory_space<vmem>>, vector<1x64x32xbf16>
    %1 = vector.shape_cast %0 : vector<1x64x32xbf16> to vector<64x32xbf16>
    %c0_2 = arith.constant 0 : index
    %c0_3 = arith.constant 0 : index
    %2 = vector.load %arg6[%c0_2, %c0_3] : memref<32x32xbf16, #tpu.memory_space<vmem>>, vector<32x32xbf16>
    %cst = arith.constant dense<0.000000e+00> : vector<64x32xf32>
    %3 = tpu.matmul %1, %2, %cst {dimension_numbers = #tpu.dot_dimension_numbers<[1], [0], [0], [1], [0, 0, 1, 1], [], []>} : vector<64x32xbf16>, vector<32x32xbf16>, vector<64x32xf32> -> vector<64x32xf32>
    %c0_4 = arith.constant 0 : index
    %c0_5 = arith.constant 0 : index
    %4 = vector.load %arg7[%c0_4, %c0_5] : memref<1x32xf32, #tpu.memory_space<vmem>>, vector<1x32xf32>
    %5 = vector.broadcast %4 : vector<1x32xf32> to vector<64x32xf32>
    %6 = arith.addf %3, %5 : vector<64x32xf32>
    %cst_6 = arith.constant 0.353553385 : f32
    %7 = vector.broadcast %cst_6 : f32 to vector<64x32xf32>
    %8 = arith.mulf %6, %7 : vector<64x32xf32>
    %9 = arith.truncf %8 : vector<64x32xf32> to vector<64x32xbf16>
    %10 = tpu.iota {dimensions = array<i32: 2>} : vector<64x8x162xi32>
    %c0_7 = arith.constant 0 : index
    %c0_8 = arith.constant 0 : index
    %c0_9 = arith.constant 0 : index
    %11 = vector.load %arg5[%c0_7, %c0_8, %c0_9] : memref<1x64x8xi32, #tpu.memory_space<vmem>>, vector<1x64x8xi32>
    %12 = vector.shape_cast %11 : vector<1x64x8xi32> to vector<64x8xi32>
    %13 = vector.shape_cast %12 : vector<64x8xi32> to vector<64x8x1xi32>
    %14 = vector.broadcast %13 : vector<64x8x1xi32> to vector<64x8x162xi32>
    %15 = arith.cmpi eq, %14, %10 : vector<64x8x162xi32>
    %cst_10 = arith.constant 1.000000e+00 : f32
    %cst_11 = arith.constant 0.000000e+00 : f32
    %16 = vector.broadcast %cst_10 : f32 to vector<64x8x162xf32>
    %17 = vector.broadcast %cst_11 : f32 to vector<64x8x162xf32>
    %18 = arith.select %15, %16, %17 : vector<64x8x162xi1>, vector<64x8x162xf32>
    %19 = arith.truncf %18 : vector<64x8x162xf32> to vector<64x8x162xbf16>
    %20 = vector.shape_cast %19 : vector<64x8x162xbf16> to vector<512x162xbf16>
    %c0_12 = arith.constant 0 : index
    %c0_13 = arith.constant 0 : index
    %21 = vector.load %arg12[%c0_12, %c0_13] : memref<162x4xbf16, #tpu.memory_space<vmem>>, vector<162x4xbf16>
    %cst_14 = arith.constant dense<0.000000e+00> : vector<512x4xf32>
    %22 = tpu.matmul %20, %21, %cst_14 {dimension_numbers = #tpu.dot_dimension_numbers<[1], [0], [0], [1], [0, 0, 1, 1], [], []>} : vector<512x162xbf16>, vector<162x4xbf16>, vector<512x4xf32> -> vector<512x4xf32>
    %23 = vector.shape_cast %22 : vector<512x4xf32> to vector<64x8x4xf32>
    %24 = vector.shape_cast %9 : vector<64x32xbf16> to vector<64x1x32xbf16>
    %c0_15 = arith.constant 0 : index
    %c0_16 = arith.constant 0 : index
    %c0_17 = arith.constant 0 : index
    %c0_18 = arith.constant 0 : index
    %25 = vector.load %arg3[%c0_15, %c0_16, %c0_17, %c0_18] : memref<1x64x8x32xbf16, #tpu.memory_space<vmem>>, vector<1x64x8x32xbf16>
    %26 = vector.shape_cast %25 : vector<1x64x8x32xbf16> to vector<64x8x32xbf16>
    %27 = vector.broadcast %24 : vector<64x1x32xbf16> to vector<64x8x32xbf16>
    %28 = arith.mulf %27, %26 : vector<64x8x32xbf16>
    %29 = vector.shape_cast %28 : vector<64x8x32xbf16> to vector<512x32xbf16>
    %c0_19 = arith.constant 0 : index
    %c0_20 = arith.constant 0 : index
    %30 = vector.load %arg9[%c0_19, %c0_20] : memref<32x4xbf16, #tpu.memory_space<vmem>>, vector<32x4xbf16>
    %cst_21 = arith.constant dense<0.000000e+00> : vector<512x4xf32>
    %31 = tpu.matmul %29, %30, %cst_21 {dimension_numbers = #tpu.dot_dimension_numbers<[1], [0], [0], [1], [0, 0, 1, 1], [], []>} : vector<512x32xbf16>, vector<32x4xbf16>, vector<512x4xf32> -> vector<512x4xf32>
    %32 = vector.shape_cast %31 : vector<512x4xf32> to vector<64x8x4xf32>
    %33 = arith.addf %32, %23 : vector<64x8x4xf32>
    %c0_22 = arith.constant 0 : index
    %c0_23 = arith.constant 0 : index
    %34 = vector.load %arg8[%c0_22, %c0_23] : memref<32x4xbf16, #tpu.memory_space<vmem>>, vector<32x4xbf16>
    %cst_24 = arith.constant dense<0.000000e+00> : vector<64x4xf32>
    %35 = tpu.matmul %9, %34, %cst_24 {dimension_numbers = #tpu.dot_dimension_numbers<[1], [0], [0], [1], [0, 0, 1, 1], [], []>} : vector<64x32xbf16>, vector<32x4xbf16>, vector<64x4xf32> -> vector<64x4xf32>
    %cst_25 = arith.constant dense<0xFF800000> : vector<64x4xf32>
    %36 = vector.multi_reduction <maximumf>, %33, %cst_25 [1] : vector<64x8x4xf32> to vector<64x4xf32>
    %37 = arith.maximumf %36, %35 : vector<64x4xf32>
    %38 = vector.shape_cast %37 : vector<64x4xf32> to vector<64x1x4xf32>
    %39 = vector.broadcast %38 : vector<64x1x4xf32> to vector<64x8x4xf32>
    %40 = arith.subf %33, %39 : vector<64x8x4xf32>
    %41 = math.exp %40 : vector<64x8x4xf32>
    %42 = arith.subf %35, %37 : vector<64x4xf32>
    %43 = math.exp %42 : vector<64x4xf32>
    %cst_26 = arith.constant dense<0.000000e+00> : vector<64x4xf32>
    %44 = vector.multi_reduction <add>, %41, %cst_26 [1] : vector<64x8x4xf32> to vector<64x4xf32>
    %45 = arith.addf %44, %43 : vector<64x4xf32>
    %cst_27 = arith.constant 1.000000e+00 : f32
    %46 = vector.broadcast %cst_27 : f32 to vector<64x4xf32>
    %47 = arith.divf %46, %45 : vector<64x4xf32>
    %48 = vector.shape_cast %47 : vector<64x4xf32> to vector<64x1x4xf32>
    %49 = vector.broadcast %48 : vector<64x1x4xf32> to vector<64x8x4xf32>
    %50 = arith.mulf %41, %49 : vector<64x8x4xf32>
    %51 = arith.mulf %43, %47 : vector<64x4xf32>
    %52 = arith.truncf %51 : vector<64x4xf32> to vector<64x4xbf16>
    %53 = arith.truncf %50 : vector<64x8x4xf32> to vector<64x8x4xbf16>
    %54 = vector.shape_cast %53 : vector<64x8x4xbf16> to vector<512x4xbf16>
    %c0_28 = arith.constant 0 : index
    %c0_29 = arith.constant 0 : index
    %55 = vector.load %arg10[%c0_28, %c0_29] : memref<4x32xbf16, #tpu.memory_space<vmem>>, vector<4x32xbf16>
    %cst_30 = arith.constant dense<0.000000e+00> : vector<512x32xf32>
    %56 = tpu.matmul %54, %55, %cst_30 {dimension_numbers = #tpu.dot_dimension_numbers<[1], [0], [0], [1], [0, 0, 1, 1], [], []>} : vector<512x4xbf16>, vector<4x32xbf16>, vector<512x32xf32> -> vector<512x32xf32>
    %57 = vector.shape_cast %56 : vector<512x32xf32> to vector<64x8x32xf32>
    %c0_31 = arith.constant 0 : index
    %c0_32 = arith.constant 0 : index
    %c0_33 = arith.constant 0 : index
    %c0_34 = arith.constant 0 : index
    %58 = vector.load %arg4[%c0_31, %c0_32, %c0_33, %c0_34] : memref<1x64x8x32xbf16, #tpu.memory_space<vmem>>, vector<1x64x8x32xbf16>
    %59 = vector.shape_cast %58 : vector<1x64x8x32xbf16> to vector<64x8x32xbf16>
    %60 = arith.extf %59 : vector<64x8x32xbf16> to vector<64x8x32xf32>
    %61 = arith.mulf %57, %60 : vector<64x8x32xf32>
    %cst_35 = arith.constant dense<0.000000e+00> : vector<64x32xf32>
    %62 = vector.multi_reduction <add>, %61, %cst_35 [1] : vector<64x8x32xf32> to vector<64x32xf32>
    %c0_36 = arith.constant 0 : index
    %c0_37 = arith.constant 0 : index
    %63 = vector.load %arg11[%c0_36, %c0_37] : memref<4x32xbf16, #tpu.memory_space<vmem>>, vector<4x32xbf16>
    %cst_38 = arith.constant dense<0.000000e+00> : vector<64x32xf32>
    %64 = tpu.matmul %52, %63, %cst_38 {dimension_numbers = #tpu.dot_dimension_numbers<[1], [0], [0], [1], [0, 0, 1, 1], [], []>} : vector<64x4xbf16>, vector<4x32xbf16>, vector<64x32xf32> -> vector<64x32xf32>
    %65 = arith.addf %62, %64 : vector<64x32xf32>
    %66 = arith.truncf %65 : vector<64x32xf32> to vector<64x32xbf16>
    %c0_39 = arith.constant 0 : index
    %c0_40 = arith.constant 0 : index
    %67 = vector.load %arg13[%c0_39, %c0_40] : memref<32x32xbf16, #tpu.memory_space<vmem>>, vector<32x32xbf16>
    %cst_41 = arith.constant dense<0.000000e+00> : vector<64x32xf32>
    %68 = tpu.matmul %66, %67, %cst_41 {dimension_numbers = #tpu.dot_dimension_numbers<[1], [0], [0], [1], [0, 0, 1, 1], [], []>} : vector<64x32xbf16>, vector<32x32xbf16>, vector<64x32xf32> -> vector<64x32xf32>
    %c0_42 = arith.constant 0 : index
    %c0_43 = arith.constant 0 : index
    %69 = vector.load %arg14[%c0_42, %c0_43] : memref<1x32xf32, #tpu.memory_space<vmem>>, vector<1x32xf32>
    %70 = vector.broadcast %69 : vector<1x32xf32> to vector<64x32xf32>
    %71 = arith.addf %68, %70 : vector<64x32xf32>
    %c0_44 = arith.constant 0 : index
    %c0_45 = arith.constant 0 : index
    %c0_46 = arith.constant 0 : index
    %72 = vector.load %arg15[%c0_44, %c0_45, %c0_46] : memref<1x64x32xf32, #tpu.memory_space<vmem>>, vector<1x64x32xf32>
    %73 = vector.shape_cast %72 : vector<1x64x32xf32> to vector<64x32xf32>
    %74 = vector.shape_cast %71 : vector<64x32xf32> to vector<1x64x32xf32>
    tpu.vector_store %arg15[%c0_44, %c0_45, %c0_46], %74 {strides = array<i32>} : memref<1x64x32xf32, #tpu.memory_space<vmem>>, vector<1x64x32xf32>,
    return
  }
  func.func @transform_0(%arg0: i32, %arg1: i32) -> (i32, i32, i32) {
    %c0_i32 = arith.constant 0 : i32
    %c0_i32_0 = arith.constant 0 : i32
    return %arg0, %arg1, %c0_i32 : i32, i32, i32
  }
  func.func @transform_1(%arg0: i32, %arg1: i32) -> (i32, i32, i32, i32) {
    %c0_i32 = arith.constant 0 : i32
    %c0_i32_0 = arith.constant 0 : i32
    %c0_i32_1 = arith.constant 0 : i32
    return %arg0, %arg1, %c0_i32, %c0_i32_0 : i32, i32, i32, i32
  }
  func.func @transform_2(%arg0: i32, %arg1: i32) -> (i32, i32, i32, i32) {
    %c0_i32 = arith.constant 0 : i32
    %c0_i32_0 = arith.constant 0 : i32
    %c0_i32_1 = arith.constant 0 : i32
    return %arg0, %arg1, %c0_i32, %c0_i32_0 : i32, i32, i32, i32
  }
  func.func @transform_3(%arg0: i32, %arg1: i32) -> (i32, i32, i32) {
    %c0_i32 = arith.constant 0 : i32
    %c0_i32_0 = arith.constant 0 : i32
    return %arg0, %arg1, %c0_i32 : i32, i32, i32
  }
  func.func @transform_4(%arg0: i32, %arg1: i32) -> (i32, i32) {
    %c0_i32 = arith.constant 0 : i32
    %c0_i32_0 = arith.constant 0 : i32
    %c0_i32_1 = arith.constant 0 : i32
    return %c0_i32, %c0_i32_0 : i32, i32
  }
  func.func @transform_5(%arg0: i32, %arg1: i32) -> (i32, i32) {
    %c0_i32 = arith.constant 0 : i32
    %c0_i32_0 = arith.constant 0 : i32
    %c0_i32_1 = arith.constant 0 : i32
    return %c0_i32, %c0_i32_0 : i32, i32
  }
  func.func @transform_6(%arg0: i32, %arg1: i32) -> (i32, i32) {
    %c0_i32 = arith.constant 0 : i32
    %c0_i32_0 = arith.constant 0 : i32
    %c0_i32_1 = arith.constant 0 : i32
    return %c0_i32, %c0_i32_0 : i32, i32
  }
  func.func @transform_7(%arg0: i32, %arg1: i32) -> (i32, i32) {
    %c0_i32 = arith.constant 0 : i32
    %c0_i32_0 = arith.constant 0 : i32
    %c0_i32_1 = arith.constant 0 : i32
    return %c0_i32, %c0_i32_0 : i32, i32
  }
  func.func @transform_8(%arg0: i32, %arg1: i32) -> (i32, i32) {
    %c0_i32 = arith.constant 0 : i32
    %c0_i32_0 = arith.constant 0 : i32
    %c0_i32_1 = arith.constant 0 : i32
    return %c0_i32, %c0_i32_0 : i32, i32
  }
  func.func @transform_9(%arg0: i32, %arg1: i32) -> (i32, i32) {
    %c0_i32 = arith.constant 0 : i32
    %c0_i32_0 = arith.constant 0 : i32
    %c0_i32_1 = arith.constant 0 : i32
    return %c0_i32, %c0_i32_0 : i32, i32
  }
  func.func @transform_10(%arg0: i32, %arg1: i32) -> (i32, i32) {
    %c0_i32 = arith.constant 0 : i32
    %c0_i32_0 = arith.constant 0 : i32
    %c0_i32_1 = arith.constant 0 : i32
    return %c0_i32, %c0_i32_0 : i32, i32
  }
  func.func @transform_11(%arg0: i32, %arg1: i32) -> (i32, i32) {
    %c0_i32 = arith.constant 0 : i32
    %c0_i32_0 = arith.constant 0 : i32
    %c0_i32_1 = arith.constant 0 : i32
    return %c0_i32, %c0_i32_0 : i32, i32
  }
  func.func @transform_12(%arg0: i32, %arg1: i32) -> (i32, i32) {
    %c0_i32 = arith.constant 0 : i32
    %c0_i32_0 = arith.constant 0 : i32
    %c0_i32_1 = arith.constant 0 : i32
    return %c0_i32, %c0_i32_0 : i32, i32
  }
  func.func @transform_13(%arg0: i32, %arg1: i32) -> (i32, i32, i32) {
    %c0_i32 = arith.constant 0 : i32
    %c0_i32_0 = arith.constant 0 : i32
    return %arg0, %arg1, %c0_i32 : i32, i32, i32
  }
}

</mosaic_0001>

<llo_original>
// kernel: cluster_attention_forward.1
$region0: #{cluster_attention_forward.1}
  #allocation0 [shape = 'u32[]', space=smem, size = 0x4, offset = 0x4, fixed_abs, tag = 'smem constant byte address 0x4 - core index']
  #allocation1 [shape = 'u32[144,128]{1,0:T(1,128)}', space=vmem, size = 0x12000, scoped, tag = 'internal scratch']
  %s0 = inlined_call_operand.vmem [shape: bf16[2,64,32], index: 0, kind: input, shape index: {}]
  %s1 = inlined_call_operand.vmem [shape: bf16[2,64,8,32], index: 1, kind: input, shape index: {}]
  %s2 = inlined_call_operand.vmem [shape: bf16[2,64,8,32], index: 2, kind: input, shape index: {}]
  %s3 = inlined_call_operand.vmem [shape: s32[2,64,8], index: 3, kind: input, shape index: {}]
  %s4 = inlined_call_operand.vmem [shape: bf16[32,32], index: 4, kind: input, shape index: {}]
  %s5 = inlined_call_operand.vmem [shape: f32[1,32], index: 5, kind: input, shape index: {}]
  %s6 = inlined_call_operand.vmem [shape: bf16[32,4], index: 6, kind: input, shape index: {}]
  %s7 = inlined_call_operand.vmem [shape: bf16[32,4], index: 7, kind: input, shape index: {}]
  %s8 = inlined_call_operand.vmem [shape: bf16[4,32], index: 8, kind: input, shape index: {}]
  %s9 = inlined_call_operand.vmem [shape: bf16[4,32], index: 9, kind: input, shape index: {}]
  %s10 = inlined_call_operand.vmem [shape: bf16[162,4], index: 10, kind: input, shape index: {}]
  %s11 = inlined_call_operand.vmem [shape: bf16[32,32], index: 11, kind: input, shape index: {}]
  %s12 = inlined_call_operand.vmem [shape: f32[1,32], index: 12, kind: input, shape index: {}]
  %s13 = inlined_call_operand.vmem [shape: f32[2,64,32], index: 13, kind: output, shape index: {}]
  %s14 = sld [smem:[#allocation0]]
  $region85: #{cluster_attention_forward.1} parent=0
    _
  %s16 = ssub.s32 1, %s14
  %s17 = scalar_select 0, %s16, %s14
  loop: start=0, step=1, limit=4
  $region2: #{cluster_attention_forward.1} parent=0 // loop_pre_header
    _
  $region3: #{cluster_attention_forward.1} parent=0 // loop_header
    %s19 = sphi 0, %s23
    %p20 = scmp.ge.s32.totalorder %s19, 4
    %s26 = sphi 0, %s38
    %s27 = sphi 0, %s34
    %s28 = sphi 0, %s26
    %s29 = sphi 0, %s27
    %s30 = sphi 0, %s28
    %s31 = sphi 0, %s29
    %s43 = sphi 0, %s45
    %s46 = sphi 0, %s43
    %s47 = sphi 0, %s46
    %s63 = sphi 0, %s47
    %s71 = sphi 0, %s73
    %s74 = sphi 0, %s71
    %s75 = sphi 0, %s74
    %s91 = sphi 0, %s75
    %s99 = sphi 0, %s101
    %s102 = sphi 0, %s99
    %s103 = sphi 0, %s102
    %s119 = sphi 0, %s103
    %s127 = sphi 0, %s129
    %s130 = sphi 0, %s127
    %s131 = sphi 0, %s130
    %s147 = sphi 0, %s131
    %s151 = sphi 0, %s151
    %s153 = sphi 0, %s151
    %s154 = sphi 0, %s153
    %s168 = sphi 0, %s154
    %s172 = sphi 0, %s172
    %s174 = sphi 0, %s172
    %s175 = sphi 0, %s174
    %s189 = sphi 0, %s175
    %s193 = sphi 0, %s193
    %s195 = sphi 0, %s193
    %s196 = sphi 0, %s195
    %s210 = sphi 0, %s196
    %s214 = sphi 0, %s214
    %s216 = sphi 0, %s214
    %s217 = sphi 0, %s216
    %s231 = sphi 0, %s217
    %s235 = sphi 0, %s235
    %s237 = sphi 0, %s235
    %s238 = sphi 0, %s237
    %s252 = sphi 0, %s238
    %s256 = sphi 0, %s256
    %s258 = sphi 0, %s256
    %s259 = sphi 0, %s258
    %s273 = sphi 0, %s259
    %s277 = sphi 0, %s277
    %s279 = sphi 0, %s277
    %s280 = sphi 0, %s279
    %s294 = sphi 0, %s280
    %s298 = sphi 0, %s298
    %s300 = sphi 0, %s298
    %s301 = sphi 0, %s300
    %s315 = sphi 0, %s301
    %s319 = sphi 0, %s319
    %s321 = sphi 0, %s319
    %s322 = sphi 0, %s321
    %s336 = sphi 0, %s322
    %s344 = sphi 0, %s346
    %s347 = sphi 0, %s344
    %s348 = sphi 0, %s347
    %s364 = sphi 0, %s348
  $region4: #{cluster_attention_forward.1} parent=0 // loop_header_branch
    %22 = sbr.rel (%p20) target = $region8
  $region5: #{cluster_attention_forward.1} parent=0 // loop_body
    %s24 = ssub.s32 %s19, 1
    %s25 = ssub.s32 %s19, 2
    %s32 = sadd.s32 1, %s27
    %p33 = scmp.ge.s32.totalorder %s32, 1
    %s34 = scalar_select %p33, 0, %s32
    %s35 = sadd.s32 1, %s26
    %s36 = scalar_select %p33, %s35, %s26
    %p37 = scmp.ge.s32.totalorder %s36, 2
    %s38 = scalar_select %p37, 0, %s36
    %s39 = ssub.s32 %s26, %s38
    %s40 = ssub.s32 %s27, %s34
    %s41 = sor.u32 %s39, %s40
    %p42 = scmp.eq.s32.totalorder %s41, 0
    %s44 = sadd.s32 %s43, 1
    %s45 = scalar_select %p42, %s43, %s44
    %p48 = pneg %p42
    %p49 = scmp.eq.s32.totalorder %s19, 1
    %p50 = por %p48, %p49
    %p51 = scmp.ne.s32.totalorder %s43, %s46
    %p52 = scmp.eq.s32.totalorder %s19, 0
    %p53 = por %p51, %p52
    %p54 = scmp.ne.s32.totalorder %s43, %s46
    %p55 = scmp.eq.s32.totalorder %s24, 1
    %p56 = por %p54, %p55
    %p57 = scmp.ne.s32.totalorder %s46, %s47
    %p58 = scmp.eq.s32.totalorder %s24, 0
    %p59 = por %p57, %p58
    %p60 = scmp.ne.s32.totalorder %s46, %s47
    %p61 = scmp.eq.s32.totalorder %s25, 1
    %p62 = por %p60, %p61
    %p64 = scmp.ne.s32.totalorder %s47, %s63
    %p65 = scmp.eq.s32.totalorder %s25, 0
    %p66 = por %p64, %p65
    %s67 = ssub.s32 %s26, %s38
    %s68 = ssub.s32 %s27, %s34
    %s69 = sor.u32 %s67, %s68
    %p70 = scmp.eq.s32.totalorder %s69, 0
    %s72 = sadd.s32 %s71, 1
    %s73 = scalar_select %p70, %s71, %s72
    %p76 = pneg %p70
    %p77 = scmp.eq.s32.totalorder %s19, 1
    %p78 = por %p76, %p77
    %p79 = scmp.ne.s32.totalorder %s71, %s74
    %p80 = scmp.eq.s32.totalorder %s19, 0
    %p81 = por %p79, %p80
    %p82 = scmp.ne.s32.totalorder %s71, %s74
    %p83 = scmp.eq.s32.totalorder %s24, 1
    %p84 = por %p82, %p83
    %p85 = scmp.ne.s32.totalorder %s74, %s75
    %p86 = scmp.eq.s32.totalorder %s24, 0
    %p87 = por %p85, %p86
    %p88 = scmp.ne.s32.totalorder %s74, %s75
    %p89 = scmp.eq.s32.totalorder %s25, 1
    %p90 = por %p88, %p89
    %p92 = scmp.ne.s32.totalorder %s75, %s91
    %p93 = scmp.eq.s32.totalorder %s25, 0
    %p94 = por %p92, %p93
    %s95 = ssub.s32 %s26, %s38
    %s96 = ssub.s32 %s27, %s34
    %s97 = sor.u32 %s95, %s96
    %p98 = scmp.eq.s32.totalorder %s97, 0
    %s100 = sadd.s32 %s99, 1
    %s101 = scalar_select %p98, %s99, %s100
    %p104 = pneg %p98
    %p105 = scmp.eq.s32.totalorder %s19, 1
    %p106 = por %p104, %p105
    %p107 = scmp.ne.s32.totalorder %s99, %s102
    %p108 = scmp.eq.s32.totalorder %s19, 0
    %p109 = por %p107, %p108
    %p110 = scmp.ne.s32.totalorder %s99, %s102
    %p111 = scmp.eq.s32.totalorder %s24, 1
    %p112 = por %p110, %p111
    %p113 = scmp.ne.s32.totalorder %s102, %s103
    %p114 = scmp.eq.s32.totalorder %s24, 0
    %p115 = por %p113, %p114
    %p116 = scmp.ne.s32.totalorder %s102, %s103
    %p117 = scmp.eq.s32.totalorder %s25, 1
    %p118 = por %p116, %p117
    %p120 = scmp.ne.s32.totalorder %s103, %s119
    %p121 = scmp.eq.s32.totalorder %s25, 0
    %p122 = por %p120, %p121
    %s123 = ssub.s32 %s26, %s38
    %s124 = ssub.s32 %s27, %s34
    %s125 = sor.u32 %s123, %s124
    %p126 = scmp.eq.s32.totalorder %s125, 0
    %s128 = sadd.s32 %s127, 1
    %s129 = scalar_select %p126, %s127, %s128
    %p132 = pneg %p126
    %p133 = scmp.eq.s32.totalorder %s19, 1
    %p134 = por %p132, %p133
    %p135 = scmp.ne.s32.totalorder %s127, %s130
    %p136 = scmp.eq.s32.totalorder %s19, 0
    %p137 = por %p135, %p136
    %p138 = scmp.ne.s32.totalorder %s127, %s130
    %p139 = scmp.eq.s32.totalorder %s24, 1
    %p140 = por %p138, %p139
    %p141 = scmp.ne.s32.totalorder %s130, %s131
    %p142 = scmp.eq.s32.totalorder %s24, 0
    %p143 = por %p141, %p142
    %p144 = scmp.ne.s32.totalorder %s130, %s131
    %p145 = scmp.eq.s32.totalorder %s25, 1
    %p146 = por %p144, %p145
    %p148 = scmp.ne.s32.totalorder %s131, %s147
    %p149 = scmp.eq.s32.totalorder %s25, 0
    %p150 = por %p148, %p149
    %s152 = sadd.s32 %s151, 1
    %p155 = scmp.eq.s32.totalorder %s19, 1
    %p156 = scmp.ne.s32.totalorder %s151, %s153
    %p157 = scmp.eq.s32.totalorder %s19, 0
    %p158 = por %p156, %p157
    %p159 = scmp.ne.s32.totalorder %s151, %s153
    %p160 = scmp.eq.s32.totalorder %s24, 1
    %p161 = por %p159, %p160
    %p162 = scmp.ne.s32.totalorder %s153, %s154
    %p163 = scmp.eq.s32.totalorder %s24, 0
    %p164 = por %p162, %p163
    %p165 = scmp.ne.s32.totalorder %s153, %s154
    %p166 = scmp.eq.s32.totalorder %s25, 1
    %p167 = por %p165, %p166
    %p169 = scmp.ne.s32.totalorder %s154, %s168
    %p170 = scmp.eq.s32.totalorder %s25, 0
    %p171 = por %p169, %p170
    %s173 = sadd.s32 %s172, 1
    %p176 = scmp.eq.s32.totalorder %s19, 1
    %p177 = scmp.ne.s32.totalorder %s172, %s174
    %p178 = scmp.eq.s32.totalorder %s19, 0
    %p179 = por %p177, %p178
    %p180 = scmp.ne.s32.totalorder %s172, %s174
    %p181 = scmp.eq.s32.totalorder %s24, 1
    %p182 = por %p180, %p181
    %p183 = scmp.ne.s32.totalorder %s174, %s175
    %p184 = scmp.eq.s32.totalorder %s24, 0
    %p185 = por %p183, %p184
    %p186 = scmp.ne.s32.totalorder %s174, %s175
    %p187 = scmp.eq.s32.totalorder %s25, 1
    %p188 = por %p186, %p187
    %p190 = scmp.ne.s32.totalorder %s175, %s189
    %p191 = scmp.eq.s32.totalorder %s25, 0
    %p192 = por %p190, %p191
    %s194 = sadd.s32 %s193, 1
    %p197 = scmp.eq.s32.totalorder %s19, 1
    %p198 = scmp.ne.s32.totalorder %s193, %s195
    %p199 = scmp.eq.s32.totalorder %s19, 0
    %p200 = por %p198, %p199
    %p201 = scmp.ne.s32.totalorder %s193, %s195
    %p202 = scmp.eq.s32.totalorder %s24, 1
    %p203 = por %p201, %p202
    %p204 = scmp.ne.s32.totalorder %s195, %s196
    %p205 = scmp.eq.s32.totalorder %s24, 0
    %p206 = por %p204, %p205
    %p207 = scmp.ne.s32.totalorder %s195, %s196
    %p208 = scmp.eq.s32.totalorder %s25, 1
    %p209 = por %p207, %p208
    %p211 = scmp.ne.s32.totalorder %s196, %s210
    %p212 = scmp.eq.s32.totalorder %s25, 0
    %p213 = por %p211, %p212
    %s215 = sadd.s32 %s214, 1
    %p218 = scmp.eq.s32.totalorder %s19, 1
    %p219 = scmp.ne.s32.totalorder %s214, %s216
    %p220 = scmp.eq.s32.totalorder %s19, 0
    %p221 = por %p219, %p220
    %p222 = scmp.ne.s32.totalorder %s214, %s216
    %p223 = scmp.eq.s32.totalorder %s24, 1
    %p224 = por %p222, %p223
    %p225 = scmp.ne.s32.totalorder %s216, %s217
    %p226 = scmp.eq.s32.totalorder %s24, 0
    %p227 = por %p225, %p226
    %p228 = scmp.ne.s32.totalorder %s216, %s217
    %p229 = scmp.eq.s32.totalorder %s25, 1
    %p230 = por %p228, %p229
    %p232 = scmp.ne.s32.totalorder %s217, %s231
    %p233 = scmp.eq.s32.totalorder %s25, 0
    %p234 = por %p232, %p233
    %s236 = sadd.s32 %s235, 1
    %p239 = scmp.eq.s32.totalorder %s19, 1
    %p240 = scmp.ne.s32.totalorder %s235, %s237
    %p241 = scmp.eq.s32.totalorder %s19, 0
    %p242 = por %p240, %p241
    %p243 = scmp.ne.s32.totalorder %s235, %s237
    %p244 = scmp.eq.s32.totalorder %s24, 1
    %p245 = por %p243, %p244
    %p246 = scmp.ne.s32.totalorder %s237, %s238
    %p247 = scmp.eq.s32.totalorder %s24, 0
    %p248 = por %p246, %p247
    %p249 = scmp.ne.s32.totalorder %s237, %s238
    %p250 = scmp.eq.s32.totalorder %s25, 1
    %p251 = por %p249, %p250
    %p253 = scmp.ne.s32.totalorder %s238, %s252
    %p254 = scmp.eq.s32.totalorder %s25, 0
    %p255 = por %p253, %p254
    %s257 = sadd.s32 %s256, 1
    %p260 = scmp.eq.s32.totalorder %s19, 1
    %p261 = scmp.ne.s32.totalorder %s256, %s258
    %p262 = scmp.eq.s32.totalorder %s19, 0
    %p263 = por %p261, %p262
    %p264 = scmp.ne.s32.totalorder %s256, %s258
    %p265 = scmp.eq.s32.totalorder %s24, 1
    %p266 = por %p264, %p265
    %p267 = scmp.ne.s32.totalorder %s258, %s259
    %p268 = scmp.eq.s32.totalorder %s24, 0
    %p269 = por %p267, %p268
    %p270 = scmp.ne.s32.totalorder %s258, %s259
    %p271 = scmp.eq.s32.totalorder %s25, 1
    %p272 = por %p270, %p271
    %p274 = scmp.ne.s32.totalorder %s259, %s273
    %p275 = scmp.eq.s32.totalorder %s25, 0
    %p276 = por %p274, %p275
    %s278 = sadd.s32 %s277, 1
    %p281 = scmp.eq.s32.totalorder %s19, 1
    %p282 = scmp.ne.s32.totalorder %s277, %s279
    %p283 = scmp.eq.s32.totalorder %s19, 0
    %p284 = por %p282, %p283
    %p285 = scmp.ne.s32.totalorder %s277, %s279
    %p286 = scmp.eq.s32.totalorder %s24, 1
    %p287 = por %p285, %p286
    %p288 = scmp.ne.s32.totalorder %s279, %s280
    %p289 = scmp.eq.s32.totalorder %s24, 0
    %p290 = por %p288, %p289
    %p291 = scmp.ne.s32.totalorder %s279, %s280
    %p292 = scmp.eq.s32.totalorder %s25, 1
    %p293 = por %p291, %p292
    %p295 = scmp.ne.s32.totalorder %s280, %s294
    %p296 = scmp.eq.s32.totalorder %s25, 0
    %p297 = por %p295, %p296
    %s299 = sadd.s32 %s298, 1
    %p302 = scmp.eq.s32.totalorder %s19, 1
    %p303 = scmp.ne.s32.totalorder %s298, %s300
    %p304 = scmp.eq.s32.totalorder %s19, 0
    %p305 = por %p303, %p304
    %p306 = scmp.ne.s32.totalorder %s298, %s300
    %p307 = scmp.eq.s32.totalorder %s24, 1
    %p308 = por %p306, %p307
    %p309 = scmp.ne.s32.totalorder %s300, %s301
    %p310 = scmp.eq.s32.totalorder %s24, 0
    %p311 = por %p309, %p310
    %p312 = scmp.ne.s32.totalorder %s300, %s301
    %p313 = scmp.eq.s32.totalorder %s25, 1
    %p314 = por %p312, %p313
    %p316 = scmp.ne.s32.totalorder %s301, %s315
    %p317 = scmp.eq.s32.totalorder %s25, 0
    %p318 = por %p316, %p317
    %s320 = sadd.s32 %s319, 1
    %p323 = scmp.eq.s32.totalorder %s19, 1
    %p324 = scmp.ne.s32.totalorder %s319, %s321
    %p325 = scmp.eq.s32.totalorder %s19, 0
    %p326 = por %p324, %p325
    %p327 = scmp.ne.s32.totalorder %s319, %s321
    %p328 = scmp.eq.s32.totalorder %s24, 1
    %p329 = por %p327, %p328
    %p330 = scmp.ne.s32.totalorder %s321, %s322
    %p331 = scmp.eq.s32.totalorder %s24, 0
    %p332 = por %p330, %p331
    %p333 = scmp.ne.s32.totalorder %s321, %s322
    %p334 = scmp.eq.s32.totalorder %s25, 1
    %p335 = por %p333, %p334
    %p337 = scmp.ne.s32.totalorder %s322, %s336
    %p338 = scmp.eq.s32.totalorder %s25, 0
    %p339 = por %p337, %p338
    %s340 = ssub.s32 %s26, %s38
    %s341 = ssub.s32 %s27, %s34
    %s342 = sor.u32 %s340, %s341
    %p343 = scmp.eq.s32.totalorder %s342, 0
    %s345 = sadd.s32 %s344, 1
    %s346 = scalar_select %p343, %s344, %s345
    %p349 = pneg %p343
    %p350 = scmp.eq.s32.totalorder %s19, 1
    %p351 = por %p349, %p350
    %p352 = scmp.ne.s32.totalorder %s344, %s347
    %p353 = scmp.eq.s32.totalorder %s19, 0
    %p354 = por %p352, %p353
    %p355 = scmp.ne.s32.totalorder %s344, %s347
    %p356 = scmp.eq.s32.totalorder %s24, 1
    %p357 = por %p355, %p356
    %p358 = scmp.ne.s32.totalorder %s347, %s348
    %p359 = scmp.eq.s32.totalorder %s24, 0
    %p360 = por %p358, %p359
    %p361 = scmp.ne.s32.totalorder %s347, %s348
    %p362 = scmp.eq.s32.totalorder %s25, 1
    %p363 = por %p361, %p362
    %p365 = scmp.ne.s32.totalorder %s348, %s364
    %p366 = scmp.eq.s32.totalorder %s25, 0
    %p367 = por %p365, %p366
    %p368 = scmp.le.s32.totalorder 1, %s19
    %p369 = scmp.lt.s32.totalorder %s19, 3
    %p370 = pnand %p368, %p369
    %p371 = pneg %p370
    // Predicated region
    $region9: #{cluster_attention_forward.1} parent=5 // pred_check
      _
    $region10: #{cluster_attention_forward.1} parent=5 // pred_check_branch
      %373 = sbr.rel (%p370) target = $region12
    $region11: #{cluster_attention_forward.1} parent=5 // pred_region
      %s374 = ssub.s32 %s19, 1
      // Predicated region
      $region13: #{cluster_attention_forward.1} parent=11 // pred_check
        %p375 = pneg %p164
      $region14: #{cluster_attention_forward.1} parent=11 // pred_check_branch
        %377 = sbr.rel (%p375) target = $region16
      $region15: #{cluster_attention_forward.1} parent=11 // pred_region
        _
      $region16: #{cluster_attention_forward.1} parent=11 // pred_fallthru
        _
      // Predicated region
      $region17: #{cluster_attention_forward.1} parent=11 // pred_check
        %p378 = pneg %p185
      $region18: #{cluster_attention_forward.1} parent=11 // pred_check_branch
        %380 = sbr.rel (%p378) target = $region20
      $region19: #{cluster_attention_forward.1} parent=11 // pred_region
        _
      $region20: #{cluster_attention_forward.1} parent=11 // pred_fallthru
        _
      // Predicated region
      $region21: #{cluster_attention_forward.1} parent=11 // pred_check
        %p381 = pneg %p206
      $region22: #{cluster_attention_forward.1} parent=11 // pred_check_branch
        %383 = sbr.rel (%p381) target = $region24
      $region23: #{cluster_attention_forward.1} parent=11 // pred_region
        _
      $region24: #{cluster_attention_forward.1} parent=11 // pred_fallthru
        _
      // Predicated region
      $region25: #{cluster_attention_forward.1} parent=11 // pred_check
        %p384 = pneg %p227
      $region26: #{cluster_attention_forward.1} parent=11 // pred_check_branch
        %386 = sbr.rel (%p384) target = $region28
      $region27: #{cluster_attention_forward.1} parent=11 // pred_region
        _
      $region28: #{cluster_attention_forward.1} parent=11 // pred_fallthru
        _
      // Predicated region
      $region29: #{cluster_attention_forward.1} parent=11 // pred_check
        %p387 = pneg %p248
      $region30: #{cluster_attention_forward.1} parent=11 // pred_check_branch
        %389 = sbr.rel (%p387) target = $region32
      $region31: #{cluster_attention_forward.1} parent=11 // pred_region
        _
      $region32: #{cluster_attention_forward.1} parent=11 // pred_fallthru
        _
      // Predicated region
      $region33: #{cluster_attention_forward.1} parent=11 // pred_check
        %p390 = pneg %p269
      $region34: #{cluster_attention_forward.1} parent=11 // pred_check_branch
        %392 = sbr.rel (%p390) target = $region36
      $region35: #{cluster_attention_forward.1} parent=11 // pred_region
        _
      $region36: #{cluster_attention_forward.1} parent=11 // pred_fallthru
        _
      // Predicated region
      $region37: #{cluster_attention_forward.1} parent=11 // pred_check
        %p393 = pneg %p290
      $region38: #{cluster_attention_forward.1} parent=11 // pred_check_branch
        %395 = sbr.rel (%p393) target = $region40
      $region39: #{cluster_attention_forward.1} parent=11 // pred_region
        _
      $region40: #{cluster_attention_forward.1} parent=11 // pred_fallthru
        _
      // Predicated region
      $region41: #{cluster_attention_forward.1} parent=11 // pred_check
        %p396 = pneg %p311
      $region42: #{cluster_attention_forward.1} parent=11 // pred_check_branch
        %398 = sbr.rel (%p396) target = $region44
      $region43: #{cluster_attention_forward.1} parent=11 // pred_region
        _
      $region44: #{cluster_attention_forward.1} parent=11 // pred_fallthru
        _
      // Predicated region
      $region45: #{cluster_attention_forward.1} parent=11 // pred_check
        %p399 = pneg %p332
      $region46: #{cluster_attention_forward.1} parent=11 // pred_check_branch
        %401 = sbr.rel (%p399) target = $region48
      $region47: #{cluster_attention_forward.1} parent=11 // pred_region
        _
      $region48: #{cluster_attention_forward.1} parent=11 // pred_fallthru
        _
    $region12: #{cluster_attention_forward.1} parent=5 // pred_fallthru
      _
    %p402 = scmp.lt.s32.totalorder %s19, 2
    // Predicated region
    $region49: #{cluster_attention_forward.1} parent=5 // pred_check
      %p403 = pneg %p402
    $region50: #{cluster_attention_forward.1} parent=5 // pred_check_branch
      %405 = sbr.rel (%p403) target = $region52
    $region51: #{cluster_attention_forward.1} parent=5 // pred_region
      // Predicated region
      $region53: #{cluster_attention_forward.1} parent=51 // pred_check
        %p406 = pneg %p53
      $region54: #{cluster_attention_forward.1} parent=51 // pred_check_branch
        %408 = sbr.rel (%p406) target = $region56
      $region55: #{cluster_attention_forward.1} parent=51 // pred_region
        %s409 = smul.u32 8, %s27
        %p410 = scmp.lt.s32.totalorder %s26, 1
        %s411 = scalar_select %p410, %s26, 1
        %p412 = scmp.lt.s32.totalorder %s409, 7
        %s413 = scalar_select %p412, %s409, 7
        %s414 = smul.addr %s411, 8
        %s415 = sadd.s32 %s413, %s414
        %s416 = smul.addr %s415, 4
        %s417 = scalar_lea.vmem %s0, %s416
        %s418 = smul.u32 8, %s27
      $region56: #{cluster_attention_forward.1} parent=51 // pred_fallthru
        _
      // Predicated region
      $region57: #{cluster_attention_forward.1} parent=51 // pred_check
        %p419 = pneg %p81
      $region58: #{cluster_attention_forward.1} parent=51 // pred_check_branch
        %421 = sbr.rel (%p419) target = $region60
      $region59: #{cluster_attention_forward.1} parent=51 // pred_region
        %s422 = smul.u32 64, %s27
        %p423 = scmp.lt.s32.totalorder %s26, 1
        %s424 = scalar_select %p423, %s26, 1
        %p425 = scmp.lt.s32.totalorder %s422, 63
        %s426 = scalar_select %p425, %s422, 63
        %s427 = smul.addr %s424, 64
        %s428 = sadd.s32 %s426, %s427
        %s429 = smul.addr %s428, 4
        %s430 = scalar_lea.vmem %s1, %s429
        %s431 = smul.u32 64, %s27
      $region60: #{cluster_attention_forward.1} parent=51 // pred_fallthru
        _
      // Predicated region
      $region61: #{cluster_attention_forward.1} parent=51 // pred_check
        %p432 = pneg %p109
      $region62: #{cluster_attention_forward.1} parent=51 // pred_check_branch
        %434 = sbr.rel (%p432) target = $region64
      $region63: #{cluster_attention_forward.1} parent=51 // pred_region
        %s435 = smul.u32 64, %s27
        %p436 = scmp.lt.s32.totalorder %s26, 1
        %s437 = scalar_select %p436, %s26, 1
        %p438 = scmp.lt.s32.totalorder %s435, 63
        %s439 = scalar_select %p438, %s435, 63
        %s440 = smul.addr %s437, 64
        %s441 = sadd.s32 %s439, %s440
        %s442 = smul.addr %s441, 4
        %s443 = scalar_lea.vmem %s2, %s442
        %s444 = smul.u32 64, %s27
      $region64: #{cluster_attention_forward.1} parent=51 // pred_fallthru
        _
      // Predicated region
      $region65: #{cluster_attention_forward.1} parent=51 // pred_check
        %p445 = pneg %p137
      $region66: #{cluster_attention_forward.1} parent=51 // pred_check_branch
        %447 = sbr.rel (%p445) target = $region68
      $region67: #{cluster_attention_forward.1} parent=51 // pred_region
        %s448 = smul.u32 8, %s27
        %p449 = scmp.lt.s32.totalorder %s26, 1
        %s450 = scalar_select %p449, %s26, 1
        %p451 = scmp.lt.s32.totalorder %s448, 7
        %s452 = scalar_select %p451, %s448, 7
        %s453 = smul.addr %s450, 8
        %s454 = sadd.s32 %s452, %s453
        %s455 = smul.addr %s454, 8
        %s456 = scalar_lea.vmem %s3, %s455
        %s457 = smul.u32 8, %s27
      $region68: #{cluster_attention_forward.1} parent=51 // pred_fallthru
        _
    $region52: #{cluster_attention_forward.1} parent=5 // pred_fallthru
      _
    %p458 = scmp.le.s32.totalorder 1, %s19
    %p459 = scmp.lt.s32.totalorder %s19, 3
    %p460 = pnand %p458, %p459
    %p461 = pneg %p460
    // Predicated region
    $region69: #{cluster_attention_forward.1} parent=5 // pred_check
      _
    $region70: #{cluster_attention_forward.1} parent=5 // pred_check_branch
      %463 = sbr.rel (%p460) target = $region72
    $region71: #{cluster_attention_forward.1} parent=5 // pred_region
      %s464 = ssub.s32 %s19, 1
      %s465 = smul.u32 8, %s29
      %p466 = scmp.lt.s32.totalorder %s28, 1
      %s467 = scalar_select %p466, %s28, 1
      %p468 = scmp.lt.s32.totalorder %s465, 7
      %s469 = scalar_select %p468, %s465, 7
      %s470 = smul.addr %s467, 8
      %s471 = sadd.s32 %s469, %s470
      %s472 = smul.addr %s471, 4
      %s473 = scalar_lea.vmem %s0, %s472
      %p474 = pneg %p59
      %p475 = pneg %p56
      %s476 = smul.u32 64, %s29
      %p477 = scmp.lt.s32.totalorder %s28, 1
      %s478 = scalar_select %p477, %s28, 1
      %p479 = scmp.lt.s32.totalorder %s476, 63
      %s480 = scalar_select %p479, %s476, 63
      %s481 = smul.addr %s478, 64
      %s482 = sadd.s32 %s480, %s481
      %s483 = smul.addr %s482, 4
      %s484 = scalar_lea.vmem %s1, %s483
      %p485 = pneg %p87
      %p486 = pneg %p84
      %s487 = smul.u32 64, %s29
      %p488 = scmp.lt.s32.totalorder %s28, 1
      %s489 = scalar_select %p488, %s28, 1
      %p490 = scmp.lt.s32.totalorder %s487, 63
      %s491 = scalar_select %p490, %s487, 63
      %s492 = smul.addr %s489, 64
      %s493 = sadd.s32 %s491, %s492
      %s494 = smul.addr %s493, 4
      %s495 = scalar_lea.vmem %s2, %s494
      %p496 = pneg %p115
      %p497 = pneg %p112
      %s498 = smul.u32 8, %s29
      %p499 = scmp.lt.s32.totalorder %s28, 1
      %s500 = scalar_select %p499, %s28, 1
      %p501 = scmp.lt.s32.totalorder %s498, 7
      %s502 = scalar_select %p501, %s498, 7
      %s503 = smul.addr %s500, 8
      %s504 = sadd.s32 %s502, %s503
      %s505 = smul.addr %s504, 8
      %s506 = scalar_lea.vmem %s3, %s505
      %p507 = pneg %p143
      %p508 = pneg %p140
      %p509 = pneg %p164
      %p510 = pneg %p161
      %p511 = pneg %p185
      %p512 = pneg %p182
      %p513 = pneg %p206
      %p514 = pneg %p203
      %p515 = pneg %p227
      %p516 = pneg %p224
      %p517 = pneg %p248
      %p518 = pneg %p245
      %p519 = pneg %p269
      %p520 = pneg %p266
      %p521 = pneg %p290
      %p522 = pneg %p287
      %p523 = pneg %p311
      %p524 = pneg %p308
      %p525 = pneg %p332
      %p526 = pneg %p329
      %p527 = pneg %p360
      %p528 = pneg %p357
      %s529 = smul.u32 8, %s29
      %p530 = scmp.lt.s32.totalorder %s28, 1
      %s531 = scalar_select %p530, %s28, 1
      %p532 = scmp.lt.s32.totalorder %s529, 7
      %s533 = scalar_select %p532, %s529, 7
      %s534 = smul.addr %s531, 8
      %s535 = sadd.s32 %s533, %s534
      %s536 = smul.addr %s535, 8
      %s537 = scalar_lea.vmem %s13, %s536
      %s538 = smul.u32 8, %s29
      %p539 = scmp.lt.s32.totalorder %s28, 1
      %s540 = scalar_select %p539, %s28, 1
      %p541 = scmp.lt.s32.totalorder %s538, 7
      %s542 = scalar_select %p541, %s538, 7
      %s543 = smul.addr %s540, 8
      %s544 = sadd.s32 %s542, %s543
      %s545 = smul.addr %s544, 4
      %s546 = scalar_lea.vmem %s0, %s545
      %s547 = smul.u32 8, %s29
      %s548 = smul.u32 64, %s29
      %p549 = scmp.lt.s32.totalorder %s28, 1
      %s550 = scalar_select %p549, %s28, 1
      %p551 = scmp.lt.s32.totalorder %s548, 63
      %s552 = scalar_select %p551, %s548, 63
      %s553 = smul.addr %s550, 64
      %s554 = sadd.s32 %s552, %s553
      %s555 = smul.addr %s554, 4
      %s556 = scalar_lea.vmem %s1, %s555
      %s557 = smul.u32 64, %s29
      %s558 = smul.u32 64, %s29
      %p559 = scmp.lt.s32.totalorder %s28, 1
      %s560 = scalar_select %p559, %s28, 1
      %p561 = scmp.lt.s32.totalorder %s558, 63
      %s562 = scalar_select %p561, %s558, 63
      %s563 = smul.addr %s560, 64
      %s564 = sadd.s32 %s562, %s563
      %s565 = smul.addr %s564, 4
      %s566 = scalar_lea.vmem %s2, %s565
      %s567 = smul.u32 64, %s29
      %s568 = smul.u32 8, %s29
      %p569 = scmp.lt.s32.totalorder %s28, 1
      %s570 = scalar_select %p569, %s28, 1
      %p571 = scmp.lt.s32.totalorder %s568, 7
      %s572 = scalar_select %p571, %s568, 7
      %s573 = smul.addr %s570, 8
      %s574 = sadd.s32 %s572, %s573
      %s575 = smul.addr %s574, 8
      %s576 = scalar_lea.vmem %s3, %s575
      %s577 = smul.u32 8, %s29
      %s578 = smul.u32 8, %s29
      %p579 = scmp.lt.s32.totalorder %s28, 1
      %s580 = scalar_select %p579, %s28, 1
      %p581 = scmp.lt.s32.totalorder %s578, 7
      %s582 = scalar_select %p581, %s578, 7
      %s583 = smul.addr %s580, 8
      %s584 = sadd.s32 %s582, %s583
      %s585 = smul.addr %s584, 8
      %s586 = scalar_lea.vmem %s13, %s585
      %s587 = smul.u32 8, %s29
      %v589 = vld [vmem:[%s546] sm:$0xf]
      %v590 = vld [vmem:[%s546 + $0x4] sm:$0xf]
      %v591 = vld [vmem:[%s546 + $0x8] sm:$0xf]
      %v592 = vld [vmem:[%s546 + $0xc] sm:$0xf]
      %v593 = vld [vmem:[%s546 + $0x10] sm:$0xf]
      %v594 = vld [vmem:[%s546 + $0x14] sm:$0xf]
      %v595 = vld [vmem:[%s546 + $0x18] sm:$0xf]
      %v596 = vld [vmem:[%s546 + $0x1c] sm:$0xf]
      %v597 = vld [vmem:[%s4] sm:$0xf]
      %v598 = vld [vmem:[%s4 + $0x4] sm:$0xf]
      %v599 = vld [vmem:[%s4 + $0x8] sm:$0xf]
      %v600 = vld [vmem:[%s4 + $0xc] sm:$0xf]
      %v601 = vld [vmem:[%s5] sm:$0x1]
      %v603 = vlaneseq
      %v604 = vshrl.u32 %v603, 7
      %v605 = vsub.s32 0, %v604
      %v606 = vrot.slane %v601, %v605
      %v616 = vunpack.c.l.b16 %v589
      %v617 = vunpack.c.l.b16 %v590
      %v618 = vunpack.c.l.b16 %v591
      %v619 = vunpack.c.l.b16 %v592
      %v620 = vunpack.c.l.b16 %v593
      %v621 = vunpack.c.l.b16 %v594
      %v622 = vunpack.c.l.b16 %v595
      %v623 = vunpack.c.l.b16 %v596
      %v624 = vpack.c.b16 %v617, %v616
      %v625 = vpack.c.b16 %v619, %v618
      %v626 = vpack.c.b16 %v621, %v620
      %v627 = vpack.c.b16 %v623, %v622
      %v632 = vunpack.c.l.b16 %v597
      %v633 = vunpack.c.l.b16 %v598
      %v634 = vunpack.c.l.b16 %v599
      %v635 = vunpack.c.l.b16 %v600
      %v636 = vpack.c.b16 %v633, %v632
      %v637 = vpack.c.b16 %v635, %v634
      %vm640 = vcmask 261120
      %v642 = vsel %vm640, %v624, 0
      %v645 = vsel %vm640, %v625, 0
      %v648 = vsel %vm640, %v626, 0
      %v651 = vsel %vm640, %v627, 0
      %653 = vmatprep.subr.bf16.mxu0 0
      %654 = vmatpush1.bf16.msra.mxu0 0
      %655 = vmatprep.subr.bf16.mxu0 0
      %656 = vmatpush1.bf16.msra.mxu0 0
      %657 = vmatprep.subr.bf16.mxu0 0
      %658 = vmatpush1.bf16.msra.mxu0 0
      %659 = vmatprep.subr.bf16.mxu0 0
      %660 = vmatpush1.bf16.msra.mxu0 0
      %661 = vmatprep.subr.bf16.mxu0 0
      %662 = vmatpush1.bf16.msra.mxu0 0
      %663 = vmatprep.subr.bf16.mxu0 0
      %664 = vmatpush1.bf16.msra.mxu0 0
      %665 = vmatprep.subr.bf16.mxu0 0
      %666 = vmatpush1.bf16.msra.mxu0 %v637
      %667 = vmatprep.subr.bf16.mxu0 0
      %668 = vmatpush1.bf16.msra.mxu0 %v636
      %669 = vmatprep.subr.bf16.mxu0 0
      %670 = vmatpush2.bf16.msra.mxu0 0
      %671 = vmatprep.subr.bf16.mxu0 0
      %672 = vmatpush2.bf16.msra.mxu0 0
      %673 = vmatprep.subr.bf16.mxu0 0
      %674 = vmatpush2.bf16.msra.mxu0 0
      %675 = vmatprep.subr.bf16.mxu0 0
      %676 = vmatpush2.bf16.msra.mxu0 0
      %677 = vmatprep.subr.bf16.mxu0 0
      %678 = vmatpush2.bf16.msra.mxu0 0
      %679 = vmatprep.subr.bf16.mxu0 0
      %680 = vmatpush2.bf16.msra.mxu0 0
      %681 = vmatprep.subr.bf16.mxu0 0
      %682 = vmatpush2.bf16.msra.mxu0 0
      %683 = vmatprep.subr.bf16.mxu0 0
      %684 = vmatpush2.bf16.msra.mxu0 0
      %685 = vmatprep.mubr.bf16.mxu0 0
      %686 = vmatmul.mubr.bf16.gmra.mxu0 %v642
      %v687 = vpop.f32.mrf.mxu0
      %v688 = vadd.f32 %v606, %v687
      %v689 = vpop.f32.mrf.mxu0
      %v690 = vpop.f32.mrf.mxu0
      %v691 = vadd.f32 %v606, %v690
      %v692 = vpop.f32.mrf.mxu0
      %693 = vmatprep.mubr.bf16.mxu0 0
      %694 = vmatmul.mubr.bf16.gmra.mxu0 %v645
      %v695 = vpop.f32.mrf.mxu0
      %v696 = vadd.f32 %v606, %v695
      %v697 = vpop.f32.mrf.mxu0
      %v698 = vpop.f32.mrf.mxu0
      %v699 = vadd.f32 %v606, %v698
      %v700 = vpop.f32.mrf.mxu0
      %701 = vmatprep.mubr.bf16.mxu0 0
      %702 = vmatmul.mubr.bf16.gmra.mxu0 %v648
      %v703 = vpop.f32.mrf.mxu0
      %v704 = vadd.f32 %v606, %v703
      %v705 = vpop.f32.mrf.mxu0
      %v706 = vpop.f32.mrf.mxu0
      %v707 = vadd.f32 %v606, %v706
      %v708 = vpop.f32.mrf.mxu0
      %709 = vmatprep.mubr.bf16.mxu0 0
      %710 = vmatmul.mubr.bf16.gmra.mxu0 %v651
      %v711 = vpop.f32.mrf.mxu0
      %v712 = vadd.f32 %v606, %v711
      %v713 = vpop.f32.mrf.mxu0
      %v714 = vpop.f32.mrf.mxu0
      %v715 = vadd.f32 %v606, %v714
      %v716 = vpop.f32.mrf.mxu0
      %717 = vdwg.mxu0
      %v718 = vmul.f32 %v688, 0.35355338
      %v719 = vmul.f32 %v691, 0.35355338
      %v720 = vmul.f32 %v696, 0.35355338
      %v721 = vmul.f32 %v699, 0.35355338
      %v722 = vmul.f32 %v704, 0.35355338
      %v723 = vmul.f32 %v707, 0.35355338
      %v724 = vmul.f32 %v712, 0.35355338
      %v725 = vmul.f32 %v715, 0.35355338
      %v726 = vpack.c.bf16 %v719, %v718
      %v727 = vpack.c.bf16 %v721, %v720
      %v728 = vpack.c.bf16 %v723, %v722
      %v729 = vpack.c.bf16 %v725, %v724
      %v730 = vlaneseq
      %v731 = vand.u32 %v730, 127
      %v732 = vadd.s32 %v731, 128
      %v733 = vld [vmem:[%s576] sm:$0xff]
      %v734 = vld [vmem:[%s576 + $0x8] sm:$0xff]
      %v735 = vld [vmem:[%s576 + $0x10] sm:$0xff]
      %v736 = vld [vmem:[%s576 + $0x18] sm:$0xff]
      %v737 = vld [vmem:[%s576 + $0x20] sm:$0xff]
      %v738 = vld [vmem:[%s576 + $0x28] sm:$0xff]
      %v739 = vld [vmem:[%s576 + $0x30] sm:$0xff]
      %v740 = vld [vmem:[%s576 + $0x38] sm:$0xff]
      %v741 = vlaneseq
      %v742 = vshrl.u32 %v741, 7
      %v743 = vsub.s32 0, %v742
      %v744 = vrot.slane %v733, %v743
      %746 = vbcast.lane.b32.xlu0 %v744, 256
      %v747 = vpop.permute.xlu0 %746
      %v748 = vlaneseq
      %v749 = vshrl.u32 %v748, 7
      %v750 = vsub.s32 1, %v749
      %v751 = vrot.slane %v733, %v750
      %753 = vbcast.lane.b32.xlu0 %v751, 256
      %v754 = vpop.permute.xlu0 %753
      %v755 = vlaneseq
      %v756 = vshrl.u32 %v755, 7
      %v757 = vsub.s32 2, %v756
      %v758 = vrot.slane %v733, %v757
      %760 = vbcast.lane.b32.xlu0 %v758, 256
      %v761 = vpop.permute.xlu0 %760
      %v762 = vlaneseq
      %v763 = vshrl.u32 %v762, 7
      %v764 = vsub.s32 3, %v763
      %v765 = vrot.slane %v733, %v764
      %767 = vbcast.lane.b32.xlu0 %v765, 256
      %v768 = vpop.permute.xlu0 %767
      %v769 = vlaneseq
      %v770 = vshrl.u32 %v769, 7
      %v771 = vsub.s32 4, %v770
      %v772 = vrot.slane %v733, %v771
      %774 = vbcast.lane.b32.xlu0 %v772, 256
      %v775 = vpop.permute.xlu0 %774
      %v776 = vlaneseq
      %v777 = vshrl.u32 %v776, 7
      %v778 = vsub.s32 5, %v777
      %v779 = vrot.slane %v733, %v778
      %781 = vbcast.lane.b32.xlu0 %v779, 256
      %v782 = vpop.permute.xlu0 %781
      %v783 = vlaneseq
      %v784 = vshrl.u32 %v783, 7
      %v785 = vsub.s32 6, %v784
      %v786 = vrot.slane %v733, %v785
      %788 = vbcast.lane.b32.xlu0 %v786, 256
      %v789 = vpop.permute.xlu0 %788
      %v790 = vlaneseq
      %v791 = vshrl.u32 %v790, 7
      %v792 = vsub.s32 7, %v791
      %v793 = vrot.slane %v733, %v792
      %795 = vbcast.lane.b32.xlu0 %v793, 256
      %v796 = vpop.permute.xlu0 %795
      %v797 = vlaneseq
      %v798 = vshrl.u32 %v797, 7
      %v799 = vsub.s32 0, %v798
      %v800 = vrot.slane %v734, %v799
      %802 = vbcast.lane.b32.xlu0 %v800, 256
      %v803 = vpop.permute.xlu0 %802
      %v804 = vlaneseq
      %v805 = vshrl.u32 %v804, 7
      %v806 = vsub.s32 1, %v805
      %v807 = vrot.slane %v734, %v806
      %809 = vbcast.lane.b32.xlu0 %v807, 256
      %v810 = vpop.permute.xlu0 %809
      %v811 = vlaneseq
      %v812 = vshrl.u32 %v811, 7
      %v813 = vsub.s32 2, %v812
      %v814 = vrot.slane %v734, %v813
      %816 = vbcast.lane.b32.xlu0 %v814, 256
      %v817 = vpop.permute.xlu0 %816
      %v818 = vlaneseq
      %v819 = vshrl.u32 %v818, 7
      %v820 = vsub.s32 3, %v819
      %v821 = vrot.slane %v734, %v820
      %823 = vbcast.lane.b32.xlu0 %v821, 256
      %v824 = vpop.permute.xlu0 %823
      %v825 = vlaneseq
      %v826 = vshrl.u32 %v825, 7
      %v827 = vsub.s32 4, %v826
      %v828 = vrot.slane %v734, %v827
      %830 = vbcast.lane.b32.xlu0 %v828, 256
      %v831 = vpop.permute.xlu0 %830
      %v832 = vlaneseq
      %v833 = vshrl.u32 %v832, 7
      %v834 = vsub.s32 5, %v833
      %v835 = vrot.slane %v734, %v834
      %837 = vbcast.lane.b32.xlu0 %v835, 256
      %v838 = vpop.permute.xlu0 %837
      %v839 = vlaneseq
      %v840 = vshrl.u32 %v839, 7
      %v841 = vsub.s32 6, %v840
      %v842 = vrot.slane %v734, %v841
      %844 = vbcast.lane.b32.xlu0 %v842, 256
      %v845 = vpop.permute.xlu0 %844
      %v846 = vlaneseq
      %v847 = vshrl.u32 %v846, 7
      %v848 = vsub.s32 7, %v847
      %v849 = vrot.slane %v734, %v848
      %851 = vbcast.lane.b32.xlu0 %v849, 256
      %v852 = vpop.permute.xlu0 %851
      %v853 = vlaneseq
      %v854 = vshrl.u32 %v853, 7
      %v855 = vsub.s32 0, %v854
      %v856 = vrot.slane %v735, %v855
      %858 = vbcast.lane.b32.xlu0 %v856, 256
      %v859 = vpop.permute.xlu0 %858
      %v860 = vlaneseq
      %v861 = vshrl.u32 %v860, 7
      %v862 = vsub.s32 1, %v861
      %v863 = vrot.slane %v735, %v862
      %865 = vbcast.lane.b32.xlu0 %v863, 256
      %v866 = vpop.permute.xlu0 %865
      %v867 = vlaneseq
      %v868 = vshrl.u32 %v867, 7
      %v869 = vsub.s32 2, %v868
      %v870 = vrot.slane %v735, %v869
      %872 = vbcast.lane.b32.xlu0 %v870, 256
      %v873 = vpop.permute.xlu0 %872
      %v874 = vlaneseq
      %v875 = vshrl.u32 %v874, 7
      %v876 = vsub.s32 3, %v875
      %v877 = vrot.slane %v735, %v876
      %879 = vbcast.lane.b32.xlu0 %v877, 256
      %v880 = vpop.permute.xlu0 %879
      %v881 = vlaneseq
      %v882 = vshrl.u32 %v881, 7
      %v883 = vsub.s32 4, %v882
      %v884 = vrot.slane %v735, %v883
      %886 = vbcast.lane.b32.xlu0 %v884, 256
      %v887 = vpop.permute.xlu0 %886
      %v888 = vlaneseq
      %v889 = vshrl.u32 %v888, 7
      %v890 = vsub.s32 5, %v889
      %v891 = vrot.slane %v735, %v890
      %893 = vbcast.lane.b32.xlu0 %v891, 256
      %v894 = vpop.permute.xlu0 %893
      %v895 = vlaneseq
      %v896 = vshrl.u32 %v895, 7
      %v897 = vsub.s32 6, %v896
      %v898 = vrot.slane %v735, %v897
      %900 = vbcast.lane.b32.xlu0 %v898, 256
      %v901 = vpop.permute.xlu0 %900
      %v902 = vlaneseq
      %v903 = vshrl.u32 %v902, 7
      %v904 = vsub.s32 7, %v903
      %v905 = vrot.slane %v735, %v904
      %907 = vbcast.lane.b32.xlu0 %v905, 256
      %v908 = vpop.permute.xlu0 %907
      %v909 = vlaneseq
      %v910 = vshrl.u32 %v909, 7
      %v911 = vsub.s32 0, %v910
      %v912 = vrot.slane %v736, %v911
      %914 = vbcast.lane.b32.xlu0 %v912, 256
      %v915 = vpop.permute.xlu0 %914
      %v916 = vlaneseq
      %v917 = vshrl.u32 %v916, 7
      %v918 = vsub.s32 1, %v917
      %v919 = vrot.slane %v736, %v918
      %921 = vbcast.lane.b32.xlu0 %v919, 256
      %v922 = vpop.permute.xlu0 %921
      %v923 = vlaneseq
      %v924 = vshrl.u32 %v923, 7
      %v925 = vsub.s32 2, %v924
      %v926 = vrot.slane %v736, %v925
      %928 = vbcast.lane.b32.xlu0 %v926, 256
      %v929 = vpop.permute.xlu0 %928
      %v930 = vlaneseq
      %v931 = vshrl.u32 %v930, 7
      %v932 = vsub.s32 3, %v931
      %v933 = vrot.slane %v736, %v932
      %935 = vbcast.lane.b32.xlu0 %v933, 256
      %v936 = vpop.permute.xlu0 %935
      %v937 = vlaneseq
      %v938 = vshrl.u32 %v937, 7
      %v939 = vsub.s32 4, %v938
      %v940 = vrot.slane %v736, %v939
      %942 = vbcast.lane.b32.xlu0 %v940, 256
      %v943 = vpop.permute.xlu0 %942
      %v944 = vlaneseq
      %v945 = vshrl.u32 %v944, 7
      %v946 = vsub.s32 5, %v945
      %v947 = vrot.slane %v736, %v946
      %949 = vbcast.lane.b32.xlu0 %v947, 256
      %v950 = vpop.permute.xlu0 %949
      %v951 = vlaneseq
      %v952 = vshrl.u32 %v951, 7
      %v953 = vsub.s32 6, %v952
      %v954 = vrot.slane %v736, %v953
      %956 = vbcast.lane.b32.xlu0 %v954, 256
      %v957 = vpop.permute.xlu0 %956
      %v958 = vlaneseq
      %v959 = vshrl.u32 %v958, 7
      %v960 = vsub.s32 7, %v959
      %v961 = vrot.slane %v736, %v960
      %963 = vbcast.lane.b32.xlu0 %v961, 256
      %v964 = vpop.permute.xlu0 %963
      %v965 = vlaneseq
      %v966 = vshrl.u32 %v965, 7
      %v967 = vsub.s32 0, %v966
      %v968 = vrot.slane %v737, %v967
      %970 = vbcast.lane.b32.xlu0 %v968, 256
      %v971 = vpop.permute.xlu0 %970
      %v972 = vlaneseq
      %v973 = vshrl.u32 %v972, 7
      %v974 = vsub.s32 1, %v973
      %v975 = vrot.slane %v737, %v974
      %977 = vbcast.lane.b32.xlu0 %v975, 256
      %v978 = vpop.permute.xlu0 %977
      %v979 = vlaneseq
      %v980 = vshrl.u32 %v979, 7
      %v981 = vsub.s32 2, %v980
      %v982 = vrot.slane %v737, %v981
      %984 = vbcast.lane.b32.xlu0 %v982, 256
      %v985 = vpop.permute.xlu0 %984
      %v986 = vlaneseq
      %v987 = vshrl.u32 %v986, 7
      %v988 = vsub.s32 3, %v987
      %v989 = vrot.slane %v737, %v988
      %991 = vbcast.lane.b32.xlu0 %v989, 256
      %v992 = vpop.permute.xlu0 %991
      %v993 = vlaneseq
      %v994 = vshrl.u32 %v993, 7
      %v995 = vsub.s32 4, %v994
      %v996 = vrot.slane %v737, %v995
      %998 = vbcast.lane.b32.xlu0 %v996, 256
      %v999 = vpop.permute.xlu0 %998
      %v1000 = vlaneseq
      %v1001 = vshrl.u32 %v1000, 7
      %v1002 = vsub.s32 5, %v1001
      %v1003 = vrot.slane %v737, %v1002
      %1005 = vbcast.lane.b32.xlu0 %v1003, 256
      %v1006 = vpop.permute.xlu0 %1005
      %v1007 = vlaneseq
      %v1008 = vshrl.u32 %v1007, 7
      %v1009 = vsub.s32 6, %v1008
      %v1010 = vrot.slane %v737, %v1009
      %1012 = vbcast.lane.b32.xlu0 %v1010, 256
      %v1013 = vpop.permute.xlu0 %1012
      %v1014 = vlaneseq
      %v1015 = vshrl.u32 %v1014, 7
      %v1016 = vsub.s32 7, %v1015
      %v1017 = vrot.slane %v737, %v1016
      %1019 = vbcast.lane.b32.xlu0 %v1017, 256
      %v1020 = vpop.permute.xlu0 %1019
      %v1021 = vlaneseq
      %v1022 = vshrl.u32 %v1021, 7
      %v1023 = vsub.s32 0, %v1022
      %v1024 = vrot.slane %v738, %v1023
      %1026 = vbcast.lane.b32.xlu0 %v1024, 256
      %v1027 = vpop.permute.xlu0 %1026
      %v1028 = vlaneseq
      %v1029 = vshrl.u32 %v1028, 7
      %v1030 = vsub.s32 1, %v1029
      %v1031 = vrot.slane %v738, %v1030
      %1033 = vbcast.lane.b32.xlu0 %v1031, 256
      %v1034 = vpop.permute.xlu0 %1033
      %v1035 = vlaneseq
      %v1036 = vshrl.u32 %v1035, 7
      %v1037 = vsub.s32 2, %v1036
      %v1038 = vrot.slane %v738, %v1037
      %1040 = vbcast.lane.b32.xlu0 %v1038, 256
      %v1041 = vpop.permute.xlu0 %1040
      %v1042 = vlaneseq
      %v1043 = vshrl.u32 %v1042, 7
      %v1044 = vsub.s32 3, %v1043
      %v1045 = vrot.slane %v738, %v1044
      %1047 = vbcast.lane.b32.xlu0 %v1045, 256
      %v1048 = vpop.permute.xlu0 %1047
      %v1049 = vlaneseq
      %v1050 = vshrl.u32 %v1049, 7
      %v1051 = vsub.s32 4, %v1050
      %v1052 = vrot.slane %v738, %v1051
      %1054 = vbcast.lane.b32.xlu0 %v1052, 256
      %v1055 = vpop.permute.xlu0 %1054
      %v1056 = vlaneseq
      %v1057 = vshrl.u32 %v1056, 7
      %v1058 = vsub.s32 5, %v1057
      %v1059 = vrot.slane %v738, %v1058
      %1061 = vbcast.lane.b32.xlu0 %v1059, 256
      %v1062 = vpop.permute.xlu0 %1061
      %v1063 = vlaneseq
      %v1064 = vshrl.u32 %v1063, 7
      %v1065 = vsub.s32 6, %v1064
      %v1066 = vrot.slane %v738, %v1065
      %1068 = vbcast.lane.b32.xlu0 %v1066, 256
      %v1069 = vpop.permute.xlu0 %1068
      %v1070 = vlaneseq
      %v1071 = vshrl.u32 %v1070, 7
      %v1072 = vsub.s32 7, %v1071
      %v1073 = vrot.slane %v738, %v1072
      %1075 = vbcast.lane.b32.xlu0 %v1073, 256
      %v1076 = vpop.permute.xlu0 %1075
      %v1077 = vlaneseq
      %v1078 = vshrl.u32 %v1077, 7
      %v1079 = vsub.s32 0, %v1078
      %v1080 = vrot.slane %v739, %v1079
      %1082 = vbcast.lane.b32.xlu0 %v1080, 256
      %v1083 = vpop.permute.xlu0 %1082
      %v1084 = vlaneseq
      %v1085 = vshrl.u32 %v1084, 7
      %v1086 = vsub.s32 1, %v1085
      %v1087 = vrot.slane %v739, %v1086
      %1089 = vbcast.lane.b32.xlu0 %v1087, 256
      %v1090 = vpop.permute.xlu0 %1089
      %v1091 = vlaneseq
      %v1092 = vshrl.u32 %v1091, 7
      %v1093 = vsub.s32 2, %v1092
      %v1094 = vrot.slane %v739, %v1093
      %1096 = vbcast.lane.b32.xlu0 %v1094, 256
      %v1097 = vpop.permute.xlu0 %1096
      %v1098 = vlaneseq
      %v1099 = vshrl.u32 %v1098, 7
      %v1100 = vsub.s32 3, %v1099
      %v1101 = vrot.slane %v739, %v1100
      %1103 = vbcast.lane.b32.xlu0 %v1101, 256
      %v1104 = vpop.permute.xlu0 %1103
      %v1105 = vlaneseq
      %v1106 = vshrl.u32 %v1105, 7
      %v1107 = vsub.s32 4, %v1106
      %v1108 = vrot.slane %v739, %v1107
      %1110 = vbcast.lane.b32.xlu0 %v1108, 256
      %v1111 = vpop.permute.xlu0 %1110
      %v1112 = vlaneseq
      %v1113 = vshrl.u32 %v1112, 7
      %v1114 = vsub.s32 5, %v1113
      %v1115 = vrot.slane %v739, %v1114
      %1117 = vbcast.lane.b32.xlu0 %v1115, 256
      %v1118 = vpop.permute.xlu0 %1117
      %v1119 = vlaneseq
      %v1120 = vshrl.u32 %v1119, 7
      %v1121 = vsub.s32 6, %v1120
      %v1122 = vrot.slane %v739, %v1121
      %1124 = vbcast.lane.b32.xlu0 %v1122, 256
      %v1125 = vpop.permute.xlu0 %1124
      %v1126 = vlaneseq
      %v1127 = vshrl.u32 %v1126, 7
      %v1128 = vsub.s32 7, %v1127
      %v1129 = vrot.slane %v739, %v1128
      %1131 = vbcast.lane.b32.xlu0 %v1129, 256
      %v1132 = vpop.permute.xlu0 %1131
      %v1133 = vlaneseq
      %v1134 = vshrl.u32 %v1133, 7
      %v1135 = vsub.s32 0, %v1134
      %v1136 = vrot.slane %v740, %v1135
      %1138 = vbcast.lane.b32.xlu0 %v1136, 256
      %v1139 = vpop.permute.xlu0 %1138
      %v1140 = vlaneseq
      %v1141 = vshrl.u32 %v1140, 7
      %v1142 = vsub.s32 1, %v1141
      %v1143 = vrot.slane %v740, %v1142
      %1145 = vbcast.lane.b32.xlu0 %v1143, 256
      %v1146 = vpop.permute.xlu0 %1145
      %v1147 = vlaneseq
      %v1148 = vshrl.u32 %v1147, 7
      %v1149 = vsub.s32 2, %v1148
      %v1150 = vrot.slane %v740, %v1149
      %1152 = vbcast.lane.b32.xlu0 %v1150, 256
      %v1153 = vpop.permute.xlu0 %1152
      %v1154 = vlaneseq
      %v1155 = vshrl.u32 %v1154, 7
      %v1156 = vsub.s32 3, %v1155
      %v1157 = vrot.slane %v740, %v1156
      %1159 = vbcast.lane.b32.xlu0 %v1157, 256
      %v1160 = vpop.permute.xlu0 %1159
      %v1161 = vlaneseq
      %v1162 = vshrl.u32 %v1161, 7
      %v1163 = vsub.s32 4, %v1162
      %v1164 = vrot.slane %v740, %v1163
      %1166 = vbcast.lane.b32.xlu0 %v1164, 256
      %v1167 = vpop.permute.xlu0 %1166
      %v1168 = vlaneseq
      %v1169 = vshrl.u32 %v1168, 7
      %v1170 = vsub.s32 5, %v1169
      %v1171 = vrot.slane %v740, %v1170
      %1173 = vbcast.lane.b32.xlu0 %v1171, 256
      %v1174 = vpop.permute.xlu0 %1173
      %v1175 = vlaneseq
      %v1176 = vshrl.u32 %v1175, 7
      %v1177 = vsub.s32 6, %v1176
      %v1178 = vrot.slane %v740, %v1177
      %1180 = vbcast.lane.b32.xlu0 %v1178, 256
      %v1181 = vpop.permute.xlu0 %1180
      %v1182 = vlaneseq
      %v1183 = vshrl.u32 %v1182, 7
      %v1184 = vsub.s32 7, %v1183
      %v1185 = vrot.slane %v740, %v1184
      %1187 = vbcast.lane.b32.xlu0 %v1185, 256
      %v1188 = vpop.permute.xlu0 %1187
      %vm1189 = vcmp.eq.s32.totalorder %v747, %v731
      %vm1190 = vcmp.eq.s32.totalorder %v747, %v732
      %vm1191 = vcmp.eq.s32.totalorder %v754, %v731
      %vm1192 = vcmp.eq.s32.totalorder %v754, %v732
      %vm1193 = vcmp.eq.s32.totalorder %v761, %v731
      %vm1194 = vcmp.eq.s32.totalorder %v761, %v732
      %vm1195 = vcmp.eq.s32.totalorder %v768, %v731
      %vm1196 = vcmp.eq.s32.totalorder %v768, %v732
      %vm1197 = vcmp.eq.s32.totalorder %v775, %v731
      %vm1198 = vcmp.eq.s32.totalorder %v775, %v732
      %vm1199 = vcmp.eq.s32.totalorder %v782, %v731
      %vm1200 = vcmp.eq.s32.totalorder %v782, %v732
      %vm1201 = vcmp.eq.s32.totalorder %v789, %v731
      %vm1202 = vcmp.eq.s32.totalorder %v789, %v732
      %vm1203 = vcmp.eq.s32.totalorder %v796, %v731
      %vm1204 = vcmp.eq.s32.totalorder %v796, %v732
      %vm1205 = vcmp.eq.s32.totalorder %v803, %v731
      %vm1206 = vcmp.eq.s32.totalorder %v803, %v732
      %vm1207 = vcmp.eq.s32.totalorder %v810, %v731
      %vm1208 = vcmp.eq.s32.totalorder %v810, %v732
      %vm1209 = vcmp.eq.s32.totalorder %v817, %v731
      %vm1210 = vcmp.eq.s32.totalorder %v817, %v732
      %vm1211 = vcmp.eq.s32.totalorder %v824, %v731
      %vm1212 = vcmp.eq.s32.totalorder %v824, %v732
      %vm1213 = vcmp.eq.s32.totalorder %v831, %v731
      %vm1214 = vcmp.eq.s32.totalorder %v831, %v732
      %vm1215 = vcmp.eq.s32.totalorder %v838, %v731
      %vm1216 = vcmp.eq.s32.totalorder %v838, %v732
      %vm1217 = vcmp.eq.s32.totalorder %v845, %v731
      %vm1218 = vcmp.eq.s32.totalorder %v845, %v732
      %vm1219 = vcmp.eq.s32.totalorder %v852, %v731
      %vm1220 = vcmp.eq.s32.totalorder %v852, %v732
      %vm1221 = vcmp.eq.s32.totalorder %v859, %v731
      %vm1222 = vcmp.eq.s32.totalorder %v859, %v732
      %vm1223 = vcmp.eq.s32.totalorder %v866, %v731
      %vm1224 = vcmp.eq.s32.totalorder %v866, %v732
      %vm1225 = vcmp.eq.s32.totalorder %v873, %v731
      %vm1226 = vcmp.eq.s32.totalorder %v873, %v732
      %vm1227 = vcmp.eq.s32.totalorder %v880, %v731
      %vm1228 = vcmp.eq.s32.totalorder %v880, %v732
      %vm1229 = vcmp.eq.s32.totalorder %v887, %v731
      %vm1230 = vcmp.eq.s32.totalorder %v887, %v732
      %vm1231 = vcmp.eq.s32.totalorder %v894, %v731
      %vm1232 = vcmp.eq.s32.totalorder %v894, %v732
      %vm1233 = vcmp.eq.s32.totalorder %v901, %v731
      %vm1234 = vcmp.eq.s32.totalorder %v901, %v732
      %vm1235 = vcmp.eq.s32.totalorder %v908, %v731
      %vm1236 = vcmp.eq.s32.totalorder %v908, %v732
      %vm1237 = vcmp.eq.s32.totalorder %v915, %v731
      %vm1238 = vcmp.eq.s32.totalorder %v915, %v732
      %vm1239 = vcmp.eq.s32.totalorder %v922, %v731
      %vm1240 = vcmp.eq.s32.totalorder %v922, %v732
      %vm1241 = vcmp.eq.s32.totalorder %v929, %v731
      %vm1242 = vcmp.eq.s32.totalorder %v929, %v732
      %vm1243 = vcmp.eq.s32.totalorder %v936, %v731
      %vm1244 = vcmp.eq.s32.totalorder %v936, %v732
      %vm1245 = vcmp.eq.s32.totalorder %v943, %v731
      %vm1246 = vcmp.eq.s32.totalorder %v943, %v732
      %vm1247 = vcmp.eq.s32.totalorder %v950, %v731
      %vm1248 = vcmp.eq.s32.totalorder %v950, %v732
      %vm1249 = vcmp.eq.s32.totalorder %v957, %v731
      %vm1250 = vcmp.eq.s32.totalorder %v957, %v732
      %vm1251 = vcmp.eq.s32.totalorder %v964, %v731
      %vm1252 = vcmp.eq.s32.totalorder %v964, %v732
      %vm1253 = vcmp.eq.s32.totalorder %v971, %v731
      %vm1254 = vcmp.eq.s32.totalorder %v971, %v732
      %vm1255 = vcmp.eq.s32.totalorder %v978, %v731
      %vm1256 = vcmp.eq.s32.totalorder %v978, %v732
      %vm1257 = vcmp.eq.s32.totalorder %v985, %v731
      %vm1258 = vcmp.eq.s32.totalorder %v985, %v732
      %vm1259 = vcmp.eq.s32.totalorder %v992, %v731
      %vm1260 = vcmp.eq.s32.totalorder %v992, %v732
      %vm1261 = vcmp.eq.s32.totalorder %v999, %v731
      %vm1262 = vcmp.eq.s32.totalorder %v999, %v732
      %vm1263 = vcmp.eq.s32.totalorder %v1006, %v731
      %vm1264 = vcmp.eq.s32.totalorder %v1006, %v732
      %vm1265 = vcmp.eq.s32.totalorder %v1013, %v731
      %vm1266 = vcmp.eq.s32.totalorder %v1013, %v732
      %vm1267 = vcmp.eq.s32.totalorder %v1020, %v731
      %vm1268 = vcmp.eq.s32.totalorder %v1020, %v732
      %vm1269 = vcmp.eq.s32.totalorder %v1027, %v731
      %vm1270 = vcmp.eq.s32.totalorder %v1027, %v732
      %vm1271 = vcmp.eq.s32.totalorder %v1034, %v731
      %vm1272 = vcmp.eq.s32.totalorder %v1034, %v732
      %vm1273 = vcmp.eq.s32.totalorder %v1041, %v731
      %vm1274 = vcmp.eq.s32.totalorder %v1041, %v732
      %vm1275 = vcmp.eq.s32.totalorder %v1048, %v731
      %vm1276 = vcmp.eq.s32.totalorder %v1048, %v732
      %vm1277 = vcmp.eq.s32.totalorder %v1055, %v731
      %vm1278 = vcmp.eq.s32.totalorder %v1055, %v732
      %vm1279 = vcmp.eq.s32.totalorder %v1062, %v731
      %vm1280 = vcmp.eq.s32.totalorder %v1062, %v732
      %vm1281 = vcmp.eq.s32.totalorder %v1069, %v731
      %vm1282 = vcmp.eq.s32.totalorder %v1069, %v732
      %vm1283 = vcmp.eq.s32.totalorder %v1076, %v731
      %vm1284 = vcmp.eq.s32.totalorder %v1076, %v732
      %vm1285 = vcmp.eq.s32.totalorder %v1083, %v731
      %vm1286 = vcmp.eq.s32.totalorder %v1083, %v732
      %vm1287 = vcmp.eq.s32.totalorder %v1090, %v731
      %vm1288 = vcmp.eq.s32.totalorder %v1090, %v732
      %vm1289 = vcmp.eq.s32.totalorder %v1097, %v731
      %vm1290 = vcmp.eq.s32.totalorder %v1097, %v732
      %vm1291 = vcmp.eq.s32.totalorder %v1104, %v731
      %vm1292 = vcmp.eq.s32.totalorder %v1104, %v732
      %vm1293 = vcmp.eq.s32.totalorder %v1111, %v731
      %vm1294 = vcmp.eq.s32.totalorder %v1111, %v732
      %vm1295 = vcmp.eq.s32.totalorder %v1118, %v731
      %vm1296 = vcmp.eq.s32.totalorder %v1118, %v732
      %vm1297 = vcmp.eq.s32.totalorder %v1125, %v731
      %vm1298 = vcmp.eq.s32.totalorder %v1125, %v732
      %vm1299 = vcmp.eq.s32.totalorder %v1132, %v731
      %vm1300 = vcmp.eq.s32.totalorder %v1132, %v732
      %vm1301 = vcmp.eq.s32.totalorder %v1139, %v731
      %vm1302 = vcmp.eq.s32.totalorder %v1139, %v732
      %vm1303 = vcmp.eq.s32.totalorder %v1146, %v731
      %vm1304 = vcmp.eq.s32.totalorder %v1146, %v732
      %vm1305 = vcmp.eq.s32.totalorder %v1153, %v731
      %vm1306 = vcmp.eq.s32.totalorder %v1153, %v732
      %vm1307 = vcmp.eq.s32.totalorder %v1160, %v731
      %vm1308 = vcmp.eq.s32.totalorder %v1160, %v732
      %vm1309 = vcmp.eq.s32.totalorder %v1167, %v731
      %vm1310 = vcmp.eq.s32.totalorder %v1167, %v732
      %vm1311 = vcmp.eq.s32.totalorder %v1174, %v731
      %vm1312 = vcmp.eq.s32.totalorder %v1174, %v732
      %vm1313 = vcmp.eq.s32.totalorder %v1181, %v731
      %vm1314 = vcmp.eq.s32.totalorder %v1181, %v732
      %vm1315 = vcmp.eq.s32.totalorder %v1188, %v731
      %vm1316 = vcmp.eq.s32.totalorder %v1188, %v732
      %v1317 = vsel %vm1189, 1.0, 0.0
      %v1318 = vsel %vm1190, 1.0, 0.0
      %v1319 = vsel %vm1191, 1.0, 0.0
      %v1320 = vsel %vm1192, 1.0, 0.0
      %v1321 = vsel %vm1193, 1.0, 0.0
      %v1322 = vsel %vm1194, 1.0, 0.0
      %v1323 = vsel %vm1195, 1.0, 0.0
      %v1324 = vsel %vm1196, 1.0, 0.0
      %v1325 = vsel %vm1197, 1.0, 0.0
      %v1326 = vsel %vm1198, 1.0, 0.0
      %v1327 = vsel %vm1199, 1.0, 0.0
      %v1328 = vsel %vm1200, 1.0, 0.0
      %v1329 = vsel %vm1201, 1.0, 0.0
      %v1330 = vsel %vm1202, 1.0, 0.0
      %v1331 = vsel %vm1203, 1.0, 0.0
      %v1332 = vsel %vm1204, 1.0, 0.0
      %v1333 = vsel %vm1205, 1.0, 0.0
      %v1334 = vsel %vm1206, 1.0, 0.0
      %v1335 = vsel %vm1207, 1.0, 0.0
      %v1336 = vsel %vm1208, 1.0, 0.0
      %v1337 = vsel %vm1209, 1.0, 0.0
      %v1338 = vsel %vm1210, 1.0, 0.0
      %v1339 = vsel %vm1211, 1.0, 0.0
      %v1340 = vsel %vm1212, 1.0, 0.0
      %v1341 = vsel %vm1213, 1.0, 0.0
      %v1342 = vsel %vm1214, 1.0, 0.0
      %v1343 = vsel %vm1215, 1.0, 0.0
      %v1344 = vsel %vm1216, 1.0, 0.0
      %v1345 = vsel %vm1217, 1.0, 0.0
      %v1346 = vsel %vm1218, 1.0, 0.0
      %v1347 = vsel %vm1219, 1.0, 0.0
      %v1348 = vsel %vm1220, 1.0, 0.0
      %v1349 = vsel %vm1221, 1.0, 0.0
      %v1350 = vsel %vm1222, 1.0, 0.0
      %v1351 = vsel %vm1223, 1.0, 0.0
      %v1352 = vsel %vm1224, 1.0, 0.0
      %v1353 = vsel %vm1225, 1.0, 0.0
      %v1354 = vsel %vm1226, 1.0, 0.0
      %v1355 = vsel %vm1227, 1.0, 0.0
      %v1356 = vsel %vm1228, 1.0, 0.0
      %v1357 = vsel %vm1229, 1.0, 0.0
      %v1358 = vsel %vm1230, 1.0, 0.0
      %v1359 = vsel %vm1231, 1.0, 0.0
      %v1360 = vsel %vm1232, 1.0, 0.0
      %v1361 = vsel %vm1233, 1.0, 0.0
      %v1362 = vsel %vm1234, 1.0, 0.0
      %v1363 = vsel %vm1235, 1.0, 0.0
      %v1364 = vsel %vm1236, 1.0, 0.0
      %v1365 = vsel %vm1237, 1.0, 0.0
      %v1366 = vsel %vm1238, 1.0, 0.0
      %v1367 = vsel %vm1239, 1.0, 0.0
      %v1368 = vsel %vm1240, 1.0, 0.0
      %v1369 = vsel %vm1241, 1.0, 0.0
      %v1370 = vsel %vm1242, 1.0, 0.0
      %v1371 = vsel %vm1243, 1.0, 0.0
      %v1372 = vsel %vm1244, 1.0, 0.0
      %v1373 = vsel %vm1245, 1.0, 0.0
      %v1374 = vsel %vm1246, 1.0, 0.0
      %v1375 = vsel %vm1247, 1.0, 0.0
      %v1376 = vsel %vm1248, 1.0, 0.0
      %v1377 = vsel %vm1249, 1.0, 0.0
      %v1378 = vsel %vm1250, 1.0, 0.0
      %v1379 = vsel %vm1251, 1.0, 0.0
      %v1380 = vsel %vm1252, 1.0, 0.0
      %v1381 = vsel %vm1253, 1.0, 0.0
      %v1382 = vsel %vm1254, 1.0, 0.0
      %v1383 = vsel %vm1255, 1.0, 0.0
      %v1384 = vsel %vm1256, 1.0, 0.0
      %v1385 = vsel %vm1257, 1.0, 0.0
      %v1386 = vsel %vm1258, 1.0, 0.0
      %v1387 = vsel %vm1259, 1.0, 0.0
      %v1388 = vsel %vm1260, 1.0, 0.0
      %v1389 = vsel %vm1261, 1.0, 0.0
      %v1390 = vsel %vm1262, 1.0, 0.0
      %v1391 = vsel %vm1263, 1.0, 0.0
      %v1392 = vsel %vm1264, 1.0, 0.0
      %v1393 = vsel %vm1265, 1.0, 0.0
      %v1394 = vsel %vm1266, 1.0, 0.0
      %v1395 = vsel %vm1267, 1.0, 0.0
      %v1396 = vsel %vm1268, 1.0, 0.0
      %v1397 = vsel %vm1269, 1.0, 0.0
      %v1398 = vsel %vm1270, 1.0, 0.0
      %v1399 = vsel %vm1271, 1.0, 0.0
      %v1400 = vsel %vm1272, 1.0, 0.0
      %v1401 = vsel %vm1273, 1.0, 0.0
      %v1402 = vsel %vm1274, 1.0, 0.0
      %v1403 = vsel %vm1275, 1.0, 0.0
      %v1404 = vsel %vm1276, 1.0, 0.0
      %v1405 = vsel %vm1277, 1.0, 0.0
      %v1406 = vsel %vm1278, 1.0, 0.0
      %v1407 = vsel %vm1279, 1.0, 0.0
      %v1408 = vsel %vm1280, 1.0, 0.0
      %v1409 = vsel %vm1281, 1.0, 0.0
      %v1410 = vsel %vm1282, 1.0, 0.0
      %v1411 = vsel %vm1283, 1.0, 0.0
      %v1412 = vsel %vm1284, 1.0, 0.0
      %v1413 = vsel %vm1285, 1.0, 0.0
      %v1414 = vsel %vm1286, 1.0, 0.0
      %v1415 = vsel %vm1287, 1.0, 0.0
      %v1416 = vsel %vm1288, 1.0, 0.0
      %v1417 = vsel %vm1289, 1.0, 0.0
      %v1418 = vsel %vm1290, 1.0, 0.0
      %v1419 = vsel %vm1291, 1.0, 0.0
      %v1420 = vsel %vm1292, 1.0, 0.0
      %v1421 = vsel %vm1293, 1.0, 0.0
      %v1422 = vsel %vm1294, 1.0, 0.0
      %v1423 = vsel %vm1295, 1.0, 0.0
      %v1424 = vsel %vm1296, 1.0, 0.0
      %v1425 = vsel %vm1297, 1.0, 0.0
      %v1426 = vsel %vm1298, 1.0, 0.0
      %v1427 = vsel %vm1299, 1.0, 0.0
      %v1428 = vsel %vm1300, 1.0, 0.0
      %v1429 = vsel %vm1301, 1.0, 0.0
      %v1430 = vsel %vm1302, 1.0, 0.0
      %v1431 = vsel %vm1303, 1.0, 0.0
      %v1432 = vsel %vm1304, 1.0, 0.0
      %v1433 = vsel %vm1305, 1.0, 0.0
      %v1434 = vsel %vm1306, 1.0, 0.0
      %v1435 = vsel %vm1307, 1.0, 0.0
      %v1436 = vsel %vm1308, 1.0, 0.0
      %v1437 = vsel %vm1309, 1.0, 0.0
      %v1438 = vsel %vm1310, 1.0, 0.0
      %v1439 = vsel %vm1311, 1.0, 0.0
      %v1440 = vsel %vm1312, 1.0, 0.0
      %v1441 = vsel %vm1313, 1.0, 0.0
      %v1442 = vsel %vm1314, 1.0, 0.0
      %v1443 = vsel %vm1315, 1.0, 0.0
      %v1444 = vsel %vm1316, 1.0, 0.0
      %v1445 = vpack.c.bf16 %v1317, %v1317
      %v1446 = vpack.c.bf16 %v1318, %v1318
      %v1447 = vpack.c.bf16 %v1319, %v1319
      %v1448 = vpack.c.bf16 %v1320, %v1320
      %v1449 = vpack.c.bf16 %v1321, %v1321
      %v1450 = vpack.c.bf16 %v1322, %v1322
      %v1451 = vpack.c.bf16 %v1323, %v1323
      %v1452 = vpack.c.bf16 %v1324, %v1324
      %v1453 = vpack.c.bf16 %v1325, %v1325
      %v1454 = vpack.c.bf16 %v1326, %v1326
      %v1455 = vpack.c.bf16 %v1327, %v1327
      %v1456 = vpack.c.bf16 %v1328, %v1328
      %v1457 = vpack.c.bf16 %v1329, %v1329
      %v1458 = vpack.c.bf16 %v1330, %v1330
      %v1459 = vpack.c.bf16 %v1331, %v1331
      %v1460 = vpack.c.bf16 %v1332, %v1332
      %v1461 = vpack.c.bf16 %v1333, %v1333
      %v1462 = vpack.c.bf16 %v1334, %v1334
      %v1463 = vpack.c.bf16 %v1335, %v1335
      %v1464 = vpack.c.bf16 %v1336, %v1336
      %v1465 = vpack.c.bf16 %v1337, %v1337
      %v1466 = vpack.c.bf16 %v1338, %v1338
      %v1467 = vpack.c.bf16 %v1339, %v1339
      %v1468 = vpack.c.bf16 %v1340, %v1340
      %v1469 = vpack.c.bf16 %v1341, %v1341
      %v1470 = vpack.c.bf16 %v1342, %v1342
      %v1471 = vpack.c.bf16 %v1343, %v1343
      %v1472 = vpack.c.bf16 %v1344, %v1344
      %v1473 = vpack.c.bf16 %v1345, %v1345
      %v1474 = vpack.c.bf16 %v1346, %v1346
      %v1475 = vpack.c.bf16 %v1347, %v1347
      %v1476 = vpack.c.bf16 %v1348, %v1348
      %v1477 = vpack.c.bf16 %v1349, %v1349
      %v1478 = vpack.c.bf16 %v1350, %v1350
      %v1479 = vpack.c.bf16 %v1351, %v1351
      %v1480 = vpack.c.bf16 %v1352, %v1352
      %v1481 = vpack.c.bf16 %v1353, %v1353
      %v1482 = vpack.c.bf16 %v1354, %v1354
      %v1483 = vpack.c.bf16 %v1355, %v1355
      %v1484 = vpack.c.bf16 %v1356, %v1356
      %v1485 = vpack.c.bf16 %v1357, %v1357
      %v1486 = vpack.c.bf16 %v1358, %v1358
      %v1487 = vpack.c.bf16 %v1359, %v1359
      %v1488 = vpack.c.bf16 %v1360, %v1360
      %v1489 = vpack.c.bf16 %v1361, %v1361
      %v1490 = vpack.c.bf16 %v1362, %v1362
      %v1491 = vpack.c.bf16 %v1363, %v1363
      %v1492 = vpack.c.bf16 %v1364, %v1364
      %v1493 = vpack.c.bf16 %v1365, %v1365
      %v1494 = vpack.c.bf16 %v1366, %v1366
      %v1495 = vpack.c.bf16 %v1367, %v1367
      %v1496 = vpack.c.bf16 %v1368, %v1368
      %v1497 = vpack.c.bf16 %v1369, %v1369
      %v1498 = vpack.c.bf16 %v1370, %v1370
      %v1499 = vpack.c.bf16 %v1371, %v1371
      %v1500 = vpack.c.bf16 %v1372, %v1372
      %v1501 = vpack.c.bf16 %v1373, %v1373
      %v1502 = vpack.c.bf16 %v1374, %v1374
      %v1503 = vpack.c.bf16 %v1375, %v1375
      %v1504 = vpack.c.bf16 %v1376, %v1376
      %v1505 = vpack.c.bf16 %v1377, %v1377
      %v1506 = vpack.c.bf16 %v1378, %v1378
      %v1507 = vpack.c.bf16 %v1379, %v1379
      %v1508 = vpack.c.bf16 %v1380, %v1380
      %v1509 = vpack.c.bf16 %v1381, %v1381
      %v1510 = vpack.c.bf16 %v1382, %v1382
      %v1511 = vpack.c.bf16 %v1383, %v1383
      %v1512 = vpack.c.bf16 %v1384, %v1384
      %v1513 = vpack.c.bf16 %v1385, %v1385
      %v1514 = vpack.c.bf16 %v1386, %v1386
      %v1515 = vpack.c.bf16 %v1387, %v1387
      %v1516 = vpack.c.bf16 %v1388, %v1388
      %v1517 = vpack.c.bf16 %v1389, %v1389
      %v1518 = vpack.c.bf16 %v1390, %v1390
      %v1519 = vpack.c.bf16 %v1391, %v1391
      %v1520 = vpack.c.bf16 %v1392, %v1392
      %v1521 = vpack.c.bf16 %v1393, %v1393
      %v1522 = vpack.c.bf16 %v1394, %v1394
      %v1523 = vpack.c.bf16 %v1395, %v1395
      %v1524 = vpack.c.bf16 %v1396, %v1396
      %v1525 = vpack.c.bf16 %v1397, %v1397
      %v1526 = vpack.c.bf16 %v1398, %v1398
      %v1527 = vpack.c.bf16 %v1399, %v1399
      %v1528 = vpack.c.bf16 %v1400, %v1400
      %v1529 = vpack.c.bf16 %v1401, %v1401
      %v1530 = vpack.c.bf16 %v1402, %v1402
      %v1531 = vpack.c.bf16 %v1403, %v1403
      %v1532 = vpack.c.bf16 %v1404, %v1404
      %v1533 = vpack.c.bf16 %v1405, %v1405
      %v1534 = vpack.c.bf16 %v1406, %v1406
      %v1535 = vpack.c.bf16 %v1407, %v1407
      %v1536 = vpack.c.bf16 %v1408, %v1408
      %v1537 = vpack.c.bf16 %v1409, %v1409
      %v1538 = vpack.c.bf16 %v1410, %v1410
      %v1539 = vpack.c.bf16 %v1411, %v1411
      %v1540 = vpack.c.bf16 %v1412, %v1412
      %v1541 = vpack.c.bf16 %v1413, %v1413
      %v1542 = vpack.c.bf16 %v1414, %v1414
      %v1543 = vpack.c.bf16 %v1415, %v1415
      %v1544 = vpack.c.bf16 %v1416, %v1416
      %v1545 = vpack.c.bf16 %v1417, %v1417
      %v1546 = vpack.c.bf16 %v1418, %v1418
      %v1547 = vpack.c.bf16 %v1419, %v1419
      %v1548 = vpack.c.bf16 %v1420, %v1420
      %v1549 = vpack.c.bf16 %v1421, %v1421
      %v1550 = vpack.c.bf16 %v1422, %v1422
      %v1551 = vpack.c.bf16 %v1423, %v1423
      %v1552 = vpack.c.bf16 %v1424, %v1424
      %v1553 = vpack.c.bf16 %v1425, %v1425
      %v1554 = vpack.c.bf16 %v1426, %v1426
      %v1555 = vpack.c.bf16 %v1427, %v1427
      %v1556 = vpack.c.bf16 %v1428, %v1428
      %v1557 = vpack.c.bf16 %v1429, %v1429
      %v1558 = vpack.c.bf16 %v1430, %v1430
      %v1559 = vpack.c.bf16 %v1431, %v1431
      %v1560 = vpack.c.bf16 %v1432, %v1432
      %v1561 = vpack.c.bf16 %v1433, %v1433
      %v1562 = vpack.c.bf16 %v1434, %v1434
      %v1563 = vpack.c.bf16 %v1435, %v1435
      %v1564 = vpack.c.bf16 %v1436, %v1436
      %v1565 = vpack.c.bf16 %v1437, %v1437
      %v1566 = vpack.c.bf16 %v1438, %v1438
      %v1567 = vpack.c.bf16 %v1439, %v1439
      %v1568 = vpack.c.bf16 %v1440, %v1440
      %v1569 = vpack.c.bf16 %v1441, %v1441
      %v1570 = vpack.c.bf16 %v1442, %v1442
      %v1571 = vpack.c.bf16 %v1443, %v1443
      %v1572 = vpack.c.bf16 %v1444, %v1444
      %v1701 = vunpack.c.l.b16 %v1445
      %v1702 = vunpack.c.l.b16 %v1446
      %v1703 = vunpack.c.l.b16 %v1447
      %v1704 = vunpack.c.l.b16 %v1448
      %v1705 = vunpack.c.l.b16 %v1449
      %v1706 = vunpack.c.l.b16 %v1450
      %v1707 = vunpack.c.l.b16 %v1451
      %v1708 = vunpack.c.l.b16 %v1452
      %v1709 = vunpack.c.l.b16 %v1453
      %v1710 = vunpack.c.l.b16 %v1454
      %v1711 = vunpack.c.l.b16 %v1455
      %v1712 = vunpack.c.l.b16 %v1456
      %v1713 = vunpack.c.l.b16 %v1457
      %v1714 = vunpack.c.l.b16 %v1458
      %v1715 = vunpack.c.l.b16 %v1459
      %v1716 = vunpack.c.l.b16 %v1460
      %v1717 = vunpack.c.l.b16 %v1461
      %v1718 = vunpack.c.l.b16 %v1462
      %v1719 = vunpack.c.l.b16 %v1463
      %v1720 = vunpack.c.l.b16 %v1464
      %v1721 = vunpack.c.l.b16 %v1465
      %v1722 = vunpack.c.l.b16 %v1466
      %v1723 = vunpack.c.l.b16 %v1467
      %v1724 = vunpack.c.l.b16 %v1468
      %v1725 = vunpack.c.l.b16 %v1469
      %v1726 = vunpack.c.l.b16 %v1470
      %v1727 = vunpack.c.l.b16 %v1471
      %v1728 = vunpack.c.l.b16 %v1472
      %v1729 = vunpack.c.l.b16 %v1473
      %v1730 = vunpack.c.l.b16 %v1474
      %v1731 = vunpack.c.l.b16 %v1475
      %v1732 = vunpack.c.l.b16 %v1476
      %v1733 = vunpack.c.l.b16 %v1477
      %v1734 = vunpack.c.l.b16 %v1478
      %v1735 = vunpack.c.l.b16 %v1479
      %v1736 = vunpack.c.l.b16 %v1480
      %v1737 = vunpack.c.l.b16 %v1481
      %v1738 = vunpack.c.l.b16 %v1482
      %v1739 = vunpack.c.l.b16 %v1483
      %v1740 = vunpack.c.l.b16 %v1484
      %v1741 = vunpack.c.l.b16 %v1485
      %v1742 = vunpack.c.l.b16 %v1486
      %v1743 = vunpack.c.l.b16 %v1487
      %v1744 = vunpack.c.l.b16 %v1488
      %v1745 = vunpack.c.l.b16 %v1489
      %v1746 = vunpack.c.l.b16 %v1490
      %v1747 = vunpack.c.l.b16 %v1491
      %v1748 = vunpack.c.l.b16 %v1492
      %v1749 = vunpack.c.l.b16 %v1493
      %v1750 = vunpack.c.l.b16 %v1494
      %v1751 = vunpack.c.l.b16 %v1495
      %v1752 = vunpack.c.l.b16 %v1496
      %v1753 = vunpack.c.l.b16 %v1497
      %v1754 = vunpack.c.l.b16 %v1498
      %v1755 = vunpack.c.l.b16 %v1499
      %v1756 = vunpack.c.l.b16 %v1500
      %v1757 = vunpack.c.l.b16 %v1501
      %v1758 = vunpack.c.l.b16 %v1502
      %v1759 = vunpack.c.l.b16 %v1503
      %v1760 = vunpack.c.l.b16 %v1504
      %v1761 = vunpack.c.l.b16 %v1505
      %v1762 = vunpack.c.l.b16 %v1506
      %v1763 = vunpack.c.l.b16 %v1507
      %v1764 = vunpack.c.l.b16 %v1508
      %v1765 = vunpack.c.l.b16 %v1509
      %v1766 = vunpack.c.l.b16 %v1510
      %v1767 = vunpack.c.l.b16 %v1511
      %v1768 = vunpack.c.l.b16 %v1512
      %v1769 = vunpack.c.l.b16 %v1513
      %v1770 = vunpack.c.l.b16 %v1514
      %v1771 = vunpack.c.l.b16 %v1515
      %v1772 = vunpack.c.l.b16 %v1516
      %v1773 = vunpack.c.l.b16 %v1517
      %v1774 = vunpack.c.l.b16 %v1518
      %v1775 = vunpack.c.l.b16 %v1519
      %v1776 = vunpack.c.l.b16 %v1520
      %v1777 = vunpack.c.l.b16 %v1521
      %v1778 = vunpack.c.l.b16 %v1522
      %v1779 = vunpack.c.l.b16 %v1523
      %v1780 = vunpack.c.l.b16 %v1524
      %v1781 = vunpack.c.l.b16 %v1525
      %v1782 = vunpack.c.l.b16 %v1526
      %v1783 = vunpack.c.l.b16 %v1527
      %v1784 = vunpack.c.l.b16 %v1528
      %v1785 = vunpack.c.l.b16 %v1529
      %v1786 = vunpack.c.l.b16 %v1530
      %v1787 = vunpack.c.l.b16 %v1531
      %v1788 = vunpack.c.l.b16 %v1532
      %v1789 = vunpack.c.l.b16 %v1533
      %v1790 = vunpack.c.l.b16 %v1534
      %v1791 = vunpack.c.l.b16 %v1535
      %v1792 = vunpack.c.l.b16 %v1536
      %v1793 = vunpack.c.l.b16 %v1537
      %v1794 = vunpack.c.l.b16 %v1538
      %v1795 = vunpack.c.l.b16 %v1539
      %v1796 = vunpack.c.l.b16 %v1540
      %v1797 = vunpack.c.l.b16 %v1541
      %v1798 = vunpack.c.l.b16 %v1542
      %v1799 = vunpack.c.l.b16 %v1543
      %v1800 = vunpack.c.l.b16 %v1544
      %v1801 = vunpack.c.l.b16 %v1545
      %v1802 = vunpack.c.l.b16 %v1546
      %v1803 = vunpack.c.l.b16 %v1547
      %v1804 = vunpack.c.l.b16 %v1548
      %v1805 = vunpack.c.l.b16 %v1549
      %v1806 = vunpack.c.l.b16 %v1550
      %v1807 = vunpack.c.l.b16 %v1551
      %v1808 = vunpack.c.l.b16 %v1552
      %v1809 = vunpack.c.l.b16 %v1553
      %v1810 = vunpack.c.l.b16 %v1554
      %v1811 = vunpack.c.l.b16 %v1555
      %v1812 = vunpack.c.l.b16 %v1556
      %v1813 = vunpack.c.l.b16 %v1557
      %v1814 = vunpack.c.l.b16 %v1558
      %v1815 = vunpack.c.l.b16 %v1559
      %v1816 = vunpack.c.l.b16 %v1560
      %v1817 = vunpack.c.l.b16 %v1561
      %v1818 = vunpack.c.l.b16 %v1562
      %v1819 = vunpack.c.l.b16 %v1563
      %v1820 = vunpack.c.l.b16 %v1564
      %v1821 = vunpack.c.l.b16 %v1565
      %v1822 = vunpack.c.l.b16 %v1566
      %v1823 = vunpack.c.l.b16 %v1567
      %v1824 = vunpack.c.l.b16 %v1568
      %v1825 = vunpack.c.l.b16 %v1569
      %v1826 = vunpack.c.l.b16 %v1570
      %v1827 = vunpack.c.l.b16 %v1571
      %v1828 = vunpack.c.l.b16 %v1572
      %v1829 = vld [vmem:[%s10] sm:$0xf]
      %v1830 = vld [vmem:[%s10 + $0x4] sm:$0xf]
      %v1831 = vld [vmem:[%s10 + $0x8] sm:$0xf]
      %v1832 = vld [vmem:[%s10 + $0xc] sm:$0xf]
      %v1833 = vld [vmem:[%s10 + $0x10] sm:$0xf]
      %v1834 = vld [vmem:[%s10 + $0x14] sm:$0xf]
      %v1835 = vld [vmem:[%s10 + $0x18] sm:$0xf]
      %v1836 = vld [vmem:[%s10 + $0x1c] sm:$0xf]
      %v1837 = vld [vmem:[%s10 + $0x20] sm:$0xf]
      %v1838 = vld [vmem:[%s10 + $0x24] sm:$0xf]
      %v1839 = vld [vmem:[%s10 + $0x28] sm:$0xf]
      %v1840 = vld [vmem:[%s10 + $0x2c] sm:$0xf]
      %v1841 = vld [vmem:[%s10 + $0x30] sm:$0xf]
      %v1842 = vld [vmem:[%s10 + $0x34] sm:$0xf]
      %v1843 = vld [vmem:[%s10 + $0x38] sm:$0xf]
      %v1844 = vld [vmem:[%s10 + $0x3c] sm:$0xf]
      %v1845 = vld [vmem:[%s10 + $0x40] sm:$0xf]
      %v1846 = vld [vmem:[%s10 + $0x44] sm:$0xf]
      %v1847 = vld [vmem:[%s10 + $0x48] sm:$0xf]
      %v1848 = vld [vmem:[%s10 + $0x4c] sm:$0xf]
      %v1849 = vld [vmem:[%s10 + $0x50] sm:$0x1]
      %v1850 = vpack.c.b16 %v1703, %v1701
      %v1851 = vpack.c.b16 %v1704, %v1702
      %v1852 = vpack.c.b16 %v1707, %v1705
      %v1853 = vpack.c.b16 %v1708, %v1706
      %v1854 = vpack.c.b16 %v1711, %v1709
      %v1855 = vpack.c.b16 %v1712, %v1710
      %v1856 = vpack.c.b16 %v1715, %v1713
      %v1857 = vpack.c.b16 %v1716, %v1714
      %v1858 = vpack.c.b16 %v1719, %v1717
      %v1859 = vpack.c.b16 %v1720, %v1718
      %v1860 = vpack.c.b16 %v1723, %v1721
      %v1861 = vpack.c.b16 %v1724, %v1722
      %v1862 = vpack.c.b16 %v1727, %v1725
      %v1863 = vpack.c.b16 %v1728, %v1726
      %v1864 = vpack.c.b16 %v1731, %v1729
      %v1865 = vpack.c.b16 %v1732, %v1730
      %v1866 = vpack.c.b16 %v1735, %v1733
      %v1867 = vpack.c.b16 %v1736, %v1734
      %v1868 = vpack.c.b16 %v1739, %v1737
      %v1869 = vpack.c.b16 %v1740, %v1738
      %v1870 = vpack.c.b16 %v1743, %v1741
      %v1871 = vpack.c.b16 %v1744, %v1742
      %v1872 = vpack.c.b16 %v1747, %v1745
      %v1873 = vpack.c.b16 %v1748, %v1746
      %v1874 = vpack.c.b16 %v1751, %v1749
      %v1875 = vpack.c.b16 %v1752, %v1750
      %v1876 = vpack.c.b16 %v1755, %v1753
      %v1877 = vpack.c.b16 %v1756, %v1754
      %v1878 = vpack.c.b16 %v1759, %v1757
      %v1879 = vpack.c.b16 %v1760, %v1758
      %v1880 = vpack.c.b16 %v1763, %v1761
      %v1881 = vpack.c.b16 %v1764, %v1762
      %v1882 = vpack.c.b16 %v1767, %v1765
      %v1883 = vpack.c.b16 %v1768, %v1766
      %v1884 = vpack.c.b16 %v1771, %v1769
      %v1885 = vpack.c.b16 %v1772, %v1770
      %v1886 = vpack.c.b16 %v1775, %v1773
      %v1887 = vpack.c.b16 %v1776, %v1774
      %v1888 = vpack.c.b16 %v1779, %v1777
      %v1889 = vpack.c.b16 %v1780, %v1778
      %v1890 = vpack.c.b16 %v1783, %v1781
      %v1891 = vpack.c.b16 %v1784, %v1782
      %v1892 = vpack.c.b16 %v1787, %v1785
      %v1893 = vpack.c.b16 %v1788, %v1786
      %v1894 = vpack.c.b16 %v1791, %v1789
      %v1895 = vpack.c.b16 %v1792, %v1790
      %v1896 = vpack.c.b16 %v1795, %v1793
      %v1897 = vpack.c.b16 %v1796, %v1794
      %v1898 = vpack.c.b16 %v1799, %v1797
      %v1899 = vpack.c.b16 %v1800, %v1798
      %v1900 = vpack.c.b16 %v1803, %v1801
      %v1901 = vpack.c.b16 %v1804, %v1802
      %v1902 = vpack.c.b16 %v1807, %v1805
      %v1903 = vpack.c.b16 %v1808, %v1806
      %v1904 = vpack.c.b16 %v1811, %v1809
      %v1905 = vpack.c.b16 %v1812, %v1810
      %v1906 = vpack.c.b16 %v1815, %v1813
      %v1907 = vpack.c.b16 %v1816, %v1814
      %v1908 = vpack.c.b16 %v1819, %v1817
      %v1909 = vpack.c.b16 %v1820, %v1818
      %v1910 = vpack.c.b16 %v1823, %v1821
      %v1911 = vpack.c.b16 %v1824, %v1822
      %v1912 = vpack.c.b16 %v1827, %v1825
      %v1913 = vpack.c.b16 %v1828, %v1826
      %v1967 = vunpack.c.l.b16 %v1829
      %v1968 = vunpack.c.l.b16 %v1830
      %v1969 = vunpack.c.l.b16 %v1831
      %v1970 = vunpack.c.l.b16 %v1832
      %v1971 = vunpack.c.l.b16 %v1833
      %v1972 = vunpack.c.l.b16 %v1834
      %v1973 = vunpack.c.l.b16 %v1835
      %v1974 = vunpack.c.l.b16 %v1836
      %v1975 = vunpack.c.l.b16 %v1837
      %v1976 = vunpack.c.l.b16 %v1838
      %v1977 = vunpack.c.l.b16 %v1839
      %v1978 = vunpack.c.l.b16 %v1840
      %v1979 = vunpack.c.l.b16 %v1841
      %v1980 = vunpack.c.l.b16 %v1842
      %v1981 = vunpack.c.l.b16 %v1843
      %v1982 = vunpack.c.l.b16 %v1844
      %v1983 = vunpack.c.l.b16 %v1845
      %v1984 = vunpack.c.l.b16 %v1846
      %v1985 = vunpack.c.l.b16 %v1847
      %v1986 = vunpack.c.l.b16 %v1848
      %v1987 = vunpack.c.l.b16 %v1849
      %v1988 = vpack.c.b16 %v1968, %v1967
      %v1989 = vpack.c.b16 %v1970, %v1969
      %v1990 = vpack.c.b16 %v1972, %v1971
      %v1991 = vpack.c.b16 %v1974, %v1973
      %v1992 = vpack.c.b16 %v1976, %v1975
      %v1993 = vpack.c.b16 %v1978, %v1977
      %v1994 = vpack.c.b16 %v1980, %v1979
      %v1995 = vpack.c.b16 %v1982, %v1981
      %v1996 = vpack.c.b16 %v1984, %v1983
      %v1997 = vpack.c.b16 %v1986, %v1985
      %v1998 = vpack.c.b16 %v1987, %v1987
      %vm2009 = vcmask 277504
      %v2011 = vsel %vm2009, %v1851, 0
      %v2014 = vsel %vm2009, %v1853, 0
      %v2017 = vsel %vm2009, %v1855, 0
      %v2020 = vsel %vm2009, %v1857, 0
      %v2023 = vsel %vm2009, %v1859, 0
      %v2026 = vsel %vm2009, %v1861, 0
      %v2029 = vsel %vm2009, %v1863, 0
      %v2032 = vsel %vm2009, %v1865, 0
      %v2035 = vsel %vm2009, %v1867, 0
      %v2038 = vsel %vm2009, %v1869, 0
      %v2041 = vsel %vm2009, %v1871, 0
      %v2044 = vsel %vm2009, %v1873, 0
      %v2047 = vsel %vm2009, %v1875, 0
      %v2050 = vsel %vm2009, %v1877, 0
      %v2053 = vsel %vm2009, %v1879, 0
      %v2056 = vsel %vm2009, %v1881, 0
      %v2059 = vsel %vm2009, %v1883, 0
      %v2062 = vsel %vm2009, %v1885, 0
      %v2065 = vsel %vm2009, %v1887, 0
      %v2068 = vsel %vm2009, %v1889, 0
      %v2071 = vsel %vm2009, %v1891, 0
      %v2074 = vsel %vm2009, %v1893, 0
      %v2077 = vsel %vm2009, %v1895, 0
      %v2080 = vsel %vm2009, %v1897, 0
      %v2083 = vsel %vm2009, %v1899, 0
      %v2086 = vsel %vm2009, %v1901, 0
      %v2089 = vsel %vm2009, %v1903, 0
      %v2092 = vsel %vm2009, %v1905, 0
      %v2095 = vsel %vm2009, %v1907, 0
      %v2098 = vsel %vm2009, %v1909, 0
      %v2101 = vsel %vm2009, %v1911, 0
      %v2104 = vsel %vm2009, %v1913, 0
      %vm2106 = vcmask 1040384
      %v2108 = vsel %vm2106, %v1998, 0
      %2110 = vmatprep.subr.bf16.mxu0 0
      %2111 = vmatpush1.bf16.msra.mxu0 %v1995
      %2112 = vmatprep.subr.bf16.mxu0 0
      %2113 = vmatpush1.bf16.msra.mxu0 %v1994
      %2114 = vmatprep.subr.bf16.mxu0 0
      %2115 = vmatpush1.bf16.msra.mxu0 %v1993
      %2116 = vmatprep.subr.bf16.mxu0 0
      %2117 = vmatpush1.bf16.msra.mxu0 %v1992
      %2118 = vmatprep.subr.bf16.mxu0 0
      %2119 = vmatpush1.bf16.msra.mxu0 %v1991
      %2120 = vmatprep.subr.bf16.mxu0 0
      %2121 = vmatpush1.bf16.msra.mxu0 %v1990
      %2122 = vmatprep.subr.bf16.mxu0 0
      %2123 = vmatpush1.bf16.msra.mxu0 %v1989
      %2124 = vmatprep.subr.bf16.mxu0 0
      %2125 = vmatpush1.bf16.msra.mxu0 %v1988
      %2126 = vmatprep.subr.bf16.mxu0 0
      %2127 = vmatpush2.bf16.msra.mxu0 0
      %2128 = vmatprep.subr.bf16.mxu0 0
      %2129 = vmatpush2.bf16.msra.mxu0 0
      %2130 = vmatprep.subr.bf16.mxu0 0
      %2131 = vmatpush2.bf16.msra.mxu0 0
      %2132 = vmatprep.subr.bf16.mxu0 0
      %2133 = vmatpush2.bf16.msra.mxu0 0
      %2134 = vmatprep.subr.bf16.mxu0 0
      %2135 = vmatpush2.bf16.msra.mxu0 0
      %2136 = vmatprep.subr.bf16.mxu0 0
      %2137 = vmatpush2.bf16.msra.mxu0 %v2108
      %2138 = vmatprep.subr.bf16.mxu0 0
      %2139 = vmatpush2.bf16.msra.mxu0 %v1997
      %2140 = vmatprep.subr.bf16.mxu0 0
      %2141 = vmatpush2.bf16.msra.mxu0 %v1996
      %2142 = vmatprep.mubr.bf16.mxu0 %v2011
      %2143 = vmatmul.mubr.bf16.gmra.mxu0 %v1850
      %v2144 = vpop.f32.mrf.mxu0
      %v2145 = vadd.f32 0.0, %v2144
      %v2146 = vpop.f32.mrf.mxu0
      %v2147 = vpop.f32.mrf.mxu0
      %v2148 = vadd.f32 0.0, %v2147
      %v2149 = vpop.f32.mrf.mxu0
      %2150 = vmatprep.mubr.bf16.mxu0 %v2014
      %2151 = vmatmul.mubr.bf16.gmra.mxu0 %v1852
      %v2152 = vpop.f32.mrf.mxu0
      %v2153 = vadd.f32 0.0, %v2152
      %v2154 = vpop.f32.mrf.mxu0
      %v2155 = vpop.f32.mrf.mxu0
      %v2156 = vadd.f32 0.0, %v2155
      %v2157 = vpop.f32.mrf.mxu0
      %2158 = vmatprep.mubr.bf16.mxu0 %v2017
      %2159 = vmatmul.mubr.bf16.gmra.mxu0 %v1854
      %v2160 = vpop.f32.mrf.mxu0
      %v2161 = vadd.f32 0.0, %v2160
      %v2162 = vpop.f32.mrf.mxu0
      %v2163 = vpop.f32.mrf.mxu0
      %v2164 = vadd.f32 0.0, %v2163
      %v2165 = vpop.f32.mrf.mxu0
      %2166 = vmatprep.mubr.bf16.mxu0 %v2020
      %2167 = vmatmul.mubr.bf16.gmra.mxu0 %v1856
      %v2168 = vpop.f32.mrf.mxu0
      %v2169 = vadd.f32 0.0, %v2168
      %v2170 = vpop.f32.mrf.mxu0
      %v2171 = vpop.f32.mrf.mxu0
      %v2172 = vadd.f32 0.0, %v2171
      %v2173 = vpop.f32.mrf.mxu0
      %2174 = vmatprep.mubr.bf16.mxu0 %v2023
      %2175 = vmatmul.mubr.bf16.gmra.mxu0 %v1858
      %v2176 = vpop.f32.mrf.mxu0
      %v2177 = vadd.f32 0.0, %v2176
      %v2178 = vpop.f32.mrf.mxu0
      %v2179 = vpop.f32.mrf.mxu0
      %v2180 = vadd.f32 0.0, %v2179
      %v2181 = vpop.f32.mrf.mxu0
      %2182 = vmatprep.mubr.bf16.mxu0 %v2026
      %2183 = vmatmul.mubr.bf16.gmra.mxu0 %v1860
      %v2184 = vpop.f32.mrf.mxu0
      %v2185 = vadd.f32 0.0, %v2184
      %v2186 = vpop.f32.mrf.mxu0
      %v2187 = vpop.f32.mrf.mxu0
      %v2188 = vadd.f32 0.0, %v2187
      %v2189 = vpop.f32.mrf.mxu0
      %2190 = vmatprep.mubr.bf16.mxu0 %v2029
      %2191 = vmatmul.mubr.bf16.gmra.mxu0 %v1862
      %v2192 = vpop.f32.mrf.mxu0
      %v2193 = vadd.f32 0.0, %v2192
      %v2194 = vpop.f32.mrf.mxu0
      %v2195 = vpop.f32.mrf.mxu0
      %v2196 = vadd.f32 0.0, %v2195
      %v2197 = vpop.f32.mrf.mxu0
      %2198 = vmatprep.mubr.bf16.mxu0 %v2032
      %2199 = vmatmul.mubr.bf16.gmra.mxu0 %v1864
      %v2200 = vpop.f32.mrf.mxu0
      %v2201 = vadd.f32 0.0, %v2200
      %v2202 = vpop.f32.mrf.mxu0
      %v2203 = vpop.f32.mrf.mxu0
      %v2204 = vadd.f32 0.0, %v2203
      %v2205 = vpop.f32.mrf.mxu0
      %2206 = vmatprep.mubr.bf16.mxu0 %v2035
      %2207 = vmatmul.mubr.bf16.gmra.mxu0 %v1866
      %v2208 = vpop.f32.mrf.mxu0
      %v2209 = vadd.f32 0.0, %v2208
      %v2210 = vpop.f32.mrf.mxu0
      %v2211 = vpop.f32.mrf.mxu0
      %v2212 = vadd.f32 0.0, %v2211
      %v2213 = vpop.f32.mrf.mxu0
      %2214 = vmatprep.mubr.bf16.mxu0 %v2038
      %2215 = vmatmul.mubr.bf16.gmra.mxu0 %v1868
      %v2216 = vpop.f32.mrf.mxu0
      %v2217 = vadd.f32 0.0, %v2216
      %v2218 = vpop.f32.mrf.mxu0
      %v2219 = vpop.f32.mrf.mxu0
      %v2220 = vadd.f32 0.0, %v2219
      %v2221 = vpop.f32.mrf.mxu0
      %2222 = vmatprep.mubr.bf16.mxu0 %v2041
      %2223 = vmatmul.mubr.bf16.gmra.mxu0 %v1870
      %v2224 = vpop.f32.mrf.mxu0
      %v2225 = vadd.f32 0.0, %v2224
      %v2226 = vpop.f32.mrf.mxu0
      %v2227 = vpop.f32.mrf.mxu0
      %v2228 = vadd.f32 0.0, %v2227
      %v2229 = vpop.f32.mrf.mxu0
      %2230 = vmatprep.mubr.bf16.mxu0 %v2044
      %2231 = vmatmul.mubr.bf16.gmra.mxu0 %v1872
      %v2232 = vpop.f32.mrf.mxu0
      %v2233 = vadd.f32 0.0, %v2232
      %v2234 = vpop.f32.mrf.mxu0
      %v2235 = vpop.f32.mrf.mxu0
      %v2236 = vadd.f32 0.0, %v2235
      %v2237 = vpop.f32.mrf.mxu0
      %2238 = vmatprep.mubr.bf16.mxu0 %v2047
      %2239 = vmatmul.mubr.bf16.gmra.mxu0 %v1874
      %v2240 = vpop.f32.mrf.mxu0
      %v2241 = vadd.f32 0.0, %v2240
      %v2242 = vpop.f32.mrf.mxu0
      %v2243 = vpop.f32.mrf.mxu0
      %v2244 = vadd.f32 0.0, %v2243
      %v2245 = vpop.f32.mrf.mxu0
      %2246 = vmatprep.mubr.bf16.mxu0 %v2050
      %2247 = vmatmul.mubr.bf16.gmra.mxu0 %v1876
      %v2248 = vpop.f32.mrf.mxu0
      %v2249 = vadd.f32 0.0, %v2248
      %v2250 = vpop.f32.mrf.mxu0
      %v2251 = vpop.f32.mrf.mxu0
      %v2252 = vadd.f32 0.0, %v2251
      %v2253 = vpop.f32.mrf.mxu0
      %2254 = vmatprep.mubr.bf16.mxu0 %v2053
      %2255 = vmatmul.mubr.bf16.gmra.mxu0 %v1878
      %v2256 = vpop.f32.mrf.mxu0
      %v2257 = vadd.f32 0.0, %v2256
      %v2258 = vpop.f32.mrf.mxu0
      %v2259 = vpop.f32.mrf.mxu0
      %v2260 = vadd.f32 0.0, %v2259
      %v2261 = vpop.f32.mrf.mxu0
      %2262 = vmatprep.mubr.bf16.mxu0 %v2056
      %2263 = vmatmul.mubr.bf16.gmra.mxu0 %v1880
      %v2264 = vpop.f32.mrf.mxu0
      %v2265 = vadd.f32 0.0, %v2264
      %v2266 = vpop.f32.mrf.mxu0
      %v2267 = vpop.f32.mrf.mxu0
      %v2268 = vadd.f32 0.0, %v2267
      %v2269 = vpop.f32.mrf.mxu0
      %2270 = vmatprep.mubr.bf16.mxu0 %v2059
      %2271 = vmatmul.mubr.bf16.gmra.mxu0 %v1882
      %v2272 = vpop.f32.mrf.mxu0
      %v2273 = vadd.f32 0.0, %v2272
      %v2274 = vpop.f32.mrf.mxu0
      %v2275 = vpop.f32.mrf.mxu0
      %v2276 = vadd.f32 0.0, %v2275
      %v2277 = vpop.f32.mrf.mxu0
      %2278 = vmatprep.mubr.bf16.mxu0 %v2062
      %2279 = vmatmul.mubr.bf16.gmra.mxu0 %v1884
      %v2280 = vpop.f32.mrf.mxu0
      %v2281 = vadd.f32 0.0, %v2280
      %v2282 = vpop.f32.mrf.mxu0
      %v2283 = vpop.f32.mrf.mxu0
      %v2284 = vadd.f32 0.0, %v2283
      %v2285 = vpop.f32.mrf.mxu0
      %2286 = vmatprep.mubr.bf16.mxu0 %v2065
      %2287 = vmatmul.mubr.bf16.gmra.mxu0 %v1886
      %v2288 = vpop.f32.mrf.mxu0
      %v2289 = vadd.f32 0.0, %v2288
      %v2290 = vpop.f32.mrf.mxu0
      %v2291 = vpop.f32.mrf.mxu0
      %v2292 = vadd.f32 0.0, %v2291
      %v2293 = vpop.f32.mrf.mxu0
      %2294 = vmatprep.mubr.bf16.mxu0 %v2068
      %2295 = vmatmul.mubr.bf16.gmra.mxu0 %v1888
      %v2296 = vpop.f32.mrf.mxu0
      %v2297 = vadd.f32 0.0, %v2296
      %v2298 = vpop.f32.mrf.mxu0
      %v2299 = vpop.f32.mrf.mxu0
      %v2300 = vadd.f32 0.0, %v2299
      %v2301 = vpop.f32.mrf.mxu0
      %2302 = vmatprep.mubr.bf16.mxu0 %v2071
      %2303 = vmatmul.mubr.bf16.gmra.mxu0 %v1890
      %v2304 = vpop.f32.mrf.mxu0
      %v2305 = vadd.f32 0.0, %v2304
      %v2306 = vpop.f32.mrf.mxu0
      %v2307 = vpop.f32.mrf.mxu0
      %v2308 = vadd.f32 0.0, %v2307
      %v2309 = vpop.f32.mrf.mxu0
      %2310 = vmatprep.mubr.bf16.mxu0 %v2074
      %2311 = vmatmul.mubr.bf16.gmra.mxu0 %v1892
      %v2312 = vpop.f32.mrf.mxu0
      %v2313 = vadd.f32 0.0, %v2312
      %v2314 = vpop.f32.mrf.mxu0
      %v2315 = vpop.f32.mrf.mxu0
      %v2316 = vadd.f32 0.0, %v2315
      %v2317 = vpop.f32.mrf.mxu0
      %2318 = vmatprep.mubr.bf16.mxu0 %v2077
      %2319 = vmatmul.mubr.bf16.gmra.mxu0 %v1894
      %v2320 = vpop.f32.mrf.mxu0
      %v2321 = vadd.f32 0.0, %v2320
      %v2322 = vpop.f32.mrf.mxu0
      %v2323 = vpop.f32.mrf.mxu0
      %v2324 = vadd.f32 0.0, %v2323
      %v2325 = vpop.f32.mrf.mxu0
      %2326 = vmatprep.mubr.bf16.mxu0 %v2080
      %2327 = vmatmul.mubr.bf16.gmra.mxu0 %v1896
      %v2328 = vpop.f32.mrf.mxu0
      %v2329 = vadd.f32 0.0, %v2328
      %v2330 = vpop.f32.mrf.mxu0
      %v2331 = vpop.f32.mrf.mxu0
      %v2332 = vadd.f32 0.0, %v2331
      %v2333 = vpop.f32.mrf.mxu0
      %2334 = vmatprep.mubr.bf16.mxu0 %v2083
      %2335 = vmatmul.mubr.bf16.gmra.mxu0 %v1898
      %v2336 = vpop.f32.mrf.mxu0
      %v2337 = vadd.f32 0.0, %v2336
      %v2338 = vpop.f32.mrf.mxu0
      %v2339 = vpop.f32.mrf.mxu0
      %v2340 = vadd.f32 0.0, %v2339
      %v2341 = vpop.f32.mrf.mxu0
      %2342 = vmatprep.mubr.bf16.mxu0 %v2086
      %2343 = vmatmul.mubr.bf16.gmra.mxu0 %v1900
      %v2344 = vpop.f32.mrf.mxu0
      %v2345 = vadd.f32 0.0, %v2344
      %v2346 = vpop.f32.mrf.mxu0
      %v2347 = vpop.f32.mrf.mxu0
      %v2348 = vadd.f32 0.0, %v2347
      %v2349 = vpop.f32.mrf.mxu0
      %2350 = vmatprep.mubr.bf16.mxu0 %v2089
      %2351 = vmatmul.mubr.bf16.gmra.mxu0 %v1902
      %v2352 = vpop.f32.mrf.mxu0
      %v2353 = vadd.f32 0.0, %v2352
      %v2354 = vpop.f32.mrf.mxu0
      %v2355 = vpop.f32.mrf.mxu0
      %v2356 = vadd.f32 0.0, %v2355
      %v2357 = vpop.f32.mrf.mxu0
      %2358 = vmatprep.mubr.bf16.mxu0 %v2092
      %2359 = vmatmul.mubr.bf16.gmra.mxu0 %v1904
      %v2360 = vpop.f32.mrf.mxu0
      %v2361 = vadd.f32 0.0, %v2360
      %v2362 = vpop.f32.mrf.mxu0
      %v2363 = vpop.f32.mrf.mxu0
      %v2364 = vadd.f32 0.0, %v2363
      %v2365 = vpop.f32.mrf.mxu0
      %2366 = vmatprep.mubr.bf16.mxu0 %v2095
      %2367 = vmatmul.mubr.bf16.gmra.mxu0 %v1906
      %v2368 = vpop.f32.mrf.mxu0
      %v2369 = vadd.f32 0.0, %v2368
      %v2370 = vpop.f32.mrf.mxu0
      %v2371 = vpop.f32.mrf.mxu0
      %v2372 = vadd.f32 0.0, %v2371
      %v2373 = vpop.f32.mrf.mxu0
      %2374 = vmatprep.mubr.bf16.mxu0 %v2098
      %2375 = vmatmul.mubr.bf16.gmra.mxu0 %v1908
      %v2376 = vpop.f32.mrf.mxu0
      %v2377 = vadd.f32 0.0, %v2376
      %v2378 = vpop.f32.mrf.mxu0
      %v2379 = vpop.f32.mrf.mxu0
      %v2380 = vadd.f32 0.0, %v2379
      %v2381 = vpop.f32.mrf.mxu0
      %2382 = vmatprep.mubr.bf16.mxu0 %v2101
      %2383 = vmatmul.mubr.bf16.gmra.mxu0 %v1910
      %v2384 = vpop.f32.mrf.mxu0
      %v2385 = vadd.f32 0.0, %v2384
      %v2386 = vpop.f32.mrf.mxu0
      %v2387 = vpop.f32.mrf.mxu0
      %v2388 = vadd.f32 0.0, %v2387
      %v2389 = vpop.f32.mrf.mxu0
      %2390 = vmatprep.mubr.bf16.mxu0 %v2104
      %2391 = vmatmul.mubr.bf16.gmra.mxu0 %v1912
      %v2392 = vpop.f32.mrf.mxu0
      %v2393 = vadd.f32 0.0, %v2392
      %v2394 = vpop.f32.mrf.mxu0
      %v2395 = vpop.f32.mrf.mxu0
      %v2396 = vadd.f32 0.0, %v2395
      %v2397 = vpop.f32.mrf.mxu0
      %2398 = vdwg.mxu0
      %v2403 = vcombine.high %v726, %v726
      %v2405 = vunpack.c.l.s4 1966171168
      %v2406 = vunpack.c.0.s8 %v2405
      %v2407 = vlaneseq
      %v2408 = vshrl.u32 %v2407, 7
      %v2409 = vsub.s32 %v2406, %v2408
      %v2410 = vrot.slane %v726, %v2409
      %v2412 = vunpack.c.l.s4 1966171168
      %v2413 = vunpack.c.0.s8 %v2412
      %v2414 = vlaneseq
      %v2415 = vshrl.u32 %v2414, 7
      %v2416 = vsub.s32 %v2413, %v2415
      %v2417 = vrot.slane %v2403, %v2416
      %v2418 = vcombine.high %v2410, %v2410
      %v2419 = vcombine.high %v2417, %v2417
      %v2421 = vunpack.c.l.s4 1966171168
      %v2422 = vunpack.c.0.s8 %v2421
      %v2423 = vlaneseq
      %v2424 = vshrl.u32 %v2423, 7
      %v2425 = vsub.s32 %v2422, %v2424
      %v2426 = vrot.slane %v2410, %v2425
      %v2428 = vunpack.c.l.s4 1966171168
      %v2429 = vunpack.c.0.s8 %v2428
      %v2430 = vlaneseq
      %v2431 = vshrl.u32 %v2430, 7
      %v2432 = vsub.s32 %v2429, %v2431
      %v2433 = vrot.slane %v2417, %v2432
      %v2435 = vunpack.c.l.s4 1966171168
      %v2436 = vunpack.c.0.s8 %v2435
      %v2437 = vlaneseq
      %v2438 = vshrl.u32 %v2437, 7
      %v2439 = vsub.s32 %v2436, %v2438
      %v2440 = vrot.slane %v2418, %v2439
      %v2442 = vunpack.c.l.s4 1966171168
      %v2443 = vunpack.c.0.s8 %v2442
      %v2444 = vlaneseq
      %v2445 = vshrl.u32 %v2444, 7
      %v2446 = vsub.s32 %v2443, %v2445
      %v2447 = vrot.slane %v2419, %v2446
      %v2448 = vcombine.high %v2426, %v2426
      %v2449 = vcombine.high %v2433, %v2433
      %v2450 = vcombine.high %v2440, %v2440
      %v2451 = vcombine.high %v2447, %v2447
      %v2452 = vcombine.high %v727, %v727
      %v2454 = vunpack.c.l.s4 1966171168
      %v2455 = vunpack.c.0.s8 %v2454
      %v2456 = vlaneseq
      %v2457 = vshrl.u32 %v2456, 7
      %v2458 = vsub.s32 %v2455, %v2457
      %v2459 = vrot.slane %v727, %v2458
      %v2461 = vunpack.c.l.s4 1966171168
      %v2462 = vunpack.c.0.s8 %v2461
      %v2463 = vlaneseq
      %v2464 = vshrl.u32 %v2463, 7
      %v2465 = vsub.s32 %v2462, %v2464
      %v2466 = vrot.slane %v2452, %v2465
      %v2467 = vcombine.high %v2459, %v2459
      %v2468 = vcombine.high %v2466, %v2466
      %v2470 = vunpack.c.l.s4 1966171168
      %v2471 = vunpack.c.0.s8 %v2470
      %v2472 = vlaneseq
      %v2473 = vshrl.u32 %v2472, 7
      %v2474 = vsub.s32 %v2471, %v2473
      %v2475 = vrot.slane %v2459, %v2474
      %v2477 = vunpack.c.l.s4 1966171168
      %v2478 = vunpack.c.0.s8 %v2477
      %v2479 = vlaneseq
      %v2480 = vshrl.u32 %v2479, 7
      %v2481 = vsub.s32 %v2478, %v2480
      %v2482 = vrot.slane %v2466, %v2481
      %v2484 = vunpack.c.l.s4 1966171168
      %v2485 = vunpack.c.0.s8 %v2484
      %v2486 = vlaneseq
      %v2487 = vshrl.u32 %v2486, 7
      %v2488 = vsub.s32 %v2485, %v2487
      %v2489 = vrot.slane %v2467, %v2488
      %v2491 = vunpack.c.l.s4 1966171168
      %v2492 = vunpack.c.0.s8 %v2491
      %v2493 = vlaneseq
      %v2494 = vshrl.u32 %v2493, 7
      %v2495 = vsub.s32 %v2492, %v2494
      %v2496 = vrot.slane %v2468, %v2495
      %v2497 = vcombine.high %v2475, %v2475
      %v2498 = vcombine.high %v2482, %v2482
      %v2499 = vcombine.high %v2489, %v2489
      %v2500 = vcombine.high %v2496, %v2496
      %v2501 = vcombine.high %v728, %v728
      %v2503 = vunpack.c.l.s4 1966171168
      %v2504 = vunpack.c.0.s8 %v2503
      %v2505 = vlaneseq
      %v2506 = vshrl.u32 %v2505, 7
      %v2507 = vsub.s32 %v2504, %v2506
      %v2508 = vrot.slane %v728, %v2507
      %v2510 = vunpack.c.l.s4 1966171168
      %v2511 = vunpack.c.0.s8 %v2510
      %v2512 = vlaneseq
      %v2513 = vshrl.u32 %v2512, 7
      %v2514 = vsub.s32 %v2511, %v2513
      %v2515 = vrot.slane %v2501, %v2514
      %v2516 = vcombine.high %v2508, %v2508
      %v2517 = vcombine.high %v2515, %v2515
      %v2519 = vunpack.c.l.s4 1966171168
      %v2520 = vunpack.c.0.s8 %v2519
      %v2521 = vlaneseq
      %v2522 = vshrl.u32 %v2521, 7
      %v2523 = vsub.s32 %v2520, %v2522
      %v2524 = vrot.slane %v2508, %v2523
      %v2526 = vunpack.c.l.s4 1966171168
      %v2527 = vunpack.c.0.s8 %v2526
      %v2528 = vlaneseq
      %v2529 = vshrl.u32 %v2528, 7
      %v2530 = vsub.s32 %v2527, %v2529
      %v2531 = vrot.slane %v2515, %v2530
      %v2533 = vunpack.c.l.s4 1966171168
      %v2534 = vunpack.c.0.s8 %v2533
      %v2535 = vlaneseq
      %v2536 = vshrl.u32 %v2535, 7
      %v2537 = vsub.s32 %v2534, %v2536
      %v2538 = vrot.slane %v2516, %v2537
      %v2540 = vunpack.c.l.s4 1966171168
      %v2541 = vunpack.c.0.s8 %v2540
      %v2542 = vlaneseq
      %v2543 = vshrl.u32 %v2542, 7
      %v2544 = vsub.s32 %v2541, %v2543
      %v2545 = vrot.slane %v2517, %v2544
      %v2546 = vcombine.high %v2524, %v2524
      %v2547 = vcombine.high %v2531, %v2531
      %v2548 = vcombine.high %v2538, %v2538
      %v2549 = vcombine.high %v2545, %v2545
      %v2550 = vcombine.high %v729, %v729
      %v2552 = vunpack.c.l.s4 1966171168
      %v2553 = vunpack.c.0.s8 %v2552
      %v2554 = vlaneseq
      %v2555 = vshrl.u32 %v2554, 7
      %v2556 = vsub.s32 %v2553, %v2555
      %v2557 = vrot.slane %v729, %v2556
      %v2559 = vunpack.c.l.s4 1966171168
      %v2560 = vunpack.c.0.s8 %v2559
      %v2561 = vlaneseq
      %v2562 = vshrl.u32 %v2561, 7
      %v2563 = vsub.s32 %v2560, %v2562
      %v2564 = vrot.slane %v2550, %v2563
      %v2565 = vcombine.high %v2557, %v2557
      %v2566 = vcombine.high %v2564, %v2564
      %v2568 = vunpack.c.l.s4 1966171168
      %v2569 = vunpack.c.0.s8 %v2568
      %v2570 = vlaneseq
      %v2571 = vshrl.u32 %v2570, 7
      %v2572 = vsub.s32 %v2569, %v2571
      %v2573 = vrot.slane %v2557, %v2572
      %v2575 = vunpack.c.l.s4 1966171168
      %v2576 = vunpack.c.0.s8 %v2575
      %v2577 = vlaneseq
      %v2578 = vshrl.u32 %v2577, 7
      %v2579 = vsub.s32 %v2576, %v2578
      %v2580 = vrot.slane %v2564, %v2579
      %v2582 = vunpack.c.l.s4 1966171168
      %v2583 = vunpack.c.0.s8 %v2582
      %v2584 = vlaneseq
      %v2585 = vshrl.u32 %v2584, 7
      %v2586 = vsub.s32 %v2583, %v2585
      %v2587 = vrot.slane %v2565, %v2586
      %v2589 = vunpack.c.l.s4 1966171168
      %v2590 = vunpack.c.0.s8 %v2589
      %v2591 = vlaneseq
      %v2592 = vshrl.u32 %v2591, 7
      %v2593 = vsub.s32 %v2590, %v2592
      %v2594 = vrot.slane %v2566, %v2593
      %v2595 = vcombine.high %v2573, %v2573
      %v2596 = vcombine.high %v2580, %v2580
      %v2597 = vcombine.high %v2587, %v2587
      %v2598 = vcombine.high %v2594, %v2594
      %v2599 = vunpack.i.l.s16 %v2426
      %v2600 = vunpack.i.h.s16 %v2426
      %v2601 = vunpack.i.l.s16 %v2440
      %v2602 = vunpack.i.h.s16 %v2440
      %v2603 = vunpack.i.l.s16 %v2448
      %v2604 = vunpack.i.h.s16 %v2448
      %v2605 = vunpack.i.l.s16 %v2450
      %v2606 = vunpack.i.h.s16 %v2450
      %v2607 = vunpack.i.l.s16 %v2433
      %v2608 = vunpack.i.h.s16 %v2433
      %v2609 = vunpack.i.l.s16 %v2447
      %v2610 = vunpack.i.h.s16 %v2447
      %v2611 = vunpack.i.l.s16 %v2449
      %v2612 = vunpack.i.h.s16 %v2449
      %v2613 = vunpack.i.l.s16 %v2451
      %v2614 = vunpack.i.h.s16 %v2451
      %v2615 = vunpack.i.l.s16 %v2475
      %v2616 = vunpack.i.h.s16 %v2475
      %v2617 = vunpack.i.l.s16 %v2489
      %v2618 = vunpack.i.h.s16 %v2489
      %v2619 = vunpack.i.l.s16 %v2497
      %v2620 = vunpack.i.h.s16 %v2497
      %v2621 = vunpack.i.l.s16 %v2499
      %v2622 = vunpack.i.h.s16 %v2499
      %v2623 = vunpack.i.l.s16 %v2482
      %v2624 = vunpack.i.h.s16 %v2482
      %v2625 = vunpack.i.l.s16 %v2496
      %v2626 = vunpack.i.h.s16 %v2496
      %v2627 = vunpack.i.l.s16 %v2498
      %v2628 = vunpack.i.h.s16 %v2498
      %v2629 = vunpack.i.l.s16 %v2500
      %v2630 = vunpack.i.h.s16 %v2500
      %v2631 = vunpack.i.l.s16 %v2524
      %v2632 = vunpack.i.h.s16 %v2524
      %v2633 = vunpack.i.l.s16 %v2538
      %v2634 = vunpack.i.h.s16 %v2538
      %v2635 = vunpack.i.l.s16 %v2546
      %v2636 = vunpack.i.h.s16 %v2546
      %v2637 = vunpack.i.l.s16 %v2548
      %v2638 = vunpack.i.h.s16 %v2548
      %v2639 = vunpack.i.l.s16 %v2531
      %v2640 = vunpack.i.h.s16 %v2531
      %v2641 = vunpack.i.l.s16 %v2545
      %v2642 = vunpack.i.h.s16 %v2545
      %v2643 = vunpack.i.l.s16 %v2547
      %v2644 = vunpack.i.h.s16 %v2547
      %v2645 = vunpack.i.l.s16 %v2549
      %v2646 = vunpack.i.h.s16 %v2549
      %v2647 = vunpack.i.l.s16 %v2573
      %v2648 = vunpack.i.h.s16 %v2573
      %v2649 = vunpack.i.l.s16 %v2587
      %v2650 = vunpack.i.h.s16 %v2587
      %v2651 = vunpack.i.l.s16 %v2595
      %v2652 = vunpack.i.h.s16 %v2595
      %v2653 = vunpack.i.l.s16 %v2597
      %v2654 = vunpack.i.h.s16 %v2597
      %v2655 = vunpack.i.l.s16 %v2580
      %v2656 = vunpack.i.h.s16 %v2580
      %v2657 = vunpack.i.l.s16 %v2594
      %v2658 = vunpack.i.h.s16 %v2594
      %v2659 = vunpack.i.l.s16 %v2596
      %v2660 = vunpack.i.h.s16 %v2596
      %v2661 = vunpack.i.l.s16 %v2598
      %v2662 = vunpack.i.h.s16 %v2598
      %v2663 = vld [vmem:[%s556] sm:$0xf]
      %v2664 = vld [vmem:[%s556 + $0x4] sm:$0xf]
      %v2665 = vld [vmem:[%s556 + $0x8] sm:$0xf]
      %v2666 = vld [vmem:[%s556 + $0xc] sm:$0xf]
      %v2667 = vld [vmem:[%s556 + $0x10] sm:$0xf]
      %v2668 = vld [vmem:[%s556 + $0x14] sm:$0xf]
      %v2669 = vld [vmem:[%s556 + $0x18] sm:$0xf]
      %v2670 = vld [vmem:[%s556 + $0x1c] sm:$0xf]
      %v2671 = vld [vmem:[%s556 + $0x20] sm:$0xf]
      %v2672 = vld [vmem:[%s556 + $0x24] sm:$0xf]
      %v2673 = vld [vmem:[%s556 + $0x28] sm:$0xf]
      %v2674 = vld [vmem:[%s556 + $0x2c] sm:$0xf]
      %v2675 = vld [vmem:[%s556 + $0x30] sm:$0xf]
      %v2676 = vld [vmem:[%s556 + $0x34] sm:$0xf]
      %v2677 = vld [vmem:[%s556 + $0x38] sm:$0xf]
      %v2678 = vld [vmem:[%s556 + $0x3c] sm:$0xf]
      %v2679 = vld [vmem:[%s556 + $0x40] sm:$0xf]
      %v2680 = vld [vmem:[%s556 + $0x44] sm:$0xf]
      %v2681 = vld [vmem:[%s556 + $0x48] sm:$0xf]
      %v2682 = vld [vmem:[%s556 + $0x4c] sm:$0xf]
      %v2683 = vld [vmem:[%s556 + $0x50] sm:$0xf]
      %v2684 = vld [vmem:[%s556 + $0x54] sm:$0xf]
      %v2685 = vld [vmem:[%s556 + $0x58] sm:$0xf]
      %v2686 = vld [vmem:[%s556 + $0x5c] sm:$0xf]
      %v2687 = vld [vmem:[%s556 + $0x60] sm:$0xf]
      %v2688 = vld [vmem:[%s556 + $0x64] sm:$0xf]
      %v2689 = vld [vmem:[%s556 + $0x68] sm:$0xf]
      %v2690 = vld [vmem:[%s556 + $0x6c] sm:$0xf]
      %v2691 = vld [vmem:[%s556 + $0x70] sm:$0xf]
      %v2692 = vld [vmem:[%s556 + $0x74] sm:$0xf]
      %v2693 = vld [vmem:[%s556 + $0x78] sm:$0xf]
      %v2694 = vld [vmem:[%s556 + $0x7c] sm:$0xf]
      %v2695 = vld [vmem:[%s556 + $0x80] sm:$0xf]
      %v2696 = vld [vmem:[%s556 + $0x84] sm:$0xf]
      %v2697 = vld [vmem:[%s556 + $0x88] sm:$0xf]
      %v2698 = vld [vmem:[%s556 + $0x8c] sm:$0xf]
      %v2699 = vld [vmem:[%s556 + $0x90] sm:$0xf]
      %v2700 = vld [vmem:[%s556 + $0x94] sm:$0xf]
      %v2701 = vld [vmem:[%s556 + $0x98] sm:$0xf]
      %v2702 = vld [vmem:[%s556 + $0x9c] sm:$0xf]
      %v2703 = vld [vmem:[%s556 + $0xa0] sm:$0xf]
      %v2704 = vld [vmem:[%s556 + $0xa4] sm:$0xf]
      %v2705 = vld [vmem:[%s556 + $0xa8] sm:$0xf]
      %v2706 = vld [vmem:[%s556 + $0xac] sm:$0xf]
      %v2707 = vld [vmem:[%s556 + $0xb0] sm:$0xf]
      %v2708 = vld [vmem:[%s556 + $0xb4] sm:$0xf]
      %v2709 = vld [vmem:[%s556 + $0xb8] sm:$0xf]
      %v2710 = vld [vmem:[%s556 + $0xbc] sm:$0xf]
      %v2711 = vld [vmem:[%s556 + $0xc0] sm:$0xf]
      %v2712 = vld [vmem:[%s556 + $0xc4] sm:$0xf]
      %v2713 = vld [vmem:[%s556 + $0xc8] sm:$0xf]
      %v2714 = vld [vmem:[%s556 + $0xcc] sm:$0xf]
      %v2715 = vld [vmem:[%s556 + $0xd0] sm:$0xf]
      %v2716 = vld [vmem:[%s556 + $0xd4] sm:$0xf]
      %v2717 = vld [vmem:[%s556 + $0xd8] sm:$0xf]
      %v2718 = vld [vmem:[%s556 + $0xdc] sm:$0xf]
      %v2719 = vld [vmem:[%s556 + $0xe0] sm:$0xf]
      %v2720 = vld [vmem:[%s556 + $0xe4] sm:$0xf]
      %v2721 = vld [vmem:[%s556 + $0xe8] sm:$0xf]
      %v2722 = vld [vmem:[%s556 + $0xec] sm:$0xf]
      %v2723 = vld [vmem:[%s556 + $0xf0] sm:$0xf]
      %v2724 = vld [vmem:[%s556 + $0xf4] sm:$0xf]
      %v2725 = vld [vmem:[%s556 + $0xf8] sm:$0xf]
      %v2726 = vld [vmem:[%s556 + $0xfc] sm:$0xf]
      %v2727 = vpack.i.b16 %v2599, %v2599
      %v2728 = vpack.i.b16 %v2600, %v2600
      %v2729 = vpack.i.b16 %v2601, %v2601
      %v2730 = vpack.i.b16 %v2602, %v2602
      %v2731 = vpack.i.b16 %v2603, %v2603
      %v2732 = vpack.i.b16 %v2604, %v2604
      %v2733 = vpack.i.b16 %v2605, %v2605
      %v2734 = vpack.i.b16 %v2606, %v2606
      %v2735 = vpack.i.b16 %v2607, %v2607
      %v2736 = vpack.i.b16 %v2608, %v2608
      %v2737 = vpack.i.b16 %v2609, %v2609
      %v2738 = vpack.i.b16 %v2610, %v2610
      %v2739 = vpack.i.b16 %v2611, %v2611
      %v2740 = vpack.i.b16 %v2612, %v2612
      %v2741 = vpack.i.b16 %v2613, %v2613
      %v2742 = vpack.i.b16 %v2614, %v2614
      %v2743 = vpack.i.b16 %v2615, %v2615
      %v2744 = vpack.i.b16 %v2616, %v2616
      %v2745 = vpack.i.b16 %v2617, %v2617
      %v2746 = vpack.i.b16 %v2618, %v2618
      %v2747 = vpack.i.b16 %v2619, %v2619
      %v2748 = vpack.i.b16 %v2620, %v2620
      %v2749 = vpack.i.b16 %v2621, %v2621
      %v2750 = vpack.i.b16 %v2622, %v2622
      %v2751 = vpack.i.b16 %v2623, %v2623
      %v2752 = vpack.i.b16 %v2624, %v2624
      %v2753 = vpack.i.b16 %v2625, %v2625
      %v2754 = vpack.i.b16 %v2626, %v2626
      %v2755 = vpack.i.b16 %v2627, %v2627
      %v2756 = vpack.i.b16 %v2628, %v2628
      %v2757 = vpack.i.b16 %v2629, %v2629
      %v2758 = vpack.i.b16 %v2630, %v2630
      %v2759 = vpack.i.b16 %v2631, %v2631
      %v2760 = vpack.i.b16 %v2632, %v2632
      %v2761 = vpack.i.b16 %v2633, %v2633
      %v2762 = vpack.i.b16 %v2634, %v2634
      %v2763 = vpack.i.b16 %v2635, %v2635
      %v2764 = vpack.i.b16 %v2636, %v2636
      %v2765 = vpack.i.b16 %v2637, %v2637
      %v2766 = vpack.i.b16 %v2638, %v2638
      %v2767 = vpack.i.b16 %v2639, %v2639
      %v2768 = vpack.i.b16 %v2640, %v2640
      %v2769 = vpack.i.b16 %v2641, %v2641
      %v2770 = vpack.i.b16 %v2642, %v2642
      %v2771 = vpack.i.b16 %v2643, %v2643
      %v2772 = vpack.i.b16 %v2644, %v2644
      %v2773 = vpack.i.b16 %v2645, %v2645
      %v2774 = vpack.i.b16 %v2646, %v2646
      %v2775 = vpack.i.b16 %v2647, %v2647
      %v2776 = vpack.i.b16 %v2648, %v2648
      %v2777 = vpack.i.b16 %v2649, %v2649
      %v2778 = vpack.i.b16 %v2650, %v2650
      %v2779 = vpack.i.b16 %v2651, %v2651
      %v2780 = vpack.i.b16 %v2652, %v2652
      %v2781 = vpack.i.b16 %v2653, %v2653
      %v2782 = vpack.i.b16 %v2654, %v2654
      %v2783 = vpack.i.b16 %v2655, %v2655
      %v2784 = vpack.i.b16 %v2656, %v2656
      %v2785 = vpack.i.b16 %v2657, %v2657
      %v2786 = vpack.i.b16 %v2658, %v2658
      %v2787 = vpack.i.b16 %v2659, %v2659
      %v2788 = vpack.i.b16 %v2660, %v2660
      %v2789 = vpack.i.b16 %v2661, %v2661
      %v2790 = vpack.i.b16 %v2662, %v2662
      %v2791 = vlaneseq
      %v2792 = vshrl.u32 %v2791, 7
      %v2793 = vsub.s32 0, %v2792
      %v2794 = vrot.slane %v2727, %v2793
      %v2795 = vlaneseq
      %v2796 = vshrl.u32 %v2795, 7
      %v2797 = vsub.s32 0, %v2796
      %v2798 = vrot.slane %v2728, %v2797
      %v2799 = vlaneseq
      %v2800 = vshrl.u32 %v2799, 7
      %v2801 = vsub.s32 0, %v2800
      %v2802 = vrot.slane %v2729, %v2801
      %v2803 = vlaneseq
      %v2804 = vshrl.u32 %v2803, 7
      %v2805 = vsub.s32 0, %v2804
      %v2806 = vrot.slane %v2730, %v2805
      %v2807 = vlaneseq
      %v2808 = vshrl.u32 %v2807, 7
      %v2809 = vsub.s32 0, %v2808
      %v2810 = vrot.slane %v2731, %v2809
      %v2811 = vlaneseq
      %v2812 = vshrl.u32 %v2811, 7
      %v2813 = vsub.s32 0, %v2812
      %v2814 = vrot.slane %v2732, %v2813
      %v2815 = vlaneseq
      %v2816 = vshrl.u32 %v2815, 7
      %v2817 = vsub.s32 0, %v2816
      %v2818 = vrot.slane %v2733, %v2817
      %v2819 = vlaneseq
      %v2820 = vshrl.u32 %v2819, 7
      %v2821 = vsub.s32 0, %v2820
      %v2822 = vrot.slane %v2734, %v2821
      %v2823 = vlaneseq
      %v2824 = vshrl.u32 %v2823, 7
      %v2825 = vsub.s32 0, %v2824
      %v2826 = vrot.slane %v2735, %v2825
      %v2827 = vlaneseq
      %v2828 = vshrl.u32 %v2827, 7
      %v2829 = vsub.s32 0, %v2828
      %v2830 = vrot.slane %v2736, %v2829
      %v2831 = vlaneseq
      %v2832 = vshrl.u32 %v2831, 7
      %v2833 = vsub.s32 0, %v2832
      %v2834 = vrot.slane %v2737, %v2833
      %v2835 = vlaneseq
      %v2836 = vshrl.u32 %v2835, 7
      %v2837 = vsub.s32 0, %v2836
      %v2838 = vrot.slane %v2738, %v2837
      %v2839 = vlaneseq
      %v2840 = vshrl.u32 %v2839, 7
      %v2841 = vsub.s32 0, %v2840
      %v2842 = vrot.slane %v2739, %v2841
      %v2843 = vlaneseq
      %v2844 = vshrl.u32 %v2843, 7
      %v2845 = vsub.s32 0, %v2844
      %v2846 = vrot.slane %v2740, %v2845
      %v2847 = vlaneseq
      %v2848 = vshrl.u32 %v2847, 7
      %v2849 = vsub.s32 0, %v2848
      %v2850 = vrot.slane %v2741, %v2849
      %v2851 = vlaneseq
      %v2852 = vshrl.u32 %v2851, 7
      %v2853 = vsub.s32 0, %v2852
      %v2854 = vrot.slane %v2742, %v2853
      %v2855 = vlaneseq
      %v2856 = vshrl.u32 %v2855, 7
      %v2857 = vsub.s32 0, %v2856
      %v2858 = vrot.slane %v2743, %v2857
      %v2859 = vlaneseq
      %v2860 = vshrl.u32 %v2859, 7
      %v2861 = vsub.s32 0, %v2860
      %v2862 = vrot.slane %v2744, %v2861
      %v2863 = vlaneseq
      %v2864 = vshrl.u32 %v2863, 7
      %v2865 = vsub.s32 0, %v2864
      %v2866 = vrot.slane %v2745, %v2865
      %v2867 = vlaneseq
      %v2868 = vshrl.u32 %v2867, 7
      %v2869 = vsub.s32 0, %v2868
      %v2870 = vrot.slane %v2746, %v2869
      %v2871 = vlaneseq
      %v2872 = vshrl.u32 %v2871, 7
      %v2873 = vsub.s32 0, %v2872
      %v2874 = vrot.slane %v2747, %v2873
      %v2875 = vlaneseq
      %v2876 = vshrl.u32 %v2875, 7
      %v2877 = vsub.s32 0, %v2876
      %v2878 = vrot.slane %v2748, %v2877
      %v2879 = vlaneseq
      %v2880 = vshrl.u32 %v2879, 7
      %v2881 = vsub.s32 0, %v2880
      %v2882 = vrot.slane %v2749, %v2881
      %v2883 = vlaneseq
      %v2884 = vshrl.u32 %v2883, 7
      %v2885 = vsub.s32 0, %v2884
      %v2886 = vrot.slane %v2750, %v2885
      %v2887 = vlaneseq
      %v2888 = vshrl.u32 %v2887, 7
      %v2889 = vsub.s32 0, %v2888
      %v2890 = vrot.slane %v2751, %v2889
      %v2891 = vlaneseq
      %v2892 = vshrl.u32 %v2891, 7
      %v2893 = vsub.s32 0, %v2892
      %v2894 = vrot.slane %v2752, %v2893
      %v2895 = vlaneseq
      %v2896 = vshrl.u32 %v2895, 7
      %v2897 = vsub.s32 0, %v2896
      %v2898 = vrot.slane %v2753, %v2897
      %v2899 = vlaneseq
      %v2900 = vshrl.u32 %v2899, 7
      %v2901 = vsub.s32 0, %v2900
      %v2902 = vrot.slane %v2754, %v2901
      %v2903 = vlaneseq
      %v2904 = vshrl.u32 %v2903, 7
      %v2905 = vsub.s32 0, %v2904
      %v2906 = vrot.slane %v2755, %v2905
      %v2907 = vlaneseq
      %v2908 = vshrl.u32 %v2907, 7
      %v2909 = vsub.s32 0, %v2908
      %v2910 = vrot.slane %v2756, %v2909
      %v2911 = vlaneseq
      %v2912 = vshrl.u32 %v2911, 7
      %v2913 = vsub.s32 0, %v2912
      %v2914 = vrot.slane %v2757, %v2913
      %v2915 = vlaneseq
      %v2916 = vshrl.u32 %v2915, 7
      %v2917 = vsub.s32 0, %v2916
      %v2918 = vrot.slane %v2758, %v2917
      %v2919 = vlaneseq
      %v2920 = vshrl.u32 %v2919, 7
      %v2921 = vsub.s32 0, %v2920
      %v2922 = vrot.slane %v2759, %v2921
      %v2923 = vlaneseq
      %v2924 = vshrl.u32 %v2923, 7
      %v2925 = vsub.s32 0, %v2924
      %v2926 = vrot.slane %v2760, %v2925
      %v2927 = vlaneseq
      %v2928 = vshrl.u32 %v2927, 7
      %v2929 = vsub.s32 0, %v2928
      %v2930 = vrot.slane %v2761, %v2929
      %v2931 = vlaneseq
      %v2932 = vshrl.u32 %v2931, 7
      %v2933 = vsub.s32 0, %v2932
      %v2934 = vrot.slane %v2762, %v2933
      %v2935 = vlaneseq
      %v2936 = vshrl.u32 %v2935, 7
      %v2937 = vsub.s32 0, %v2936
      %v2938 = vrot.slane %v2763, %v2937
      %v2939 = vlaneseq
      %v2940 = vshrl.u32 %v2939, 7
      %v2941 = vsub.s32 0, %v2940
      %v2942 = vrot.slane %v2764, %v2941
      %v2943 = vlaneseq
      %v2944 = vshrl.u32 %v2943, 7
      %v2945 = vsub.s32 0, %v2944
      %v2946 = vrot.slane %v2765, %v2945
      %v2947 = vlaneseq
      %v2948 = vshrl.u32 %v2947, 7
      %v2949 = vsub.s32 0, %v2948
      %v2950 = vrot.slane %v2766, %v2949
      %v2951 = vlaneseq
      %v2952 = vshrl.u32 %v2951, 7
      %v2953 = vsub.s32 0, %v2952
      %v2954 = vrot.slane %v2767, %v2953
      %v2955 = vlaneseq
      %v2956 = vshrl.u32 %v2955, 7
      %v2957 = vsub.s32 0, %v2956
      %v2958 = vrot.slane %v2768, %v2957
      %v2959 = vlaneseq
      %v2960 = vshrl.u32 %v2959, 7
      %v2961 = vsub.s32 0, %v2960
      %v2962 = vrot.slane %v2769, %v2961
      %v2963 = vlaneseq
      %v2964 = vshrl.u32 %v2963, 7
      %v2965 = vsub.s32 0, %v2964
      %v2966 = vrot.slane %v2770, %v2965
      %v2967 = vlaneseq
      %v2968 = vshrl.u32 %v2967, 7
      %v2969 = vsub.s32 0, %v2968
      %v2970 = vrot.slane %v2771, %v2969
      %v2971 = vlaneseq
      %v2972 = vshrl.u32 %v2971, 7
      %v2973 = vsub.s32 0, %v2972
      %v2974 = vrot.slane %v2772, %v2973
      %v2975 = vlaneseq
      %v2976 = vshrl.u32 %v2975, 7
      %v2977 = vsub.s32 0, %v2976
      %v2978 = vrot.slane %v2773, %v2977
      %v2979 = vlaneseq
      %v2980 = vshrl.u32 %v2979, 7
      %v2981 = vsub.s32 0, %v2980
      %v2982 = vrot.slane %v2774, %v2981
      %v2983 = vlaneseq
      %v2984 = vshrl.u32 %v2983, 7
      %v2985 = vsub.s32 0, %v2984
      %v2986 = vrot.slane %v2775, %v2985
      %v2987 = vlaneseq
      %v2988 = vshrl.u32 %v2987, 7
      %v2989 = vsub.s32 0, %v2988
      %v2990 = vrot.slane %v2776, %v2989
      %v2991 = vlaneseq
      %v2992 = vshrl.u32 %v2991, 7
      %v2993 = vsub.s32 0, %v2992
      %v2994 = vrot.slane %v2777, %v2993
      %v2995 = vlaneseq
      %v2996 = vshrl.u32 %v2995, 7
      %v2997 = vsub.s32 0, %v2996
      %v2998 = vrot.slane %v2778, %v2997
      %v2999 = vlaneseq
      %v3000 = vshrl.u32 %v2999, 7
      %v3001 = vsub.s32 0, %v3000
      %v3002 = vrot.slane %v2779, %v3001
      %v3003 = vlaneseq
      %v3004 = vshrl.u32 %v3003, 7
      %v3005 = vsub.s32 0, %v3004
      %v3006 = vrot.slane %v2780, %v3005
      %v3007 = vlaneseq
      %v3008 = vshrl.u32 %v3007, 7
      %v3009 = vsub.s32 0, %v3008
      %v3010 = vrot.slane %v2781, %v3009
      %v3011 = vlaneseq
      %v3012 = vshrl.u32 %v3011, 7
      %v3013 = vsub.s32 0, %v3012
      %v3014 = vrot.slane %v2782, %v3013
      %v3015 = vlaneseq
      %v3016 = vshrl.u32 %v3015, 7
      %v3017 = vsub.s32 0, %v3016
      %v3018 = vrot.slane %v2783, %v3017
      %v3019 = vlaneseq
      %v3020 = vshrl.u32 %v3019, 7
      %v3021 = vsub.s32 0, %v3020
      %v3022 = vrot.slane %v2784, %v3021
      %v3023 = vlaneseq
      %v3024 = vshrl.u32 %v3023, 7
      %v3025 = vsub.s32 0, %v3024
      %v3026 = vrot.slane %v2785, %v3025
      %v3027 = vlaneseq
      %v3028 = vshrl.u32 %v3027, 7
      %v3029 = vsub.s32 0, %v3028
      %v3030 = vrot.slane %v2786, %v3029
      %v3031 = vlaneseq
      %v3032 = vshrl.u32 %v3031, 7
      %v3033 = vsub.s32 0, %v3032
      %v3034 = vrot.slane %v2787, %v3033
      %v3035 = vlaneseq
      %v3036 = vshrl.u32 %v3035, 7
      %v3037 = vsub.s32 0, %v3036
      %v3038 = vrot.slane %v2788, %v3037
      %v3039 = vlaneseq
      %v3040 = vshrl.u32 %v3039, 7
      %v3041 = vsub.s32 0, %v3040
      %v3042 = vrot.slane %v2789, %v3041
      %v3043 = vlaneseq
      %v3044 = vshrl.u32 %v3043, 7
      %v3045 = vsub.s32 0, %v3044
      %v3046 = vrot.slane %v2790, %v3045
      %v3048 = vpack.i.b16 %v2794, %v2794
      %v3050 = vlaneseq
      %v3051 = vshrl.u32 %v3050, 7
      %v3052 = vsub.s32 0, %v3051
      %v3053 = vrot.slane %v3048, %v3052
      %v3055 = vpack.i.b16 %v2798, %v2798
      %v3057 = vlaneseq
      %v3058 = vshrl.u32 %v3057, 7
      %v3059 = vsub.s32 0, %v3058
      %v3060 = vrot.slane %v3055, %v3059
      %v3062 = vpack.i.b16 %v2802, %v2802
      %v3064 = vlaneseq
      %v3065 = vshrl.u32 %v3064, 7
      %v3066 = vsub.s32 0, %v3065
      %v3067 = vrot.slane %v3062, %v3066
      %v3069 = vpack.i.b16 %v2806, %v2806
      %v3071 = vlaneseq
      %v3072 = vshrl.u32 %v3071, 7
      %v3073 = vsub.s32 0, %v3072
      %v3074 = vrot.slane %v3069, %v3073
      %v3076 = vpack.i.b16 %v2810, %v2810
      %v3078 = vlaneseq
      %v3079 = vshrl.u32 %v3078, 7
      %v3080 = vsub.s32 0, %v3079
      %v3081 = vrot.slane %v3076, %v3080
      %v3083 = vpack.i.b16 %v2814, %v2814
      %v3085 = vlaneseq
      %v3086 = vshrl.u32 %v3085, 7
      %v3087 = vsub.s32 0, %v3086
      %v3088 = vrot.slane %v3083, %v3087
      %v3090 = vpack.i.b16 %v2818, %v2818
      %v3092 = vlaneseq
      %v3093 = vshrl.u32 %v3092, 7
      %v3094 = vsub.s32 0, %v3093
      %v3095 = vrot.slane %v3090, %v3094
      %v3097 = vpack.i.b16 %v2822, %v2822
      %v3099 = vlaneseq
      %v3100 = vshrl.u32 %v3099, 7
      %v3101 = vsub.s32 0, %v3100
      %v3102 = vrot.slane %v3097, %v3101
      %v3104 = vpack.i.b16 %v2826, %v2826
      %v3106 = vlaneseq
      %v3107 = vshrl.u32 %v3106, 7
      %v3108 = vsub.s32 0, %v3107
      %v3109 = vrot.slane %v3104, %v3108
      %v3111 = vpack.i.b16 %v2830, %v2830
      %v3113 = vlaneseq
      %v3114 = vshrl.u32 %v3113, 7
      %v3115 = vsub.s32 0, %v3114
      %v3116 = vrot.slane %v3111, %v3115
      %v3118 = vpack.i.b16 %v2834, %v2834
      %v3120 = vlaneseq
      %v3121 = vshrl.u32 %v3120, 7
      %v3122 = vsub.s32 0, %v3121
      %v3123 = vrot.slane %v3118, %v3122
      %v3125 = vpack.i.b16 %v2838, %v2838
      %v3127 = vlaneseq
      %v3128 = vshrl.u32 %v3127, 7
      %v3129 = vsub.s32 0, %v3128
      %v3130 = vrot.slane %v3125, %v3129
      %v3132 = vpack.i.b16 %v2842, %v2842
      %v3134 = vlaneseq
      %v3135 = vshrl.u32 %v3134, 7
      %v3136 = vsub.s32 0, %v3135
      %v3137 = vrot.slane %v3132, %v3136
      %v3139 = vpack.i.b16 %v2846, %v2846
      %v3141 = vlaneseq
      %v3142 = vshrl.u32 %v3141, 7
      %v3143 = vsub.s32 0, %v3142
      %v3144 = vrot.slane %v3139, %v3143
      %v3146 = vpack.i.b16 %v2850, %v2850
      %v3148 = vlaneseq
      %v3149 = vshrl.u32 %v3148, 7
      %v3150 = vsub.s32 0, %v3149
      %v3151 = vrot.slane %v3146, %v3150
      %v3153 = vpack.i.b16 %v2854, %v2854
      %v3155 = vlaneseq
      %v3156 = vshrl.u32 %v3155, 7
      %v3157 = vsub.s32 0, %v3156
      %v3158 = vrot.slane %v3153, %v3157
      %v3160 = vpack.i.b16 %v2858, %v2858
      %v3162 = vlaneseq
      %v3163 = vshrl.u32 %v3162, 7
      %v3164 = vsub.s32 0, %v3163
      %v3165 = vrot.slane %v3160, %v3164
      %v3167 = vpack.i.b16 %v2862, %v2862
      %v3169 = vlaneseq
      %v3170 = vshrl.u32 %v3169, 7
      %v3171 = vsub.s32 0, %v3170
      %v3172 = vrot.slane %v3167, %v3171
      %v3174 = vpack.i.b16 %v2866, %v2866
      %v3176 = vlaneseq
      %v3177 = vshrl.u32 %v3176, 7
      %v3178 = vsub.s32 0, %v3177
      %v3179 = vrot.slane %v3174, %v3178
      %v3181 = vpack.i.b16 %v2870, %v2870
      %v3183 = vlaneseq
      %v3184 = vshrl.u32 %v3183, 7
      %v3185 = vsub.s32 0, %v3184
      %v3186 = vrot.slane %v3181, %v3185
      %v3188 = vpack.i.b16 %v2874, %v2874
      %v3190 = vlaneseq
      %v3191 = vshrl.u32 %v3190, 7
      %v3192 = vsub.s32 0, %v3191
      %v3193 = vrot.slane %v3188, %v3192
      %v3195 = vpack.i.b16 %v2878, %v2878
      %v3197 = vlaneseq
      %v3198 = vshrl.u32 %v3197, 7
      %v3199 = vsub.s32 0, %v3198
      %v3200 = vrot.slane %v3195, %v3199
      %v3202 = vpack.i.b16 %v2882, %v2882
      %v3204 = vlaneseq
      %v3205 = vshrl.u32 %v3204, 7
      %v3206 = vsub.s32 0, %v3205
      %v3207 = vrot.slane %v3202, %v3206
      %v3209 = vpack.i.b16 %v2886, %v2886
      %v3211 = vlaneseq
      %v3212 = vshrl.u32 %v3211, 7
      %v3213 = vsub.s32 0, %v3212
      %v3214 = vrot.slane %v3209, %v3213
      %v3216 = vpack.i.b16 %v2890, %v2890
      %v3218 = vlaneseq
      %v3219 = vshrl.u32 %v3218, 7
      %v3220 = vsub.s32 0, %v3219
      %v3221 = vrot.slane %v3216, %v3220
      %v3223 = vpack.i.b16 %v2894, %v2894
      %v3225 = vlaneseq
      %v3226 = vshrl.u32 %v3225, 7
      %v3227 = vsub.s32 0, %v3226
      %v3228 = vrot.slane %v3223, %v3227
      %v3230 = vpack.i.b16 %v2898, %v2898
      %v3232 = vlaneseq
      %v3233 = vshrl.u32 %v3232, 7
      %v3234 = vsub.s32 0, %v3233
      %v3235 = vrot.slane %v3230, %v3234
      %v3237 = vpack.i.b16 %v2902, %v2902
      %v3239 = vlaneseq
      %v3240 = vshrl.u32 %v3239, 7
      %v3241 = vsub.s32 0, %v3240
      %v3242 = vrot.slane %v3237, %v3241
      %v3244 = vpack.i.b16 %v2906, %v2906
      %v3246 = vlaneseq
      %v3247 = vshrl.u32 %v3246, 7
      %v3248 = vsub.s32 0, %v3247
      %v3249 = vrot.slane %v3244, %v3248
      %v3251 = vpack.i.b16 %v2910, %v2910
      %v3253 = vlaneseq
      %v3254 = vshrl.u32 %v3253, 7
      %v3255 = vsub.s32 0, %v3254
      %v3256 = vrot.slane %v3251, %v3255
      %v3258 = vpack.i.b16 %v2914, %v2914
      %v3260 = vlaneseq
      %v3261 = vshrl.u32 %v3260, 7
      %v3262 = vsub.s32 0, %v3261
      %v3263 = vrot.slane %v3258, %v3262
      %v3265 = vpack.i.b16 %v2918, %v2918
      %v3267 = vlaneseq
      %v3268 = vshrl.u32 %v3267, 7
      %v3269 = vsub.s32 0, %v3268
      %v3270 = vrot.slane %v3265, %v3269
      %v3272 = vpack.i.b16 %v2922, %v2922
      %v3274 = vlaneseq
      %v3275 = vshrl.u32 %v3274, 7
      %v3276 = vsub.s32 0, %v3275
      %v3277 = vrot.slane %v3272, %v3276
      %v3279 = vpack.i.b16 %v2926, %v2926
      %v3281 = vlaneseq
      %v3282 = vshrl.u32 %v3281, 7
      %v3283 = vsub.s32 0, %v3282
      %v3284 = vrot.slane %v3279, %v3283
      %v3286 = vpack.i.b16 %v2930, %v2930
      %v3288 = vlaneseq
      %v3289 = vshrl.u32 %v3288, 7
      %v3290 = vsub.s32 0, %v3289
      %v3291 = vrot.slane %v3286, %v3290
      %v3293 = vpack.i.b16 %v2934, %v2934
      %v3295 = vlaneseq
      %v3296 = vshrl.u32 %v3295, 7
      %v3297 = vsub.s32 0, %v3296
      %v3298 = vrot.slane %v3293, %v3297
      %v3300 = vpack.i.b16 %v2938, %v2938
      %v3302 = vlaneseq
      %v3303 = vshrl.u32 %v3302, 7
      %v3304 = vsub.s32 0, %v3303
      %v3305 = vrot.slane %v3300, %v3304
      %v3307 = vpack.i.b16 %v2942, %v2942
      %v3309 = vlaneseq
      %v3310 = vshrl.u32 %v3309, 7
      %v3311 = vsub.s32 0, %v3310
      %v3312 = vrot.slane %v3307, %v3311
      %v3314 = vpack.i.b16 %v2946, %v2946
      %v3316 = vlaneseq
      %v3317 = vshrl.u32 %v3316, 7
      %v3318 = vsub.s32 0, %v3317
      %v3319 = vrot.slane %v3314, %v3318
      %v3321 = vpack.i.b16 %v2950, %v2950
      %v3323 = vlaneseq
      %v3324 = vshrl.u32 %v3323, 7
      %v3325 = vsub.s32 0, %v3324
      %v3326 = vrot.slane %v3321, %v3325
      %v3328 = vpack.i.b16 %v2954, %v2954
      %v3330 = vlaneseq
      %v3331 = vshrl.u32 %v3330, 7
      %v3332 = vsub.s32 0, %v3331
      %v3333 = vrot.slane %v3328, %v3332
      %v3335 = vpack.i.b16 %v2958, %v2958
      %v3337 = vlaneseq
      %v3338 = vshrl.u32 %v3337, 7
      %v3339 = vsub.s32 0, %v3338
      %v3340 = vrot.slane %v3335, %v3339
      %v3342 = vpack.i.b16 %v2962, %v2962
      %v3344 = vlaneseq
      %v3345 = vshrl.u32 %v3344, 7
      %v3346 = vsub.s32 0, %v3345
      %v3347 = vrot.slane %v3342, %v3346
      %v3349 = vpack.i.b16 %v2966, %v2966
      %v3351 = vlaneseq
      %v3352 = vshrl.u32 %v3351, 7
      %v3353 = vsub.s32 0, %v3352
      %v3354 = vrot.slane %v3349, %v3353
      %v3356 = vpack.i.b16 %v2970, %v2970
      %v3358 = vlaneseq
      %v3359 = vshrl.u32 %v3358, 7
      %v3360 = vsub.s32 0, %v3359
      %v3361 = vrot.slane %v3356, %v3360
      %v3363 = vpack.i.b16 %v2974, %v2974
      %v3365 = vlaneseq
      %v3366 = vshrl.u32 %v3365, 7
      %v3367 = vsub.s32 0, %v3366
      %v3368 = vrot.slane %v3363, %v3367
      %v3370 = vpack.i.b16 %v2978, %v2978
      %v3372 = vlaneseq
      %v3373 = vshrl.u32 %v3372, 7
      %v3374 = vsub.s32 0, %v3373
      %v3375 = vrot.slane %v3370, %v3374
      %v3377 = vpack.i.b16 %v2982, %v2982
      %v3379 = vlaneseq
      %v3380 = vshrl.u32 %v3379, 7
      %v3381 = vsub.s32 0, %v3380
      %v3382 = vrot.slane %v3377, %v3381
      %v3384 = vpack.i.b16 %v2986, %v2986
      %v3386 = vlaneseq
      %v3387 = vshrl.u32 %v3386, 7
      %v3388 = vsub.s32 0, %v3387
      %v3389 = vrot.slane %v3384, %v3388
      %v3391 = vpack.i.b16 %v2990, %v2990
      %v3393 = vlaneseq
      %v3394 = vshrl.u32 %v3393, 7
      %v3395 = vsub.s32 0, %v3394
      %v3396 = vrot.slane %v3391, %v3395
      %v3398 = vpack.i.b16 %v2994, %v2994
      %v3400 = vlaneseq
      %v3401 = vshrl.u32 %v3400, 7
      %v3402 = vsub.s32 0, %v3401
      %v3403 = vrot.slane %v3398, %v3402
      %v3405 = vpack.i.b16 %v2998, %v2998
      %v3407 = vlaneseq
      %v3408 = vshrl.u32 %v3407, 7
      %v3409 = vsub.s32 0, %v3408
      %v3410 = vrot.slane %v3405, %v3409
      %v3412 = vpack.i.b16 %v3002, %v3002
      %v3414 = vlaneseq
      %v3415 = vshrl.u32 %v3414, 7
      %v3416 = vsub.s32 0, %v3415
      %v3417 = vrot.slane %v3412, %v3416
      %v3419 = vpack.i.b16 %v3006, %v3006
      %v3421 = vlaneseq
      %v3422 = vshrl.u32 %v3421, 7
      %v3423 = vsub.s32 0, %v3422
      %v3424 = vrot.slane %v3419, %v3423
      %v3426 = vpack.i.b16 %v3010, %v3010
      %v3428 = vlaneseq
      %v3429 = vshrl.u32 %v3428, 7
      %v3430 = vsub.s32 0, %v3429
      %v3431 = vrot.slane %v3426, %v3430
      %v3433 = vpack.i.b16 %v3014, %v3014
      %v3435 = vlaneseq
      %v3436 = vshrl.u32 %v3435, 7
      %v3437 = vsub.s32 0, %v3436
      %v3438 = vrot.slane %v3433, %v3437
      %v3440 = vpack.i.b16 %v3018, %v3018
      %v3442 = vlaneseq
      %v3443 = vshrl.u32 %v3442, 7
      %v3444 = vsub.s32 0, %v3443
      %v3445 = vrot.slane %v3440, %v3444
      %v3447 = vpack.i.b16 %v3022, %v3022
      %v3449 = vlaneseq
      %v3450 = vshrl.u32 %v3449, 7
      %v3451 = vsub.s32 0, %v3450
      %v3452 = vrot.slane %v3447, %v3451
      %v3454 = vpack.i.b16 %v3026, %v3026
      %v3456 = vlaneseq
      %v3457 = vshrl.u32 %v3456, 7
      %v3458 = vsub.s32 0, %v3457
      %v3459 = vrot.slane %v3454, %v3458
      %v3461 = vpack.i.b16 %v3030, %v3030
      %v3463 = vlaneseq
      %v3464 = vshrl.u32 %v3463, 7
      %v3465 = vsub.s32 0, %v3464
      %v3466 = vrot.slane %v3461, %v3465
      %v3468 = vpack.i.b16 %v3034, %v3034
      %v3470 = vlaneseq
      %v3471 = vshrl.u32 %v3470, 7
      %v3472 = vsub.s32 0, %v3471
      %v3473 = vrot.slane %v3468, %v3472
      %v3475 = vpack.i.b16 %v3038, %v3038
      %v3477 = vlaneseq
      %v3478 = vshrl.u32 %v3477, 7
      %v3479 = vsub.s32 0, %v3478
      %v3480 = vrot.slane %v3475, %v3479
      %v3482 = vpack.i.b16 %v3042, %v3042
      %v3484 = vlaneseq
      %v3485 = vshrl.u32 %v3484, 7
      %v3486 = vsub.s32 0, %v3485
      %v3487 = vrot.slane %v3482, %v3486
      %v3489 = vpack.i.b16 %v3046, %v3046
      %v3491 = vlaneseq
      %v3492 = vshrl.u32 %v3491, 7
      %v3493 = vsub.s32 0, %v3492
      %v3494 = vrot.slane %v3489, %v3493
      %v3495 = vmul.bf16 %v3053, %v2663
      %v3496 = vmul.bf16 %v3060, %v2664
      %v3497 = vmul.bf16 %v3067, %v2665
      %v3498 = vmul.bf16 %v3074, %v2666
      %v3499 = vmul.bf16 %v3081, %v2667
      %v3500 = vmul.bf16 %v3088, %v2668
      %v3501 = vmul.bf16 %v3095, %v2669
      %v3502 = vmul.bf16 %v3102, %v2670
      %v3503 = vmul.bf16 %v3109, %v2671
      %v3504 = vmul.bf16 %v3116, %v2672
      %v3505 = vmul.bf16 %v3123, %v2673
      %v3506 = vmul.bf16 %v3130, %v2674
      %v3507 = vmul.bf16 %v3137, %v2675
      %v3508 = vmul.bf16 %v3144, %v2676
      %v3509 = vmul.bf16 %v3151, %v2677
      %v3510 = vmul.bf16 %v3158, %v2678
      %v3511 = vmul.bf16 %v3165, %v2679
      %v3512 = vmul.bf16 %v3172, %v2680
      %v3513 = vmul.bf16 %v3179, %v2681
      %v3514 = vmul.bf16 %v3186, %v2682
      %v3515 = vmul.bf16 %v3193, %v2683
      %v3516 = vmul.bf16 %v3200, %v2684
      %v3517 = vmul.bf16 %v3207, %v2685
      %v3518 = vmul.bf16 %v3214, %v2686
      %v3519 = vmul.bf16 %v3221, %v2687
      %v3520 = vmul.bf16 %v3228, %v2688
      %v3521 = vmul.bf16 %v3235, %v2689
      %v3522 = vmul.bf16 %v3242, %v2690
      %v3523 = vmul.bf16 %v3249, %v2691
      %v3524 = vmul.bf16 %v3256, %v2692
      %v3525 = vmul.bf16 %v3263, %v2693
      %v3526 = vmul.bf16 %v3270, %v2694
      %v3527 = vmul.bf16 %v3277, %v2695
      %v3528 = vmul.bf16 %v3284, %v2696
      %v3529 = vmul.bf16 %v3291, %v2697
      %v3530 = vmul.bf16 %v3298, %v2698
      %v3531 = vmul.bf16 %v3305, %v2699
      %v3532 = vmul.bf16 %v3312, %v2700
      %v3533 = vmul.bf16 %v3319, %v2701
      %v3534 = vmul.bf16 %v3326, %v2702
      %v3535 = vmul.bf16 %v3333, %v2703
      %v3536 = vmul.bf16 %v3340, %v2704
      %v3537 = vmul.bf16 %v3347, %v2705
      %v3538 = vmul.bf16 %v3354, %v2706
      %v3539 = vmul.bf16 %v3361, %v2707
      %v3540 = vmul.bf16 %v3368, %v2708
      %v3541 = vmul.bf16 %v3375, %v2709
      %v3542 = vmul.bf16 %v3382, %v2710
      %v3543 = vmul.bf16 %v3389, %v2711
      %v3544 = vmul.bf16 %v3396, %v2712
      %v3545 = vmul.bf16 %v3403, %v2713
      %v3546 = vmul.bf16 %v3410, %v2714
      %v3547 = vmul.bf16 %v3417, %v2715
      %v3548 = vmul.bf16 %v3424, %v2716
      %v3549 = vmul.bf16 %v3431, %v2717
      %v3550 = vmul.bf16 %v3438, %v2718
      %v3551 = vmul.bf16 %v3445, %v2719
      %v3552 = vmul.bf16 %v3452, %v2720
      %v3553 = vmul.bf16 %v3459, %v2721
      %v3554 = vmul.bf16 %v3466, %v2722
      %v3555 = vmul.bf16 %v3473, %v2723
      %v3556 = vmul.bf16 %v3480, %v2724
      %v3557 = vmul.bf16 %v3487, %v2725
      %v3558 = vmul.bf16 %v3494, %v2726
      %v3559 = vld [vmem:[%s7] sm:$0xf]
      %v3560 = vld [vmem:[%s7 + $0x4] sm:$0xf]
      %v3561 = vld [vmem:[%s7 + $0x8] sm:$0xf]
      %v3562 = vld [vmem:[%s7 + $0xc] sm:$0xf]
      %v3627 = vunpack.c.l.b16 %v3495
      %v3628 = vunpack.c.l.b16 %v3496
      %v3629 = vunpack.c.l.b16 %v3497
      %v3630 = vunpack.c.l.b16 %v3498
      %v3631 = vunpack.c.l.b16 %v3499
      %v3632 = vunpack.c.l.b16 %v3500
      %v3633 = vunpack.c.l.b16 %v3501
      %v3634 = vunpack.c.l.b16 %v3502
      %v3635 = vunpack.c.l.b16 %v3503
      %v3636 = vunpack.c.l.b16 %v3504
      %v3637 = vunpack.c.l.b16 %v3505
      %v3638 = vunpack.c.l.b16 %v3506
      %v3639 = vunpack.c.l.b16 %v3507
      %v3640 = vunpack.c.l.b16 %v3508
      %v3641 = vunpack.c.l.b16 %v3509
      %v3642 = vunpack.c.l.b16 %v3510
      %v3643 = vunpack.c.l.b16 %v3511
      %v3644 = vunpack.c.l.b16 %v3512
      %v3645 = vunpack.c.l.b16 %v3513
      %v3646 = vunpack.c.l.b16 %v3514
      %v3647 = vunpack.c.l.b16 %v3515
      %v3648 = vunpack.c.l.b16 %v3516
      %v3649 = vunpack.c.l.b16 %v3517
      %v3650 = vunpack.c.l.b16 %v3518
      %v3651 = vunpack.c.l.b16 %v3519
      %v3652 = vunpack.c.l.b16 %v3520
      %v3653 = vunpack.c.l.b16 %v3521
      %v3654 = vunpack.c.l.b16 %v3522
      %v3655 = vunpack.c.l.b16 %v3523
      %v3656 = vunpack.c.l.b16 %v3524
      %v3657 = vunpack.c.l.b16 %v3525
      %v3658 = vunpack.c.l.b16 %v3526
      %v3659 = vunpack.c.l.b16 %v3527
      %v3660 = vunpack.c.l.b16 %v3528
      %v3661 = vunpack.c.l.b16 %v3529
      %v3662 = vunpack.c.l.b16 %v3530
      %v3663 = vunpack.c.l.b16 %v3531
      %v3664 = vunpack.c.l.b16 %v3532
      %v3665 = vunpack.c.l.b16 %v3533
      %v3666 = vunpack.c.l.b16 %v3534
      %v3667 = vunpack.c.l.b16 %v3535
      %v3668 = vunpack.c.l.b16 %v3536
      %v3669 = vunpack.c.l.b16 %v3537
      %v3670 = vunpack.c.l.b16 %v3538
      %v3671 = vunpack.c.l.b16 %v3539
      %v3672 = vunpack.c.l.b16 %v3540
      %v3673 = vunpack.c.l.b16 %v3541
      %v3674 = vunpack.c.l.b16 %v3542
      %v3675 = vunpack.c.l.b16 %v3543
      %v3676 = vunpack.c.l.b16 %v3544
      %v3677 = vunpack.c.l.b16 %v3545
      %v3678 = vunpack.c.l.b16 %v3546
      %v3679 = vunpack.c.l.b16 %v3547
      %v3680 = vunpack.c.l.b16 %v3548
      %v3681 = vunpack.c.l.b16 %v3549
      %v3682 = vunpack.c.l.b16 %v3550
      %v3683 = vunpack.c.l.b16 %v3551
      %v3684 = vunpack.c.l.b16 %v3552
      %v3685 = vunpack.c.l.b16 %v3553
      %v3686 = vunpack.c.l.b16 %v3554
      %v3687 = vunpack.c.l.b16 %v3555
      %v3688 = vunpack.c.l.b16 %v3556
      %v3689 = vunpack.c.l.b16 %v3557
      %v3690 = vunpack.c.l.b16 %v3558
      %v3691 = vpack.c.b16 %v3628, %v3627
      %v3692 = vpack.c.b16 %v3630, %v3629
      %v3693 = vpack.c.b16 %v3632, %v3631
      %v3694 = vpack.c.b16 %v3634, %v3633
      %v3695 = vpack.c.b16 %v3636, %v3635
      %v3696 = vpack.c.b16 %v3638, %v3637
      %v3697 = vpack.c.b16 %v3640, %v3639
      %v3698 = vpack.c.b16 %v3642, %v3641
      %v3699 = vpack.c.b16 %v3644, %v3643
      %v3700 = vpack.c.b16 %v3646, %v3645
      %v3701 = vpack.c.b16 %v3648, %v3647
      %v3702 = vpack.c.b16 %v3650, %v3649
      %v3703 = vpack.c.b16 %v3652, %v3651
      %v3704 = vpack.c.b16 %v3654, %v3653
      %v3705 = vpack.c.b16 %v3656, %v3655
      %v3706 = vpack.c.b16 %v3658, %v3657
      %v3707 = vpack.c.b16 %v3660, %v3659
      %v3708 = vpack.c.b16 %v3662, %v3661
      %v3709 = vpack.c.b16 %v3664, %v3663
      %v3710 = vpack.c.b16 %v3666, %v3665
      %v3711 = vpack.c.b16 %v3668, %v3667
      %v3712 = vpack.c.b16 %v3670, %v3669
      %v3713 = vpack.c.b16 %v3672, %v3671
      %v3714 = vpack.c.b16 %v3674, %v3673
      %v3715 = vpack.c.b16 %v3676, %v3675
      %v3716 = vpack.c.b16 %v3678, %v3677
      %v3717 = vpack.c.b16 %v3680, %v3679
      %v3718 = vpack.c.b16 %v3682, %v3681
      %v3719 = vpack.c.b16 %v3684, %v3683
      %v3720 = vpack.c.b16 %v3686, %v3685
      %v3721 = vpack.c.b16 %v3688, %v3687
      %v3722 = vpack.c.b16 %v3690, %v3689
      %v3727 = vunpack.c.l.b16 %v3559
      %v3728 = vunpack.c.l.b16 %v3560
      %v3729 = vunpack.c.l.b16 %v3561
      %v3730 = vunpack.c.l.b16 %v3562
      %v3731 = vpack.c.b16 %v3728, %v3727
      %v3732 = vpack.c.b16 %v3730, %v3729
      %v3736 = vsel %vm640, %v3691, 0
      %v3739 = vsel %vm640, %v3692, 0
      %v3742 = vsel %vm640, %v3693, 0
      %v3745 = vsel %vm640, %v3694, 0
      %v3748 = vsel %vm640, %v3695, 0
      %v3751 = vsel %vm640, %v3696, 0
      %v3754 = vsel %vm640, %v3697, 0
      %v3757 = vsel %vm640, %v3698, 0
      %v3760 = vsel %vm640, %v3699, 0
      %v3763 = vsel %vm640, %v3700, 0
      %v3766 = vsel %vm640, %v3701, 0
      %v3769 = vsel %vm640, %v3702, 0
      %v3772 = vsel %vm640, %v3703, 0
      %v3775 = vsel %vm640, %v3704, 0
      %v3778 = vsel %vm640, %v3705, 0
      %v3781 = vsel %vm640, %v3706, 0
      %v3784 = vsel %vm640, %v3707, 0
      %v3787 = vsel %vm640, %v3708, 0
      %v3790 = vsel %vm640, %v3709, 0
      %v3793 = vsel %vm640, %v3710, 0
      %v3796 = vsel %vm640, %v3711, 0
      %v3799 = vsel %vm640, %v3712, 0
      %v3802 = vsel %vm640, %v3713, 0
      %v3805 = vsel %vm640, %v3714, 0
      %v3808 = vsel %vm640, %v3715, 0
      %v3811 = vsel %vm640, %v3716, 0
      %v3814 = vsel %vm640, %v3717, 0
      %v3817 = vsel %vm640, %v3718, 0
      %v3820 = vsel %vm640, %v3719, 0
      %v3823 = vsel %vm640, %v3720, 0
      %v3826 = vsel %vm640, %v3721, 0
      %v3829 = vsel %vm640, %v3722, 0
      %3831 = vmatprep.subr.bf16.mxu0 0
      %3832 = vmatpush1.bf16.msra.mxu0 0
      %3833 = vmatprep.subr.bf16.mxu0 0
      %3834 = vmatpush1.bf16.msra.mxu0 0
      %3835 = vmatprep.subr.bf16.mxu0 0
      %3836 = vmatpush1.bf16.msra.mxu0 0
      %3837 = vmatprep.subr.bf16.mxu0 0
      %3838 = vmatpush1.bf16.msra.mxu0 0
      %3839 = vmatprep.subr.bf16.mxu0 0
      %3840 = vmatpush1.bf16.msra.mxu0 0
      %3841 = vmatprep.subr.bf16.mxu0 0
      %3842 = vmatpush1.bf16.msra.mxu0 0
      %3843 = vmatprep.subr.bf16.mxu0 0
      %3844 = vmatpush1.bf16.msra.mxu0 %v3732
      %3845 = vmatprep.subr.bf16.mxu0 0
      %3846 = vmatpush1.bf16.msra.mxu0 %v3731
      %3847 = vmatprep.subr.bf16.mxu0 0
      %3848 = vmatpush2.bf16.msra.mxu0 0
      %3849 = vmatprep.subr.bf16.mxu0 0
      %3850 = vmatpush2.bf16.msra.mxu0 0
      %3851 = vmatprep.subr.bf16.mxu0 0
      %3852 = vmatpush2.bf16.msra.mxu0 0
      %3853 = vmatprep.subr.bf16.mxu0 0
      %3854 = vmatpush2.bf16.msra.mxu0 0
      %3855 = vmatprep.subr.bf16.mxu0 0
      %3856 = vmatpush2.bf16.msra.mxu0 0
      %3857 = vmatprep.subr.bf16.mxu0 0
      %3858 = vmatpush2.bf16.msra.mxu0 0
      %3859 = vmatprep.subr.bf16.mxu0 0
      %3860 = vmatpush2.bf16.msra.mxu0 0
      %3861 = vmatprep.subr.bf16.mxu0 0
      %3862 = vmatpush2.bf16.msra.mxu0 0
      %3863 = vmatprep.mubr.bf16.mxu0 0
      %3864 = vmatmul.mubr.bf16.gmra.mxu0 %v3736
      %v3865 = vpop.f32.mrf.mxu0
      %v3866 = vadd.f32 0.0, %v3865
      %v3867 = vpop.f32.mrf.mxu0
      %v3868 = vpop.f32.mrf.mxu0
      %v3869 = vadd.f32 0.0, %v3868
      %v3870 = vpop.f32.mrf.mxu0
      %3871 = vmatprep.mubr.bf16.mxu0 0
      %3872 = vmatmul.mubr.bf16.gmra.mxu0 %v3739
      %v3873 = vpop.f32.mrf.mxu0
      %v3874 = vadd.f32 0.0, %v3873
      %v3875 = vpop.f32.mrf.mxu0
      %v3876 = vpop.f32.mrf.mxu0
      %v3877 = vadd.f32 0.0, %v3876
      %v3878 = vpop.f32.mrf.mxu0
      %3879 = vmatprep.mubr.bf16.mxu0 0
      %3880 = vmatmul.mubr.bf16.gmra.mxu0 %v3742
      %v3881 = vpop.f32.mrf.mxu0
      %v3882 = vadd.f32 0.0, %v3881
      %v3883 = vpop.f32.mrf.mxu0
      %v3884 = vpop.f32.mrf.mxu0
      %v3885 = vadd.f32 0.0, %v3884
      %v3886 = vpop.f32.mrf.mxu0
      %3887 = vmatprep.mubr.bf16.mxu0 0
      %3888 = vmatmul.mubr.bf16.gmra.mxu0 %v3745
      %v3889 = vpop.f32.mrf.mxu0
      %v3890 = vadd.f32 0.0, %v3889
      %v3891 = vpop.f32.mrf.mxu0
      %v3892 = vpop.f32.mrf.mxu0
      %v3893 = vadd.f32 0.0, %v3892
      %v3894 = vpop.f32.mrf.mxu0
      %3895 = vmatprep.mubr.bf16.mxu0 0
      %3896 = vmatmul.mubr.bf16.gmra.mxu0 %v3748
      %v3897 = vpop.f32.mrf.mxu0
      %v3898 = vadd.f32 0.0, %v3897
      %v3899 = vpop.f32.mrf.mxu0
      %v3900 = vpop.f32.mrf.mxu0
      %v3901 = vadd.f32 0.0, %v3900
      %v3902 = vpop.f32.mrf.mxu0
      %3903 = vmatprep.mubr.bf16.mxu0 0
      %3904 = vmatmul.mubr.bf16.gmra.mxu0 %v3751
      %v3905 = vpop.f32.mrf.mxu0
      %v3906 = vadd.f32 0.0, %v3905
      %v3907 = vpop.f32.mrf.mxu0
      %v3908 = vpop.f32.mrf.mxu0
      %v3909 = vadd.f32 0.0, %v3908
      %v3910 = vpop.f32.mrf.mxu0
      %3911 = vmatprep.mubr.bf16.mxu0 0
      %3912 = vmatmul.mubr.bf16.gmra.mxu0 %v3754
      %v3913 = vpop.f32.mrf.mxu0
      %v3914 = vadd.f32 0.0, %v3913
      %v3915 = vpop.f32.mrf.mxu0
      %v3916 = vpop.f32.mrf.mxu0
      %v3917 = vadd.f32 0.0, %v3916
      %v3918 = vpop.f32.mrf.mxu0
      %3919 = vmatprep.mubr.bf16.mxu0 0
      %3920 = vmatmul.mubr.bf16.gmra.mxu0 %v3757
      %v3921 = vpop.f32.mrf.mxu0
      %v3922 = vadd.f32 0.0, %v3921
      %v3923 = vpop.f32.mrf.mxu0
      %v3924 = vpop.f32.mrf.mxu0
      %v3925 = vadd.f32 0.0, %v3924
      %v3926 = vpop.f32.mrf.mxu0
      %3927 = vmatprep.mubr.bf16.mxu0 0
      %3928 = vmatmul.mubr.bf16.gmra.mxu0 %v3760
      %v3929 = vpop.f32.mrf.mxu0
      %v3930 = vadd.f32 0.0, %v3929
      %v3931 = vpop.f32.mrf.mxu0
      %v3932 = vpop.f32.mrf.mxu0
      %v3933 = vadd.f32 0.0, %v3932
      %v3934 = vpop.f32.mrf.mxu0
      %3935 = vmatprep.mubr.bf16.mxu0 0
      %3936 = vmatmul.mubr.bf16.gmra.mxu0 %v3763
      %v3937 = vpop.f32.mrf.mxu0
      %v3938 = vadd.f32 0.0, %v3937
      %v3939 = vpop.f32.mrf.mxu0
      %v3940 = vpop.f32.mrf.mxu0
      %v3941 = vadd.f32 0.0, %v3940
      %v3942 = vpop.f32.mrf.mxu0
      %3943 = vmatprep.mubr.bf16.mxu0 0
      %3944 = vmatmul.mubr.bf16.gmra.mxu0 %v3766
      %v3945 = vpop.f32.mrf.mxu0
      %v3946 = vadd.f32 0.0, %v3945
      %v3947 = vpop.f32.mrf.mxu0
      %v3948 = vpop.f32.mrf.mxu0
      %v3949 = vadd.f32 0.0, %v3948
      %v3950 = vpop.f32.mrf.mxu0
      %3951 = vmatprep.mubr.bf16.mxu0 0
      %3952 = vmatmul.mubr.bf16.gmra.mxu0 %v3769
      %v3953 = vpop.f32.mrf.mxu0
      %v3954 = vadd.f32 0.0, %v3953
      %v3955 = vpop.f32.mrf.mxu0
      %v3956 = vpop.f32.mrf.mxu0
      %v3957 = vadd.f32 0.0, %v3956
      %v3958 = vpop.f32.mrf.mxu0
      %3959 = vmatprep.mubr.bf16.mxu0 0
      %3960 = vmatmul.mubr.bf16.gmra.mxu0 %v3772
      %v3961 = vpop.f32.mrf.mxu0
      %v3962 = vadd.f32 0.0, %v3961
      %v3963 = vpop.f32.mrf.mxu0
      %v3964 = vpop.f32.mrf.mxu0
      %v3965 = vadd.f32 0.0, %v3964
      %v3966 = vpop.f32.mrf.mxu0
      %3967 = vmatprep.mubr.bf16.mxu0 0
      %3968 = vmatmul.mubr.bf16.gmra.mxu0 %v3775
      %v3969 = vpop.f32.mrf.mxu0
      %v3970 = vadd.f32 0.0, %v3969
      %v3971 = vpop.f32.mrf.mxu0
      %v3972 = vpop.f32.mrf.mxu0
      %v3973 = vadd.f32 0.0, %v3972
      %v3974 = vpop.f32.mrf.mxu0
      %3975 = vmatprep.mubr.bf16.mxu0 0
      %3976 = vmatmul.mubr.bf16.gmra.mxu0 %v3778
      %v3977 = vpop.f32.mrf.mxu0
      %v3978 = vadd.f32 0.0, %v3977
      %v3979 = vpop.f32.mrf.mxu0
      %v3980 = vpop.f32.mrf.mxu0
      %v3981 = vadd.f32 0.0, %v3980
      %v3982 = vpop.f32.mrf.mxu0
      %3983 = vmatprep.mubr.bf16.mxu0 0
      %3984 = vmatmul.mubr.bf16.gmra.mxu0 %v3781
      %v3985 = vpop.f32.mrf.mxu0
      %v3986 = vadd.f32 0.0, %v3985
      %v3987 = vpop.f32.mrf.mxu0
      %v3988 = vpop.f32.mrf.mxu0
      %v3989 = vadd.f32 0.0, %v3988
      %v3990 = vpop.f32.mrf.mxu0
      %3991 = vmatprep.mubr.bf16.mxu0 0
      %3992 = vmatmul.mubr.bf16.gmra.mxu0 %v3784
      %v3993 = vpop.f32.mrf.mxu0
      %v3994 = vadd.f32 0.0, %v3993
      %v3995 = vpop.f32.mrf.mxu0
      %v3996 = vpop.f32.mrf.mxu0
      %v3997 = vadd.f32 0.0, %v3996
      %v3998 = vpop.f32.mrf.mxu0
      %3999 = vmatprep.mubr.bf16.mxu0 0
      %4000 = vmatmul.mubr.bf16.gmra.mxu0 %v3787
      %v4001 = vpop.f32.mrf.mxu0
      %v4002 = vadd.f32 0.0, %v4001
      %v4003 = vpop.f32.mrf.mxu0
      %v4004 = vpop.f32.mrf.mxu0
      %v4005 = vadd.f32 0.0, %v4004
      %v4006 = vpop.f32.mrf.mxu0
      %4007 = vmatprep.mubr.bf16.mxu0 0
      %4008 = vmatmul.mubr.bf16.gmra.mxu0 %v3790
      %v4009 = vpop.f32.mrf.mxu0
      %v4010 = vadd.f32 0.0, %v4009
      %v4011 = vpop.f32.mrf.mxu0
      %v4012 = vpop.f32.mrf.mxu0
      %v4013 = vadd.f32 0.0, %v4012
      %v4014 = vpop.f32.mrf.mxu0
      %4015 = vmatprep.mubr.bf16.mxu0 0
      %4016 = vmatmul.mubr.bf16.gmra.mxu0 %v3793
      %v4017 = vpop.f32.mrf.mxu0
      %v4018 = vadd.f32 0.0, %v4017
      %v4019 = vpop.f32.mrf.mxu0
      %v4020 = vpop.f32.mrf.mxu0
      %v4021 = vadd.f32 0.0, %v4020
      %v4022 = vpop.f32.mrf.mxu0
      %4023 = vmatprep.mubr.bf16.mxu0 0
      %4024 = vmatmul.mubr.bf16.gmra.mxu0 %v3796
      %v4025 = vpop.f32.mrf.mxu0
      %v4026 = vadd.f32 0.0, %v4025
      %v4027 = vpop.f32.mrf.mxu0
      %v4028 = vpop.f32.mrf.mxu0
      %v4029 = vadd.f32 0.0, %v4028
      %v4030 = vpop.f32.mrf.mxu0
      %4031 = vmatprep.mubr.bf16.mxu0 0
      %4032 = vmatmul.mubr.bf16.gmra.mxu0 %v3799
      %v4033 = vpop.f32.mrf.mxu0
      %v4034 = vadd.f32 0.0, %v4033
      %v4035 = vpop.f32.mrf.mxu0
      %v4036 = vpop.f32.mrf.mxu0
      %v4037 = vadd.f32 0.0, %v4036
      %v4038 = vpop.f32.mrf.mxu0
      %4039 = vmatprep.mubr.bf16.mxu0 0
      %4040 = vmatmul.mubr.bf16.gmra.mxu0 %v3802
      %v4041 = vpop.f32.mrf.mxu0
      %v4042 = vadd.f32 0.0, %v4041
      %v4043 = vpop.f32.mrf.mxu0
      %v4044 = vpop.f32.mrf.mxu0
      %v4045 = vadd.f32 0.0, %v4044
      %v4046 = vpop.f32.mrf.mxu0
      %4047 = vmatprep.mubr.bf16.mxu0 0
      %4048 = vmatmul.mubr.bf16.gmra.mxu0 %v3805
      %v4049 = vpop.f32.mrf.mxu0
      %v4050 = vadd.f32 0.0, %v4049
      %v4051 = vpop.f32.mrf.mxu0
      %v4052 = vpop.f32.mrf.mxu0
      %v4053 = vadd.f32 0.0, %v4052
      %v4054 = vpop.f32.mrf.mxu0
      %4055 = vmatprep.mubr.bf16.mxu0 0
      %4056 = vmatmul.mubr.bf16.gmra.mxu0 %v3808
      %v4057 = vpop.f32.mrf.mxu0
      %v4058 = vadd.f32 0.0, %v4057
      %v4059 = vpop.f32.mrf.mxu0
      %v4060 = vpop.f32.mrf.mxu0
      %v4061 = vadd.f32 0.0, %v4060
      %v4062 = vpop.f32.mrf.mxu0
      %4063 = vmatprep.mubr.bf16.mxu0 0
      %4064 = vmatmul.mubr.bf16.gmra.mxu0 %v3811
      %v4065 = vpop.f32.mrf.mxu0
      %v4066 = vadd.f32 0.0, %v4065
      %v4067 = vpop.f32.mrf.mxu0
      %v4068 = vpop.f32.mrf.mxu0
      %v4069 = vadd.f32 0.0, %v4068
      %v4070 = vpop.f32.mrf.mxu0
      %4071 = vmatprep.mubr.bf16.mxu0 0
      %4072 = vmatmul.mubr.bf16.gmra.mxu0 %v3814
      %v4073 = vpop.f32.mrf.mxu0
      %v4074 = vadd.f32 0.0, %v4073
      %v4075 = vpop.f32.mrf.mxu0
      %v4076 = vpop.f32.mrf.mxu0
      %v4077 = vadd.f32 0.0, %v4076
      %v4078 = vpop.f32.mrf.mxu0
      %4079 = vmatprep.mubr.bf16.mxu0 0
      %4080 = vmatmul.mubr.bf16.gmra.mxu0 %v3817
      %v4081 = vpop.f32.mrf.mxu0
      %v4082 = vadd.f32 0.0, %v4081
      %v4083 = vpop.f32.mrf.mxu0
      %v4084 = vpop.f32.mrf.mxu0
      %v4085 = vadd.f32 0.0, %v4084
      %v4086 = vpop.f32.mrf.mxu0
      %4087 = vmatprep.mubr.bf16.mxu0 0
      %4088 = vmatmul.mubr.bf16.gmra.mxu0 %v3820
      %v4089 = vpop.f32.mrf.mxu0
      %v4090 = vadd.f32 0.0, %v4089
      %v4091 = vpop.f32.mrf.mxu0
      %v4092 = vpop.f32.mrf.mxu0
      %v4093 = vadd.f32 0.0, %v4092
      %v4094 = vpop.f32.mrf.mxu0
      %4095 = vmatprep.mubr.bf16.mxu0 0
      %4096 = vmatmul.mubr.bf16.gmra.mxu0 %v3823
      %v4097 = vpop.f32.mrf.mxu0
      %v4098 = vadd.f32 0.0, %v4097
      %v4099 = vpop.f32.mrf.mxu0
      %v4100 = vpop.f32.mrf.mxu0
      %v4101 = vadd.f32 0.0, %v4100
      %v4102 = vpop.f32.mrf.mxu0
      %4103 = vmatprep.mubr.bf16.mxu0 0
      %4104 = vmatmul.mubr.bf16.gmra.mxu0 %v3826
      %v4105 = vpop.f32.mrf.mxu0
      %v4106 = vadd.f32 0.0, %v4105
      %v4107 = vpop.f32.mrf.mxu0
      %v4108 = vpop.f32.mrf.mxu0
      %v4109 = vadd.f32 0.0, %v4108
      %v4110 = vpop.f32.mrf.mxu0
      %4111 = vmatprep.mubr.bf16.mxu0 0
      %4112 = vmatmul.mubr.bf16.gmra.mxu0 %v3829
      %v4113 = vpop.f32.mrf.mxu0
      %v4114 = vadd.f32 0.0, %v4113
      %v4115 = vpop.f32.mrf.mxu0
      %v4116 = vpop.f32.mrf.mxu0
      %v4117 = vadd.f32 0.0, %v4116
      %v4118 = vpop.f32.mrf.mxu0
      %4119 = vdwg.mxu0
      %v4120 = vadd.f32 %v3866, %v2145
      %v4121 = vadd.f32 %v3869, %v2148
      %v4122 = vadd.f32 %v3874, %v2153
      %v4123 = vadd.f32 %v3877, %v2156
      %v4124 = vadd.f32 %v3882, %v2161
      %v4125 = vadd.f32 %v3885, %v2164
      %v4126 = vadd.f32 %v3890, %v2169
      %v4127 = vadd.f32 %v3893, %v2172
      %v4128 = vadd.f32 %v3898, %v2177
      %v4129 = vadd.f32 %v3901, %v2180
      %v4130 = vadd.f32 %v3906, %v2185
      %v4131 = vadd.f32 %v3909, %v2188
      %v4132 = vadd.f32 %v3914, %v2193
      %v4133 = vadd.f32 %v3917, %v2196
      %v4134 = vadd.f32 %v3922, %v2201
      %v4135 = vadd.f32 %v3925, %v2204
      %v4136 = vadd.f32 %v3930, %v2209
      %v4137 = vadd.f32 %v3933, %v2212
      %v4138 = vadd.f32 %v3938, %v2217
      %v4139 = vadd.f32 %v3941, %v2220
      %v4140 = vadd.f32 %v3946, %v2225
      %v4141 = vadd.f32 %v3949, %v2228
      %v4142 = vadd.f32 %v3954, %v2233
      %v4143 = vadd.f32 %v3957, %v2236
      %v4144 = vadd.f32 %v3962, %v2241
      %v4145 = vadd.f32 %v3965, %v2244
      %v4146 = vadd.f32 %v3970, %v2249
      %v4147 = vadd.f32 %v3973, %v2252
      %v4148 = vadd.f32 %v3978, %v2257
      %v4149 = vadd.f32 %v3981, %v2260
      %v4150 = vadd.f32 %v3986, %v2265
      %v4151 = vadd.f32 %v3989, %v2268
      %v4152 = vadd.f32 %v3994, %v2273
      %v4153 = vadd.f32 %v3997, %v2276
      %v4154 = vadd.f32 %v4002, %v2281
      %v4155 = vadd.f32 %v4005, %v2284
      %v4156 = vadd.f32 %v4010, %v2289
      %v4157 = vadd.f32 %v4013, %v2292
      %v4158 = vadd.f32 %v4018, %v2297
      %v4159 = vadd.f32 %v4021, %v2300
      %v4160 = vadd.f32 %v4026, %v2305
      %v4161 = vadd.f32 %v4029, %v2308
      %v4162 = vadd.f32 %v4034, %v2313
      %v4163 = vadd.f32 %v4037, %v2316
      %v4164 = vadd.f32 %v4042, %v2321
      %v4165 = vadd.f32 %v4045, %v2324
      %v4166 = vadd.f32 %v4050, %v2329
      %v4167 = vadd.f32 %v4053, %v2332
      %v4168 = vadd.f32 %v4058, %v2337
      %v4169 = vadd.f32 %v4061, %v2340
      %v4170 = vadd.f32 %v4066, %v2345
      %v4171 = vadd.f32 %v4069, %v2348
      %v4172 = vadd.f32 %v4074, %v2353
      %v4173 = vadd.f32 %v4077, %v2356
      %v4174 = vadd.f32 %v4082, %v2361
      %v4175 = vadd.f32 %v4085, %v2364
      %v4176 = vadd.f32 %v4090, %v2369
      %v4177 = vadd.f32 %v4093, %v2372
      %v4178 = vadd.f32 %v4098, %v2377
      %v4179 = vadd.f32 %v4101, %v2380
      %v4180 = vadd.f32 %v4106, %v2385
      %v4181 = vadd.f32 %v4109, %v2388
      %v4182 = vadd.f32 %v4114, %v2393
      %v4183 = vadd.f32 %v4117, %v2396
      %v4184 = vld [vmem:[%s6] sm:$0xf]
      %v4185 = vld [vmem:[%s6 + $0x4] sm:$0xf]
      %v4186 = vld [vmem:[%s6 + $0x8] sm:$0xf]
      %v4187 = vld [vmem:[%s6 + $0xc] sm:$0xf]
      %v4192 = vunpack.c.l.b16 %v4184
      %v4193 = vunpack.c.l.b16 %v4185
      %v4194 = vunpack.c.l.b16 %v4186
      %v4195 = vunpack.c.l.b16 %v4187
      %v4196 = vpack.c.b16 %v4193, %v4192
      %v4197 = vpack.c.b16 %v4195, %v4194
      %v4201 = vsel %vm640, %v726, 0
      %v4204 = vsel %vm640, %v727, 0
      %v4207 = vsel %vm640, %v728, 0
      %v4210 = vsel %vm640, %v729, 0
      %4212 = vmatprep.subr.bf16.mxu0 0
      %4213 = vmatpush1.bf16.msra.mxu0 0
      %4214 = vmatprep.subr.bf16.mxu0 0
      %4215 = vmatpush1.bf16.msra.mxu0 0
      %4216 = vmatprep.subr.bf16.mxu0 0
      %4217 = vmatpush1.bf16.msra.mxu0 0
      %4218 = vmatprep.subr.bf16.mxu0 0
      %4219 = vmatpush1.bf16.msra.mxu0 0
      %4220 = vmatprep.subr.bf16.mxu0 0
      %4221 = vmatpush1.bf16.msra.mxu0 0
      %4222 = vmatprep.subr.bf16.mxu0 0
      %4223 = vmatpush1.bf16.msra.mxu0 0
      %4224 = vmatprep.subr.bf16.mxu0 0
      %4225 = vmatpush1.bf16.msra.mxu0 %v4197
      %4226 = vmatprep.subr.bf16.mxu0 0
      %4227 = vmatpush1.bf16.msra.mxu0 %v4196
      %4228 = vmatprep.subr.bf16.mxu0 0
      %4229 = vmatpush2.bf16.msra.mxu0 0
      %4230 = vmatprep.subr.bf16.mxu0 0
      %4231 = vmatpush2.bf16.msra.mxu0 0
      %4232 = vmatprep.subr.bf16.mxu0 0
      %4233 = vmatpush2.bf16.msra.mxu0 0
      %4234 = vmatprep.subr.bf16.mxu0 0
      %4235 = vmatpush2.bf16.msra.mxu0 0
      %4236 = vmatprep.subr.bf16.mxu0 0
      %4237 = vmatpush2.bf16.msra.mxu0 0
      %4238 = vmatprep.subr.bf16.mxu0 0
      %4239 = vmatpush2.bf16.msra.mxu0 0
      %4240 = vmatprep.subr.bf16.mxu0 0
      %4241 = vmatpush2.bf16.msra.mxu0 0
      %4242 = vmatprep.subr.bf16.mxu0 0
      %4243 = vmatpush2.bf16.msra.mxu0 0
      %4244 = vmatprep.mubr.bf16.mxu0 0
      %4245 = vmatmul.mubr.bf16.gmra.mxu0 %v4201
      %v4246 = vpop.f32.mrf.mxu0
      %v4247 = vadd.f32 0.0, %v4246
      %v4248 = vpop.f32.mrf.mxu0
      %v4249 = vpop.f32.mrf.mxu0
      %v4250 = vadd.f32 0.0, %v4249
      %v4251 = vpop.f32.mrf.mxu0
      %4252 = vmatprep.mubr.bf16.mxu0 0
      %4253 = vmatmul.mubr.bf16.gmra.mxu0 %v4204
      %v4254 = vpop.f32.mrf.mxu0
      %v4255 = vadd.f32 0.0, %v4254
      %v4256 = vpop.f32.mrf.mxu0
      %v4257 = vpop.f32.mrf.mxu0
      %v4258 = vadd.f32 0.0, %v4257
      %v4259 = vpop.f32.mrf.mxu0
      %4260 = vmatprep.mubr.bf16.mxu0 0
      %4261 = vmatmul.mubr.bf16.gmra.mxu0 %v4207
      %v4262 = vpop.f32.mrf.mxu0
      %v4263 = vadd.f32 0.0, %v4262
      %v4264 = vpop.f32.mrf.mxu0
      %v4265 = vpop.f32.mrf.mxu0
      %v4266 = vadd.f32 0.0, %v4265
      %v4267 = vpop.f32.mrf.mxu0
      %4268 = vmatprep.mubr.bf16.mxu0 0
      %4269 = vmatmul.mubr.bf16.gmra.mxu0 %v4210
      %v4270 = vpop.f32.mrf.mxu0
      %v4271 = vadd.f32 0.0, %v4270
      %v4272 = vpop.f32.mrf.mxu0
      %v4273 = vpop.f32.mrf.mxu0
      %v4274 = vadd.f32 0.0, %v4273
      %v4275 = vpop.f32.mrf.mxu0
      %4276 = vdwg.mxu0
      %vm4277 = vcmask 31744
      %v4278 = vsel %vm4277, %v4120, -inf
      %v4279 = vrot.slane %v4278, 4
      %v4280 = vmax.f32 %v4278, %v4279
      %v4281 = vrot.slane %v4280, 2
      %v4282 = vmax.f32 %v4280, %v4281
      %v4283 = vrot.slane %v4282, 1
      %v4284 = vmax.f32 %v4282, %v4283
      %v4285 = vsel %vm4277, %v4121, -inf
      %v4286 = vrot.slane %v4285, 4
      %v4287 = vmax.f32 %v4285, %v4286
      %v4288 = vrot.slane %v4287, 2
      %v4289 = vmax.f32 %v4287, %v4288
      %v4290 = vrot.slane %v4289, 1
      %v4291 = vmax.f32 %v4289, %v4290
      %v4292 = vsel %vm4277, %v4122, -inf
      %v4293 = vrot.slane %v4292, 4
      %v4294 = vmax.f32 %v4292, %v4293
      %v4295 = vrot.slane %v4294, 2
      %v4296 = vmax.f32 %v4294, %v4295
      %v4297 = vrot.slane %v4296, 1
      %v4298 = vmax.f32 %v4296, %v4297
      %v4299 = vsel %vm4277, %v4123, -inf
      %v4300 = vrot.slane %v4299, 4
      %v4301 = vmax.f32 %v4299, %v4300
      %v4302 = vrot.slane %v4301, 2
      %v4303 = vmax.f32 %v4301, %v4302
      %v4304 = vrot.slane %v4303, 1
      %v4305 = vmax.f32 %v4303, %v4304
      %v4306 = vsel %vm4277, %v4124, -inf
      %v4307 = vrot.slane %v4306, 4
      %v4308 = vmax.f32 %v4306, %v4307
      %v4309 = vrot.slane %v4308, 2
      %v4310 = vmax.f32 %v4308, %v4309
      %v4311 = vrot.slane %v4310, 1
      %v4312 = vmax.f32 %v4310, %v4311
      %v4313 = vsel %vm4277, %v4125, -inf
      %v4314 = vrot.slane %v4313, 4
      %v4315 = vmax.f32 %v4313, %v4314
      %v4316 = vrot.slane %v4315, 2
      %v4317 = vmax.f32 %v4315, %v4316
      %v4318 = vrot.slane %v4317, 1
      %v4319 = vmax.f32 %v4317, %v4318
      %v4320 = vsel %vm4277, %v4126, -inf
      %v4321 = vrot.slane %v4320, 4
      %v4322 = vmax.f32 %v4320, %v4321
      %v4323 = vrot.slane %v4322, 2
      %v4324 = vmax.f32 %v4322, %v4323
      %v4325 = vrot.slane %v4324, 1
      %v4326 = vmax.f32 %v4324, %v4325
      %v4327 = vsel %vm4277, %v4127, -inf
      %v4328 = vrot.slane %v4327, 4
      %v4329 = vmax.f32 %v4327, %v4328
      %v4330 = vrot.slane %v4329, 2
      %v4331 = vmax.f32 %v4329, %v4330
      %v4332 = vrot.slane %v4331, 1
      %v4333 = vmax.f32 %v4331, %v4332
      %v4334 = vsel %vm4277, %v4128, -inf
      %v4335 = vrot.slane %v4334, 4
      %v4336 = vmax.f32 %v4334, %v4335
      %v4337 = vrot.slane %v4336, 2
      %v4338 = vmax.f32 %v4336, %v4337
      %v4339 = vrot.slane %v4338, 1
      %v4340 = vmax.f32 %v4338, %v4339
      %v4341 = vsel %vm4277, %v4129, -inf
      %v4342 = vrot.slane %v4341, 4
      %v4343 = vmax.f32 %v4341, %v4342
      %v4344 = vrot.slane %v4343, 2
      %v4345 = vmax.f32 %v4343, %v4344
      %v4346 = vrot.slane %v4345, 1
      %v4347 = vmax.f32 %v4345, %v4346
      %v4348 = vsel %vm4277, %v4130, -inf
      %v4349 = vrot.slane %v4348, 4
      %v4350 = vmax.f32 %v4348, %v4349
      %v4351 = vrot.slane %v4350, 2
      %v4352 = vmax.f32 %v4350, %v4351
      %v4353 = vrot.slane %v4352, 1
      %v4354 = vmax.f32 %v4352, %v4353
      %v4355 = vsel %vm4277, %v4131, -inf
      %v4356 = vrot.slane %v4355, 4
      %v4357 = vmax.f32 %v4355, %v4356
      %v4358 = vrot.slane %v4357, 2
      %v4359 = vmax.f32 %v4357, %v4358
      %v4360 = vrot.slane %v4359, 1
      %v4361 = vmax.f32 %v4359, %v4360
      %v4362 = vsel %vm4277, %v4132, -inf
      %v4363 = vrot.slane %v4362, 4
      %v4364 = vmax.f32 %v4362, %v4363
      %v4365 = vrot.slane %v4364, 2
      %v4366 = vmax.f32 %v4364, %v4365
      %v4367 = vrot.slane %v4366, 1
      %v4368 = vmax.f32 %v4366, %v4367
      %v4369 = vsel %vm4277, %v4133, -inf
      %v4370 = vrot.slane %v4369, 4
      %v4371 = vmax.f32 %v4369, %v4370
      %v4372 = vrot.slane %v4371, 2
      %v4373 = vmax.f32 %v4371, %v4372
      %v4374 = vrot.slane %v4373, 1
      %v4375 = vmax.f32 %v4373, %v4374
      %v4376 = vsel %vm4277, %v4134, -inf
      %v4377 = vrot.slane %v4376, 4
      %v4378 = vmax.f32 %v4376, %v4377
      %v4379 = vrot.slane %v4378, 2
      %v4380 = vmax.f32 %v4378, %v4379
      %v4381 = vrot.slane %v4380, 1
      %v4382 = vmax.f32 %v4380, %v4381
      %v4383 = vsel %vm4277, %v4135, -inf
      %v4384 = vrot.slane %v4383, 4
      %v4385 = vmax.f32 %v4383, %v4384
      %v4386 = vrot.slane %v4385, 2
      %v4387 = vmax.f32 %v4385, %v4386
      %v4388 = vrot.slane %v4387, 1
      %v4389 = vmax.f32 %v4387, %v4388
      %v4390 = vsel %vm4277, %v4136, -inf
      %v4391 = vrot.slane %v4390, 4
      %v4392 = vmax.f32 %v4390, %v4391
      %v4393 = vrot.slane %v4392, 2
      %v4394 = vmax.f32 %v4392, %v4393
      %v4395 = vrot.slane %v4394, 1
      %v4396 = vmax.f32 %v4394, %v4395
      %v4397 = vsel %vm4277, %v4137, -inf
      %v4398 = vrot.slane %v4397, 4
      %v4399 = vmax.f32 %v4397, %v4398
      %v4400 = vrot.slane %v4399, 2
      %v4401 = vmax.f32 %v4399, %v4400
      %v4402 = vrot.slane %v4401, 1
      %v4403 = vmax.f32 %v4401, %v4402
      %v4404 = vsel %vm4277, %v4138, -inf
      %v4405 = vrot.slane %v4404, 4
      %v4406 = vmax.f32 %v4404, %v4405
      %v4407 = vrot.slane %v4406, 2
      %v4408 = vmax.f32 %v4406, %v4407
      %v4409 = vrot.slane %v4408, 1
      %v4410 = vmax.f32 %v4408, %v4409
      %v4411 = vsel %vm4277, %v4139, -inf
      %v4412 = vrot.slane %v4411, 4
      %v4413 = vmax.f32 %v4411, %v4412
      %v4414 = vrot.slane %v4413, 2
      %v4415 = vmax.f32 %v4413, %v4414
      %v4416 = vrot.slane %v4415, 1
      %v4417 = vmax.f32 %v4415, %v4416
      %v4418 = vsel %vm4277, %v4140, -inf
      %v4419 = vrot.slane %v4418, 4
      %v4420 = vmax.f32 %v4418, %v4419
      %v4421 = vrot.slane %v4420, 2
      %v4422 = vmax.f32 %v4420, %v4421
      %v4423 = vrot.slane %v4422, 1
      %v4424 = vmax.f32 %v4422, %v4423
      %v4425 = vsel %vm4277, %v4141, -inf
      %v4426 = vrot.slane %v4425, 4
      %v4427 = vmax.f32 %v4425, %v4426
      %v4428 = vrot.slane %v4427, 2
      %v4429 = vmax.f32 %v4427, %v4428
      %v4430 = vrot.slane %v4429, 1
      %v4431 = vmax.f32 %v4429, %v4430
      %v4432 = vsel %vm4277, %v4142, -inf
      %v4433 = vrot.slane %v4432, 4
      %v4434 = vmax.f32 %v4432, %v4433
      %v4435 = vrot.slane %v4434, 2
      %v4436 = vmax.f32 %v4434, %v4435
      %v4437 = vrot.slane %v4436, 1
      %v4438 = vmax.f32 %v4436, %v4437
      %v4439 = vsel %vm4277, %v4143, -inf
      %v4440 = vrot.slane %v4439, 4
      %v4441 = vmax.f32 %v4439, %v4440
      %v4442 = vrot.slane %v4441, 2
      %v4443 = vmax.f32 %v4441, %v4442
      %v4444 = vrot.slane %v4443, 1
      %v4445 = vmax.f32 %v4443, %v4444
      %v4446 = vsel %vm4277, %v4144, -inf
      %v4447 = vrot.slane %v4446, 4
      %v4448 = vmax.f32 %v4446, %v4447
      %v4449 = vrot.slane %v4448, 2
      %v4450 = vmax.f32 %v4448, %v4449
      %v4451 = vrot.slane %v4450, 1
      %v4452 = vmax.f32 %v4450, %v4451
      %v4453 = vsel %vm4277, %v4145, -inf
      %v4454 = vrot.slane %v4453, 4
      %v4455 = vmax.f32 %v4453, %v4454
      %v4456 = vrot.slane %v4455, 2
      %v4457 = vmax.f32 %v4455, %v4456
      %v4458 = vrot.slane %v4457, 1
      %v4459 = vmax.f32 %v4457, %v4458
      %v4460 = vsel %vm4277, %v4146, -inf
      %v4461 = vrot.slane %v4460, 4
      %v4462 = vmax.f32 %v4460, %v4461
      %v4463 = vrot.slane %v4462, 2
      %v4464 = vmax.f32 %v4462, %v4463
      %v4465 = vrot.slane %v4464, 1
      %v4466 = vmax.f32 %v4464, %v4465
      %v4467 = vsel %vm4277, %v4147, -inf
      %v4468 = vrot.slane %v4467, 4
      %v4469 = vmax.f32 %v4467, %v4468
      %v4470 = vrot.slane %v4469, 2
      %v4471 = vmax.f32 %v4469, %v4470
      %v4472 = vrot.slane %v4471, 1
      %v4473 = vmax.f32 %v4471, %v4472
      %v4474 = vsel %vm4277, %v4148, -inf
      %v4475 = vrot.slane %v4474, 4
      %v4476 = vmax.f32 %v4474, %v4475
      %v4477 = vrot.slane %v4476, 2
      %v4478 = vmax.f32 %v4476, %v4477
      %v4479 = vrot.slane %v4478, 1
      %v4480 = vmax.f32 %v4478, %v4479
      %v4481 = vsel %vm4277, %v4149, -inf
      %v4482 = vrot.slane %v4481, 4
      %v4483 = vmax.f32 %v4481, %v4482
      %v4484 = vrot.slane %v4483, 2
      %v4485 = vmax.f32 %v4483, %v4484
      %v4486 = vrot.slane %v4485, 1
      %v4487 = vmax.f32 %v4485, %v4486
      %v4488 = vsel %vm4277, %v4150, -inf
      %v4489 = vrot.slane %v4488, 4
      %v4490 = vmax.f32 %v4488, %v4489
      %v4491 = vrot.slane %v4490, 2
      %v4492 = vmax.f32 %v4490, %v4491
      %v4493 = vrot.slane %v4492, 1
      %v4494 = vmax.f32 %v4492, %v4493
      %v4495 = vsel %vm4277, %v4151, -inf
      %v4496 = vrot.slane %v4495, 4
      %v4497 = vmax.f32 %v4495, %v4496
      %v4498 = vrot.slane %v4497, 2
      %v4499 = vmax.f32 %v4497, %v4498
      %v4500 = vrot.slane %v4499, 1
      %v4501 = vmax.f32 %v4499, %v4500
      %v4502 = vsel %vm4277, %v4152, -inf
      %v4503 = vrot.slane %v4502, 4
      %v4504 = vmax.f32 %v4502, %v4503
      %v4505 = vrot.slane %v4504, 2
      %v4506 = vmax.f32 %v4504, %v4505
      %v4507 = vrot.slane %v4506, 1
      %v4508 = vmax.f32 %v4506, %v4507
      %v4509 = vsel %vm4277, %v4153, -inf
      %v4510 = vrot.slane %v4509, 4
      %v4511 = vmax.f32 %v4509, %v4510
      %v4512 = vrot.slane %v4511, 2
      %v4513 = vmax.f32 %v4511, %v4512
      %v4514 = vrot.slane %v4513, 1
      %v4515 = vmax.f32 %v4513, %v4514
      %v4516 = vsel %vm4277, %v4154, -inf
      %v4517 = vrot.slane %v4516, 4
      %v4518 = vmax.f32 %v4516, %v4517
      %v4519 = vrot.slane %v4518, 2
      %v4520 = vmax.f32 %v4518, %v4519
      %v4521 = vrot.slane %v4520, 1
      %v4522 = vmax.f32 %v4520, %v4521
      %v4523 = vsel %vm4277, %v4155, -inf
      %v4524 = vrot.slane %v4523, 4
      %v4525 = vmax.f32 %v4523, %v4524
      %v4526 = vrot.slane %v4525, 2
      %v4527 = vmax.f32 %v4525, %v4526
      %v4528 = vrot.slane %v4527, 1
      %v4529 = vmax.f32 %v4527, %v4528
      %v4530 = vsel %vm4277, %v4156, -inf
      %v4531 = vrot.slane %v4530, 4
      %v4532 = vmax.f32 %v4530, %v4531
      %v4533 = vrot.slane %v4532, 2
      %v4534 = vmax.f32 %v4532, %v4533
      %v4535 = vrot.slane %v4534, 1
      %v4536 = vmax.f32 %v4534, %v4535
      %v4537 = vsel %vm4277, %v4157, -inf
      %v4538 = vrot.slane %v4537, 4
      %v4539 = vmax.f32 %v4537, %v4538
      %v4540 = vrot.slane %v4539, 2
      %v4541 = vmax.f32 %v4539, %v4540
      %v4542 = vrot.slane %v4541, 1
      %v4543 = vmax.f32 %v4541, %v4542
      %v4544 = vsel %vm4277, %v4158, -inf
      %v4545 = vrot.slane %v4544, 4
      %v4546 = vmax.f32 %v4544, %v4545
      %v4547 = vrot.slane %v4546, 2
      %v4548 = vmax.f32 %v4546, %v4547
      %v4549 = vrot.slane %v4548, 1
      %v4550 = vmax.f32 %v4548, %v4549
      %v4551 = vsel %vm4277, %v4159, -inf
      %v4552 = vrot.slane %v4551, 4
      %v4553 = vmax.f32 %v4551, %v4552
      %v4554 = vrot.slane %v4553, 2
      %v4555 = vmax.f32 %v4553, %v4554
      %v4556 = vrot.slane %v4555, 1
      %v4557 = vmax.f32 %v4555, %v4556
      %v4558 = vsel %vm4277, %v4160, -inf
      %v4559 = vrot.slane %v4558, 4
      %v4560 = vmax.f32 %v4558, %v4559
      %v4561 = vrot.slane %v4560, 2
      %v4562 = vmax.f32 %v4560, %v4561
      %v4563 = vrot.slane %v4562, 1
      %v4564 = vmax.f32 %v4562, %v4563
      %v4565 = vsel %vm4277, %v4161, -inf
      %v4566 = vrot.slane %v4565, 4
      %v4567 = vmax.f32 %v4565, %v4566
      %v4568 = vrot.slane %v4567, 2
      %v4569 = vmax.f32 %v4567, %v4568
      %v4570 = vrot.slane %v4569, 1
      %v4571 = vmax.f32 %v4569, %v4570
      %v4572 = vsel %vm4277, %v4162, -inf
      %v4573 = vrot.slane %v4572, 4
      %v4574 = vmax.f32 %v4572, %v4573
      %v4575 = vrot.slane %v4574, 2
      %v4576 = vmax.f32 %v4574, %v4575
      %v4577 = vrot.slane %v4576, 1
      %v4578 = vmax.f32 %v4576, %v4577
      %v4579 = vsel %vm4277, %v4163, -inf
      %v4580 = vrot.slane %v4579, 4
      %v4581 = vmax.f32 %v4579, %v4580
      %v4582 = vrot.slane %v4581, 2
      %v4583 = vmax.f32 %v4581, %v4582
      %v4584 = vrot.slane %v4583, 1
      %v4585 = vmax.f32 %v4583, %v4584
      %v4586 = vsel %vm4277, %v4164, -inf
      %v4587 = vrot.slane %v4586, 4
      %v4588 = vmax.f32 %v4586, %v4587
      %v4589 = vrot.slane %v4588, 2
      %v4590 = vmax.f32 %v4588, %v4589
      %v4591 = vrot.slane %v4590, 1
      %v4592 = vmax.f32 %v4590, %v4591
      %v4593 = vsel %vm4277, %v4165, -inf
      %v4594 = vrot.slane %v4593, 4
      %v4595 = vmax.f32 %v4593, %v4594
      %v4596 = vrot.slane %v4595, 2
      %v4597 = vmax.f32 %v4595, %v4596
      %v4598 = vrot.slane %v4597, 1
      %v4599 = vmax.f32 %v4597, %v4598
      %v4600 = vsel %vm4277, %v4166, -inf
      %v4601 = vrot.slane %v4600, 4
      %v4602 = vmax.f32 %v4600, %v4601
      %v4603 = vrot.slane %v4602, 2
      %v4604 = vmax.f32 %v4602, %v4603
      %v4605 = vrot.slane %v4604, 1
      %v4606 = vmax.f32 %v4604, %v4605
      %v4607 = vsel %vm4277, %v4167, -inf
      %v4608 = vrot.slane %v4607, 4
      %v4609 = vmax.f32 %v4607, %v4608
      %v4610 = vrot.slane %v4609, 2
      %v4611 = vmax.f32 %v4609, %v4610
      %v4612 = vrot.slane %v4611, 1
      %v4613 = vmax.f32 %v4611, %v4612
      %v4614 = vsel %vm4277, %v4168, -inf
      %v4615 = vrot.slane %v4614, 4
      %v4616 = vmax.f32 %v4614, %v4615
      %v4617 = vrot.slane %v4616, 2
      %v4618 = vmax.f32 %v4616, %v4617
      %v4619 = vrot.slane %v4618, 1
      %v4620 = vmax.f32 %v4618, %v4619
      %v4621 = vsel %vm4277, %v4169, -inf
      %v4622 = vrot.slane %v4621, 4
      %v4623 = vmax.f32 %v4621, %v4622
      %v4624 = vrot.slane %v4623, 2
      %v4625 = vmax.f32 %v4623, %v4624
      %v4626 = vrot.slane %v4625, 1
      %v4627 = vmax.f32 %v4625, %v4626
      %v4628 = vsel %vm4277, %v4170, -inf
      %v4629 = vrot.slane %v4628, 4
      %v4630 = vmax.f32 %v4628, %v4629
      %v4631 = vrot.slane %v4630, 2
      %v4632 = vmax.f32 %v4630, %v4631
      %v4633 = vrot.slane %v4632, 1
      %v4634 = vmax.f32 %v4632, %v4633
      %v4635 = vsel %vm4277, %v4171, -inf
      %v4636 = vrot.slane %v4635, 4
      %v4637 = vmax.f32 %v4635, %v4636
      %v4638 = vrot.slane %v4637, 2
      %v4639 = vmax.f32 %v4637, %v4638
      %v4640 = vrot.slane %v4639, 1
      %v4641 = vmax.f32 %v4639, %v4640
      %v4642 = vsel %vm4277, %v4172, -inf
      %v4643 = vrot.slane %v4642, 4
      %v4644 = vmax.f32 %v4642, %v4643
      %v4645 = vrot.slane %v4644, 2
      %v4646 = vmax.f32 %v4644, %v4645
      %v4647 = vrot.slane %v4646, 1
      %v4648 = vmax.f32 %v4646, %v4647
      %v4649 = vsel %vm4277, %v4173, -inf
      %v4650 = vrot.slane %v4649, 4
      %v4651 = vmax.f32 %v4649, %v4650
      %v4652 = vrot.slane %v4651, 2
      %v4653 = vmax.f32 %v4651, %v4652
      %v4654 = vrot.slane %v4653, 1
      %v4655 = vmax.f32 %v4653, %v4654
      %v4656 = vsel %vm4277, %v4174, -inf
      %v4657 = vrot.slane %v4656, 4
      %v4658 = vmax.f32 %v4656, %v4657
      %v4659 = vrot.slane %v4658, 2
      %v4660 = vmax.f32 %v4658, %v4659
      %v4661 = vrot.slane %v4660, 1
      %v4662 = vmax.f32 %v4660, %v4661
      %v4663 = vsel %vm4277, %v4175, -inf
      %v4664 = vrot.slane %v4663, 4
      %v4665 = vmax.f32 %v4663, %v4664
      %v4666 = vrot.slane %v4665, 2
      %v4667 = vmax.f32 %v4665, %v4666
      %v4668 = vrot.slane %v4667, 1
      %v4669 = vmax.f32 %v4667, %v4668
      %v4670 = vsel %vm4277, %v4176, -inf
      %v4671 = vrot.slane %v4670, 4
      %v4672 = vmax.f32 %v4670, %v4671
      %v4673 = vrot.slane %v4672, 2
      %v4674 = vmax.f32 %v4672, %v4673
      %v4675 = vrot.slane %v4674, 1
      %v4676 = vmax.f32 %v4674, %v4675
      %v4677 = vsel %vm4277, %v4177, -inf
      %v4678 = vrot.slane %v4677, 4
      %v4679 = vmax.f32 %v4677, %v4678
      %v4680 = vrot.slane %v4679, 2
      %v4681 = vmax.f32 %v4679, %v4680
      %v4682 = vrot.slane %v4681, 1
      %v4683 = vmax.f32 %v4681, %v4682
      %v4684 = vsel %vm4277, %v4178, -inf
      %v4685 = vrot.slane %v4684, 4
      %v4686 = vmax.f32 %v4684, %v4685
      %v4687 = vrot.slane %v4686, 2
      %v4688 = vmax.f32 %v4686, %v4687
      %v4689 = vrot.slane %v4688, 1
      %v4690 = vmax.f32 %v4688, %v4689
      %v4691 = vsel %vm4277, %v4179, -inf
      %v4692 = vrot.slane %v4691, 4
      %v4693 = vmax.f32 %v4691, %v4692
      %v4694 = vrot.slane %v4693, 2
      %v4695 = vmax.f32 %v4693, %v4694
      %v4696 = vrot.slane %v4695, 1
      %v4697 = vmax.f32 %v4695, %v4696
      %v4698 = vsel %vm4277, %v4180, -inf
      %v4699 = vrot.slane %v4698, 4
      %v4700 = vmax.f32 %v4698, %v4699
      %v4701 = vrot.slane %v4700, 2
      %v4702 = vmax.f32 %v4700, %v4701
      %v4703 = vrot.slane %v4702, 1
      %v4704 = vmax.f32 %v4702, %v4703
      %v4705 = vsel %vm4277, %v4181, -inf
      %v4706 = vrot.slane %v4705, 4
      %v4707 = vmax.f32 %v4705, %v4706
      %v4708 = vrot.slane %v4707, 2
      %v4709 = vmax.f32 %v4707, %v4708
      %v4710 = vrot.slane %v4709, 1
      %v4711 = vmax.f32 %v4709, %v4710
      %v4712 = vsel %vm4277, %v4182, -inf
      %v4713 = vrot.slane %v4712, 4
      %v4714 = vmax.f32 %v4712, %v4713
      %v4715 = vrot.slane %v4714, 2
      %v4716 = vmax.f32 %v4714, %v4715
      %v4717 = vrot.slane %v4716, 1
      %v4718 = vmax.f32 %v4716, %v4717
      %v4719 = vsel %vm4277, %v4183, -inf
      %v4720 = vrot.slane %v4719, 4
      %v4721 = vmax.f32 %v4719, %v4720
      %v4722 = vrot.slane %v4721, 2
      %v4723 = vmax.f32 %v4721, %v4722
      %v4724 = vrot.slane %v4723, 1
      %v4725 = vmax.f32 %v4723, %v4724
      %v4734 = vrot.slane %v4247, 1
      %v4735 = vrot.slane %v4247, 2
      %v4736 = vrot.slane %v4247, 3
      %v4737 = vrot.slane %v4247, 4
      %v4738 = vrot.slane %v4247, 5
      %v4739 = vrot.slane %v4247, 6
      %v4740 = vrot.slane %v4247, 7
      %v4741 = vrot.slane %v4250, 1
      %v4742 = vrot.slane %v4250, 2
      %v4743 = vrot.slane %v4250, 3
      %v4744 = vrot.slane %v4250, 4
      %v4745 = vrot.slane %v4250, 5
      %v4746 = vrot.slane %v4250, 6
      %v4747 = vrot.slane %v4250, 7
      %v4748 = vrot.slane %v4255, 1
      %v4749 = vrot.slane %v4255, 2
      %v4750 = vrot.slane %v4255, 3
      %v4751 = vrot.slane %v4255, 4
      %v4752 = vrot.slane %v4255, 5
      %v4753 = vrot.slane %v4255, 6
      %v4754 = vrot.slane %v4255, 7
      %v4755 = vrot.slane %v4258, 1
      %v4756 = vrot.slane %v4258, 2
      %v4757 = vrot.slane %v4258, 3
      %v4758 = vrot.slane %v4258, 4
      %v4759 = vrot.slane %v4258, 5
      %v4760 = vrot.slane %v4258, 6
      %v4761 = vrot.slane %v4258, 7
      %v4762 = vrot.slane %v4263, 1
      %v4763 = vrot.slane %v4263, 2
      %v4764 = vrot.slane %v4263, 3
      %v4765 = vrot.slane %v4263, 4
      %v4766 = vrot.slane %v4263, 5
      %v4767 = vrot.slane %v4263, 6
      %v4768 = vrot.slane %v4263, 7
      %v4769 = vrot.slane %v4266, 1
      %v4770 = vrot.slane %v4266, 2
      %v4771 = vrot.slane %v4266, 3
      %v4772 = vrot.slane %v4266, 4
      %v4773 = vrot.slane %v4266, 5
      %v4774 = vrot.slane %v4266, 6
      %v4775 = vrot.slane %v4266, 7
      %v4776 = vrot.slane %v4271, 1
      %v4777 = vrot.slane %v4271, 2
      %v4778 = vrot.slane %v4271, 3
      %v4779 = vrot.slane %v4271, 4
      %v4780 = vrot.slane %v4271, 5
      %v4781 = vrot.slane %v4271, 6
      %v4782 = vrot.slane %v4271, 7
      %v4783 = vrot.slane %v4274, 1
      %v4784 = vrot.slane %v4274, 2
      %v4785 = vrot.slane %v4274, 3
      %v4786 = vrot.slane %v4274, 4
      %v4787 = vrot.slane %v4274, 5
      %v4788 = vrot.slane %v4274, 6
      %v4789 = vrot.slane %v4274, 7
      %v4854 = vmax.f32 %v4284, %v4247
      %v4855 = vmax.f32 %v4291, %v4734
      %v4856 = vmax.f32 %v4298, %v4735
      %v4857 = vmax.f32 %v4305, %v4736
      %v4858 = vmax.f32 %v4312, %v4737
      %v4859 = vmax.f32 %v4319, %v4738
      %v4860 = vmax.f32 %v4326, %v4739
      %v4861 = vmax.f32 %v4333, %v4740
      %v4862 = vmax.f32 %v4340, %v4250
      %v4863 = vmax.f32 %v4347, %v4741
      %v4864 = vmax.f32 %v4354, %v4742
      %v4865 = vmax.f32 %v4361, %v4743
      %v4866 = vmax.f32 %v4368, %v4744
      %v4867 = vmax.f32 %v4375, %v4745
      %v4868 = vmax.f32 %v4382, %v4746
      %v4869 = vmax.f32 %v4389, %v4747
      %v4870 = vmax.f32 %v4396, %v4255
      %v4871 = vmax.f32 %v4403, %v4748
      %v4872 = vmax.f32 %v4410, %v4749
      %v4873 = vmax.f32 %v4417, %v4750
      %v4874 = vmax.f32 %v4424, %v4751
      %v4875 = vmax.f32 %v4431, %v4752
      %v4876 = vmax.f32 %v4438, %v4753
      %v4877 = vmax.f32 %v4445, %v4754
      %v4878 = vmax.f32 %v4452, %v4258
      %v4879 = vmax.f32 %v4459, %v4755
      %v4880 = vmax.f32 %v4466, %v4756
      %v4881 = vmax.f32 %v4473, %v4757
      %v4882 = vmax.f32 %v4480, %v4758
      %v4883 = vmax.f32 %v4487, %v4759
      %v4884 = vmax.f32 %v4494, %v4760
      %v4885 = vmax.f32 %v4501, %v4761
      %v4886 = vmax.f32 %v4508, %v4263
      %v4887 = vmax.f32 %v4515, %v4762
      %v4888 = vmax.f32 %v4522, %v4763
      %v4889 = vmax.f32 %v4529, %v4764
      %v4890 = vmax.f32 %v4536, %v4765
      %v4891 = vmax.f32 %v4543, %v4766
      %v4892 = vmax.f32 %v4550, %v4767
      %v4893 = vmax.f32 %v4557, %v4768
      %v4894 = vmax.f32 %v4564, %v4266
      %v4895 = vmax.f32 %v4571, %v4769
      %v4896 = vmax.f32 %v4578, %v4770
      %v4897 = vmax.f32 %v4585, %v4771
      %v4898 = vmax.f32 %v4592, %v4772
      %v4899 = vmax.f32 %v4599, %v4773
      %v4900 = vmax.f32 %v4606, %v4774
      %v4901 = vmax.f32 %v4613, %v4775
      %v4902 = vmax.f32 %v4620, %v4271
      %v4903 = vmax.f32 %v4627, %v4776
      %v4904 = vmax.f32 %v4634, %v4777
      %v4905 = vmax.f32 %v4641, %v4778
      %v4906 = vmax.f32 %v4648, %v4779
      %v4907 = vmax.f32 %v4655, %v4780
      %v4908 = vmax.f32 %v4662, %v4781
      %v4909 = vmax.f32 %v4669, %v4782
      %v4910 = vmax.f32 %v4676, %v4274
      %v4911 = vmax.f32 %v4683, %v4783
      %v4912 = vmax.f32 %v4690, %v4784
      %v4913 = vmax.f32 %v4697, %v4785
      %v4914 = vmax.f32 %v4704, %v4786
      %v4915 = vmax.f32 %v4711, %v4787
      %v4916 = vmax.f32 %v4718, %v4788
      %v4917 = vmax.f32 %v4725, %v4789
      %v4918 = vlaneseq
      %v4919 = vshrl.u32 %v4918, 7
      %v4920 = vsub.s32 0, %v4919
      %v4921 = vrot.slane %v4854, %v4920
      %v4922 = vlaneseq
      %v4923 = vshrl.u32 %v4922, 7
      %v4924 = vsub.s32 0, %v4923
      %v4925 = vrot.slane %v4855, %v4924
      %v4926 = vlaneseq
      %v4927 = vshrl.u32 %v4926, 7
      %v4928 = vsub.s32 0, %v4927
      %v4929 = vrot.slane %v4856, %v4928
      %v4930 = vlaneseq
      %v4931 = vshrl.u32 %v4930, 7
      %v4932 = vsub.s32 0, %v4931
      %v4933 = vrot.slane %v4857, %v4932
      %v4934 = vlaneseq
      %v4935 = vshrl.u32 %v4934, 7
      %v4936 = vsub.s32 0, %v4935
      %v4937 = vrot.slane %v4858, %v4936
      %v4938 = vlaneseq
      %v4939 = vshrl.u32 %v4938, 7
      %v4940 = vsub.s32 0, %v4939
      %v4941 = vrot.slane %v4859, %v4940
      %v4942 = vlaneseq
      %v4943 = vshrl.u32 %v4942, 7
      %v4944 = vsub.s32 0, %v4943
      %v4945 = vrot.slane %v4860, %v4944
      %v4946 = vlaneseq
      %v4947 = vshrl.u32 %v4946, 7
      %v4948 = vsub.s32 0, %v4947
      %v4949 = vrot.slane %v4861, %v4948
      %v4950 = vlaneseq
      %v4951 = vshrl.u32 %v4950, 7
      %v4952 = vsub.s32 0, %v4951
      %v4953 = vrot.slane %v4862, %v4952
      %v4954 = vlaneseq
      %v4955 = vshrl.u32 %v4954, 7
      %v4956 = vsub.s32 0, %v4955
      %v4957 = vrot.slane %v4863, %v4956
      %v4958 = vlaneseq
      %v4959 = vshrl.u32 %v4958, 7
      %v4960 = vsub.s32 0, %v4959
      %v4961 = vrot.slane %v4864, %v4960
      %v4962 = vlaneseq
      %v4963 = vshrl.u32 %v4962, 7
      %v4964 = vsub.s32 0, %v4963
      %v4965 = vrot.slane %v4865, %v4964
      %v4966 = vlaneseq
      %v4967 = vshrl.u32 %v4966, 7
      %v4968 = vsub.s32 0, %v4967
      %v4969 = vrot.slane %v4866, %v4968
      %v4970 = vlaneseq
      %v4971 = vshrl.u32 %v4970, 7
      %v4972 = vsub.s32 0, %v4971
      %v4973 = vrot.slane %v4867, %v4972
      %v4974 = vlaneseq
      %v4975 = vshrl.u32 %v4974, 7
      %v4976 = vsub.s32 0, %v4975
      %v4977 = vrot.slane %v4868, %v4976
      %v4978 = vlaneseq
      %v4979 = vshrl.u32 %v4978, 7
      %v4980 = vsub.s32 0, %v4979
      %v4981 = vrot.slane %v4869, %v4980
      %v4982 = vlaneseq
      %v4983 = vshrl.u32 %v4982, 7
      %v4984 = vsub.s32 0, %v4983
      %v4985 = vrot.slane %v4870, %v4984
      %v4986 = vlaneseq
      %v4987 = vshrl.u32 %v4986, 7
      %v4988 = vsub.s32 0, %v4987
      %v4989 = vrot.slane %v4871, %v4988
      %v4990 = vlaneseq
      %v4991 = vshrl.u32 %v4990, 7
      %v4992 = vsub.s32 0, %v4991
      %v4993 = vrot.slane %v4872, %v4992
      %v4994 = vlaneseq
      %v4995 = vshrl.u32 %v4994, 7
      %v4996 = vsub.s32 0, %v4995
      %v4997 = vrot.slane %v4873, %v4996
      %v4998 = vlaneseq
      %v4999 = vshrl.u32 %v4998, 7
      %v5000 = vsub.s32 0, %v4999
      %v5001 = vrot.slane %v4874, %v5000
      %v5002 = vlaneseq
      %v5003 = vshrl.u32 %v5002, 7
      %v5004 = vsub.s32 0, %v5003
      %v5005 = vrot.slane %v4875, %v5004
      %v5006 = vlaneseq
      %v5007 = vshrl.u32 %v5006, 7
      %v5008 = vsub.s32 0, %v5007
      %v5009 = vrot.slane %v4876, %v5008
      %v5010 = vlaneseq
      %v5011 = vshrl.u32 %v5010, 7
      %v5012 = vsub.s32 0, %v5011
      %v5013 = vrot.slane %v4877, %v5012
      %v5014 = vlaneseq
      %v5015 = vshrl.u32 %v5014, 7
      %v5016 = vsub.s32 0, %v5015
      %v5017 = vrot.slane %v4878, %v5016
      %v5018 = vlaneseq
      %v5019 = vshrl.u32 %v5018, 7
      %v5020 = vsub.s32 0, %v5019
      %v5021 = vrot.slane %v4879, %v5020
      %v5022 = vlaneseq
      %v5023 = vshrl.u32 %v5022, 7
      %v5024 = vsub.s32 0, %v5023
      %v5025 = vrot.slane %v4880, %v5024
      %v5026 = vlaneseq
      %v5027 = vshrl.u32 %v5026, 7
      %v5028 = vsub.s32 0, %v5027
      %v5029 = vrot.slane %v4881, %v5028
      %v5030 = vlaneseq
      %v5031 = vshrl.u32 %v5030, 7
      %v5032 = vsub.s32 0, %v5031
      %v5033 = vrot.slane %v4882, %v5032
      %v5034 = vlaneseq
      %v5035 = vshrl.u32 %v5034, 7
      %v5036 = vsub.s32 0, %v5035
      %v5037 = vrot.slane %v4883, %v5036
      %v5038 = vlaneseq
      %v5039 = vshrl.u32 %v5038, 7
      %v5040 = vsub.s32 0, %v5039
      %v5041 = vrot.slane %v4884, %v5040
      %v5042 = vlaneseq
      %v5043 = vshrl.u32 %v5042, 7
      %v5044 = vsub.s32 0, %v5043
      %v5045 = vrot.slane %v4885, %v5044
      %v5046 = vlaneseq
      %v5047 = vshrl.u32 %v5046, 7
      %v5048 = vsub.s32 0, %v5047
      %v5049 = vrot.slane %v4886, %v5048
      %v5050 = vlaneseq
      %v5051 = vshrl.u32 %v5050, 7
      %v5052 = vsub.s32 0, %v5051
      %v5053 = vrot.slane %v4887, %v5052
      %v5054 = vlaneseq
      %v5055 = vshrl.u32 %v5054, 7
      %v5056 = vsub.s32 0, %v5055
      %v5057 = vrot.slane %v4888, %v5056
      %v5058 = vlaneseq
      %v5059 = vshrl.u32 %v5058, 7
      %v5060 = vsub.s32 0, %v5059
      %v5061 = vrot.slane %v4889, %v5060
      %v5062 = vlaneseq
      %v5063 = vshrl.u32 %v5062, 7
      %v5064 = vsub.s32 0, %v5063
      %v5065 = vrot.slane %v4890, %v5064
      %v5066 = vlaneseq
      %v5067 = vshrl.u32 %v5066, 7
      %v5068 = vsub.s32 0, %v5067
      %v5069 = vrot.slane %v4891, %v5068
      %v5070 = vlaneseq
      %v5071 = vshrl.u32 %v5070, 7
      %v5072 = vsub.s32 0, %v5071
      %v5073 = vrot.slane %v4892, %v5072
      %v5074 = vlaneseq
      %v5075 = vshrl.u32 %v5074, 7
      %v5076 = vsub.s32 0, %v5075
      %v5077 = vrot.slane %v4893, %v5076
      %v5078 = vlaneseq
      %v5079 = vshrl.u32 %v5078, 7
      %v5080 = vsub.s32 0, %v5079
      %v5081 = vrot.slane %v4894, %v5080
      %v5082 = vlaneseq
      %v5083 = vshrl.u32 %v5082, 7
      %v5084 = vsub.s32 0, %v5083
      %v5085 = vrot.slane %v4895, %v5084
      %v5086 = vlaneseq
      %v5087 = vshrl.u32 %v5086, 7
      %v5088 = vsub.s32 0, %v5087
      %v5089 = vrot.slane %v4896, %v5088
      %v5090 = vlaneseq
      %v5091 = vshrl.u32 %v5090, 7
      %v5092 = vsub.s32 0, %v5091
      %v5093 = vrot.slane %v4897, %v5092
      %v5094 = vlaneseq
      %v5095 = vshrl.u32 %v5094, 7
      %v5096 = vsub.s32 0, %v5095
      %v5097 = vrot.slane %v4898, %v5096
      %v5098 = vlaneseq
      %v5099 = vshrl.u32 %v5098, 7
      %v5100 = vsub.s32 0, %v5099
      %v5101 = vrot.slane %v4899, %v5100
      %v5102 = vlaneseq
      %v5103 = vshrl.u32 %v5102, 7
      %v5104 = vsub.s32 0, %v5103
      %v5105 = vrot.slane %v4900, %v5104
      %v5106 = vlaneseq
      %v5107 = vshrl.u32 %v5106, 7
      %v5108 = vsub.s32 0, %v5107
      %v5109 = vrot.slane %v4901, %v5108
      %v5110 = vlaneseq
      %v5111 = vshrl.u32 %v5110, 7
      %v5112 = vsub.s32 0, %v5111
      %v5113 = vrot.slane %v4902, %v5112
      %v5114 = vlaneseq
      %v5115 = vshrl.u32 %v5114, 7
      %v5116 = vsub.s32 0, %v5115
      %v5117 = vrot.slane %v4903, %v5116
      %v5118 = vlaneseq
      %v5119 = vshrl.u32 %v5118, 7
      %v5120 = vsub.s32 0, %v5119
      %v5121 = vrot.slane %v4904, %v5120
      %v5122 = vlaneseq
      %v5123 = vshrl.u32 %v5122, 7
      %v5124 = vsub.s32 0, %v5123
      %v5125 = vrot.slane %v4905, %v5124
      %v5126 = vlaneseq
      %v5127 = vshrl.u32 %v5126, 7
      %v5128 = vsub.s32 0, %v5127
      %v5129 = vrot.slane %v4906, %v5128
      %v5130 = vlaneseq
      %v5131 = vshrl.u32 %v5130, 7
      %v5132 = vsub.s32 0, %v5131
      %v5133 = vrot.slane %v4907, %v5132
      %v5134 = vlaneseq
      %v5135 = vshrl.u32 %v5134, 7
      %v5136 = vsub.s32 0, %v5135
      %v5137 = vrot.slane %v4908, %v5136
      %v5138 = vlaneseq
      %v5139 = vshrl.u32 %v5138, 7
      %v5140 = vsub.s32 0, %v5139
      %v5141 = vrot.slane %v4909, %v5140
      %v5142 = vlaneseq
      %v5143 = vshrl.u32 %v5142, 7
      %v5144 = vsub.s32 0, %v5143
      %v5145 = vrot.slane %v4910, %v5144
      %v5146 = vlaneseq
      %v5147 = vshrl.u32 %v5146, 7
      %v5148 = vsub.s32 0, %v5147
      %v5149 = vrot.slane %v4911, %v5148
      %v5150 = vlaneseq
      %v5151 = vshrl.u32 %v5150, 7
      %v5152 = vsub.s32 0, %v5151
      %v5153 = vrot.slane %v4912, %v5152
      %v5154 = vlaneseq
      %v5155 = vshrl.u32 %v5154, 7
      %v5156 = vsub.s32 0, %v5155
      %v5157 = vrot.slane %v4913, %v5156
      %v5158 = vlaneseq
      %v5159 = vshrl.u32 %v5158, 7
      %v5160 = vsub.s32 0, %v5159
      %v5161 = vrot.slane %v4914, %v5160
      %v5162 = vlaneseq
      %v5163 = vshrl.u32 %v5162, 7
      %v5164 = vsub.s32 0, %v5163
      %v5165 = vrot.slane %v4915, %v5164
      %v5166 = vlaneseq
      %v5167 = vshrl.u32 %v5166, 7
      %v5168 = vsub.s32 0, %v5167
      %v5169 = vrot.slane %v4916, %v5168
      %v5170 = vlaneseq
      %v5171 = vshrl.u32 %v5170, 7
      %v5172 = vsub.s32 0, %v5171
      %v5173 = vrot.slane %v4917, %v5172
      %v5174 = vsub.f32 %v4120, %v4921
      %v5175 = vsub.f32 %v4121, %v4925
      %v5176 = vsub.f32 %v4122, %v4929
      %v5177 = vsub.f32 %v4123, %v4933
      %v5178 = vsub.f32 %v4124, %v4937
      %v5179 = vsub.f32 %v4125, %v4941
      %v5180 = vsub.f32 %v4126, %v4945
      %v5181 = vsub.f32 %v4127, %v4949
      %v5182 = vsub.f32 %v4128, %v4953
      %v5183 = vsub.f32 %v4129, %v4957
      %v5184 = vsub.f32 %v4130, %v4961
      %v5185 = vsub.f32 %v4131, %v4965
      %v5186 = vsub.f32 %v4132, %v4969
      %v5187 = vsub.f32 %v4133, %v4973
      %v5188 = vsub.f32 %v4134, %v4977
      %v5189 = vsub.f32 %v4135, %v4981
      %v5190 = vsub.f32 %v4136, %v4985
      %v5191 = vsub.f32 %v4137, %v4989
      %v5192 = vsub.f32 %v4138, %v4993
      %v5193 = vsub.f32 %v4139, %v4997
      %v5194 = vsub.f32 %v4140, %v5001
      %v5195 = vsub.f32 %v4141, %v5005
      %v5196 = vsub.f32 %v4142, %v5009
      %v5197 = vsub.f32 %v4143, %v5013
      %v5198 = vsub.f32 %v4144, %v5017
      %v5199 = vsub.f32 %v4145, %v5021
      %v5200 = vsub.f32 %v4146, %v5025
      %v5201 = vsub.f32 %v4147, %v5029
      %v5202 = vsub.f32 %v4148, %v5033
      %v5203 = vsub.f32 %v4149, %v5037
      %v5204 = vsub.f32 %v4150, %v5041
      %v5205 = vsub.f32 %v4151, %v5045
      %v5206 = vsub.f32 %v4152, %v5049
      %v5207 = vsub.f32 %v4153, %v5053
      %v5208 = vsub.f32 %v4154, %v5057
      %v5209 = vsub.f32 %v4155, %v5061
      %v5210 = vsub.f32 %v4156, %v5065
      %v5211 = vsub.f32 %v4157, %v5069
      %v5212 = vsub.f32 %v4158, %v5073
      %v5213 = vsub.f32 %v4159, %v5077
      %v5214 = vsub.f32 %v4160, %v5081
      %v5215 = vsub.f32 %v4161, %v5085
      %v5216 = vsub.f32 %v4162, %v5089
      %v5217 = vsub.f32 %v4163, %v5093
      %v5218 = vsub.f32 %v4164, %v5097
      %v5219 = vsub.f32 %v4165, %v5101
      %v5220 = vsub.f32 %v4166, %v5105
      %v5221 = vsub.f32 %v4167, %v5109
      %v5222 = vsub.f32 %v4168, %v5113
      %v5223 = vsub.f32 %v4169, %v5117
      %v5224 = vsub.f32 %v4170, %v5121
      %v5225 = vsub.f32 %v4171, %v5125
      %v5226 = vsub.f32 %v4172, %v5129
      %v5227 = vsub.f32 %v4173, %v5133
      %v5228 = vsub.f32 %v4174, %v5137
      %v5229 = vsub.f32 %v4175, %v5141
      %v5230 = vsub.f32 %v4176, %v5145
      %v5231 = vsub.f32 %v4177, %v5149
      %v5232 = vsub.f32 %v4178, %v5153
      %v5233 = vsub.f32 %v4179, %v5157
      %v5234 = vsub.f32 %v4180, %v5161
      %v5235 = vsub.f32 %v4181, %v5165
      %v5236 = vsub.f32 %v4182, %v5169
      %v5237 = vsub.f32 %v4183, %v5173
      %v5238 = vmul.f32 %v5174, 1.442695
      %v5239 = vpow.pop %v5238
      %v5240 = vmul.f32 %v5175, 1.442695
      %v5241 = vpow.pop %v5240
      %v5242 = vmul.f32 %v5176, 1.442695
      %v5243 = vpow.pop %v5242
      %v5244 = vmul.f32 %v5177, 1.442695
      %v5245 = vpow.pop %v5244
      %v5246 = vmul.f32 %v5178, 1.442695
      %v5247 = vpow.pop %v5246
      %v5248 = vmul.f32 %v5179, 1.442695
      %v5249 = vpow.pop %v5248
      %v5250 = vmul.f32 %v5180, 1.442695
      %v5251 = vpow.pop %v5250
      %v5252 = vmul.f32 %v5181, 1.442695
      %v5253 = vpow.pop %v5252
      %v5254 = vmul.f32 %v5182, 1.442695
      %v5255 = vpow.pop %v5254
      %v5256 = vmul.f32 %v5183, 1.442695
      %v5257 = vpow.pop %v5256
      %v5258 = vmul.f32 %v5184, 1.442695
      %v5259 = vpow.pop %v5258
      %v5260 = vmul.f32 %v5185, 1.442695
      %v5261 = vpow.pop %v5260
      %v5262 = vmul.f32 %v5186, 1.442695
      %v5263 = vpow.pop %v5262
      %v5264 = vmul.f32 %v5187, 1.442695
      %v5265 = vpow.pop %v5264
      %v5266 = vmul.f32 %v5188, 1.442695
      %v5267 = vpow.pop %v5266
      %v5268 = vmul.f32 %v5189, 1.442695
      %v5269 = vpow.pop %v5268
      %v5270 = vmul.f32 %v5190, 1.442695
      %v5271 = vpow.pop %v5270
      %v5272 = vmul.f32 %v5191, 1.442695
      %v5273 = vpow.pop %v5272
      %v5274 = vmul.f32 %v5192, 1.442695
      %v5275 = vpow.pop %v5274
      %v5276 = vmul.f32 %v5193, 1.442695
      %v5277 = vpow.pop %v5276
      %v5278 = vmul.f32 %v5194, 1.442695
      %v5279 = vpow.pop %v5278
      %v5280 = vmul.f32 %v5195, 1.442695
      %v5281 = vpow.pop %v5280
      %v5282 = vmul.f32 %v5196, 1.442695
      %v5283 = vpow.pop %v5282
      %v5284 = vmul.f32 %v5197, 1.442695
      %v5285 = vpow.pop %v5284
      %v5286 = vmul.f32 %v5198, 1.442695
      %v5287 = vpow.pop %v5286
      %v5288 = vmul.f32 %v5199, 1.442695
      %v5289 = vpow.pop %v5288
      %v5290 = vmul.f32 %v5200, 1.442695
      %v5291 = vpow.pop %v5290
      %v5292 = vmul.f32 %v5201, 1.442695
      %v5293 = vpow.pop %v5292
      %v5294 = vmul.f32 %v5202, 1.442695
      %v5295 = vpow.pop %v5294
      %v5296 = vmul.f32 %v5203, 1.442695
      %v5297 = vpow.pop %v5296
      %v5298 = vmul.f32 %v5204, 1.442695
      %v5299 = vpow.pop %v5298
      %v5300 = vmul.f32 %v5205, 1.442695
      %v5301 = vpow.pop %v5300
      %v5302 = vmul.f32 %v5206, 1.442695
      %v5303 = vpow.pop %v5302
      %v5304 = vmul.f32 %v5207, 1.442695
      %v5305 = vpow.pop %v5304
      %v5306 = vmul.f32 %v5208, 1.442695
      %v5307 = vpow.pop %v5306
      %v5308 = vmul.f32 %v5209, 1.442695
      %v5309 = vpow.pop %v5308
      %v5310 = vmul.f32 %v5210, 1.442695
      %v5311 = vpow.pop %v5310
      %v5312 = vmul.f32 %v5211, 1.442695
      %v5313 = vpow.pop %v5312
      %v5314 = vmul.f32 %v5212, 1.442695
      %v5315 = vpow.pop %v5314
      %v5316 = vmul.f32 %v5213, 1.442695
      %v5317 = vpow.pop %v5316
      %v5318 = vmul.f32 %v5214, 1.442695
      %v5319 = vpow.pop %v5318
      %v5320 = vmul.f32 %v5215, 1.442695
      %v5321 = vpow.pop %v5320
      %v5322 = vmul.f32 %v5216, 1.442695
      %v5323 = vpow.pop %v5322
      %v5324 = vmul.f32 %v5217, 1.442695
      %v5325 = vpow.pop %v5324
      %v5326 = vmul.f32 %v5218, 1.442695
      %v5327 = vpow.pop %v5326
      %v5328 = vmul.f32 %v5219, 1.442695
      %v5329 = vpow.pop %v5328
      %v5330 = vmul.f32 %v5220, 1.442695
      %v5331 = vpow.pop %v5330
      %v5332 = vmul.f32 %v5221, 1.442695
      %v5333 = vpow.pop %v5332
      %v5334 = vmul.f32 %v5222, 1.442695
      %v5335 = vpow.pop %v5334
      %v5336 = vmul.f32 %v5223, 1.442695
      %v5337 = vpow.pop %v5336
      %v5338 = vmul.f32 %v5224, 1.442695
      %v5339 = vpow.pop %v5338
      %v5340 = vmul.f32 %v5225, 1.442695
      %v5341 = vpow.pop %v5340
      %v5342 = vmul.f32 %v5226, 1.442695
      %v5343 = vpow.pop %v5342
      %v5344 = vmul.f32 %v5227, 1.442695
      %v5345 = vpow.pop %v5344
      %v5346 = vmul.f32 %v5228, 1.442695
      %v5347 = vpow.pop %v5346
      %v5348 = vmul.f32 %v5229, 1.442695
      %v5349 = vpow.pop %v5348
      %v5350 = vmul.f32 %v5230, 1.442695
      %v5351 = vpow.pop %v5350
      %v5352 = vmul.f32 %v5231, 1.442695
      %v5353 = vpow.pop %v5352
      %v5354 = vmul.f32 %v5232, 1.442695
      %v5355 = vpow.pop %v5354
      %v5356 = vmul.f32 %v5233, 1.442695
      %v5357 = vpow.pop %v5356
      %v5358 = vmul.f32 %v5234, 1.442695
      %v5359 = vpow.pop %v5358
      %v5360 = vmul.f32 %v5235, 1.442695
      %v5361 = vpow.pop %v5360
      %v5362 = vmul.f32 %v5236, 1.442695
      %v5363 = vpow.pop %v5362
      %v5364 = vmul.f32 %v5237, 1.442695
      %v5365 = vpow.pop %v5364
      %v5430 = vrot.slane %v4855, 7
      %vm5431 = vcmask 1041409
      %v5432 = vsel %vm5431, %v5430, %v4854
      %v5433 = vrot.slane %v4856, 6
      %vm5434 = vcmask 1042434
      %v5435 = vsel %vm5434, %v5433, %v5432
      %v5436 = vrot.slane %v4857, 5
      %vm5437 = vcmask 1043459
      %v5438 = vsel %vm5437, %v5436, %v5435
      %v5439 = vrot.slane %v4858, 4
      %vm5440 = vcmask 1044484
      %v5441 = vsel %vm5440, %v5439, %v5438
      %v5442 = vrot.slane %v4859, 3
      %vm5443 = vcmask 1045509
      %v5444 = vsel %vm5443, %v5442, %v5441
      %v5445 = vrot.slane %v4860, 2
      %vm5446 = vcmask 1046534
      %v5447 = vsel %vm5446, %v5445, %v5444
      %v5448 = vrot.slane %v4861, 1
      %vm5449 = vcmask 1047559
      %v5450 = vsel %vm5449, %v5448, %v5447
      %v5451 = vrot.slane %v4863, 7
      %v5452 = vsel %vm5431, %v5451, %v4862
      %v5453 = vrot.slane %v4864, 6
      %v5454 = vsel %vm5434, %v5453, %v5452
      %v5455 = vrot.slane %v4865, 5
      %v5456 = vsel %vm5437, %v5455, %v5454
      %v5457 = vrot.slane %v4866, 4
      %v5458 = vsel %vm5440, %v5457, %v5456
      %v5459 = vrot.slane %v4867, 3
      %v5460 = vsel %vm5443, %v5459, %v5458
      %v5461 = vrot.slane %v4868, 2
      %v5462 = vsel %vm5446, %v5461, %v5460
      %v5463 = vrot.slane %v4869, 1
      %v5464 = vsel %vm5449, %v5463, %v5462
      %v5465 = vrot.slane %v4871, 7
      %v5466 = vsel %vm5431, %v5465, %v4870
      %v5467 = vrot.slane %v4872, 6
      %v5468 = vsel %vm5434, %v5467, %v5466
      %v5469 = vrot.slane %v4873, 5
      %v5470 = vsel %vm5437, %v5469, %v5468
      %v5471 = vrot.slane %v4874, 4
      %v5472 = vsel %vm5440, %v5471, %v5470
      %v5473 = vrot.slane %v4875, 3
      %v5474 = vsel %vm5443, %v5473, %v5472
      %v5475 = vrot.slane %v4876, 2
      %v5476 = vsel %vm5446, %v5475, %v5474
      %v5477 = vrot.slane %v4877, 1
      %v5478 = vsel %vm5449, %v5477, %v5476
      %v5479 = vrot.slane %v4879, 7
      %v5480 = vsel %vm5431, %v5479, %v4878
      %v5481 = vrot.slane %v4880, 6
      %v5482 = vsel %vm5434, %v5481, %v5480
      %v5483 = vrot.slane %v4881, 5
      %v5484 = vsel %vm5437, %v5483, %v5482
      %v5485 = vrot.slane %v4882, 4
      %v5486 = vsel %vm5440, %v5485, %v5484
      %v5487 = vrot.slane %v4883, 3
      %v5488 = vsel %vm5443, %v5487, %v5486
      %v5489 = vrot.slane %v4884, 2
      %v5490 = vsel %vm5446, %v5489, %v5488
      %v5491 = vrot.slane %v4885, 1
      %v5492 = vsel %vm5449, %v5491, %v5490
      %v5493 = vrot.slane %v4887, 7
      %v5494 = vsel %vm5431, %v5493, %v4886
      %v5495 = vrot.slane %v4888, 6
      %v5496 = vsel %vm5434, %v5495, %v5494
      %v5497 = vrot.slane %v4889, 5
      %v5498 = vsel %vm5437, %v5497, %v5496
      %v5499 = vrot.slane %v4890, 4
      %v5500 = vsel %vm5440, %v5499, %v5498
      %v5501 = vrot.slane %v4891, 3
      %v5502 = vsel %vm5443, %v5501, %v5500
      %v5503 = vrot.slane %v4892, 2
      %v5504 = vsel %vm5446, %v5503, %v5502
      %v5505 = vrot.slane %v4893, 1
      %v5506 = vsel %vm5449, %v5505, %v5504
      %v5507 = vrot.slane %v4895, 7
      %v5508 = vsel %vm5431, %v5507, %v4894
      %v5509 = vrot.slane %v4896, 6
      %v5510 = vsel %vm5434, %v5509, %v5508
      %v5511 = vrot.slane %v4897, 5
      %v5512 = vsel %vm5437, %v5511, %v5510
      %v5513 = vrot.slane %v4898, 4
      %v5514 = vsel %vm5440, %v5513, %v5512
      %v5515 = vrot.slane %v4899, 3
      %v5516 = vsel %vm5443, %v5515, %v5514
      %v5517 = vrot.slane %v4900, 2
      %v5518 = vsel %vm5446, %v5517, %v5516
      %v5519 = vrot.slane %v4901, 1
      %v5520 = vsel %vm5449, %v5519, %v5518
      %v5521 = vrot.slane %v4903, 7
      %v5522 = vsel %vm5431, %v5521, %v4902
      %v5523 = vrot.slane %v4904, 6
      %v5524 = vsel %vm5434, %v5523, %v5522
      %v5525 = vrot.slane %v4905, 5
      %v5526 = vsel %vm5437, %v5525, %v5524
      %v5527 = vrot.slane %v4906, 4
      %v5528 = vsel %vm5440, %v5527, %v5526
      %v5529 = vrot.slane %v4907, 3
      %v5530 = vsel %vm5443, %v5529, %v5528
      %v5531 = vrot.slane %v4908, 2
      %v5532 = vsel %vm5446, %v5531, %v5530
      %v5533 = vrot.slane %v4909, 1
      %v5534 = vsel %vm5449, %v5533, %v5532
      %v5535 = vrot.slane %v4911, 7
      %v5536 = vsel %vm5431, %v5535, %v4910
      %v5537 = vrot.slane %v4912, 6
      %v5538 = vsel %vm5434, %v5537, %v5536
      %v5539 = vrot.slane %v4913, 5
      %v5540 = vsel %vm5437, %v5539, %v5538
      %v5541 = vrot.slane %v4914, 4
      %v5542 = vsel %vm5440, %v5541, %v5540
      %v5543 = vrot.slane %v4915, 3
      %v5544 = vsel %vm5443, %v5543, %v5542
      %v5545 = vrot.slane %v4916, 2
      %v5546 = vsel %vm5446, %v5545, %v5544
      %v5547 = vrot.slane %v4917, 1
      %v5548 = vsel %vm5449, %v5547, %v5546
      %v5557 = vsub.f32 %v4247, %v5450
      %v5558 = vsub.f32 %v4250, %v5464
      %v5559 = vsub.f32 %v4255, %v5478
      %v5560 = vsub.f32 %v4258, %v5492
      %v5561 = vsub.f32 %v4263, %v5506
      %v5562 = vsub.f32 %v4266, %v5520
      %v5563 = vsub.f32 %v4271, %v5534
      %v5564 = vsub.f32 %v4274, %v5548
      %v5565 = vmul.f32 %v5557, 1.442695
      %v5566 = vpow.pop %v5565
      %v5567 = vmul.f32 %v5558, 1.442695
      %v5568 = vpow.pop %v5567
      %v5569 = vmul.f32 %v5559, 1.442695
      %v5570 = vpow.pop %v5569
      %v5571 = vmul.f32 %v5560, 1.442695
      %v5572 = vpow.pop %v5571
      %v5573 = vmul.f32 %v5561, 1.442695
      %v5574 = vpow.pop %v5573
      %v5575 = vmul.f32 %v5562, 1.442695
      %v5576 = vpow.pop %v5575
      %v5577 = vmul.f32 %v5563, 1.442695
      %v5578 = vpow.pop %v5577
      %v5579 = vmul.f32 %v5564, 1.442695
      %v5580 = vpow.pop %v5579
      %v5581 = vsel %vm4277, %v5239, 0.0
      %v5582 = vrot.slane %v5581, 4
      %v5583 = vadd.f32 %v5581, %v5582
      %v5584 = vrot.slane %v5583, 2
      %v5585 = vadd.f32 %v5583, %v5584
      %v5586 = vrot.slane %v5585, 1
      %v5587 = vadd.f32 %v5585, %v5586
      %v5588 = vsel %vm4277, %v5241, 0.0
      %v5589 = vrot.slane %v5588, 4
      %v5590 = vadd.f32 %v5588, %v5589
      %v5591 = vrot.slane %v5590, 2
      %v5592 = vadd.f32 %v5590, %v5591
      %v5593 = vrot.slane %v5592, 1
      %v5594 = vadd.f32 %v5592, %v5593
      %v5595 = vsel %vm4277, %v5243, 0.0
      %v5596 = vrot.slane %v5595, 4
      %v5597 = vadd.f32 %v5595, %v5596
      %v5598 = vrot.slane %v5597, 2
      %v5599 = vadd.f32 %v5597, %v5598
      %v5600 = vrot.slane %v5599, 1
      %v5601 = vadd.f32 %v5599, %v5600
      %v5602 = vsel %vm4277, %v5245, 0.0
      %v5603 = vrot.slane %v5602, 4
      %v5604 = vadd.f32 %v5602, %v5603
      %v5605 = vrot.slane %v5604, 2
      %v5606 = vadd.f32 %v5604, %v5605
      %v5607 = vrot.slane %v5606, 1
      %v5608 = vadd.f32 %v5606, %v5607
      %v5609 = vsel %vm4277, %v5247, 0.0
      %v5610 = vrot.slane %v5609, 4
      %v5611 = vadd.f32 %v5609, %v5610
      %v5612 = vrot.slane %v5611, 2
      %v5613 = vadd.f32 %v5611, %v5612
      %v5614 = vrot.slane %v5613, 1
      %v5615 = vadd.f32 %v5613, %v5614
      %v5616 = vsel %vm4277, %v5249, 0.0
      %v5617 = vrot.slane %v5616, 4
      %v5618 = vadd.f32 %v5616, %v5617
      %v5619 = vrot.slane %v5618, 2
      %v5620 = vadd.f32 %v5618, %v5619
      %v5621 = vrot.slane %v5620, 1
      %v5622 = vadd.f32 %v5620, %v5621
      %v5623 = vsel %vm4277, %v5251, 0.0
      %v5624 = vrot.slane %v5623, 4
      %v5625 = vadd.f32 %v5623, %v5624
      %v5626 = vrot.slane %v5625, 2
      %v5627 = vadd.f32 %v5625, %v5626
      %v5628 = vrot.slane %v5627, 1
      %v5629 = vadd.f32 %v5627, %v5628
      %v5630 = vsel %vm4277, %v5253, 0.0
      %v5631 = vrot.slane %v5630, 4
      %v5632 = vadd.f32 %v5630, %v5631
      %v5633 = vrot.slane %v5632, 2
      %v5634 = vadd.f32 %v5632, %v5633
      %v5635 = vrot.slane %v5634, 1
      %v5636 = vadd.f32 %v5634, %v5635
      %v5637 = vsel %vm4277, %v5255, 0.0
      %v5638 = vrot.slane %v5637, 4
      %v5639 = vadd.f32 %v5637, %v5638
      %v5640 = vrot.slane %v5639, 2
      %v5641 = vadd.f32 %v5639, %v5640
      %v5642 = vrot.slane %v5641, 1
      %v5643 = vadd.f32 %v5641, %v5642
      %v5644 = vsel %vm4277, %v5257, 0.0
      %v5645 = vrot.slane %v5644, 4
      %v5646 = vadd.f32 %v5644, %v5645
      %v5647 = vrot.slane %v5646, 2
      %v5648 = vadd.f32 %v5646, %v5647
      %v5649 = vrot.slane %v5648, 1
      %v5650 = vadd.f32 %v5648, %v5649
      %v5651 = vsel %vm4277, %v5259, 0.0
      %v5652 = vrot.slane %v5651, 4
      %v5653 = vadd.f32 %v5651, %v5652
      %v5654 = vrot.slane %v5653, 2
      %v5655 = vadd.f32 %v5653, %v5654
      %v5656 = vrot.slane %v5655, 1
      %v5657 = vadd.f32 %v5655, %v5656
      %v5658 = vsel %vm4277, %v5261, 0.0
      %v5659 = vrot.slane %v5658, 4
      %v5660 = vadd.f32 %v5658, %v5659
      %v5661 = vrot.slane %v5660, 2
      %v5662 = vadd.f32 %v5660, %v5661
      %v5663 = vrot.slane %v5662, 1
      %v5664 = vadd.f32 %v5662, %v5663
      %v5665 = vsel %vm4277, %v5263, 0.0
      %v5666 = vrot.slane %v5665, 4
      %v5667 = vadd.f32 %v5665, %v5666
      %v5668 = vrot.slane %v5667, 2
      %v5669 = vadd.f32 %v5667, %v5668
      %v5670 = vrot.slane %v5669, 1
      %v5671 = vadd.f32 %v5669, %v5670
      %v5672 = vsel %vm4277, %v5265, 0.0
      %v5673 = vrot.slane %v5672, 4
      %v5674 = vadd.f32 %v5672, %v5673
      %v5675 = vrot.slane %v5674, 2
      %v5676 = vadd.f32 %v5674, %v5675
      %v5677 = vrot.slane %v5676, 1
      %v5678 = vadd.f32 %v5676, %v5677
      %v5679 = vsel %vm4277, %v5267, 0.0
      %v5680 = vrot.slane %v5679, 4
      %v5681 = vadd.f32 %v5679, %v5680
      %v5682 = vrot.slane %v5681, 2
      %v5683 = vadd.f32 %v5681, %v5682
      %v5684 = vrot.slane %v5683, 1
      %v5685 = vadd.f32 %v5683, %v5684
      %v5686 = vsel %vm4277, %v5269, 0.0
      %v5687 = vrot.slane %v5686, 4
      %v5688 = vadd.f32 %v5686, %v5687
      %v5689 = vrot.slane %v5688, 2
      %v5690 = vadd.f32 %v5688, %v5689
      %v5691 = vrot.slane %v5690, 1
      %v5692 = vadd.f32 %v5690, %v5691
      %v5693 = vsel %vm4277, %v5271, 0.0
      %v5694 = vrot.slane %v5693, 4
      %v5695 = vadd.f32 %v5693, %v5694
      %v5696 = vrot.slane %v5695, 2
      %v5697 = vadd.f32 %v5695, %v5696
      %v5698 = vrot.slane %v5697, 1
      %v5699 = vadd.f32 %v5697, %v5698
      %v5700 = vsel %vm4277, %v5273, 0.0
      %v5701 = vrot.slane %v5700, 4
      %v5702 = vadd.f32 %v5700, %v5701
      %v5703 = vrot.slane %v5702, 2
      %v5704 = vadd.f32 %v5702, %v5703
      %v5705 = vrot.slane %v5704, 1
      %v5706 = vadd.f32 %v5704, %v5705
      %v5707 = vsel %vm4277, %v5275, 0.0
      %v5708 = vrot.slane %v5707, 4
      %v5709 = vadd.f32 %v5707, %v5708
      %v5710 = vrot.slane %v5709, 2
      %v5711 = vadd.f32 %v5709, %v5710
      %v5712 = vrot.slane %v5711, 1
      %v5713 = vadd.f32 %v5711, %v5712
      %v5714 = vsel %vm4277, %v5277, 0.0
      %v5715 = vrot.slane %v5714, 4
      %v5716 = vadd.f32 %v5714, %v5715
      %v5717 = vrot.slane %v5716, 2
      %v5718 = vadd.f32 %v5716, %v5717
      %v5719 = vrot.slane %v5718, 1
      %v5720 = vadd.f32 %v5718, %v5719
      %v5721 = vsel %vm4277, %v5279, 0.0
      %v5722 = vrot.slane %v5721, 4
      %v5723 = vadd.f32 %v5721, %v5722
      %v5724 = vrot.slane %v5723, 2
      %v5725 = vadd.f32 %v5723, %v5724
      %v5726 = vrot.slane %v5725, 1
      %v5727 = vadd.f32 %v5725, %v5726
      %v5728 = vsel %vm4277, %v5281, 0.0
      %v5729 = vrot.slane %v5728, 4
      %v5730 = vadd.f32 %v5728, %v5729
      %v5731 = vrot.slane %v5730, 2
      %v5732 = vadd.f32 %v5730, %v5731
      %v5733 = vrot.slane %v5732, 1
      %v5734 = vadd.f32 %v5732, %v5733
      %v5735 = vsel %vm4277, %v5283, 0.0
      %v5736 = vrot.slane %v5735, 4
      %v5737 = vadd.f32 %v5735, %v5736
      %v5738 = vrot.slane %v5737, 2
      %v5739 = vadd.f32 %v5737, %v5738
      %v5740 = vrot.slane %v5739, 1
      %v5741 = vadd.f32 %v5739, %v5740
      %v5742 = vsel %vm4277, %v5285, 0.0
      %v5743 = vrot.slane %v5742, 4
      %v5744 = vadd.f32 %v5742, %v5743
      %v5745 = vrot.slane %v5744, 2
      %v5746 = vadd.f32 %v5744, %v5745
      %v5747 = vrot.slane %v5746, 1
      %v5748 = vadd.f32 %v5746, %v5747
      %v5749 = vsel %vm4277, %v5287, 0.0
      %v5750 = vrot.slane %v5749, 4
      %v5751 = vadd.f32 %v5749, %v5750
      %v5752 = vrot.slane %v5751, 2
      %v5753 = vadd.f32 %v5751, %v5752
      %v5754 = vrot.slane %v5753, 1
      %v5755 = vadd.f32 %v5753, %v5754
      %v5756 = vsel %vm4277, %v5289, 0.0
      %v5757 = vrot.slane %v5756, 4
      %v5758 = vadd.f32 %v5756, %v5757
      %v5759 = vrot.slane %v5758, 2
      %v5760 = vadd.f32 %v5758, %v5759
      %v5761 = vrot.slane %v5760, 1
      %v5762 = vadd.f32 %v5760, %v5761
      %v5763 = vsel %vm4277, %v5291, 0.0
      %v5764 = vrot.slane %v5763, 4
      %v5765 = vadd.f32 %v5763, %v5764
      %v5766 = vrot.slane %v5765, 2
      %v5767 = vadd.f32 %v5765, %v5766
      %v5768 = vrot.slane %v5767, 1
      %v5769 = vadd.f32 %v5767, %v5768
      %v5770 = vsel %vm4277, %v5293, 0.0
      %v5771 = vrot.slane %v5770, 4
      %v5772 = vadd.f32 %v5770, %v5771
      %v5773 = vrot.slane %v5772, 2
      %v5774 = vadd.f32 %v5772, %v5773
      %v5775 = vrot.slane %v5774, 1
      %v5776 = vadd.f32 %v5774, %v5775
      %v5777 = vsel %vm4277, %v5295, 0.0
      %v5778 = vrot.slane %v5777, 4
      %v5779 = vadd.f32 %v5777, %v5778
      %v5780 = vrot.slane %v5779, 2
      %v5781 = vadd.f32 %v5779, %v5780
      %v5782 = vrot.slane %v5781, 1
      %v5783 = vadd.f32 %v5781, %v5782
      %v5784 = vsel %vm4277, %v5297, 0.0
      %v5785 = vrot.slane %v5784, 4
      %v5786 = vadd.f32 %v5784, %v5785
      %v5787 = vrot.slane %v5786, 2
      %v5788 = vadd.f32 %v5786, %v5787
      %v5789 = vrot.slane %v5788, 1
      %v5790 = vadd.f32 %v5788, %v5789
      %v5791 = vsel %vm4277, %v5299, 0.0
      %v5792 = vrot.slane %v5791, 4
      %v5793 = vadd.f32 %v5791, %v5792
      %v5794 = vrot.slane %v5793, 2
      %v5795 = vadd.f32 %v5793, %v5794
      %v5796 = vrot.slane %v5795, 1
      %v5797 = vadd.f32 %v5795, %v5796
      %v5798 = vsel %vm4277, %v5301, 0.0
      %v5799 = vrot.slane %v5798, 4
      %v5800 = vadd.f32 %v5798, %v5799
      %v5801 = vrot.slane %v5800, 2
      %v5802 = vadd.f32 %v5800, %v5801
      %v5803 = vrot.slane %v5802, 1
      %v5804 = vadd.f32 %v5802, %v5803
      %v5805 = vsel %vm4277, %v5303, 0.0
      %v5806 = vrot.slane %v5805, 4
      %v5807 = vadd.f32 %v5805, %v5806
      %v5808 = vrot.slane %v5807, 2
      %v5809 = vadd.f32 %v5807, %v5808
      %v5810 = vrot.slane %v5809, 1
      %v5811 = vadd.f32 %v5809, %v5810
      %v5812 = vsel %vm4277, %v5305, 0.0
      %v5813 = vrot.slane %v5812, 4
      %v5814 = vadd.f32 %v5812, %v5813
      %v5815 = vrot.slane %v5814, 2
      %v5816 = vadd.f32 %v5814, %v5815
      %v5817 = vrot.slane %v5816, 1
      %v5818 = vadd.f32 %v5816, %v5817
      %v5819 = vsel %vm4277, %v5307, 0.0
      %v5820 = vrot.slane %v5819, 4
      %v5821 = vadd.f32 %v5819, %v5820
      %v5822 = vrot.slane %v5821, 2
      %v5823 = vadd.f32 %v5821, %v5822
      %v5824 = vrot.slane %v5823, 1
      %v5825 = vadd.f32 %v5823, %v5824
      %v5826 = vsel %vm4277, %v5309, 0.0
      %v5827 = vrot.slane %v5826, 4
      %v5828 = vadd.f32 %v5826, %v5827
      %v5829 = vrot.slane %v5828, 2
      %v5830 = vadd.f32 %v5828, %v5829
      %v5831 = vrot.slane %v5830, 1
      %v5832 = vadd.f32 %v5830, %v5831
      %v5833 = vsel %vm4277, %v5311, 0.0
      %v5834 = vrot.slane %v5833, 4
      %v5835 = vadd.f32 %v5833, %v5834
      %v5836 = vrot.slane %v5835, 2
      %v5837 = vadd.f32 %v5835, %v5836
      %v5838 = vrot.slane %v5837, 1
      %v5839 = vadd.f32 %v5837, %v5838
      %v5840 = vsel %vm4277, %v5313, 0.0
      %v5841 = vrot.slane %v5840, 4
      %v5842 = vadd.f32 %v5840, %v5841
      %v5843 = vrot.slane %v5842, 2
      %v5844 = vadd.f32 %v5842, %v5843
      %v5845 = vrot.slane %v5844, 1
      %v5846 = vadd.f32 %v5844, %v5845
      %v5847 = vsel %vm4277, %v5315, 0.0
      %v5848 = vrot.slane %v5847, 4
      %v5849 = vadd.f32 %v5847, %v5848
      %v5850 = vrot.slane %v5849, 2
      %v5851 = vadd.f32 %v5849, %v5850
      %v5852 = vrot.slane %v5851, 1
      %v5853 = vadd.f32 %v5851, %v5852
      %v5854 = vsel %vm4277, %v5317, 0.0
      %v5855 = vrot.slane %v5854, 4
      %v5856 = vadd.f32 %v5854, %v5855
      %v5857 = vrot.slane %v5856, 2
      %v5858 = vadd.f32 %v5856, %v5857
      %v5859 = vrot.slane %v5858, 1
      %v5860 = vadd.f32 %v5858, %v5859
      %v5861 = vsel %vm4277, %v5319, 0.0
      %v5862 = vrot.slane %v5861, 4
      %v5863 = vadd.f32 %v5861, %v5862
      %v5864 = vrot.slane %v5863, 2
      %v5865 = vadd.f32 %v5863, %v5864
      %v5866 = vrot.slane %v5865, 1
      %v5867 = vadd.f32 %v5865, %v5866
      %v5868 = vsel %vm4277, %v5321, 0.0
      %v5869 = vrot.slane %v5868, 4
      %v5870 = vadd.f32 %v5868, %v5869
      %v5871 = vrot.slane %v5870, 2
      %v5872 = vadd.f32 %v5870, %v5871
      %v5873 = vrot.slane %v5872, 1
      %v5874 = vadd.f32 %v5872, %v5873
      %v5875 = vsel %vm4277, %v5323, 0.0
      %v5876 = vrot.slane %v5875, 4
      %v5877 = vadd.f32 %v5875, %v5876
      %v5878 = vrot.slane %v5877, 2
      %v5879 = vadd.f32 %v5877, %v5878
      %v5880 = vrot.slane %v5879, 1
      %v5881 = vadd.f32 %v5879, %v5880
      %v5882 = vsel %vm4277, %v5325, 0.0
      %v5883 = vrot.slane %v5882, 4
      %v5884 = vadd.f32 %v5882, %v5883
      %v5885 = vrot.slane %v5884, 2
      %v5886 = vadd.f32 %v5884, %v5885
      %v5887 = vrot.slane %v5886, 1
      %v5888 = vadd.f32 %v5886, %v5887
      %v5889 = vsel %vm4277, %v5327, 0.0
      %v5890 = vrot.slane %v5889, 4
      %v5891 = vadd.f32 %v5889, %v5890
      %v5892 = vrot.slane %v5891, 2
      %v5893 = vadd.f32 %v5891, %v5892
      %v5894 = vrot.slane %v5893, 1
      %v5895 = vadd.f32 %v5893, %v5894
      %v5896 = vsel %vm4277, %v5329, 0.0
      %v5897 = vrot.slane %v5896, 4
      %v5898 = vadd.f32 %v5896, %v5897
      %v5899 = vrot.slane %v5898, 2
      %v5900 = vadd.f32 %v5898, %v5899
      %v5901 = vrot.slane %v5900, 1
      %v5902 = vadd.f32 %v5900, %v5901
      %v5903 = vsel %vm4277, %v5331, 0.0
      %v5904 = vrot.slane %v5903, 4
      %v5905 = vadd.f32 %v5903, %v5904
      %v5906 = vrot.slane %v5905, 2
      %v5907 = vadd.f32 %v5905, %v5906
      %v5908 = vrot.slane %v5907, 1
      %v5909 = vadd.f32 %v5907, %v5908
      %v5910 = vsel %vm4277, %v5333, 0.0
      %v5911 = vrot.slane %v5910, 4
      %v5912 = vadd.f32 %v5910, %v5911
      %v5913 = vrot.slane %v5912, 2
      %v5914 = vadd.f32 %v5912, %v5913
      %v5915 = vrot.slane %v5914, 1
      %v5916 = vadd.f32 %v5914, %v5915
      %v5917 = vsel %vm4277, %v5335, 0.0
      %v5918 = vrot.slane %v5917, 4
      %v5919 = vadd.f32 %v5917, %v5918
      %v5920 = vrot.slane %v5919, 2
      %v5921 = vadd.f32 %v5919, %v5920
      %v5922 = vrot.slane %v5921, 1
      %v5923 = vadd.f32 %v5921, %v5922
      %v5924 = vsel %vm4277, %v5337, 0.0
      %v5925 = vrot.slane %v5924, 4
      %v5926 = vadd.f32 %v5924, %v5925
      %v5927 = vrot.slane %v5926, 2
      %v5928 = vadd.f32 %v5926, %v5927
      %v5929 = vrot.slane %v5928, 1
      %v5930 = vadd.f32 %v5928, %v5929
      %v5931 = vsel %vm4277, %v5339, 0.0
      %v5932 = vrot.slane %v5931, 4
      %v5933 = vadd.f32 %v5931, %v5932
      %v5934 = vrot.slane %v5933, 2
      %v5935 = vadd.f32 %v5933, %v5934
      %v5936 = vrot.slane %v5935, 1
      %v5937 = vadd.f32 %v5935, %v5936
      %v5938 = vsel %vm4277, %v5341, 0.0
      %v5939 = vrot.slane %v5938, 4
      %v5940 = vadd.f32 %v5938, %v5939
      %v5941 = vrot.slane %v5940, 2
      %v5942 = vadd.f32 %v5940, %v5941
      %v5943 = vrot.slane %v5942, 1
      %v5944 = vadd.f32 %v5942, %v5943
      %v5945 = vsel %vm4277, %v5343, 0.0
      %v5946 = vrot.slane %v5945, 4
      %v5947 = vadd.f32 %v5945, %v5946
      %v5948 = vrot.slane %v5947, 2
      %v5949 = vadd.f32 %v5947, %v5948
      %v5950 = vrot.slane %v5949, 1
      %v5951 = vadd.f32 %v5949, %v5950
      %v5952 = vsel %vm4277, %v5345, 0.0
      %v5953 = vrot.slane %v5952, 4
      %v5954 = vadd.f32 %v5952, %v5953
      %v5955 = vrot.slane %v5954, 2
      %v5956 = vadd.f32 %v5954, %v5955
      %v5957 = vrot.slane %v5956, 1
      %v5958 = vadd.f32 %v5956, %v5957
      %v5959 = vsel %vm4277, %v5347, 0.0
      %v5960 = vrot.slane %v5959, 4
      %v5961 = vadd.f32 %v5959, %v5960
      %v5962 = vrot.slane %v5961, 2
      %v5963 = vadd.f32 %v5961, %v5962
      %v5964 = vrot.slane %v5963, 1
      %v5965 = vadd.f32 %v5963, %v5964
      %v5966 = vsel %vm4277, %v5349, 0.0
      %v5967 = vrot.slane %v5966, 4
      %v5968 = vadd.f32 %v5966, %v5967
      %v5969 = vrot.slane %v5968, 2
      %v5970 = vadd.f32 %v5968, %v5969
      %v5971 = vrot.slane %v5970, 1
      %v5972 = vadd.f32 %v5970, %v5971
      %v5973 = vsel %vm4277, %v5351, 0.0
      %v5974 = vrot.slane %v5973, 4
      %v5975 = vadd.f32 %v5973, %v5974
      %v5976 = vrot.slane %v5975, 2
      %v5977 = vadd.f32 %v5975, %v5976
      %v5978 = vrot.slane %v5977, 1
      %v5979 = vadd.f32 %v5977, %v5978
      %v5980 = vsel %vm4277, %v5353, 0.0
      %v5981 = vrot.slane %v5980, 4
      %v5982 = vadd.f32 %v5980, %v5981
      %v5983 = vrot.slane %v5982, 2
      %v5984 = vadd.f32 %v5982, %v5983
      %v5985 = vrot.slane %v5984, 1
      %v5986 = vadd.f32 %v5984, %v5985
      %v5987 = vsel %vm4277, %v5355, 0.0
      %v5988 = vrot.slane %v5987, 4
      %v5989 = vadd.f32 %v5987, %v5988
      %v5990 = vrot.slane %v5989, 2
      %v5991 = vadd.f32 %v5989, %v5990
      %v5992 = vrot.slane %v5991, 1
      %v5993 = vadd.f32 %v5991, %v5992
      %v5994 = vsel %vm4277, %v5357, 0.0
      %v5995 = vrot.slane %v5994, 4
      %v5996 = vadd.f32 %v5994, %v5995
      %v5997 = vrot.slane %v5996, 2
      %v5998 = vadd.f32 %v5996, %v5997
      %v5999 = vrot.slane %v5998, 1
      %v6000 = vadd.f32 %v5998, %v5999
      %v6001 = vsel %vm4277, %v5359, 0.0
      %v6002 = vrot.slane %v6001, 4
      %v6003 = vadd.f32 %v6001, %v6002
      %v6004 = vrot.slane %v6003, 2
      %v6005 = vadd.f32 %v6003, %v6004
      %v6006 = vrot.slane %v6005, 1
      %v6007 = vadd.f32 %v6005, %v6006
      %v6008 = vsel %vm4277, %v5361, 0.0
      %v6009 = vrot.slane %v6008, 4
      %v6010 = vadd.f32 %v6008, %v6009
      %v6011 = vrot.slane %v6010, 2
      %v6012 = vadd.f32 %v6010, %v6011
      %v6013 = vrot.slane %v6012, 1
      %v6014 = vadd.f32 %v6012, %v6013
      %v6015 = vsel %vm4277, %v5363, 0.0
      %v6016 = vrot.slane %v6015, 4
      %v6017 = vadd.f32 %v6015, %v6016
      %v6018 = vrot.slane %v6017, 2
      %v6019 = vadd.f32 %v6017, %v6018
      %v6020 = vrot.slane %v6019, 1
      %v6021 = vadd.f32 %v6019, %v6020
      %v6022 = vsel %vm4277, %v5365, 0.0
      %v6023 = vrot.slane %v6022, 4
      %v6024 = vadd.f32 %v6022, %v6023
      %v6025 = vrot.slane %v6024, 2
      %v6026 = vadd.f32 %v6024, %v6025
      %v6027 = vrot.slane %v6026, 1
      %v6028 = vadd.f32 %v6026, %v6027
      %v6037 = vrot.slane %v5566, 1
      %v6038 = vrot.slane %v5566, 2
      %v6039 = vrot.slane %v5566, 3
      %v6040 = vrot.slane %v5566, 4
      %v6041 = vrot.slane %v5566, 5
      %v6042 = vrot.slane %v5566, 6
      %v6043 = vrot.slane %v5566, 7
      %v6044 = vrot.slane %v5568, 1
      %v6045 = vrot.slane %v5568, 2
      %v6046 = vrot.slane %v5568, 3
      %v6047 = vrot.slane %v5568, 4
      %v6048 = vrot.slane %v5568, 5
      %v6049 = vrot.slane %v5568, 6
      %v6050 = vrot.slane %v5568, 7
      %v6051 = vrot.slane %v5570, 1
      %v6052 = vrot.slane %v5570, 2
      %v6053 = vrot.slane %v5570, 3
      %v6054 = vrot.slane %v5570, 4
      %v6055 = vrot.slane %v5570, 5
      %v6056 = vrot.slane %v5570, 6
      %v6057 = vrot.slane %v5570, 7
      %v6058 = vrot.slane %v5572, 1
      %v6059 = vrot.slane %v5572, 2
      %v6060 = vrot.slane %v5572, 3
      %v6061 = vrot.slane %v5572, 4
      %v6062 = vrot.slane %v5572, 5
      %v6063 = vrot.slane %v5572, 6
      %v6064 = vrot.slane %v5572, 7
      %v6065 = vrot.slane %v5574, 1
      %v6066 = vrot.slane %v5574, 2
      %v6067 = vrot.slane %v5574, 3
      %v6068 = vrot.slane %v5574, 4
      %v6069 = vrot.slane %v5574, 5
      %v6070 = vrot.slane %v5574, 6
      %v6071 = vrot.slane %v5574, 7
      %v6072 = vrot.slane %v5576, 1
      %v6073 = vrot.slane %v5576, 2
      %v6074 = vrot.slane %v5576, 3
      %v6075 = vrot.slane %v5576, 4
      %v6076 = vrot.slane %v5576, 5
      %v6077 = vrot.slane %v5576, 6
      %v6078 = vrot.slane %v5576, 7
      %v6079 = vrot.slane %v5578, 1
      %v6080 = vrot.slane %v5578, 2
      %v6081 = vrot.slane %v5578, 3
      %v6082 = vrot.slane %v5578, 4
      %v6083 = vrot.slane %v5578, 5
      %v6084 = vrot.slane %v5578, 6
      %v6085 = vrot.slane %v5578, 7
      %v6086 = vrot.slane %v5580, 1
      %v6087 = vrot.slane %v5580, 2
      %v6088 = vrot.slane %v5580, 3
      %v6089 = vrot.slane %v5580, 4
      %v6090 = vrot.slane %v5580, 5
      %v6091 = vrot.slane %v5580, 6
      %v6092 = vrot.slane %v5580, 7
      %v6157 = vadd.f32 %v5587, %v5566
      %v6158 = vadd.f32 %v5594, %v6037
      %v6159 = vadd.f32 %v5601, %v6038
      %v6160 = vadd.f32 %v5608, %v6039
      %v6161 = vadd.f32 %v5615, %v6040
      %v6162 = vadd.f32 %v5622, %v6041
      %v6163 = vadd.f32 %v5629, %v6042
      %v6164 = vadd.f32 %v5636, %v6043
      %v6165 = vadd.f32 %v5643, %v5568
      %v6166 = vadd.f32 %v5650, %v6044
      %v6167 = vadd.f32 %v5657, %v6045
      %v6168 = vadd.f32 %v5664, %v6046
      %v6169 = vadd.f32 %v5671, %v6047
      %v6170 = vadd.f32 %v5678, %v6048
      %v6171 = vadd.f32 %v5685, %v6049
      %v6172 = vadd.f32 %v5692, %v6050
      %v6173 = vadd.f32 %v5699, %v5570
      %v6174 = vadd.f32 %v5706, %v6051
      %v6175 = vadd.f32 %v5713, %v6052
      %v6176 = vadd.f32 %v5720, %v6053
      %v6177 = vadd.f32 %v5727, %v6054
      %v6178 = vadd.f32 %v5734, %v6055
      %v6179 = vadd.f32 %v5741, %v6056
      %v6180 = vadd.f32 %v5748, %v6057
      %v6181 = vadd.f32 %v5755, %v5572
      %v6182 = vadd.f32 %v5762, %v6058
      %v6183 = vadd.f32 %v5769, %v6059
      %v6184 = vadd.f32 %v5776, %v6060
      %v6185 = vadd.f32 %v5783, %v6061
      %v6186 = vadd.f32 %v5790, %v6062
      %v6187 = vadd.f32 %v5797, %v6063
      %v6188 = vadd.f32 %v5804, %v6064
      %v6189 = vadd.f32 %v5811, %v5574
      %v6190 = vadd.f32 %v5818, %v6065
      %v6191 = vadd.f32 %v5825, %v6066
      %v6192 = vadd.f32 %v5832, %v6067
      %v6193 = vadd.f32 %v5839, %v6068
      %v6194 = vadd.f32 %v5846, %v6069
      %v6195 = vadd.f32 %v5853, %v6070
      %v6196 = vadd.f32 %v5860, %v6071
      %v6197 = vadd.f32 %v5867, %v5576
      %v6198 = vadd.f32 %v5874, %v6072
      %v6199 = vadd.f32 %v5881, %v6073
      %v6200 = vadd.f32 %v5888, %v6074
      %v6201 = vadd.f32 %v5895, %v6075
      %v6202 = vadd.f32 %v5902, %v6076
      %v6203 = vadd.f32 %v5909, %v6077
      %v6204 = vadd.f32 %v5916, %v6078
      %v6205 = vadd.f32 %v5923, %v5578
      %v6206 = vadd.f32 %v5930, %v6079
      %v6207 = vadd.f32 %v5937, %v6080
      %v6208 = vadd.f32 %v5944, %v6081
      %v6209 = vadd.f32 %v5951, %v6082
      %v6210 = vadd.f32 %v5958, %v6083
      %v6211 = vadd.f32 %v5965, %v6084
      %v6212 = vadd.f32 %v5972, %v6085
      %v6213 = vadd.f32 %v5979, %v5580
      %v6214 = vadd.f32 %v5986, %v6086
      %v6215 = vadd.f32 %v5993, %v6087
      %v6216 = vadd.f32 %v6000, %v6088
      %v6217 = vadd.f32 %v6007, %v6089
      %v6218 = vadd.f32 %v6014, %v6090
      %v6219 = vadd.f32 %v6021, %v6091
      %v6220 = vadd.f32 %v6028, %v6092
      %v6221 = vrcp.pop %v6157
      %v6222 = vmul.f32 1.0, %v6221
      %v6223 = vrcp.pop %v6158
      %v6224 = vmul.f32 1.0, %v6223
      %v6225 = vrcp.pop %v6159
      %v6226 = vmul.f32 1.0, %v6225
      %v6227 = vrcp.pop %v6160
      %v6228 = vmul.f32 1.0, %v6227
      %v6229 = vrcp.pop %v6161
      %v6230 = vmul.f32 1.0, %v6229
      %v6231 = vrcp.pop %v6162
      %v6232 = vmul.f32 1.0, %v6231
      %v6233 = vrcp.pop %v6163
      %v6234 = vmul.f32 1.0, %v6233
      %v6235 = vrcp.pop %v6164
      %v6236 = vmul.f32 1.0, %v6235
      %v6237 = vrcp.pop %v6165
      %v6238 = vmul.f32 1.0, %v6237
      %v6239 = vrcp.pop %v6166
      %v6240 = vmul.f32 1.0, %v6239
      %v6241 = vrcp.pop %v6167
      %v6242 = vmul.f32 1.0, %v6241
      %v6243 = vrcp.pop %v6168
      %v6244 = vmul.f32 1.0, %v6243
      %v6245 = vrcp.pop %v6169
      %v6246 = vmul.f32 1.0, %v6245
      %v6247 = vrcp.pop %v6170
      %v6248 = vmul.f32 1.0, %v6247
      %v6249 = vrcp.pop %v6171
      %v6250 = vmul.f32 1.0, %v6249
      %v6251 = vrcp.pop %v6172
      %v6252 = vmul.f32 1.0, %v6251
      %v6253 = vrcp.pop %v6173
      %v6254 = vmul.f32 1.0, %v6253
      %v6255 = vrcp.pop %v6174
      %v6256 = vmul.f32 1.0, %v6255
      %v6257 = vrcp.pop %v6175
      %v6258 = vmul.f32 1.0, %v6257
      %v6259 = vrcp.pop %v6176
      %v6260 = vmul.f32 1.0, %v6259
      %v6261 = vrcp.pop %v6177
      %v6262 = vmul.f32 1.0, %v6261
      %v6263 = vrcp.pop %v6178
      %v6264 = vmul.f32 1.0, %v6263
      %v6265 = vrcp.pop %v6179
      %v6266 = vmul.f32 1.0, %v6265
      %v6267 = vrcp.pop %v6180
      %v6268 = vmul.f32 1.0, %v6267
      %v6269 = vrcp.pop %v6181
      %v6270 = vmul.f32 1.0, %v6269
      %v6271 = vrcp.pop %v6182
      %v6272 = vmul.f32 1.0, %v6271
      %v6273 = vrcp.pop %v6183
      %v6274 = vmul.f32 1.0, %v6273
      %v6275 = vrcp.pop %v6184
      %v6276 = vmul.f32 1.0, %v6275
      %v6277 = vrcp.pop %v6185
      %v6278 = vmul.f32 1.0, %v6277
      %v6279 = vrcp.pop %v6186
      %v6280 = vmul.f32 1.0, %v6279
      %v6281 = vrcp.pop %v6187
      %v6282 = vmul.f32 1.0, %v6281
      %v6283 = vrcp.pop %v6188
      %v6284 = vmul.f32 1.0, %v6283
      %v6285 = vrcp.pop %v6189
      %v6286 = vmul.f32 1.0, %v6285
      %v6287 = vrcp.pop %v6190
      %v6288 = vmul.f32 1.0, %v6287
      %v6289 = vrcp.pop %v6191
      %v6290 = vmul.f32 1.0, %v6289
      %v6291 = vrcp.pop %v6192
      %v6292 = vmul.f32 1.0, %v6291
      %v6293 = vrcp.pop %v6193
      %v6294 = vmul.f32 1.0, %v6293
      %v6295 = vrcp.pop %v6194
      %v6296 = vmul.f32 1.0, %v6295
      %v6297 = vrcp.pop %v6195
      %v6298 = vmul.f32 1.0, %v6297
      %v6299 = vrcp.pop %v6196
      %v6300 = vmul.f32 1.0, %v6299
      %v6301 = vrcp.pop %v6197
      %v6302 = vmul.f32 1.0, %v6301
      %v6303 = vrcp.pop %v6198
      %v6304 = vmul.f32 1.0, %v6303
      %v6305 = vrcp.pop %v6199
      %v6306 = vmul.f32 1.0, %v6305
      %v6307 = vrcp.pop %v6200
      %v6308 = vmul.f32 1.0, %v6307
      %v6309 = vrcp.pop %v6201
      %v6310 = vmul.f32 1.0, %v6309
      %v6311 = vrcp.pop %v6202
      %v6312 = vmul.f32 1.0, %v6311
      %v6313 = vrcp.pop %v6203
      %v6314 = vmul.f32 1.0, %v6313
      %v6315 = vrcp.pop %v6204
      %v6316 = vmul.f32 1.0, %v6315
      %v6317 = vrcp.pop %v6205
      %v6318 = vmul.f32 1.0, %v6317
      %v6319 = vrcp.pop %v6206
      %v6320 = vmul.f32 1.0, %v6319
      %v6321 = vrcp.pop %v6207
      %v6322 = vmul.f32 1.0, %v6321
      %v6323 = vrcp.pop %v6208
      %v6324 = vmul.f32 1.0, %v6323
      %v6325 = vrcp.pop %v6209
      %v6326 = vmul.f32 1.0, %v6325
      %v6327 = vrcp.pop %v6210
      %v6328 = vmul.f32 1.0, %v6327
      %v6329 = vrcp.pop %v6211
      %v6330 = vmul.f32 1.0, %v6329
      %v6331 = vrcp.pop %v6212
      %v6332 = vmul.f32 1.0, %v6331
      %v6333 = vrcp.pop %v6213
      %v6334 = vmul.f32 1.0, %v6333
      %v6335 = vrcp.pop %v6214
      %v6336 = vmul.f32 1.0, %v6335
      %v6337 = vrcp.pop %v6215
      %v6338 = vmul.f32 1.0, %v6337
      %v6339 = vrcp.pop %v6216
      %v6340 = vmul.f32 1.0, %v6339
      %v6341 = vrcp.pop %v6217
      %v6342 = vmul.f32 1.0, %v6341
      %v6343 = vrcp.pop %v6218
      %v6344 = vmul.f32 1.0, %v6343
      %v6345 = vrcp.pop %v6219
      %v6346 = vmul.f32 1.0, %v6345
      %v6347 = vrcp.pop %v6220
      %v6348 = vmul.f32 1.0, %v6347
      %v6349 = vlaneseq
      %v6350 = vshrl.u32 %v6349, 7
      %v6351 = vsub.s32 0, %v6350
      %v6352 = vrot.slane %v6222, %v6351
      %v6353 = vlaneseq
      %v6354 = vshrl.u32 %v6353, 7
      %v6355 = vsub.s32 0, %v6354
      %v6356 = vrot.slane %v6224, %v6355
      %v6357 = vlaneseq
      %v6358 = vshrl.u32 %v6357, 7
      %v6359 = vsub.s32 0, %v6358
      %v6360 = vrot.slane %v6226, %v6359
      %v6361 = vlaneseq
      %v6362 = vshrl.u32 %v6361, 7
      %v6363 = vsub.s32 0, %v6362
      %v6364 = vrot.slane %v6228, %v6363
      %v6365 = vlaneseq
      %v6366 = vshrl.u32 %v6365, 7
      %v6367 = vsub.s32 0, %v6366
      %v6368 = vrot.slane %v6230, %v6367
      %v6369 = vlaneseq
      %v6370 = vshrl.u32 %v6369, 7
      %v6371 = vsub.s32 0, %v6370
      %v6372 = vrot.slane %v6232, %v6371
      %v6373 = vlaneseq
      %v6374 = vshrl.u32 %v6373, 7
      %v6375 = vsub.s32 0, %v6374
      %v6376 = vrot.slane %v6234, %v6375
      %v6377 = vlaneseq
      %v6378 = vshrl.u32 %v6377, 7
      %v6379 = vsub.s32 0, %v6378
      %v6380 = vrot.slane %v6236, %v6379
      %v6381 = vlaneseq
      %v6382 = vshrl.u32 %v6381, 7
      %v6383 = vsub.s32 0, %v6382
      %v6384 = vrot.slane %v6238, %v6383
      %v6385 = vlaneseq
      %v6386 = vshrl.u32 %v6385, 7
      %v6387 = vsub.s32 0, %v6386
      %v6388 = vrot.slane %v6240, %v6387
      %v6389 = vlaneseq
      %v6390 = vshrl.u32 %v6389, 7
      %v6391 = vsub.s32 0, %v6390
      %v6392 = vrot.slane %v6242, %v6391
      %v6393 = vlaneseq
      %v6394 = vshrl.u32 %v6393, 7
      %v6395 = vsub.s32 0, %v6394
      %v6396 = vrot.slane %v6244, %v6395
      %v6397 = vlaneseq
      %v6398 = vshrl.u32 %v6397, 7
      %v6399 = vsub.s32 0, %v6398
      %v6400 = vrot.slane %v6246, %v6399
      %v6401 = vlaneseq
      %v6402 = vshrl.u32 %v6401, 7
      %v6403 = vsub.s32 0, %v6402
      %v6404 = vrot.slane %v6248, %v6403
      %v6405 = vlaneseq
      %v6406 = vshrl.u32 %v6405, 7
      %v6407 = vsub.s32 0, %v6406
      %v6408 = vrot.slane %v6250, %v6407
      %v6409 = vlaneseq
      %v6410 = vshrl.u32 %v6409, 7
      %v6411 = vsub.s32 0, %v6410
      %v6412 = vrot.slane %v6252, %v6411
      %v6413 = vlaneseq
      %v6414 = vshrl.u32 %v6413, 7
      %v6415 = vsub.s32 0, %v6414
      %v6416 = vrot.slane %v6254, %v6415
      %v6417 = vlaneseq
      %v6418 = vshrl.u32 %v6417, 7
      %v6419 = vsub.s32 0, %v6418
      %v6420 = vrot.slane %v6256, %v6419
      %v6421 = vlaneseq
      %v6422 = vshrl.u32 %v6421, 7
      %v6423 = vsub.s32 0, %v6422
      %v6424 = vrot.slane %v6258, %v6423
      %v6425 = vlaneseq
      %v6426 = vshrl.u32 %v6425, 7
      %v6427 = vsub.s32 0, %v6426
      %v6428 = vrot.slane %v6260, %v6427
      %v6429 = vlaneseq
      %v6430 = vshrl.u32 %v6429, 7
      %v6431 = vsub.s32 0, %v6430
      %v6432 = vrot.slane %v6262, %v6431
      %v6433 = vlaneseq
      %v6434 = vshrl.u32 %v6433, 7
      %v6435 = vsub.s32 0, %v6434
      %v6436 = vrot.slane %v6264, %v6435
      %v6437 = vlaneseq
      %v6438 = vshrl.u32 %v6437, 7
      %v6439 = vsub.s32 0, %v6438
      %v6440 = vrot.slane %v6266, %v6439
      %v6441 = vlaneseq
      %v6442 = vshrl.u32 %v6441, 7
      %v6443 = vsub.s32 0, %v6442
      %v6444 = vrot.slane %v6268, %v6443
      %v6445 = vlaneseq
      %v6446 = vshrl.u32 %v6445, 7
      %v6447 = vsub.s32 0, %v6446
      %v6448 = vrot.slane %v6270, %v6447
      %v6449 = vlaneseq
      %v6450 = vshrl.u32 %v6449, 7
      %v6451 = vsub.s32 0, %v6450
      %v6452 = vrot.slane %v6272, %v6451
      %v6453 = vlaneseq
      %v6454 = vshrl.u32 %v6453, 7
      %v6455 = vsub.s32 0, %v6454
      %v6456 = vrot.slane %v6274, %v6455
      %v6457 = vlaneseq
      %v6458 = vshrl.u32 %v6457, 7
      %v6459 = vsub.s32 0, %v6458
      %v6460 = vrot.slane %v6276, %v6459
      %v6461 = vlaneseq
      %v6462 = vshrl.u32 %v6461, 7
      %v6463 = vsub.s32 0, %v6462
      %v6464 = vrot.slane %v6278, %v6463
      %v6465 = vlaneseq
      %v6466 = vshrl.u32 %v6465, 7
      %v6467 = vsub.s32 0, %v6466
      %v6468 = vrot.slane %v6280, %v6467
      %v6469 = vlaneseq
      %v6470 = vshrl.u32 %v6469, 7
      %v6471 = vsub.s32 0, %v6470
      %v6472 = vrot.slane %v6282, %v6471
      %v6473 = vlaneseq
      %v6474 = vshrl.u32 %v6473, 7
      %v6475 = vsub.s32 0, %v6474
      %v6476 = vrot.slane %v6284, %v6475
      %v6477 = vlaneseq
      %v6478 = vshrl.u32 %v6477, 7
      %v6479 = vsub.s32 0, %v6478
      %v6480 = vrot.slane %v6286, %v6479
      %v6481 = vlaneseq
      %v6482 = vshrl.u32 %v6481, 7
      %v6483 = vsub.s32 0, %v6482
      %v6484 = vrot.slane %v6288, %v6483
      %v6485 = vlaneseq
      %v6486 = vshrl.u32 %v6485, 7
      %v6487 = vsub.s32 0, %v6486
      %v6488 = vrot.slane %v6290, %v6487
      %v6489 = vlaneseq
      %v6490 = vshrl.u32 %v6489, 7
      %v6491 = vsub.s32 0, %v6490
      %v6492 = vrot.slane %v6292, %v6491
      %v6493 = vlaneseq
      %v6494 = vshrl.u32 %v6493, 7
      %v6495 = vsub.s32 0, %v6494
      %v6496 = vrot.slane %v6294, %v6495
      %v6497 = vlaneseq
      %v6498 = vshrl.u32 %v6497, 7
      %v6499 = vsub.s32 0, %v6498
      %v6500 = vrot.slane %v6296, %v6499
      %v6501 = vlaneseq
      %v6502 = vshrl.u32 %v6501, 7
      %v6503 = vsub.s32 0, %v6502
      %v6504 = vrot.slane %v6298, %v6503
      %v6505 = vlaneseq
      %v6506 = vshrl.u32 %v6505, 7
      %v6507 = vsub.s32 0, %v6506
      %v6508 = vrot.slane %v6300, %v6507
      %v6509 = vlaneseq
      %v6510 = vshrl.u32 %v6509, 7
      %v6511 = vsub.s32 0, %v6510
      %v6512 = vrot.slane %v6302, %v6511
      %v6513 = vlaneseq
      %v6514 = vshrl.u32 %v6513, 7
      %v6515 = vsub.s32 0, %v6514
      %v6516 = vrot.slane %v6304, %v6515
      %v6517 = vlaneseq
      %v6518 = vshrl.u32 %v6517, 7
      %v6519 = vsub.s32 0, %v6518
      %v6520 = vrot.slane %v6306, %v6519
      %v6521 = vlaneseq
      %v6522 = vshrl.u32 %v6521, 7
      %v6523 = vsub.s32 0, %v6522
      %v6524 = vrot.slane %v6308, %v6523
      %v6525 = vlaneseq
      %v6526 = vshrl.u32 %v6525, 7
      %v6527 = vsub.s32 0, %v6526
      %v6528 = vrot.slane %v6310, %v6527
      %v6529 = vlaneseq
      %v6530 = vshrl.u32 %v6529, 7
      %v6531 = vsub.s32 0, %v6530
      %v6532 = vrot.slane %v6312, %v6531
      %v6533 = vlaneseq
      %v6534 = vshrl.u32 %v6533, 7
      %v6535 = vsub.s32 0, %v6534
      %v6536 = vrot.slane %v6314, %v6535
      %v6537 = vlaneseq
      %v6538 = vshrl.u32 %v6537, 7
      %v6539 = vsub.s32 0, %v6538
      %v6540 = vrot.slane %v6316, %v6539
      %v6541 = vlaneseq
      %v6542 = vshrl.u32 %v6541, 7
      %v6543 = vsub.s32 0, %v6542
      %v6544 = vrot.slane %v6318, %v6543
      %v6545 = vlaneseq
      %v6546 = vshrl.u32 %v6545, 7
      %v6547 = vsub.s32 0, %v6546
      %v6548 = vrot.slane %v6320, %v6547
      %v6549 = vlaneseq
      %v6550 = vshrl.u32 %v6549, 7
      %v6551 = vsub.s32 0, %v6550
      %v6552 = vrot.slane %v6322, %v6551
      %v6553 = vlaneseq
      %v6554 = vshrl.u32 %v6553, 7
      %v6555 = vsub.s32 0, %v6554
      %v6556 = vrot.slane %v6324, %v6555
      %v6557 = vlaneseq
      %v6558 = vshrl.u32 %v6557, 7
      %v6559 = vsub.s32 0, %v6558
      %v6560 = vrot.slane %v6326, %v6559
      %v6561 = vlaneseq
      %v6562 = vshrl.u32 %v6561, 7
      %v6563 = vsub.s32 0, %v6562
      %v6564 = vrot.slane %v6328, %v6563
      %v6565 = vlaneseq
      %v6566 = vshrl.u32 %v6565, 7
      %v6567 = vsub.s32 0, %v6566
      %v6568 = vrot.slane %v6330, %v6567
      %v6569 = vlaneseq
      %v6570 = vshrl.u32 %v6569, 7
      %v6571 = vsub.s32 0, %v6570
      %v6572 = vrot.slane %v6332, %v6571
      %v6573 = vlaneseq
      %v6574 = vshrl.u32 %v6573, 7
      %v6575 = vsub.s32 0, %v6574
      %v6576 = vrot.slane %v6334, %v6575
      %v6577 = vlaneseq
      %v6578 = vshrl.u32 %v6577, 7
      %v6579 = vsub.s32 0, %v6578
      %v6580 = vrot.slane %v6336, %v6579
      %v6581 = vlaneseq
      %v6582 = vshrl.u32 %v6581, 7
      %v6583 = vsub.s32 0, %v6582
      %v6584 = vrot.slane %v6338, %v6583
      %v6585 = vlaneseq
      %v6586 = vshrl.u32 %v6585, 7
      %v6587 = vsub.s32 0, %v6586
      %v6588 = vrot.slane %v6340, %v6587
      %v6589 = vlaneseq
      %v6590 = vshrl.u32 %v6589, 7
      %v6591 = vsub.s32 0, %v6590
      %v6592 = vrot.slane %v6342, %v6591
      %v6593 = vlaneseq
      %v6594 = vshrl.u32 %v6593, 7
      %v6595 = vsub.s32 0, %v6594
      %v6596 = vrot.slane %v6344, %v6595
      %v6597 = vlaneseq
      %v6598 = vshrl.u32 %v6597, 7
      %v6599 = vsub.s32 0, %v6598
      %v6600 = vrot.slane %v6346, %v6599
      %v6601 = vlaneseq
      %v6602 = vshrl.u32 %v6601, 7
      %v6603 = vsub.s32 0, %v6602
      %v6604 = vrot.slane %v6348, %v6603
      %v6605 = vmul.f32 %v5239, %v6352
      %v6606 = vmul.f32 %v5241, %v6356
      %v6607 = vmul.f32 %v5243, %v6360
      %v6608 = vmul.f32 %v5245, %v6364
      %v6609 = vmul.f32 %v5247, %v6368
      %v6610 = vmul.f32 %v5249, %v6372
      %v6611 = vmul.f32 %v5251, %v6376
      %v6612 = vmul.f32 %v5253, %v6380
      %v6613 = vmul.f32 %v5255, %v6384
      %v6614 = vmul.f32 %v5257, %v6388
      %v6615 = vmul.f32 %v5259, %v6392
      %v6616 = vmul.f32 %v5261, %v6396
      %v6617 = vmul.f32 %v5263, %v6400
      %v6618 = vmul.f32 %v5265, %v6404
      %v6619 = vmul.f32 %v5267, %v6408
      %v6620 = vmul.f32 %v5269, %v6412
      %v6621 = vmul.f32 %v5271, %v6416
      %v6622 = vmul.f32 %v5273, %v6420
      %v6623 = vmul.f32 %v5275, %v6424
      %v6624 = vmul.f32 %v5277, %v6428
      %v6625 = vmul.f32 %v5279, %v6432
      %v6626 = vmul.f32 %v5281, %v6436
      %v6627 = vmul.f32 %v5283, %v6440
      %v6628 = vmul.f32 %v5285, %v6444
      %v6629 = vmul.f32 %v5287, %v6448
      %v6630 = vmul.f32 %v5289, %v6452
      %v6631 = vmul.f32 %v5291, %v6456
      %v6632 = vmul.f32 %v5293, %v6460
      %v6633 = vmul.f32 %v5295, %v6464
      %v6634 = vmul.f32 %v5297, %v6468
      %v6635 = vmul.f32 %v5299, %v6472
      %v6636 = vmul.f32 %v5301, %v6476
      %v6637 = vmul.f32 %v5303, %v6480
      %v6638 = vmul.f32 %v5305, %v6484
      %v6639 = vmul.f32 %v5307, %v6488
      %v6640 = vmul.f32 %v5309, %v6492
      %v6641 = vmul.f32 %v5311, %v6496
      %v6642 = vmul.f32 %v5313, %v6500
      %v6643 = vmul.f32 %v5315, %v6504
      %v6644 = vmul.f32 %v5317, %v6508
      %v6645 = vmul.f32 %v5319, %v6512
      %v6646 = vmul.f32 %v5321, %v6516
      %v6647 = vmul.f32 %v5323, %v6520
      %v6648 = vmul.f32 %v5325, %v6524
      %v6649 = vmul.f32 %v5327, %v6528
      %v6650 = vmul.f32 %v5329, %v6532
      %v6651 = vmul.f32 %v5331, %v6536
      %v6652 = vmul.f32 %v5333, %v6540
      %v6653 = vmul.f32 %v5335, %v6544
      %v6654 = vmul.f32 %v5337, %v6548
      %v6655 = vmul.f32 %v5339, %v6552
      %v6656 = vmul.f32 %v5341, %v6556
      %v6657 = vmul.f32 %v5343, %v6560
      %v6658 = vmul.f32 %v5345, %v6564
      %v6659 = vmul.f32 %v5347, %v6568
      %v6660 = vmul.f32 %v5349, %v6572
      %v6661 = vmul.f32 %v5351, %v6576
      %v6662 = vmul.f32 %v5353, %v6580
      %v6663 = vmul.f32 %v5355, %v6584
      %v6664 = vmul.f32 %v5357, %v6588
      %v6665 = vmul.f32 %v5359, %v6592
      %v6666 = vmul.f32 %v5361, %v6596
      %v6667 = vmul.f32 %v5363, %v6600
      %v6668 = vmul.f32 %v5365, %v6604
      %v6733 = vrot.slane %v6224, 7
      %v6734 = vsel %vm5431, %v6733, %v6222
      %v6735 = vrot.slane %v6226, 6
      %v6736 = vsel %vm5434, %v6735, %v6734
      %v6737 = vrot.slane %v6228, 5
      %v6738 = vsel %vm5437, %v6737, %v6736
      %v6739 = vrot.slane %v6230, 4
      %v6740 = vsel %vm5440, %v6739, %v6738
      %v6741 = vrot.slane %v6232, 3
      %v6742 = vsel %vm5443, %v6741, %v6740
      %v6743 = vrot.slane %v6234, 2
      %v6744 = vsel %vm5446, %v6743, %v6742
      %v6745 = vrot.slane %v6236, 1
      %v6746 = vsel %vm5449, %v6745, %v6744
      %v6747 = vrot.slane %v6240, 7
      %v6748 = vsel %vm5431, %v6747, %v6238
      %v6749 = vrot.slane %v6242, 6
      %v6750 = vsel %vm5434, %v6749, %v6748
      %v6751 = vrot.slane %v6244, 5
      %v6752 = vsel %vm5437, %v6751, %v6750
      %v6753 = vrot.slane %v6246, 4
      %v6754 = vsel %vm5440, %v6753, %v6752
      %v6755 = vrot.slane %v6248, 3
      %v6756 = vsel %vm5443, %v6755, %v6754
      %v6757 = vrot.slane %v6250, 2
      %v6758 = vsel %vm5446, %v6757, %v6756
      %v6759 = vrot.slane %v6252, 1
      %v6760 = vsel %vm5449, %v6759, %v6758
      %v6761 = vrot.slane %v6256, 7
      %v6762 = vsel %vm5431, %v6761, %v6254
      %v6763 = vrot.slane %v6258, 6
      %v6764 = vsel %vm5434, %v6763, %v6762
      %v6765 = vrot.slane %v6260, 5
      %v6766 = vsel %vm5437, %v6765, %v6764
      %v6767 = vrot.slane %v6262, 4
      %v6768 = vsel %vm5440, %v6767, %v6766
      %v6769 = vrot.slane %v6264, 3
      %v6770 = vsel %vm5443, %v6769, %v6768
      %v6771 = vrot.slane %v6266, 2
      %v6772 = vsel %vm5446, %v6771, %v6770
      %v6773 = vrot.slane %v6268, 1
      %v6774 = vsel %vm5449, %v6773, %v6772
      %v6775 = vrot.slane %v6272, 7
      %v6776 = vsel %vm5431, %v6775, %v6270
      %v6777 = vrot.slane %v6274, 6
      %v6778 = vsel %vm5434, %v6777, %v6776
      %v6779 = vrot.slane %v6276, 5
      %v6780 = vsel %vm5437, %v6779, %v6778
      %v6781 = vrot.slane %v6278, 4
      %v6782 = vsel %vm5440, %v6781, %v6780
      %v6783 = vrot.slane %v6280, 3
      %v6784 = vsel %vm5443, %v6783, %v6782
      %v6785 = vrot.slane %v6282, 2
      %v6786 = vsel %vm5446, %v6785, %v6784
      %v6787 = vrot.slane %v6284, 1
      %v6788 = vsel %vm5449, %v6787, %v6786
      %v6789 = vrot.slane %v6288, 7
      %v6790 = vsel %vm5431, %v6789, %v6286
      %v6791 = vrot.slane %v6290, 6
      %v6792 = vsel %vm5434, %v6791, %v6790
      %v6793 = vrot.slane %v6292, 5
      %v6794 = vsel %vm5437, %v6793, %v6792
      %v6795 = vrot.slane %v6294, 4
      %v6796 = vsel %vm5440, %v6795, %v6794
      %v6797 = vrot.slane %v6296, 3
      %v6798 = vsel %vm5443, %v6797, %v6796
      %v6799 = vrot.slane %v6298, 2
      %v6800 = vsel %vm5446, %v6799, %v6798
      %v6801 = vrot.slane %v6300, 1
      %v6802 = vsel %vm5449, %v6801, %v6800
      %v6803 = vrot.slane %v6304, 7
      %v6804 = vsel %vm5431, %v6803, %v6302
      %v6805 = vrot.slane %v6306, 6
      %v6806 = vsel %vm5434, %v6805, %v6804
      %v6807 = vrot.slane %v6308, 5
      %v6808 = vsel %vm5437, %v6807, %v6806
      %v6809 = vrot.slane %v6310, 4
      %v6810 = vsel %vm5440, %v6809, %v6808
      %v6811 = vrot.slane %v6312, 3
      %v6812 = vsel %vm5443, %v6811, %v6810
      %v6813 = vrot.slane %v6314, 2
      %v6814 = vsel %vm5446, %v6813, %v6812
      %v6815 = vrot.slane %v6316, 1
      %v6816 = vsel %vm5449, %v6815, %v6814
      %v6817 = vrot.slane %v6320, 7
      %v6818 = vsel %vm5431, %v6817, %v6318
      %v6819 = vrot.slane %v6322, 6
      %v6820 = vsel %vm5434, %v6819, %v6818
      %v6821 = vrot.slane %v6324, 5
      %v6822 = vsel %vm5437, %v6821, %v6820
      %v6823 = vrot.slane %v6326, 4
      %v6824 = vsel %vm5440, %v6823, %v6822
      %v6825 = vrot.slane %v6328, 3
      %v6826 = vsel %vm5443, %v6825, %v6824
      %v6827 = vrot.slane %v6330, 2
      %v6828 = vsel %vm5446, %v6827, %v6826
      %v6829 = vrot.slane %v6332, 1
      %v6830 = vsel %vm5449, %v6829, %v6828
      %v6831 = vrot.slane %v6336, 7
      %v6832 = vsel %vm5431, %v6831, %v6334
      %v6833 = vrot.slane %v6338, 6
      %v6834 = vsel %vm5434, %v6833, %v6832
      %v6835 = vrot.slane %v6340, 5
      %v6836 = vsel %vm5437, %v6835, %v6834
      %v6837 = vrot.slane %v6342, 4
      %v6838 = vsel %vm5440, %v6837, %v6836
      %v6839 = vrot.slane %v6344, 3
      %v6840 = vsel %vm5443, %v6839, %v6838
      %v6841 = vrot.slane %v6346, 2
      %v6842 = vsel %vm5446, %v6841, %v6840
      %v6843 = vrot.slane %v6348, 1
      %v6844 = vsel %vm5449, %v6843, %v6842
      %v6853 = vmul.f32 %v5566, %v6746
      %v6854 = vmul.f32 %v5568, %v6760
      %v6855 = vmul.f32 %v5570, %v6774
      %v6856 = vmul.f32 %v5572, %v6788
      %v6857 = vmul.f32 %v5574, %v6802
      %v6858 = vmul.f32 %v5576, %v6816
      %v6859 = vmul.f32 %v5578, %v6830
      %v6860 = vmul.f32 %v5580, %v6844
      %v6861 = vpack.c.bf16 %v6854, %v6853
      %v6862 = vpack.c.bf16 %v6856, %v6855
      %v6863 = vpack.c.bf16 %v6858, %v6857
      %v6864 = vpack.c.bf16 %v6860, %v6859
      %v6865 = vpack.c.bf16 %v6605, %v6605
      %v6866 = vpack.c.bf16 %v6606, %v6606
      %v6867 = vpack.c.bf16 %v6607, %v6607
      %v6868 = vpack.c.bf16 %v6608, %v6608
      %v6869 = vpack.c.bf16 %v6609, %v6609
      %v6870 = vpack.c.bf16 %v6610, %v6610
      %v6871 = vpack.c.bf16 %v6611, %v6611
      %v6872 = vpack.c.bf16 %v6612, %v6612
      %v6873 = vpack.c.bf16 %v6613, %v6613
      %v6874 = vpack.c.bf16 %v6614, %v6614
      %v6875 = vpack.c.bf16 %v6615, %v6615
      %v6876 = vpack.c.bf16 %v6616, %v6616
      %v6877 = vpack.c.bf16 %v6617, %v6617
      %v6878 = vpack.c.bf16 %v6618, %v6618
      %v6879 = vpack.c.bf16 %v6619, %v6619
      %v6880 = vpack.c.bf16 %v6620, %v6620
      %v6881 = vpack.c.bf16 %v6621, %v6621
      %v6882 = vpack.c.bf16 %v6622, %v6622
      %v6883 = vpack.c.bf16 %v6623, %v6623
      %v6884 = vpack.c.bf16 %v6624, %v6624
      %v6885 = vpack.c.bf16 %v6625, %v6625
      %v6886 = vpack.c.bf16 %v6626, %v6626
      %v6887 = vpack.c.bf16 %v6627, %v6627
      %v6888 = vpack.c.bf16 %v6628, %v6628
      %v6889 = vpack.c.bf16 %v6629, %v6629
      %v6890 = vpack.c.bf16 %v6630, %v6630
      %v6891 = vpack.c.bf16 %v6631, %v6631
      %v6892 = vpack.c.bf16 %v6632, %v6632
      %v6893 = vpack.c.bf16 %v6633, %v6633
      %v6894 = vpack.c.bf16 %v6634, %v6634
      %v6895 = vpack.c.bf16 %v6635, %v6635
      %v6896 = vpack.c.bf16 %v6636, %v6636
      %v6897 = vpack.c.bf16 %v6637, %v6637
      %v6898 = vpack.c.bf16 %v6638, %v6638
      %v6899 = vpack.c.bf16 %v6639, %v6639
      %v6900 = vpack.c.bf16 %v6640, %v6640
      %v6901 = vpack.c.bf16 %v6641, %v6641
      %v6902 = vpack.c.bf16 %v6642, %v6642
      %v6903 = vpack.c.bf16 %v6643, %v6643
      %v6904 = vpack.c.bf16 %v6644, %v6644
      %v6905 = vpack.c.bf16 %v6645, %v6645
      %v6906 = vpack.c.bf16 %v6646, %v6646
      %v6907 = vpack.c.bf16 %v6647, %v6647
      %v6908 = vpack.c.bf16 %v6648, %v6648
      %v6909 = vpack.c.bf16 %v6649, %v6649
      %v6910 = vpack.c.bf16 %v6650, %v6650
      %v6911 = vpack.c.bf16 %v6651, %v6651
      %v6912 = vpack.c.bf16 %v6652, %v6652
      %v6913 = vpack.c.bf16 %v6653, %v6653
      %v6914 = vpack.c.bf16 %v6654, %v6654
      %v6915 = vpack.c.bf16 %v6655, %v6655
      %v6916 = vpack.c.bf16 %v6656, %v6656
      %v6917 = vpack.c.bf16 %v6657, %v6657
      %v6918 = vpack.c.bf16 %v6658, %v6658
      %v6919 = vpack.c.bf16 %v6659, %v6659
      %v6920 = vpack.c.bf16 %v6660, %v6660
      %v6921 = vpack.c.bf16 %v6661, %v6661
      %v6922 = vpack.c.bf16 %v6662, %v6662
      %v6923 = vpack.c.bf16 %v6663, %v6663
      %v6924 = vpack.c.bf16 %v6664, %v6664
      %v6925 = vpack.c.bf16 %v6665, %v6665
      %v6926 = vpack.c.bf16 %v6666, %v6666
      %v6927 = vpack.c.bf16 %v6667, %v6667
      %v6928 = vpack.c.bf16 %v6668, %v6668
      %v6929 = vld [vmem:[%s8] sm:$0x3]
      %v6994 = vunpack.c.l.b16 %v6865
      %v6995 = vunpack.c.l.b16 %v6866
      %v6996 = vunpack.c.l.b16 %v6867
      %v6997 = vunpack.c.l.b16 %v6868
      %v6998 = vunpack.c.l.b16 %v6869
      %v6999 = vunpack.c.l.b16 %v6870
      %v7000 = vunpack.c.l.b16 %v6871
      %v7001 = vunpack.c.l.b16 %v6872
      %v7002 = vunpack.c.l.b16 %v6873
      %v7003 = vunpack.c.l.b16 %v6874
      %v7004 = vunpack.c.l.b16 %v6875
      %v7005 = vunpack.c.l.b16 %v6876
      %v7006 = vunpack.c.l.b16 %v6877
      %v7007 = vunpack.c.l.b16 %v6878
      %v7008 = vunpack.c.l.b16 %v6879
      %v7009 = vunpack.c.l.b16 %v6880
      %v7010 = vunpack.c.l.b16 %v6881
      %v7011 = vunpack.c.l.b16 %v6882
      %v7012 = vunpack.c.l.b16 %v6883
      %v7013 = vunpack.c.l.b16 %v6884
      %v7014 = vunpack.c.l.b16 %v6885
      %v7015 = vunpack.c.l.b16 %v6886
      %v7016 = vunpack.c.l.b16 %v6887
      %v7017 = vunpack.c.l.b16 %v6888
      %v7018 = vunpack.c.l.b16 %v6889
      %v7019 = vunpack.c.l.b16 %v6890
      %v7020 = vunpack.c.l.b16 %v6891
      %v7021 = vunpack.c.l.b16 %v6892
      %v7022 = vunpack.c.l.b16 %v6893
      %v7023 = vunpack.c.l.b16 %v6894
      %v7024 = vunpack.c.l.b16 %v6895
      %v7025 = vunpack.c.l.b16 %v6896
      %v7026 = vunpack.c.l.b16 %v6897
      %v7027 = vunpack.c.l.b16 %v6898
      %v7028 = vunpack.c.l.b16 %v6899
      %v7029 = vunpack.c.l.b16 %v6900
      %v7030 = vunpack.c.l.b16 %v6901
      %v7031 = vunpack.c.l.b16 %v6902
      %v7032 = vunpack.c.l.b16 %v6903
      %v7033 = vunpack.c.l.b16 %v6904
      %v7034 = vunpack.c.l.b16 %v6905
      %v7035 = vunpack.c.l.b16 %v6906
      %v7036 = vunpack.c.l.b16 %v6907
      %v7037 = vunpack.c.l.b16 %v6908
      %v7038 = vunpack.c.l.b16 %v6909
      %v7039 = vunpack.c.l.b16 %v6910
      %v7040 = vunpack.c.l.b16 %v6911
      %v7041 = vunpack.c.l.b16 %v6912
      %v7042 = vunpack.c.l.b16 %v6913
      %v7043 = vunpack.c.l.b16 %v6914
      %v7044 = vunpack.c.l.b16 %v6915
      %v7045 = vunpack.c.l.b16 %v6916
      %v7046 = vunpack.c.l.b16 %v6917
      %v7047 = vunpack.c.l.b16 %v6918
      %v7048 = vunpack.c.l.b16 %v6919
      %v7049 = vunpack.c.l.b16 %v6920
      %v7050 = vunpack.c.l.b16 %v6921
      %v7051 = vunpack.c.l.b16 %v6922
      %v7052 = vunpack.c.l.b16 %v6923
      %v7053 = vunpack.c.l.b16 %v6924
      %v7054 = vunpack.c.l.b16 %v6925
      %v7055 = vunpack.c.l.b16 %v6926
      %v7056 = vunpack.c.l.b16 %v6927
      %v7057 = vunpack.c.l.b16 %v6928
      %v7058 = vpack.c.b16 %v6995, %v6994
      %v7059 = vpack.c.b16 %v6997, %v6996
      %v7060 = vpack.c.b16 %v6999, %v6998
      %v7061 = vpack.c.b16 %v7001, %v7000
      %v7062 = vpack.c.b16 %v7003, %v7002
      %v7063 = vpack.c.b16 %v7005, %v7004
      %v7064 = vpack.c.b16 %v7007, %v7006
      %v7065 = vpack.c.b16 %v7009, %v7008
      %v7066 = vpack.c.b16 %v7011, %v7010
      %v7067 = vpack.c.b16 %v7013, %v7012
      %v7068 = vpack.c.b16 %v7015, %v7014
      %v7069 = vpack.c.b16 %v7017, %v7016
      %v7070 = vpack.c.b16 %v7019, %v7018
      %v7071 = vpack.c.b16 %v7021, %v7020
      %v7072 = vpack.c.b16 %v7023, %v7022
      %v7073 = vpack.c.b16 %v7025, %v7024
      %v7074 = vpack.c.b16 %v7027, %v7026
      %v7075 = vpack.c.b16 %v7029, %v7028
      %v7076 = vpack.c.b16 %v7031, %v7030
      %v7077 = vpack.c.b16 %v7033, %v7032
      %v7078 = vpack.c.b16 %v7035, %v7034
      %v7079 = vpack.c.b16 %v7037, %v7036
      %v7080 = vpack.c.b16 %v7039, %v7038
      %v7081 = vpack.c.b16 %v7041, %v7040
      %v7082 = vpack.c.b16 %v7043, %v7042
      %v7083 = vpack.c.b16 %v7045, %v7044
      %v7084 = vpack.c.b16 %v7047, %v7046
      %v7085 = vpack.c.b16 %v7049, %v7048
      %v7086 = vpack.c.b16 %v7051, %v7050
      %v7087 = vpack.c.b16 %v7053, %v7052
      %v7088 = vpack.c.b16 %v7055, %v7054
      %v7089 = vpack.c.b16 %v7057, %v7056
      %v7091 = vsel %vm4277, %v7058, 0
      %v7094 = vsel %vm4277, %v7059, 0
      %v7097 = vsel %vm4277, %v7060, 0
      %v7100 = vsel %vm4277, %v7061, 0
      %v7103 = vsel %vm4277, %v7062, 0
      %v7106 = vsel %vm4277, %v7063, 0
      %v7109 = vsel %vm4277, %v7064, 0
      %v7112 = vsel %vm4277, %v7065, 0
      %v7115 = vsel %vm4277, %v7066, 0
      %v7118 = vsel %vm4277, %v7067, 0
      %v7121 = vsel %vm4277, %v7068, 0
      %v7124 = vsel %vm4277, %v7069, 0
      %v7127 = vsel %vm4277, %v7070, 0
      %v7130 = vsel %vm4277, %v7071, 0
      %v7133 = vsel %vm4277, %v7072, 0
      %v7136 = vsel %vm4277, %v7073, 0
      %v7139 = vsel %vm4277, %v7074, 0
      %v7142 = vsel %vm4277, %v7075, 0
      %v7145 = vsel %vm4277, %v7076, 0
      %v7148 = vsel %vm4277, %v7077, 0
      %v7151 = vsel %vm4277, %v7078, 0
      %v7154 = vsel %vm4277, %v7079, 0
      %v7157 = vsel %vm4277, %v7080, 0
      %v7160 = vsel %vm4277, %v7081, 0
      %v7163 = vsel %vm4277, %v7082, 0
      %v7166 = vsel %vm4277, %v7083, 0
      %v7169 = vsel %vm4277, %v7084, 0
      %v7172 = vsel %vm4277, %v7085, 0
      %v7175 = vsel %vm4277, %v7086, 0
      %v7178 = vsel %vm4277, %v7087, 0
      %v7181 = vsel %vm4277, %v7088, 0
      %v7184 = vsel %vm4277, %v7089, 0
      %vm7186 = vcmask 1041408
      %v7188 = vsel %vm7186, %v6929, 0
      %7190 = vmatprep.subr.bf16.mxu0 0
      %7191 = vmatpush1.bf16.msra.mxu0 0
      %7192 = vmatprep.subr.bf16.mxu0 0
      %7193 = vmatpush1.bf16.msra.mxu0 0
      %7194 = vmatprep.subr.bf16.mxu0 0
      %7195 = vmatpush1.bf16.msra.mxu0 0
      %7196 = vmatprep.subr.bf16.mxu0 0
      %7197 = vmatpush1.bf16.msra.mxu0 0
      %7198 = vmatprep.subr.bf16.mxu0 0
      %7199 = vmatpush1.bf16.msra.mxu0 0
      %7200 = vmatprep.subr.bf16.mxu0 0
      %7201 = vmatpush1.bf16.msra.mxu0 0
      %7202 = vmatprep.subr.bf16.mxu0 0
      %7203 = vmatpush1.bf16.msra.mxu0 0
      %7204 = vmatprep.subr.bf16.mxu0 0
      %7205 = vmatpush1.bf16.msra.mxu0 %v7188
      %7206 = vmatprep.subr.bf16.mxu0 0
      %7207 = vmatpush2.bf16.msra.mxu0 0
      %7208 = vmatprep.subr.bf16.mxu0 0
      %7209 = vmatpush2.bf16.msra.mxu0 0
      %7210 = vmatprep.subr.bf16.mxu0 0
      %7211 = vmatpush2.bf16.msra.mxu0 0
      %7212 = vmatprep.subr.bf16.mxu0 0
      %7213 = vmatpush2.bf16.msra.mxu0 0
      %7214 = vmatprep.subr.bf16.mxu0 0
      %7215 = vmatpush2.bf16.msra.mxu0 0
      %7216 = vmatprep.subr.bf16.mxu0 0
      %7217 = vmatpush2.bf16.msra.mxu0 0
      %7218 = vmatprep.subr.bf16.mxu0 0
      %7219 = vmatpush2.bf16.msra.mxu0 0
      %7220 = vmatprep.subr.bf16.mxu0 0
      %7221 = vmatpush2.bf16.msra.mxu0 0
      %7222 = vmatprep.mubr.bf16.mxu0 0
      %7223 = vmatmul.mubr.bf16.gmra.mxu0 %v7091
      %v7224 = vpop.f32.mrf.mxu0
      %v7225 = vadd.f32 0.0, %v7224
      %v7226 = vpop.f32.mrf.mxu0
      %v7227 = vpop.f32.mrf.mxu0
      %v7228 = vadd.f32 0.0, %v7227
      %v7229 = vpop.f32.mrf.mxu0
      %7230 = vmatprep.mubr.bf16.mxu0 0
      %7231 = vmatmul.mubr.bf16.gmra.mxu0 %v7094
      %v7232 = vpop.f32.mrf.mxu0
      %v7233 = vadd.f32 0.0, %v7232
      %v7234 = vpop.f32.mrf.mxu0
      %v7235 = vpop.f32.mrf.mxu0
      %v7236 = vadd.f32 0.0, %v7235
      %v7237 = vpop.f32.mrf.mxu0
      %7238 = vmatprep.mubr.bf16.mxu0 0
      %7239 = vmatmul.mubr.bf16.gmra.mxu0 %v7097
      %v7240 = vpop.f32.mrf.mxu0
      %v7241 = vadd.f32 0.0, %v7240
      %v7242 = vpop.f32.mrf.mxu0
      %v7243 = vpop.f32.mrf.mxu0
      %v7244 = vadd.f32 0.0, %v7243
      %v7245 = vpop.f32.mrf.mxu0
      %7246 = vmatprep.mubr.bf16.mxu0 0
      %7247 = vmatmul.mubr.bf16.gmra.mxu0 %v7100
      %v7248 = vpop.f32.mrf.mxu0
      %v7249 = vadd.f32 0.0, %v7248
      %v7250 = vpop.f32.mrf.mxu0
      %v7251 = vpop.f32.mrf.mxu0
      %v7252 = vadd.f32 0.0, %v7251
      %v7253 = vpop.f32.mrf.mxu0
      %7254 = vmatprep.mubr.bf16.mxu0 0
      %7255 = vmatmul.mubr.bf16.gmra.mxu0 %v7103
      %v7256 = vpop.f32.mrf.mxu0
      %v7257 = vadd.f32 0.0, %v7256
      %v7258 = vpop.f32.mrf.mxu0
      %v7259 = vpop.f32.mrf.mxu0
      %v7260 = vadd.f32 0.0, %v7259
      %v7261 = vpop.f32.mrf.mxu0
      %7262 = vmatprep.mubr.bf16.mxu0 0
      %7263 = vmatmul.mubr.bf16.gmra.mxu0 %v7106
      %v7264 = vpop.f32.mrf.mxu0
      %v7265 = vadd.f32 0.0, %v7264
      %v7266 = vpop.f32.mrf.mxu0
      %v7267 = vpop.f32.mrf.mxu0
      %v7268 = vadd.f32 0.0, %v7267
      %v7269 = vpop.f32.mrf.mxu0
      %7270 = vmatprep.mubr.bf16.mxu0 0
      %7271 = vmatmul.mubr.bf16.gmra.mxu0 %v7109
      %v7272 = vpop.f32.mrf.mxu0
      %v7273 = vadd.f32 0.0, %v7272
      %v7274 = vpop.f32.mrf.mxu0
      %v7275 = vpop.f32.mrf.mxu0
      %v7276 = vadd.f32 0.0, %v7275
      %v7277 = vpop.f32.mrf.mxu0
      %7278 = vmatprep.mubr.bf16.mxu0 0
      %7279 = vmatmul.mubr.bf16.gmra.mxu0 %v7112
      %v7280 = vpop.f32.mrf.mxu0
      %v7281 = vadd.f32 0.0, %v7280
      %v7282 = vpop.f32.mrf.mxu0
      %v7283 = vpop.f32.mrf.mxu0
      %v7284 = vadd.f32 0.0, %v7283
      %v7285 = vpop.f32.mrf.mxu0
      %7286 = vmatprep.mubr.bf16.mxu0 0
      %7287 = vmatmul.mubr.bf16.gmra.mxu0 %v7115
      %v7288 = vpop.f32.mrf.mxu0
      %v7289 = vadd.f32 0.0, %v7288
      %v7290 = vpop.f32.mrf.mxu0
      %v7291 = vpop.f32.mrf.mxu0
      %v7292 = vadd.f32 0.0, %v7291
      %v7293 = vpop.f32.mrf.mxu0
      %7294 = vmatprep.mubr.bf16.mxu0 0
      %7295 = vmatmul.mubr.bf16.gmra.mxu0 %v7118
      %v7296 = vpop.f32.mrf.mxu0
      %v7297 = vadd.f32 0.0, %v7296
      %v7298 = vpop.f32.mrf.mxu0
      %v7299 = vpop.f32.mrf.mxu0
      %v7300 = vadd.f32 0.0, %v7299
      %v7301 = vpop.f32.mrf.mxu0
      %7302 = vmatprep.mubr.bf16.mxu0 0
      %7303 = vmatmul.mubr.bf16.gmra.mxu0 %v7121
      %v7304 = vpop.f32.mrf.mxu0
      %v7305 = vadd.f32 0.0, %v7304
      %v7306 = vpop.f32.mrf.mxu0
      %v7307 = vpop.f32.mrf.mxu0
      %v7308 = vadd.f32 0.0, %v7307
      %v7309 = vpop.f32.mrf.mxu0
      %7310 = vmatprep.mubr.bf16.mxu0 0
      %7311 = vmatmul.mubr.bf16.gmra.mxu0 %v7124
      %v7312 = vpop.f32.mrf.mxu0
      %v7313 = vadd.f32 0.0, %v7312
      %v7314 = vpop.f32.mrf.mxu0
      %v7315 = vpop.f32.mrf.mxu0
      %v7316 = vadd.f32 0.0, %v7315
      %v7317 = vpop.f32.mrf.mxu0
      %7318 = vmatprep.mubr.bf16.mxu0 0
      %7319 = vmatmul.mubr.bf16.gmra.mxu0 %v7127
      %v7320 = vpop.f32.mrf.mxu0
      %v7321 = vadd.f32 0.0, %v7320
      %v7322 = vpop.f32.mrf.mxu0
      %v7323 = vpop.f32.mrf.mxu0
      %v7324 = vadd.f32 0.0, %v7323
      %v7325 = vpop.f32.mrf.mxu0
      %7326 = vmatprep.mubr.bf16.mxu0 0
      %7327 = vmatmul.mubr.bf16.gmra.mxu0 %v7130
      %v7328 = vpop.f32.mrf.mxu0
      %v7329 = vadd.f32 0.0, %v7328
      %v7330 = vpop.f32.mrf.mxu0
      %v7331 = vpop.f32.mrf.mxu0
      %v7332 = vadd.f32 0.0, %v7331
      %v7333 = vpop.f32.mrf.mxu0
      %7334 = vmatprep.mubr.bf16.mxu0 0
      %7335 = vmatmul.mubr.bf16.gmra.mxu0 %v7133
      %v7336 = vpop.f32.mrf.mxu0
      %v7337 = vadd.f32 0.0, %v7336
      %v7338 = vpop.f32.mrf.mxu0
      %v7339 = vpop.f32.mrf.mxu0
      %v7340 = vadd.f32 0.0, %v7339
      %v7341 = vpop.f32.mrf.mxu0
      %7342 = vmatprep.mubr.bf16.mxu0 0
      %7343 = vmatmul.mubr.bf16.gmra.mxu0 %v7136
      %v7344 = vpop.f32.mrf.mxu0
      %v7345 = vadd.f32 0.0, %v7344
      %v7346 = vpop.f32.mrf.mxu0
      %v7347 = vpop.f32.mrf.mxu0
      %v7348 = vadd.f32 0.0, %v7347
      %v7349 = vpop.f32.mrf.mxu0
      %7350 = vmatprep.mubr.bf16.mxu0 0
      %7351 = vmatmul.mubr.bf16.gmra.mxu0 %v7139
      %v7352 = vpop.f32.mrf.mxu0
      %v7353 = vadd.f32 0.0, %v7352
      %v7354 = vpop.f32.mrf.mxu0
      %v7355 = vpop.f32.mrf.mxu0
      %v7356 = vadd.f32 0.0, %v7355
      %v7357 = vpop.f32.mrf.mxu0
      %7358 = vmatprep.mubr.bf16.mxu0 0
      %7359 = vmatmul.mubr.bf16.gmra.mxu0 %v7142
      %v7360 = vpop.f32.mrf.mxu0
      %v7361 = vadd.f32 0.0, %v7360
      %v7362 = vpop.f32.mrf.mxu0
      %v7363 = vpop.f32.mrf.mxu0
      %v7364 = vadd.f32 0.0, %v7363
      %v7365 = vpop.f32.mrf.mxu0
      %7366 = vmatprep.mubr.bf16.mxu0 0
      %7367 = vmatmul.mubr.bf16.gmra.mxu0 %v7145
      %v7368 = vpop.f32.mrf.mxu0
      %v7369 = vadd.f32 0.0, %v7368
      %v7370 = vpop.f32.mrf.mxu0
      %v7371 = vpop.f32.mrf.mxu0
      %v7372 = vadd.f32 0.0, %v7371
      %v7373 = vpop.f32.mrf.mxu0
      %7374 = vmatprep.mubr.bf16.mxu0 0
      %7375 = vmatmul.mubr.bf16.gmra.mxu0 %v7148
      %v7376 = vpop.f32.mrf.mxu0
      %v7377 = vadd.f32 0.0, %v7376
      %v7378 = vpop.f32.mrf.mxu0
      %v7379 = vpop.f32.mrf.mxu0
      %v7380 = vadd.f32 0.0, %v7379
      %v7381 = vpop.f32.mrf.mxu0
      %7382 = vmatprep.mubr.bf16.mxu0 0
      %7383 = vmatmul.mubr.bf16.gmra.mxu0 %v7151
      %v7384 = vpop.f32.mrf.mxu0
      %v7385 = vadd.f32 0.0, %v7384
      %v7386 = vpop.f32.mrf.mxu0
      %v7387 = vpop.f32.mrf.mxu0
      %v7388 = vadd.f32 0.0, %v7387
      %v7389 = vpop.f32.mrf.mxu0
      %7390 = vmatprep.mubr.bf16.mxu0 0
      %7391 = vmatmul.mubr.bf16.gmra.mxu0 %v7154
      %v7392 = vpop.f32.mrf.mxu0
      %v7393 = vadd.f32 0.0, %v7392
      %v7394 = vpop.f32.mrf.mxu0
      %v7395 = vpop.f32.mrf.mxu0
      %v7396 = vadd.f32 0.0, %v7395
      %v7397 = vpop.f32.mrf.mxu0
      %7398 = vmatprep.mubr.bf16.mxu0 0
      %7399 = vmatmul.mubr.bf16.gmra.mxu0 %v7157
      %v7400 = vpop.f32.mrf.mxu0
      %v7401 = vadd.f32 0.0, %v7400
      %v7402 = vpop.f32.mrf.mxu0
      %v7403 = vpop.f32.mrf.mxu0
      %v7404 = vadd.f32 0.0, %v7403
      %v7405 = vpop.f32.mrf.mxu0
      %7406 = vmatprep.mubr.bf16.mxu0 0
      %7407 = vmatmul.mubr.bf16.gmra.mxu0 %v7160
      %v7408 = vpop.f32.mrf.mxu0
      %v7409 = vadd.f32 0.0, %v7408
      %v7410 = vpop.f32.mrf.mxu0
      %v7411 = vpop.f32.mrf.mxu0
      %v7412 = vadd.f32 0.0, %v7411
      %v7413 = vpop.f32.mrf.mxu0
      %7414 = vmatprep.mubr.bf16.mxu0 0
      %7415 = vmatmul.mubr.bf16.gmra.mxu0 %v7163
      %v7416 = vpop.f32.mrf.mxu0
      %v7417 = vadd.f32 0.0, %v7416
      %v7418 = vpop.f32.mrf.mxu0
      %v7419 = vpop.f32.mrf.mxu0
      %v7420 = vadd.f32 0.0, %v7419
      %v7421 = vpop.f32.mrf.mxu0
      %7422 = vmatprep.mubr.bf16.mxu0 0
      %7423 = vmatmul.mubr.bf16.gmra.mxu0 %v7166
      %v7424 = vpop.f32.mrf.mxu0
      %v7425 = vadd.f32 0.0, %v7424
      %v7426 = vpop.f32.mrf.mxu0
      %v7427 = vpop.f32.mrf.mxu0
      %v7428 = vadd.f32 0.0, %v7427
      %v7429 = vpop.f32.mrf.mxu0
      %7430 = vmatprep.mubr.bf16.mxu0 0
      %7431 = vmatmul.mubr.bf16.gmra.mxu0 %v7169
      %v7432 = vpop.f32.mrf.mxu0
      %v7433 = vadd.f32 0.0, %v7432
      %v7434 = vpop.f32.mrf.mxu0
      %v7435 = vpop.f32.mrf.mxu0
      %v7436 = vadd.f32 0.0, %v7435
      %v7437 = vpop.f32.mrf.mxu0
      %7438 = vmatprep.mubr.bf16.mxu0 0
      %7439 = vmatmul.mubr.bf16.gmra.mxu0 %v7172
      %v7440 = vpop.f32.mrf.mxu0
      %v7441 = vadd.f32 0.0, %v7440
      %v7442 = vpop.f32.mrf.mxu0
      %v7443 = vpop.f32.mrf.mxu0
      %v7444 = vadd.f32 0.0, %v7443
      %v7445 = vpop.f32.mrf.mxu0
      %7446 = vmatprep.mubr.bf16.mxu0 0
      %7447 = vmatmul.mubr.bf16.gmra.mxu0 %v7175
      %v7448 = vpop.f32.mrf.mxu0
      %v7449 = vadd.f32 0.0, %v7448
      %v7450 = vpop.f32.mrf.mxu0
      %v7451 = vpop.f32.mrf.mxu0
      %v7452 = vadd.f32 0.0, %v7451
      %v7453 = vpop.f32.mrf.mxu0
      %7454 = vmatprep.mubr.bf16.mxu0 0
      %7455 = vmatmul.mubr.bf16.gmra.mxu0 %v7178
      %v7456 = vpop.f32.mrf.mxu0
      %v7457 = vadd.f32 0.0, %v7456
      %v7458 = vpop.f32.mrf.mxu0
      %v7459 = vpop.f32.mrf.mxu0
      %v7460 = vadd.f32 0.0, %v7459
      %v7461 = vpop.f32.mrf.mxu0
      %7462 = vmatprep.mubr.bf16.mxu0 0
      %7463 = vmatmul.mubr.bf16.gmra.mxu0 %v7181
      %v7464 = vpop.f32.mrf.mxu0
      %v7465 = vadd.f32 0.0, %v7464
      %v7466 = vpop.f32.mrf.mxu0
      %v7467 = vpop.f32.mrf.mxu0
      %v7468 = vadd.f32 0.0, %v7467
      %v7469 = vpop.f32.mrf.mxu0
      %7470 = vmatprep.mubr.bf16.mxu0 0
      %7471 = vmatmul.mubr.bf16.gmra.mxu0 %v7184
      %v7472 = vpop.f32.mrf.mxu0
      %v7473 = vadd.f32 0.0, %v7472
      %v7474 = vpop.f32.mrf.mxu0
      %v7475 = vpop.f32.mrf.mxu0
      %v7476 = vadd.f32 0.0, %v7475
      %v7477 = vpop.f32.mrf.mxu0
      %7478 = vdwg.mxu0
      %v7479 = vld [vmem:[%s566] sm:$0xf]
      %v7480 = vld [vmem:[%s566 + $0x4] sm:$0xf]
      %v7481 = vld [vmem:[%s566 + $0x8] sm:$0xf]
      %v7482 = vld [vmem:[%s566 + $0xc] sm:$0xf]
      %v7483 = vld [vmem:[%s566 + $0x10] sm:$0xf]
      %v7484 = vld [vmem:[%s566 + $0x14] sm:$0xf]
      %v7485 = vld [vmem:[%s566 + $0x18] sm:$0xf]
      %v7486 = vld [vmem:[%s566 + $0x1c] sm:$0xf]
      %v7487 = vld [vmem:[%s566 + $0x20] sm:$0xf]
      %v7488 = vld [vmem:[%s566 + $0x24] sm:$0xf]
      %v7489 = vld [vmem:[%s566 + $0x28] sm:$0xf]
      %v7490 = vld [vmem:[%s566 + $0x2c] sm:$0xf]
      %v7491 = vld [vmem:[%s566 + $0x30] sm:$0xf]
      %v7492 = vld [vmem:[%s566 + $0x34] sm:$0xf]
      %v7493 = vld [vmem:[%s566 + $0x38] sm:$0xf]
      %v7494 = vld [vmem:[%s566 + $0x3c] sm:$0xf]
      %v7495 = vld [vmem:[%s566 + $0x40] sm:$0xf]
      %v7496 = vld [vmem:[%s566 + $0x44] sm:$0xf]
      %v7497 = vld [vmem:[%s566 + $0x48] sm:$0xf]
      %v7498 = vld [vmem:[%s566 + $0x4c] sm:$0xf]
      %v7499 = vld [vmem:[%s566 + $0x50] sm:$0xf]
      %v7500 = vld [vmem:[%s566 + $0x54] sm:$0xf]
      %v7501 = vld [vmem:[%s566 + $0x58] sm:$0xf]
      %v7502 = vld [vmem:[%s566 + $0x5c] sm:$0xf]
      %v7503 = vld [vmem:[%s566 + $0x60] sm:$0xf]
      %v7504 = vld [vmem:[%s566 + $0x64] sm:$0xf]
      %v7505 = vld [vmem:[%s566 + $0x68] sm:$0xf]
      %v7506 = vld [vmem:[%s566 + $0x6c] sm:$0xf]
      %v7507 = vld [vmem:[%s566 + $0x70] sm:$0xf]
      %v7508 = vld [vmem:[%s566 + $0x74] sm:$0xf]
      %v7509 = vld [vmem:[%s566 + $0x78] sm:$0xf]
      %v7510 = vld [vmem:[%s566 + $0x7c] sm:$0xf]
      %v7511 = vld [vmem:[%s566 + $0x80] sm:$0xf]
      %v7512 = vld [vmem:[%s566 + $0x84] sm:$0xf]
      %v7513 = vld [vmem:[%s566 + $0x88] sm:$0xf]
      %v7514 = vld [vmem:[%s566 + $0x8c] sm:$0xf]
      %v7515 = vld [vmem:[%s566 + $0x90] sm:$0xf]
      %v7516 = vld [vmem:[%s566 + $0x94] sm:$0xf]
      %v7517 = vld [vmem:[%s566 + $0x98] sm:$0xf]
      %v7518 = vld [vmem:[%s566 + $0x9c] sm:$0xf]
      %v7519 = vld [vmem:[%s566 + $0xa0] sm:$0xf]
      %v7520 = vld [vmem:[%s566 + $0xa4] sm:$0xf]
      %v7521 = vld [vmem:[%s566 + $0xa8] sm:$0xf]
      %v7522 = vld [vmem:[%s566 + $0xac] sm:$0xf]
      %v7523 = vld [vmem:[%s566 + $0xb0] sm:$0xf]
      %v7524 = vld [vmem:[%s566 + $0xb4] sm:$0xf]
      %v7525 = vld [vmem:[%s566 + $0xb8] sm:$0xf]
      %v7526 = vld [vmem:[%s566 + $0xbc] sm:$0xf]
      %v7527 = vld [vmem:[%s566 + $0xc0] sm:$0xf]
      %v7528 = vld [vmem:[%s566 + $0xc4] sm:$0xf]
      %v7529 = vld [vmem:[%s566 + $0xc8] sm:$0xf]
      %v7530 = vld [vmem:[%s566 + $0xcc] sm:$0xf]
      %v7531 = vld [vmem:[%s566 + $0xd0] sm:$0xf]
      %v7532 = vld [vmem:[%s566 + $0xd4] sm:$0xf]
      %v7533 = vld [vmem:[%s566 + $0xd8] sm:$0xf]
      %v7534 = vld [vmem:[%s566 + $0xdc] sm:$0xf]
      %v7535 = vld [vmem:[%s566 + $0xe0] sm:$0xf]
      %v7536 = vld [vmem:[%s566 + $0xe4] sm:$0xf]
      %v7537 = vld [vmem:[%s566 + $0xe8] sm:$0xf]
      %v7538 = vld [vmem:[%s566 + $0xec] sm:$0xf]
      %v7539 = vld [vmem:[%s566 + $0xf0] sm:$0xf]
      %v7540 = vld [vmem:[%s566 + $0xf4] sm:$0xf]
      %v7541 = vld [vmem:[%s566 + $0xf8] sm:$0xf]
      %v7542 = vld [vmem:[%s566 + $0xfc] sm:$0xf]
      %v7543 = vunpack.c.l.bf16 %v7479
      %v7544 = vunpack.c.l.bf16 %v7480
      %v7545 = vunpack.c.l.bf16 %v7481
      %v7546 = vunpack.c.l.bf16 %v7482
      %v7547 = vunpack.c.l.bf16 %v7483
      %v7548 = vunpack.c.l.bf16 %v7484
      %v7549 = vunpack.c.l.bf16 %v7485
      %v7550 = vunpack.c.l.bf16 %v7486
      %v7551 = vunpack.c.l.bf16 %v7487
      %v7552 = vunpack.c.l.bf16 %v7488
      %v7553 = vunpack.c.l.bf16 %v7489
      %v7554 = vunpack.c.l.bf16 %v7490
      %v7555 = vunpack.c.l.bf16 %v7491
      %v7556 = vunpack.c.l.bf16 %v7492
      %v7557 = vunpack.c.l.bf16 %v7493
      %v7558 = vunpack.c.l.bf16 %v7494
      %v7559 = vunpack.c.l.bf16 %v7495
      %v7560 = vunpack.c.l.bf16 %v7496
      %v7561 = vunpack.c.l.bf16 %v7497
      %v7562 = vunpack.c.l.bf16 %v7498
      %v7563 = vunpack.c.l.bf16 %v7499
      %v7564 = vunpack.c.l.bf16 %v7500
      %v7565 = vunpack.c.l.bf16 %v7501
      %v7566 = vunpack.c.l.bf16 %v7502
      %v7567 = vunpack.c.l.bf16 %v7503
      %v7568 = vunpack.c.l.bf16 %v7504
      %v7569 = vunpack.c.l.bf16 %v7505
      %v7570 = vunpack.c.l.bf16 %v7506
      %v7571 = vunpack.c.l.bf16 %v7507
      %v7572 = vunpack.c.l.bf16 %v7508
      %v7573 = vunpack.c.l.bf16 %v7509
      %v7574 = vunpack.c.l.bf16 %v7510
      %v7575 = vunpack.c.l.bf16 %v7511
      %v7576 = vunpack.c.l.bf16 %v7512
      %v7577 = vunpack.c.l.bf16 %v7513
      %v7578 = vunpack.c.l.bf16 %v7514
      %v7579 = vunpack.c.l.bf16 %v7515
      %v7580 = vunpack.c.l.bf16 %v7516
      %v7581 = vunpack.c.l.bf16 %v7517
      %v7582 = vunpack.c.l.bf16 %v7518
      %v7583 = vunpack.c.l.bf16 %v7519
      %v7584 = vunpack.c.l.bf16 %v7520
      %v7585 = vunpack.c.l.bf16 %v7521
      %v7586 = vunpack.c.l.bf16 %v7522
      %v7587 = vunpack.c.l.bf16 %v7523
      %v7588 = vunpack.c.l.bf16 %v7524
      %v7589 = vunpack.c.l.bf16 %v7525
      %v7590 = vunpack.c.l.bf16 %v7526
      %v7591 = vunpack.c.l.bf16 %v7527
      %v7592 = vunpack.c.l.bf16 %v7528
      %v7593 = vunpack.c.l.bf16 %v7529
      %v7594 = vunpack.c.l.bf16 %v7530
      %v7595 = vunpack.c.l.bf16 %v7531
      %v7596 = vunpack.c.l.bf16 %v7532
      %v7597 = vunpack.c.l.bf16 %v7533
      %v7598 = vunpack.c.l.bf16 %v7534
      %v7599 = vunpack.c.l.bf16 %v7535
      %v7600 = vunpack.c.l.bf16 %v7536
      %v7601 = vunpack.c.l.bf16 %v7537
      %v7602 = vunpack.c.l.bf16 %v7538
      %v7603 = vunpack.c.l.bf16 %v7539
      %v7604 = vunpack.c.l.bf16 %v7540
      %v7605 = vunpack.c.l.bf16 %v7541
      %v7606 = vunpack.c.l.bf16 %v7542
      %v7607 = vmul.f32 %v7225, %v7543
      %v7608 = vmul.f32 %v7228, %v7544
      %v7609 = vmul.f32 %v7233, %v7545
      %v7610 = vmul.f32 %v7236, %v7546
      %v7611 = vmul.f32 %v7241, %v7547
      %v7612 = vmul.f32 %v7244, %v7548
      %v7613 = vmul.f32 %v7249, %v7549
      %v7614 = vmul.f32 %v7252, %v7550
      %v7615 = vmul.f32 %v7257, %v7551
      %v7616 = vmul.f32 %v7260, %v7552
      %v7617 = vmul.f32 %v7265, %v7553
      %v7618 = vmul.f32 %v7268, %v7554
      %v7619 = vmul.f32 %v7273, %v7555
      %v7620 = vmul.f32 %v7276, %v7556
      %v7621 = vmul.f32 %v7281, %v7557
      %v7622 = vmul.f32 %v7284, %v7558
      %v7623 = vmul.f32 %v7289, %v7559
      %v7624 = vmul.f32 %v7292, %v7560
      %v7625 = vmul.f32 %v7297, %v7561
      %v7626 = vmul.f32 %v7300, %v7562
      %v7627 = vmul.f32 %v7305, %v7563
      %v7628 = vmul.f32 %v7308, %v7564
      %v7629 = vmul.f32 %v7313, %v7565
      %v7630 = vmul.f32 %v7316, %v7566
      %v7631 = vmul.f32 %v7321, %v7567
      %v7632 = vmul.f32 %v7324, %v7568
      %v7633 = vmul.f32 %v7329, %v7569
      %v7634 = vmul.f32 %v7332, %v7570
      %v7635 = vmul.f32 %v7337, %v7571
      %v7636 = vmul.f32 %v7340, %v7572
      %v7637 = vmul.f32 %v7345, %v7573
      %v7638 = vmul.f32 %v7348, %v7574
      %v7639 = vmul.f32 %v7353, %v7575
      %v7640 = vmul.f32 %v7356, %v7576
      %v7641 = vmul.f32 %v7361, %v7577
      %v7642 = vmul.f32 %v7364, %v7578
      %v7643 = vmul.f32 %v7369, %v7579
      %v7644 = vmul.f32 %v7372, %v7580
      %v7645 = vmul.f32 %v7377, %v7581
      %v7646 = vmul.f32 %v7380, %v7582
      %v7647 = vmul.f32 %v7385, %v7583
      %v7648 = vmul.f32 %v7388, %v7584
      %v7649 = vmul.f32 %v7393, %v7585
      %v7650 = vmul.f32 %v7396, %v7586
      %v7651 = vmul.f32 %v7401, %v7587
      %v7652 = vmul.f32 %v7404, %v7588
      %v7653 = vmul.f32 %v7409, %v7589
      %v7654 = vmul.f32 %v7412, %v7590
      %v7655 = vmul.f32 %v7417, %v7591
      %v7656 = vmul.f32 %v7420, %v7592
      %v7657 = vmul.f32 %v7425, %v7593
      %v7658 = vmul.f32 %v7428, %v7594
      %v7659 = vmul.f32 %v7433, %v7595
      %v7660 = vmul.f32 %v7436, %v7596
      %v7661 = vmul.f32 %v7441, %v7597
      %v7662 = vmul.f32 %v7444, %v7598
      %v7663 = vmul.f32 %v7449, %v7599
      %v7664 = vmul.f32 %v7452, %v7600
      %v7665 = vmul.f32 %v7457, %v7601
      %v7666 = vmul.f32 %v7460, %v7602
      %v7667 = vmul.f32 %v7465, %v7603
      %v7668 = vmul.f32 %v7468, %v7604
      %v7669 = vmul.f32 %v7473, %v7605
      %v7670 = vmul.f32 %v7476, %v7606
      %v7671 = vsel %vm640, %v7607, 0.0
      %v7672 = vrot.slane %v7671, 4
      %v7673 = vadd.f32 %v7671, %v7672
      %v7674 = vrot.slane %v7673, 2
      %v7675 = vadd.f32 %v7673, %v7674
      %v7676 = vrot.slane %v7675, 1
      %v7677 = vadd.f32 %v7675, %v7676
      %v7678 = vsel %vm640, %v7608, 0.0
      %v7679 = vrot.slane %v7678, 4
      %v7680 = vadd.f32 %v7678, %v7679
      %v7681 = vrot.slane %v7680, 2
      %v7682 = vadd.f32 %v7680, %v7681
      %v7683 = vrot.slane %v7682, 1
      %v7684 = vadd.f32 %v7682, %v7683
      %v7685 = vsel %vm640, %v7609, 0.0
      %v7686 = vrot.slane %v7685, 4
      %v7687 = vadd.f32 %v7685, %v7686
      %v7688 = vrot.slane %v7687, 2
      %v7689 = vadd.f32 %v7687, %v7688
      %v7690 = vrot.slane %v7689, 1
      %v7691 = vadd.f32 %v7689, %v7690
      %v7692 = vsel %vm640, %v7610, 0.0
      %v7693 = vrot.slane %v7692, 4
      %v7694 = vadd.f32 %v7692, %v7693
      %v7695 = vrot.slane %v7694, 2
      %v7696 = vadd.f32 %v7694, %v7695
      %v7697 = vrot.slane %v7696, 1
      %v7698 = vadd.f32 %v7696, %v7697
      %v7699 = vsel %vm640, %v7611, 0.0
      %v7700 = vrot.slane %v7699, 4
      %v7701 = vadd.f32 %v7699, %v7700
      %v7702 = vrot.slane %v7701, 2
      %v7703 = vadd.f32 %v7701, %v7702
      %v7704 = vrot.slane %v7703, 1
      %v7705 = vadd.f32 %v7703, %v7704
      %v7706 = vsel %vm640, %v7612, 0.0
      %v7707 = vrot.slane %v7706, 4
      %v7708 = vadd.f32 %v7706, %v7707
      %v7709 = vrot.slane %v7708, 2
      %v7710 = vadd.f32 %v7708, %v7709
      %v7711 = vrot.slane %v7710, 1
      %v7712 = vadd.f32 %v7710, %v7711
      %v7713 = vsel %vm640, %v7613, 0.0
      %v7714 = vrot.slane %v7713, 4
      %v7715 = vadd.f32 %v7713, %v7714
      %v7716 = vrot.slane %v7715, 2
      %v7717 = vadd.f32 %v7715, %v7716
      %v7718 = vrot.slane %v7717, 1
      %v7719 = vadd.f32 %v7717, %v7718
      %v7720 = vsel %vm640, %v7614, 0.0
      %v7721 = vrot.slane %v7720, 4
      %v7722 = vadd.f32 %v7720, %v7721
      %v7723 = vrot.slane %v7722, 2
      %v7724 = vadd.f32 %v7722, %v7723
      %v7725 = vrot.slane %v7724, 1
      %v7726 = vadd.f32 %v7724, %v7725
      %v7727 = vsel %vm640, %v7615, 0.0
      %v7728 = vrot.slane %v7727, 4
      %v7729 = vadd.f32 %v7727, %v7728
      %v7730 = vrot.slane %v7729, 2
      %v7731 = vadd.f32 %v7729, %v7730
      %v7732 = vrot.slane %v7731, 1
      %v7733 = vadd.f32 %v7731, %v7732
      %v7734 = vsel %vm640, %v7616, 0.0
      %v7735 = vrot.slane %v7734, 4
      %v7736 = vadd.f32 %v7734, %v7735
      %v7737 = vrot.slane %v7736, 2
      %v7738 = vadd.f32 %v7736, %v7737
      %v7739 = vrot.slane %v7738, 1
      %v7740 = vadd.f32 %v7738, %v7739
      %v7741 = vsel %vm640, %v7617, 0.0
      %v7742 = vrot.slane %v7741, 4
      %v7743 = vadd.f32 %v7741, %v7742
      %v7744 = vrot.slane %v7743, 2
      %v7745 = vadd.f32 %v7743, %v7744
      %v7746 = vrot.slane %v7745, 1
      %v7747 = vadd.f32 %v7745, %v7746
      %v7748 = vsel %vm640, %v7618, 0.0
      %v7749 = vrot.slane %v7748, 4
      %v7750 = vadd.f32 %v7748, %v7749
      %v7751 = vrot.slane %v7750, 2
      %v7752 = vadd.f32 %v7750, %v7751
      %v7753 = vrot.slane %v7752, 1
      %v7754 = vadd.f32 %v7752, %v7753
      %v7755 = vsel %vm640, %v7619, 0.0
      %v7756 = vrot.slane %v7755, 4
      %v7757 = vadd.f32 %v7755, %v7756
      %v7758 = vrot.slane %v7757, 2
      %v7759 = vadd.f32 %v7757, %v7758
      %v7760 = vrot.slane %v7759, 1
      %v7761 = vadd.f32 %v7759, %v7760
      %v7762 = vsel %vm640, %v7620, 0.0
      %v7763 = vrot.slane %v7762, 4
      %v7764 = vadd.f32 %v7762, %v7763
      %v7765 = vrot.slane %v7764, 2
      %v7766 = vadd.f32 %v7764, %v7765
      %v7767 = vrot.slane %v7766, 1
      %v7768 = vadd.f32 %v7766, %v7767
      %v7769 = vsel %vm640, %v7621, 0.0
      %v7770 = vrot.slane %v7769, 4
      %v7771 = vadd.f32 %v7769, %v7770
      %v7772 = vrot.slane %v7771, 2
      %v7773 = vadd.f32 %v7771, %v7772
      %v7774 = vrot.slane %v7773, 1
      %v7775 = vadd.f32 %v7773, %v7774
      %v7776 = vsel %vm640, %v7622, 0.0
      %v7777 = vrot.slane %v7776, 4
      %v7778 = vadd.f32 %v7776, %v7777
      %v7779 = vrot.slane %v7778, 2
      %v7780 = vadd.f32 %v7778, %v7779
      %v7781 = vrot.slane %v7780, 1
      %v7782 = vadd.f32 %v7780, %v7781
      %v7783 = vsel %vm640, %v7623, 0.0
      %v7784 = vrot.slane %v7783, 4
      %v7785 = vadd.f32 %v7783, %v7784
      %v7786 = vrot.slane %v7785, 2
      %v7787 = vadd.f32 %v7785, %v7786
      %v7788 = vrot.slane %v7787, 1
      %v7789 = vadd.f32 %v7787, %v7788
      %v7790 = vsel %vm640, %v7624, 0.0
      %v7791 = vrot.slane %v7790, 4
      %v7792 = vadd.f32 %v7790, %v7791
      %v7793 = vrot.slane %v7792, 2
      %v7794 = vadd.f32 %v7792, %v7793
      %v7795 = vrot.slane %v7794, 1
      %v7796 = vadd.f32 %v7794, %v7795
      %v7797 = vsel %vm640, %v7625, 0.0
      %v7798 = vrot.slane %v7797, 4
      %v7799 = vadd.f32 %v7797, %v7798
      %v7800 = vrot.slane %v7799, 2
      %v7801 = vadd.f32 %v7799, %v7800
      %v7802 = vrot.slane %v7801, 1
      %v7803 = vadd.f32 %v7801, %v7802
      %v7804 = vsel %vm640, %v7626, 0.0
      %v7805 = vrot.slane %v7804, 4
      %v7806 = vadd.f32 %v7804, %v7805
      %v7807 = vrot.slane %v7806, 2
      %v7808 = vadd.f32 %v7806, %v7807
      %v7809 = vrot.slane %v7808, 1
      %v7810 = vadd.f32 %v7808, %v7809
      %v7811 = vsel %vm640, %v7627, 0.0
      %v7812 = vrot.slane %v7811, 4
      %v7813 = vadd.f32 %v7811, %v7812
      %v7814 = vrot.slane %v7813, 2
      %v7815 = vadd.f32 %v7813, %v7814
      %v7816 = vrot.slane %v7815, 1
      %v7817 = vadd.f32 %v7815, %v7816
      %v7818 = vsel %vm640, %v7628, 0.0
      %v7819 = vrot.slane %v7818, 4
      %v7820 = vadd.f32 %v7818, %v7819
      %v7821 = vrot.slane %v7820, 2
      %v7822 = vadd.f32 %v7820, %v7821
      %v7823 = vrot.slane %v7822, 1
      %v7824 = vadd.f32 %v7822, %v7823
      %v7825 = vsel %vm640, %v7629, 0.0
      %v7826 = vrot.slane %v7825, 4
      %v7827 = vadd.f32 %v7825, %v7826
      %v7828 = vrot.slane %v7827, 2
      %v7829 = vadd.f32 %v7827, %v7828
      %v7830 = vrot.slane %v7829, 1
      %v7831 = vadd.f32 %v7829, %v7830
      %v7832 = vsel %vm640, %v7630, 0.0
      %v7833 = vrot.slane %v7832, 4
      %v7834 = vadd.f32 %v7832, %v7833
      %v7835 = vrot.slane %v7834, 2
      %v7836 = vadd.f32 %v7834, %v7835
      %v7837 = vrot.slane %v7836, 1
      %v7838 = vadd.f32 %v7836, %v7837
      %v7839 = vsel %vm640, %v7631, 0.0
      %v7840 = vrot.slane %v7839, 4
      %v7841 = vadd.f32 %v7839, %v7840
      %v7842 = vrot.slane %v7841, 2
      %v7843 = vadd.f32 %v7841, %v7842
      %v7844 = vrot.slane %v7843, 1
      %v7845 = vadd.f32 %v7843, %v7844
      %v7846 = vsel %vm640, %v7632, 0.0
      %v7847 = vrot.slane %v7846, 4
      %v7848 = vadd.f32 %v7846, %v7847
      %v7849 = vrot.slane %v7848, 2
      %v7850 = vadd.f32 %v7848, %v7849
      %v7851 = vrot.slane %v7850, 1
      %v7852 = vadd.f32 %v7850, %v7851
      %v7853 = vsel %vm640, %v7633, 0.0
      %v7854 = vrot.slane %v7853, 4
      %v7855 = vadd.f32 %v7853, %v7854
      %v7856 = vrot.slane %v7855, 2
      %v7857 = vadd.f32 %v7855, %v7856
      %v7858 = vrot.slane %v7857, 1
      %v7859 = vadd.f32 %v7857, %v7858
      %v7860 = vsel %vm640, %v7634, 0.0
      %v7861 = vrot.slane %v7860, 4
      %v7862 = vadd.f32 %v7860, %v7861
      %v7863 = vrot.slane %v7862, 2
      %v7864 = vadd.f32 %v7862, %v7863
      %v7865 = vrot.slane %v7864, 1
      %v7866 = vadd.f32 %v7864, %v7865
      %v7867 = vsel %vm640, %v7635, 0.0
      %v7868 = vrot.slane %v7867, 4
      %v7869 = vadd.f32 %v7867, %v7868
      %v7870 = vrot.slane %v7869, 2
      %v7871 = vadd.f32 %v7869, %v7870
      %v7872 = vrot.slane %v7871, 1
      %v7873 = vadd.f32 %v7871, %v7872
      %v7874 = vsel %vm640, %v7636, 0.0
      %v7875 = vrot.slane %v7874, 4
      %v7876 = vadd.f32 %v7874, %v7875
      %v7877 = vrot.slane %v7876, 2
      %v7878 = vadd.f32 %v7876, %v7877
      %v7879 = vrot.slane %v7878, 1
      %v7880 = vadd.f32 %v7878, %v7879
      %v7881 = vsel %vm640, %v7637, 0.0
      %v7882 = vrot.slane %v7881, 4
      %v7883 = vadd.f32 %v7881, %v7882
      %v7884 = vrot.slane %v7883, 2
      %v7885 = vadd.f32 %v7883, %v7884
      %v7886 = vrot.slane %v7885, 1
      %v7887 = vadd.f32 %v7885, %v7886
      %v7888 = vsel %vm640, %v7638, 0.0
      %v7889 = vrot.slane %v7888, 4
      %v7890 = vadd.f32 %v7888, %v7889
      %v7891 = vrot.slane %v7890, 2
      %v7892 = vadd.f32 %v7890, %v7891
      %v7893 = vrot.slane %v7892, 1
      %v7894 = vadd.f32 %v7892, %v7893
      %v7895 = vsel %vm640, %v7639, 0.0
      %v7896 = vrot.slane %v7895, 4
      %v7897 = vadd.f32 %v7895, %v7896
      %v7898 = vrot.slane %v7897, 2
      %v7899 = vadd.f32 %v7897, %v7898
      %v7900 = vrot.slane %v7899, 1
      %v7901 = vadd.f32 %v7899, %v7900
      %v7902 = vsel %vm640, %v7640, 0.0
      %v7903 = vrot.slane %v7902, 4
      %v7904 = vadd.f32 %v7902, %v7903
      %v7905 = vrot.slane %v7904, 2
      %v7906 = vadd.f32 %v7904, %v7905
      %v7907 = vrot.slane %v7906, 1
      %v7908 = vadd.f32 %v7906, %v7907
      %v7909 = vsel %vm640, %v7641, 0.0
      %v7910 = vrot.slane %v7909, 4
      %v7911 = vadd.f32 %v7909, %v7910
      %v7912 = vrot.slane %v7911, 2
      %v7913 = vadd.f32 %v7911, %v7912
      %v7914 = vrot.slane %v7913, 1
      %v7915 = vadd.f32 %v7913, %v7914
      %v7916 = vsel %vm640, %v7642, 0.0
      %v7917 = vrot.slane %v7916, 4
      %v7918 = vadd.f32 %v7916, %v7917
      %v7919 = vrot.slane %v7918, 2
      %v7920 = vadd.f32 %v7918, %v7919
      %v7921 = vrot.slane %v7920, 1
      %v7922 = vadd.f32 %v7920, %v7921
      %v7923 = vsel %vm640, %v7643, 0.0
      %v7924 = vrot.slane %v7923, 4
      %v7925 = vadd.f32 %v7923, %v7924
      %v7926 = vrot.slane %v7925, 2
      %v7927 = vadd.f32 %v7925, %v7926
      %v7928 = vrot.slane %v7927, 1
      %v7929 = vadd.f32 %v7927, %v7928
      %v7930 = vsel %vm640, %v7644, 0.0
      %v7931 = vrot.slane %v7930, 4
      %v7932 = vadd.f32 %v7930, %v7931
      %v7933 = vrot.slane %v7932, 2
      %v7934 = vadd.f32 %v7932, %v7933
      %v7935 = vrot.slane %v7934, 1
      %v7936 = vadd.f32 %v7934, %v7935
      %v7937 = vsel %vm640, %v7645, 0.0
      %v7938 = vrot.slane %v7937, 4
      %v7939 = vadd.f32 %v7937, %v7938
      %v7940 = vrot.slane %v7939, 2
      %v7941 = vadd.f32 %v7939, %v7940
      %v7942 = vrot.slane %v7941, 1
      %v7943 = vadd.f32 %v7941, %v7942
      %v7944 = vsel %vm640, %v7646, 0.0
      %v7945 = vrot.slane %v7944, 4
      %v7946 = vadd.f32 %v7944, %v7945
      %v7947 = vrot.slane %v7946, 2
      %v7948 = vadd.f32 %v7946, %v7947
      %v7949 = vrot.slane %v7948, 1
      %v7950 = vadd.f32 %v7948, %v7949
      %v7951 = vsel %vm640, %v7647, 0.0
      %v7952 = vrot.slane %v7951, 4
      %v7953 = vadd.f32 %v7951, %v7952
      %v7954 = vrot.slane %v7953, 2
      %v7955 = vadd.f32 %v7953, %v7954
      %v7956 = vrot.slane %v7955, 1
      %v7957 = vadd.f32 %v7955, %v7956
      %v7958 = vsel %vm640, %v7648, 0.0
      %v7959 = vrot.slane %v7958, 4
      %v7960 = vadd.f32 %v7958, %v7959
      %v7961 = vrot.slane %v7960, 2
      %v7962 = vadd.f32 %v7960, %v7961
      %v7963 = vrot.slane %v7962, 1
      %v7964 = vadd.f32 %v7962, %v7963
      %v7965 = vsel %vm640, %v7649, 0.0
      %v7966 = vrot.slane %v7965, 4
      %v7967 = vadd.f32 %v7965, %v7966
      %v7968 = vrot.slane %v7967, 2
      %v7969 = vadd.f32 %v7967, %v7968
      %v7970 = vrot.slane %v7969, 1
      %v7971 = vadd.f32 %v7969, %v7970
      %v7972 = vsel %vm640, %v7650, 0.0
      %v7973 = vrot.slane %v7972, 4
      %v7974 = vadd.f32 %v7972, %v7973
      %v7975 = vrot.slane %v7974, 2
      %v7976 = vadd.f32 %v7974, %v7975
      %v7977 = vrot.slane %v7976, 1
      %v7978 = vadd.f32 %v7976, %v7977
      %v7979 = vsel %vm640, %v7651, 0.0
      %v7980 = vrot.slane %v7979, 4
      %v7981 = vadd.f32 %v7979, %v7980
      %v7982 = vrot.slane %v7981, 2
      %v7983 = vadd.f32 %v7981, %v7982
      %v7984 = vrot.slane %v7983, 1
      %v7985 = vadd.f32 %v7983, %v7984
      %v7986 = vsel %vm640, %v7652, 0.0
      %v7987 = vrot.slane %v7986, 4
      %v7988 = vadd.f32 %v7986, %v7987
      %v7989 = vrot.slane %v7988, 2
      %v7990 = vadd.f32 %v7988, %v7989
      %v7991 = vrot.slane %v7990, 1
      %v7992 = vadd.f32 %v7990, %v7991
      %v7993 = vsel %vm640, %v7653, 0.0
      %v7994 = vrot.slane %v7993, 4
      %v7995 = vadd.f32 %v7993, %v7994
      %v7996 = vrot.slane %v7995, 2
      %v7997 = vadd.f32 %v7995, %v7996
      %v7998 = vrot.slane %v7997, 1
      %v7999 = vadd.f32 %v7997, %v7998
      %v8000 = vsel %vm640, %v7654, 0.0
      %v8001 = vrot.slane %v8000, 4
      %v8002 = vadd.f32 %v8000, %v8001
      %v8003 = vrot.slane %v8002, 2
      %v8004 = vadd.f32 %v8002, %v8003
      %v8005 = vrot.slane %v8004, 1
      %v8006 = vadd.f32 %v8004, %v8005
      %v8007 = vsel %vm640, %v7655, 0.0
      %v8008 = vrot.slane %v8007, 4
      %v8009 = vadd.f32 %v8007, %v8008
      %v8010 = vrot.slane %v8009, 2
      %v8011 = vadd.f32 %v8009, %v8010
      %v8012 = vrot.slane %v8011, 1
      %v8013 = vadd.f32 %v8011, %v8012
      %v8014 = vsel %vm640, %v7656, 0.0
      %v8015 = vrot.slane %v8014, 4
      %v8016 = vadd.f32 %v8014, %v8015
      %v8017 = vrot.slane %v8016, 2
      %v8018 = vadd.f32 %v8016, %v8017
      %v8019 = vrot.slane %v8018, 1
      %v8020 = vadd.f32 %v8018, %v8019
      %v8021 = vsel %vm640, %v7657, 0.0
      %v8022 = vrot.slane %v8021, 4
      %v8023 = vadd.f32 %v8021, %v8022
      %v8024 = vrot.slane %v8023, 2
      %v8025 = vadd.f32 %v8023, %v8024
      %v8026 = vrot.slane %v8025, 1
      %v8027 = vadd.f32 %v8025, %v8026
      %v8028 = vsel %vm640, %v7658, 0.0
      %v8029 = vrot.slane %v8028, 4
      %v8030 = vadd.f32 %v8028, %v8029
      %v8031 = vrot.slane %v8030, 2
      %v8032 = vadd.f32 %v8030, %v8031
      %v8033 = vrot.slane %v8032, 1
      %v8034 = vadd.f32 %v8032, %v8033
      %v8035 = vsel %vm640, %v7659, 0.0
      %v8036 = vrot.slane %v8035, 4
      %v8037 = vadd.f32 %v8035, %v8036
      %v8038 = vrot.slane %v8037, 2
      %v8039 = vadd.f32 %v8037, %v8038
      %v8040 = vrot.slane %v8039, 1
      %v8041 = vadd.f32 %v8039, %v8040
      %v8042 = vsel %vm640, %v7660, 0.0
      %v8043 = vrot.slane %v8042, 4
      %v8044 = vadd.f32 %v8042, %v8043
      %v8045 = vrot.slane %v8044, 2
      %v8046 = vadd.f32 %v8044, %v8045
      %v8047 = vrot.slane %v8046, 1
      %v8048 = vadd.f32 %v8046, %v8047
      %v8049 = vsel %vm640, %v7661, 0.0
      %v8050 = vrot.slane %v8049, 4
      %v8051 = vadd.f32 %v8049, %v8050
      %v8052 = vrot.slane %v8051, 2
      %v8053 = vadd.f32 %v8051, %v8052
      %v8054 = vrot.slane %v8053, 1
      %v8055 = vadd.f32 %v8053, %v8054
      %v8056 = vsel %vm640, %v7662, 0.0
      %v8057 = vrot.slane %v8056, 4
      %v8058 = vadd.f32 %v8056, %v8057
      %v8059 = vrot.slane %v8058, 2
      %v8060 = vadd.f32 %v8058, %v8059
      %v8061 = vrot.slane %v8060, 1
      %v8062 = vadd.f32 %v8060, %v8061
      %v8063 = vsel %vm640, %v7663, 0.0
      %v8064 = vrot.slane %v8063, 4
      %v8065 = vadd.f32 %v8063, %v8064
      %v8066 = vrot.slane %v8065, 2
      %v8067 = vadd.f32 %v8065, %v8066
      %v8068 = vrot.slane %v8067, 1
      %v8069 = vadd.f32 %v8067, %v8068
      %v8070 = vsel %vm640, %v7664, 0.0
      %v8071 = vrot.slane %v8070, 4
      %v8072 = vadd.f32 %v8070, %v8071
      %v8073 = vrot.slane %v8072, 2
      %v8074 = vadd.f32 %v8072, %v8073
      %v8075 = vrot.slane %v8074, 1
      %v8076 = vadd.f32 %v8074, %v8075
      %v8077 = vsel %vm640, %v7665, 0.0
      %v8078 = vrot.slane %v8077, 4
      %v8079 = vadd.f32 %v8077, %v8078
      %v8080 = vrot.slane %v8079, 2
      %v8081 = vadd.f32 %v8079, %v8080
      %v8082 = vrot.slane %v8081, 1
      %v8083 = vadd.f32 %v8081, %v8082
      %v8084 = vsel %vm640, %v7666, 0.0
      %v8085 = vrot.slane %v8084, 4
      %v8086 = vadd.f32 %v8084, %v8085
      %v8087 = vrot.slane %v8086, 2
      %v8088 = vadd.f32 %v8086, %v8087
      %v8089 = vrot.slane %v8088, 1
      %v8090 = vadd.f32 %v8088, %v8089
      %v8091 = vsel %vm640, %v7667, 0.0
      %v8092 = vrot.slane %v8091, 4
      %v8093 = vadd.f32 %v8091, %v8092
      %v8094 = vrot.slane %v8093, 2
      %v8095 = vadd.f32 %v8093, %v8094
      %v8096 = vrot.slane %v8095, 1
      %v8097 = vadd.f32 %v8095, %v8096
      %v8098 = vsel %vm640, %v7668, 0.0
      %v8099 = vrot.slane %v8098, 4
      %v8100 = vadd.f32 %v8098, %v8099
      %v8101 = vrot.slane %v8100, 2
      %v8102 = vadd.f32 %v8100, %v8101
      %v8103 = vrot.slane %v8102, 1
      %v8104 = vadd.f32 %v8102, %v8103
      %v8105 = vsel %vm640, %v7669, 0.0
      %v8106 = vrot.slane %v8105, 4
      %v8107 = vadd.f32 %v8105, %v8106
      %v8108 = vrot.slane %v8107, 2
      %v8109 = vadd.f32 %v8107, %v8108
      %v8110 = vrot.slane %v8109, 1
      %v8111 = vadd.f32 %v8109, %v8110
      %v8112 = vsel %vm640, %v7670, 0.0
      %v8113 = vrot.slane %v8112, 4
      %v8114 = vadd.f32 %v8112, %v8113
      %v8115 = vrot.slane %v8114, 2
      %v8116 = vadd.f32 %v8114, %v8115
      %v8117 = vrot.slane %v8116, 1
      %v8118 = vadd.f32 %v8116, %v8117
      %v8119 = vld [vmem:[%s9] sm:$0x3]
      %v8121 = vsel %vm4277, %v6861, 0
      %v8124 = vsel %vm4277, %v6862, 0
      %v8127 = vsel %vm4277, %v6863, 0
      %v8130 = vsel %vm4277, %v6864, 0
      %v8133 = vsel %vm7186, %v8119, 0
      %8135 = vmatprep.subr.bf16.mxu0 0
      %8136 = vmatpush1.bf16.msra.mxu0 0
      %8137 = vmatprep.subr.bf16.mxu0 0
      %8138 = vmatpush1.bf16.msra.mxu0 0
      %8139 = vmatprep.subr.bf16.mxu0 0
      %8140 = vmatpush1.bf16.msra.mxu0 0
      %8141 = vmatprep.subr.bf16.mxu0 0
      %8142 = vmatpush1.bf16.msra.mxu0 0
      %8143 = vmatprep.subr.bf16.mxu0 0
      %8144 = vmatpush1.bf16.msra.mxu0 0
      %8145 = vmatprep.subr.bf16.mxu0 0
      %8146 = vmatpush1.bf16.msra.mxu0 0
      %8147 = vmatprep.subr.bf16.mxu0 0
      %8148 = vmatpush1.bf16.msra.mxu0 0
      %8149 = vmatprep.subr.bf16.mxu0 0
      %8150 = vmatpush1.bf16.msra.mxu0 %v8133
      %8151 = vmatprep.subr.bf16.mxu0 0
      %8152 = vmatpush2.bf16.msra.mxu0 0
      %8153 = vmatprep.subr.bf16.mxu0 0
      %8154 = vmatpush2.bf16.msra.mxu0 0
      %8155 = vmatprep.subr.bf16.mxu0 0
      %8156 = vmatpush2.bf16.msra.mxu0 0
      %8157 = vmatprep.subr.bf16.mxu0 0
      %8158 = vmatpush2.bf16.msra.mxu0 0
      %8159 = vmatprep.subr.bf16.mxu0 0
      %8160 = vmatpush2.bf16.msra.mxu0 0
      %8161 = vmatprep.subr.bf16.mxu0 0
      %8162 = vmatpush2.bf16.msra.mxu0 0
      %8163 = vmatprep.subr.bf16.mxu0 0
      %8164 = vmatpush2.bf16.msra.mxu0 0
      %8165 = vmatprep.subr.bf16.mxu0 0
      %8166 = vmatpush2.bf16.msra.mxu0 0
      %8167 = vmatprep.mubr.bf16.mxu0 0
      %8168 = vmatmul.mubr.bf16.gmra.mxu0 %v8121
      %v8169 = vpop.f32.mrf.mxu0
      %v8170 = vadd.f32 0.0, %v8169
      %v8171 = vpop.f32.mrf.mxu0
      %v8172 = vpop.f32.mrf.mxu0
      %v8173 = vadd.f32 0.0, %v8172
      %v8174 = vpop.f32.mrf.mxu0
      %8175 = vmatprep.mubr.bf16.mxu0 0
      %8176 = vmatmul.mubr.bf16.gmra.mxu0 %v8124
      %v8177 = vpop.f32.mrf.mxu0
      %v8178 = vadd.f32 0.0, %v8177
      %v8179 = vpop.f32.mrf.mxu0
      %v8180 = vpop.f32.mrf.mxu0
      %v8181 = vadd.f32 0.0, %v8180
      %v8182 = vpop.f32.mrf.mxu0
      %8183 = vmatprep.mubr.bf16.mxu0 0
      %8184 = vmatmul.mubr.bf16.gmra.mxu0 %v8127
      %v8185 = vpop.f32.mrf.mxu0
      %v8186 = vadd.f32 0.0, %v8185
      %v8187 = vpop.f32.mrf.mxu0
      %v8188 = vpop.f32.mrf.mxu0
      %v8189 = vadd.f32 0.0, %v8188
      %v8190 = vpop.f32.mrf.mxu0
      %8191 = vmatprep.mubr.bf16.mxu0 0
      %8192 = vmatmul.mubr.bf16.gmra.mxu0 %v8130
      %v8193 = vpop.f32.mrf.mxu0
      %v8194 = vadd.f32 0.0, %v8193
      %v8195 = vpop.f32.mrf.mxu0
      %v8196 = vpop.f32.mrf.mxu0
      %v8197 = vadd.f32 0.0, %v8196
      %v8198 = vpop.f32.mrf.mxu0
      %8199 = vdwg.mxu0
      %v8208 = vrot.slane %v8170, 1
      %v8209 = vrot.slane %v8170, 2
      %v8210 = vrot.slane %v8170, 3
      %v8211 = vrot.slane %v8170, 4
      %v8212 = vrot.slane %v8170, 5
      %v8213 = vrot.slane %v8170, 6
      %v8214 = vrot.slane %v8170, 7
      %v8215 = vrot.slane %v8173, 1
      %v8216 = vrot.slane %v8173, 2
      %v8217 = vrot.slane %v8173, 3
      %v8218 = vrot.slane %v8173, 4
      %v8219 = vrot.slane %v8173, 5
      %v8220 = vrot.slane %v8173, 6
      %v8221 = vrot.slane %v8173, 7
      %v8222 = vrot.slane %v8178, 1
      %v8223 = vrot.slane %v8178, 2
      %v8224 = vrot.slane %v8178, 3
      %v8225 = vrot.slane %v8178, 4
      %v8226 = vrot.slane %v8178, 5
      %v8227 = vrot.slane %v8178, 6
      %v8228 = vrot.slane %v8178, 7
      %v8229 = vrot.slane %v8181, 1
      %v8230 = vrot.slane %v8181, 2
      %v8231 = vrot.slane %v8181, 3
      %v8232 = vrot.slane %v8181, 4
      %v8233 = vrot.slane %v8181, 5
      %v8234 = vrot.slane %v8181, 6
      %v8235 = vrot.slane %v8181, 7
      %v8236 = vrot.slane %v8186, 1
      %v8237 = vrot.slane %v8186, 2
      %v8238 = vrot.slane %v8186, 3
      %v8239 = vrot.slane %v8186, 4
      %v8240 = vrot.slane %v8186, 5
      %v8241 = vrot.slane %v8186, 6
      %v8242 = vrot.slane %v8186, 7
      %v8243 = vrot.slane %v8189, 1
      %v8244 = vrot.slane %v8189, 2
      %v8245 = vrot.slane %v8189, 3
      %v8246 = vrot.slane %v8189, 4
      %v8247 = vrot.slane %v8189, 5
      %v8248 = vrot.slane %v8189, 6
      %v8249 = vrot.slane %v8189, 7
      %v8250 = vrot.slane %v8194, 1
      %v8251 = vrot.slane %v8194, 2
      %v8252 = vrot.slane %v8194, 3
      %v8253 = vrot.slane %v8194, 4
      %v8254 = vrot.slane %v8194, 5
      %v8255 = vrot.slane %v8194, 6
      %v8256 = vrot.slane %v8194, 7
      %v8257 = vrot.slane %v8197, 1
      %v8258 = vrot.slane %v8197, 2
      %v8259 = vrot.slane %v8197, 3
      %v8260 = vrot.slane %v8197, 4
      %v8261 = vrot.slane %v8197, 5
      %v8262 = vrot.slane %v8197, 6
      %v8263 = vrot.slane %v8197, 7
      %v8328 = vadd.f32 %v7677, %v8170
      %v8329 = vadd.f32 %v7684, %v8208
      %v8330 = vadd.f32 %v7691, %v8209
      %v8331 = vadd.f32 %v7698, %v8210
      %v8332 = vadd.f32 %v7705, %v8211
      %v8333 = vadd.f32 %v7712, %v8212
      %v8334 = vadd.f32 %v7719, %v8213
      %v8335 = vadd.f32 %v7726, %v8214
      %v8336 = vadd.f32 %v7733, %v8173
      %v8337 = vadd.f32 %v7740, %v8215
      %v8338 = vadd.f32 %v7747, %v8216
      %v8339 = vadd.f32 %v7754, %v8217
      %v8340 = vadd.f32 %v7761, %v8218
      %v8341 = vadd.f32 %v7768, %v8219
      %v8342 = vadd.f32 %v7775, %v8220
      %v8343 = vadd.f32 %v7782, %v8221
      %v8344 = vadd.f32 %v7789, %v8178
      %v8345 = vadd.f32 %v7796, %v8222
      %v8346 = vadd.f32 %v7803, %v8223
      %v8347 = vadd.f32 %v7810, %v8224
      %v8348 = vadd.f32 %v7817, %v8225
      %v8349 = vadd.f32 %v7824, %v8226
      %v8350 = vadd.f32 %v7831, %v8227
      %v8351 = vadd.f32 %v7838, %v8228
      %v8352 = vadd.f32 %v7845, %v8181
      %v8353 = vadd.f32 %v7852, %v8229
      %v8354 = vadd.f32 %v7859, %v8230
      %v8355 = vadd.f32 %v7866, %v8231
      %v8356 = vadd.f32 %v7873, %v8232
      %v8357 = vadd.f32 %v7880, %v8233
      %v8358 = vadd.f32 %v7887, %v8234
      %v8359 = vadd.f32 %v7894, %v8235
      %v8360 = vadd.f32 %v7901, %v8186
      %v8361 = vadd.f32 %v7908, %v8236
      %v8362 = vadd.f32 %v7915, %v8237
      %v8363 = vadd.f32 %v7922, %v8238
      %v8364 = vadd.f32 %v7929, %v8239
      %v8365 = vadd.f32 %v7936, %v8240
      %v8366 = vadd.f32 %v7943, %v8241
      %v8367 = vadd.f32 %v7950, %v8242
      %v8368 = vadd.f32 %v7957, %v8189
      %v8369 = vadd.f32 %v7964, %v8243
      %v8370 = vadd.f32 %v7971, %v8244
      %v8371 = vadd.f32 %v7978, %v8245
      %v8372 = vadd.f32 %v7985, %v8246
      %v8373 = vadd.f32 %v7992, %v8247
      %v8374 = vadd.f32 %v7999, %v8248
      %v8375 = vadd.f32 %v8006, %v8249
      %v8376 = vadd.f32 %v8013, %v8194
      %v8377 = vadd.f32 %v8020, %v8250
      %v8378 = vadd.f32 %v8027, %v8251
      %v8379 = vadd.f32 %v8034, %v8252
      %v8380 = vadd.f32 %v8041, %v8253
      %v8381 = vadd.f32 %v8048, %v8254
      %v8382 = vadd.f32 %v8055, %v8255
      %v8383 = vadd.f32 %v8062, %v8256
      %v8384 = vadd.f32 %v8069, %v8197
      %v8385 = vadd.f32 %v8076, %v8257
      %v8386 = vadd.f32 %v8083, %v8258
      %v8387 = vadd.f32 %v8090, %v8259
      %v8388 = vadd.f32 %v8097, %v8260
      %v8389 = vadd.f32 %v8104, %v8261
      %v8390 = vadd.f32 %v8111, %v8262
      %v8391 = vadd.f32 %v8118, %v8263
      %v8392 = vpack.c.bf16 %v8328, %v8328
      %v8393 = vpack.c.bf16 %v8329, %v8329
      %v8394 = vpack.c.bf16 %v8330, %v8330
      %v8395 = vpack.c.bf16 %v8331, %v8331
      %v8396 = vpack.c.bf16 %v8332, %v8332
      %v8397 = vpack.c.bf16 %v8333, %v8333
      %v8398 = vpack.c.bf16 %v8334, %v8334
      %v8399 = vpack.c.bf16 %v8335, %v8335
      %v8400 = vpack.c.bf16 %v8336, %v8336
      %v8401 = vpack.c.bf16 %v8337, %v8337
      %v8402 = vpack.c.bf16 %v8338, %v8338
      %v8403 = vpack.c.bf16 %v8339, %v8339
      %v8404 = vpack.c.bf16 %v8340, %v8340
      %v8405 = vpack.c.bf16 %v8341, %v8341
      %v8406 = vpack.c.bf16 %v8342, %v8342
      %v8407 = vpack.c.bf16 %v8343, %v8343
      %v8408 = vpack.c.bf16 %v8344, %v8344
      %v8409 = vpack.c.bf16 %v8345, %v8345
      %v8410 = vpack.c.bf16 %v8346, %v8346
      %v8411 = vpack.c.bf16 %v8347, %v8347
      %v8412 = vpack.c.bf16 %v8348, %v8348
      %v8413 = vpack.c.bf16 %v8349, %v8349
      %v8414 = vpack.c.bf16 %v8350, %v8350
      %v8415 = vpack.c.bf16 %v8351, %v8351
      %v8416 = vpack.c.bf16 %v8352, %v8352
      %v8417 = vpack.c.bf16 %v8353, %v8353
      %v8418 = vpack.c.bf16 %v8354, %v8354
      %v8419 = vpack.c.bf16 %v8355, %v8355
      %v8420 = vpack.c.bf16 %v8356, %v8356
      %v8421 = vpack.c.bf16 %v8357, %v8357
      %v8422 = vpack.c.bf16 %v8358, %v8358
      %v8423 = vpack.c.bf16 %v8359, %v8359
      %v8424 = vpack.c.bf16 %v8360, %v8360
      %v8425 = vpack.c.bf16 %v8361, %v8361
      %v8426 = vpack.c.bf16 %v8362, %v8362
      %v8427 = vpack.c.bf16 %v8363, %v8363
      %v8428 = vpack.c.bf16 %v8364, %v8364
      %v8429 = vpack.c.bf16 %v8365, %v8365
      %v8430 = vpack.c.bf16 %v8366, %v8366
      %v8431 = vpack.c.bf16 %v8367, %v8367
      %v8432 = vpack.c.bf16 %v8368, %v8368
      %v8433 = vpack.c.bf16 %v8369, %v8369
      %v8434 = vpack.c.bf16 %v8370, %v8370
      %v8435 = vpack.c.bf16 %v8371, %v8371
      %v8436 = vpack.c.bf16 %v8372, %v8372
      %v8437 = vpack.c.bf16 %v8373, %v8373
      %v8438 = vpack.c.bf16 %v8374, %v8374
      %v8439 = vpack.c.bf16 %v8375, %v8375
      %v8440 = vpack.c.bf16 %v8376, %v8376
      %v8441 = vpack.c.bf16 %v8377, %v8377
      %v8442 = vpack.c.bf16 %v8378, %v8378
      %v8443 = vpack.c.bf16 %v8379, %v8379
      %v8444 = vpack.c.bf16 %v8380, %v8380
      %v8445 = vpack.c.bf16 %v8381, %v8381
      %v8446 = vpack.c.bf16 %v8382, %v8382
      %v8447 = vpack.c.bf16 %v8383, %v8383
      %v8448 = vpack.c.bf16 %v8384, %v8384
      %v8449 = vpack.c.bf16 %v8385, %v8385
      %v8450 = vpack.c.bf16 %v8386, %v8386
      %v8451 = vpack.c.bf16 %v8387, %v8387
      %v8452 = vpack.c.bf16 %v8388, %v8388
      %v8453 = vpack.c.bf16 %v8389, %v8389
      %v8454 = vpack.c.bf16 %v8390, %v8390
      %v8455 = vpack.c.bf16 %v8391, %v8391
      %v8456 = vld [vmem:[%s11] sm:$0xf]
      %v8457 = vld [vmem:[%s11 + $0x4] sm:$0xf]
      %v8458 = vld [vmem:[%s11 + $0x8] sm:$0xf]
      %v8459 = vld [vmem:[%s11 + $0xc] sm:$0xf]
      %v8460 = vld [vmem:[%s12] sm:$0x1]
      %v8462 = vlaneseq
      %v8463 = vshrl.u32 %v8462, 7
      %v8464 = vsub.s32 0, %v8463
      %v8465 = vrot.slane %v8460, %v8464
      %v8531 = vunpack.c.l.b16 %v8392
      %v8532 = vunpack.c.l.b16 %v8393
      %v8533 = vunpack.c.l.b16 %v8394
      %v8534 = vunpack.c.l.b16 %v8395
      %v8535 = vunpack.c.l.b16 %v8396
      %v8536 = vunpack.c.l.b16 %v8397
      %v8537 = vunpack.c.l.b16 %v8398
      %v8538 = vunpack.c.l.b16 %v8399
      %v8539 = vunpack.c.l.b16 %v8400
      %v8540 = vunpack.c.l.b16 %v8401
      %v8541 = vunpack.c.l.b16 %v8402
      %v8542 = vunpack.c.l.b16 %v8403
      %v8543 = vunpack.c.l.b16 %v8404
      %v8544 = vunpack.c.l.b16 %v8405
      %v8545 = vunpack.c.l.b16 %v8406
      %v8546 = vunpack.c.l.b16 %v8407
      %v8547 = vunpack.c.l.b16 %v8408
      %v8548 = vunpack.c.l.b16 %v8409
      %v8549 = vunpack.c.l.b16 %v8410
      %v8550 = vunpack.c.l.b16 %v8411
      %v8551 = vunpack.c.l.b16 %v8412
      %v8552 = vunpack.c.l.b16 %v8413
      %v8553 = vunpack.c.l.b16 %v8414
      %v8554 = vunpack.c.l.b16 %v8415
      %v8555 = vunpack.c.l.b16 %v8416
      %v8556 = vunpack.c.l.b16 %v8417
      %v8557 = vunpack.c.l.b16 %v8418
      %v8558 = vunpack.c.l.b16 %v8419
      %v8559 = vunpack.c.l.b16 %v8420
      %v8560 = vunpack.c.l.b16 %v8421
      %v8561 = vunpack.c.l.b16 %v8422
      %v8562 = vunpack.c.l.b16 %v8423
      %v8563 = vunpack.c.l.b16 %v8424
      %v8564 = vunpack.c.l.b16 %v8425
      %v8565 = vunpack.c.l.b16 %v8426
      %v8566 = vunpack.c.l.b16 %v8427
      %v8567 = vunpack.c.l.b16 %v8428
      %v8568 = vunpack.c.l.b16 %v8429
      %v8569 = vunpack.c.l.b16 %v8430
      %v8570 = vunpack.c.l.b16 %v8431
      %v8571 = vunpack.c.l.b16 %v8432
      %v8572 = vunpack.c.l.b16 %v8433
      %v8573 = vunpack.c.l.b16 %v8434
      %v8574 = vunpack.c.l.b16 %v8435
      %v8575 = vunpack.c.l.b16 %v8436
      %v8576 = vunpack.c.l.b16 %v8437
      %v8577 = vunpack.c.l.b16 %v8438
      %v8578 = vunpack.c.l.b16 %v8439
      %v8579 = vunpack.c.l.b16 %v8440
      %v8580 = vunpack.c.l.b16 %v8441
      %v8581 = vunpack.c.l.b16 %v8442
      %v8582 = vunpack.c.l.b16 %v8443
      %v8583 = vunpack.c.l.b16 %v8444
      %v8584 = vunpack.c.l.b16 %v8445
      %v8585 = vunpack.c.l.b16 %v8446
      %v8586 = vunpack.c.l.b16 %v8447
      %v8587 = vunpack.c.l.b16 %v8448
      %v8588 = vunpack.c.l.b16 %v8449
      %v8589 = vunpack.c.l.b16 %v8450
      %v8590 = vunpack.c.l.b16 %v8451
      %v8591 = vunpack.c.l.b16 %v8452
      %v8592 = vunpack.c.l.b16 %v8453
      %v8593 = vunpack.c.l.b16 %v8454
      %v8594 = vunpack.c.l.b16 %v8455
      %v8595 = vrot.slane %v8532, 7
      %v8596 = vsel %vm5431, %v8595, %v8531
      %v8597 = vrot.slane %v8533, 6
      %v8598 = vsel %vm5434, %v8597, %v8596
      %v8599 = vrot.slane %v8534, 5
      %v8600 = vsel %vm5437, %v8599, %v8598
      %v8601 = vrot.slane %v8535, 4
      %v8602 = vsel %vm5440, %v8601, %v8600
      %v8603 = vrot.slane %v8536, 3
      %v8604 = vsel %vm5443, %v8603, %v8602
      %v8605 = vrot.slane %v8537, 2
      %v8606 = vsel %vm5446, %v8605, %v8604
      %v8607 = vrot.slane %v8538, 1
      %v8608 = vsel %vm5449, %v8607, %v8606
      %v8609 = vrot.slane %v8540, 7
      %v8610 = vsel %vm5431, %v8609, %v8539
      %v8611 = vrot.slane %v8541, 6
      %v8612 = vsel %vm5434, %v8611, %v8610
      %v8613 = vrot.slane %v8542, 5
      %v8614 = vsel %vm5437, %v8613, %v8612
      %v8615 = vrot.slane %v8543, 4
      %v8616 = vsel %vm5440, %v8615, %v8614
      %v8617 = vrot.slane %v8544, 3
      %v8618 = vsel %vm5443, %v8617, %v8616
      %v8619 = vrot.slane %v8545, 2
      %v8620 = vsel %vm5446, %v8619, %v8618
      %v8621 = vrot.slane %v8546, 1
      %v8622 = vsel %vm5449, %v8621, %v8620
      %v8623 = vrot.slane %v8548, 7
      %v8624 = vsel %vm5431, %v8623, %v8547
      %v8625 = vrot.slane %v8549, 6
      %v8626 = vsel %vm5434, %v8625, %v8624
      %v8627 = vrot.slane %v8550, 5
      %v8628 = vsel %vm5437, %v8627, %v8626
      %v8629 = vrot.slane %v8551, 4
      %v8630 = vsel %vm5440, %v8629, %v8628
      %v8631 = vrot.slane %v8552, 3
      %v8632 = vsel %vm5443, %v8631, %v8630
      %v8633 = vrot.slane %v8553, 2
      %v8634 = vsel %vm5446, %v8633, %v8632
      %v8635 = vrot.slane %v8554, 1
      %v8636 = vsel %vm5449, %v8635, %v8634
      %v8637 = vrot.slane %v8556, 7
      %v8638 = vsel %vm5431, %v8637, %v8555
      %v8639 = vrot.slane %v8557, 6
      %v8640 = vsel %vm5434, %v8639, %v8638
      %v8641 = vrot.slane %v8558, 5
      %v8642 = vsel %vm5437, %v8641, %v8640
      %v8643 = vrot.slane %v8559, 4
      %v8644 = vsel %vm5440, %v8643, %v8642
      %v8645 = vrot.slane %v8560, 3
      %v8646 = vsel %vm5443, %v8645, %v8644
      %v8647 = vrot.slane %v8561, 2
      %v8648 = vsel %vm5446, %v8647, %v8646
      %v8649 = vrot.slane %v8562, 1
      %v8650 = vsel %vm5449, %v8649, %v8648
      %v8651 = vrot.slane %v8564, 7
      %v8652 = vsel %vm5431, %v8651, %v8563
      %v8653 = vrot.slane %v8565, 6
      %v8654 = vsel %vm5434, %v8653, %v8652
      %v8655 = vrot.slane %v8566, 5
      %v8656 = vsel %vm5437, %v8655, %v8654
      %v8657 = vrot.slane %v8567, 4
      %v8658 = vsel %vm5440, %v8657, %v8656
      %v8659 = vrot.slane %v8568, 3
      %v8660 = vsel %vm5443, %v8659, %v8658
      %v8661 = vrot.slane %v8569, 2
      %v8662 = vsel %vm5446, %v8661, %v8660
      %v8663 = vrot.slane %v8570, 1
      %v8664 = vsel %vm5449, %v8663, %v8662
      %v8665 = vrot.slane %v8572, 7
      %v8666 = vsel %vm5431, %v8665, %v8571
      %v8667 = vrot.slane %v8573, 6
      %v8668 = vsel %vm5434, %v8667, %v8666
      %v8669 = vrot.slane %v8574, 5
      %v8670 = vsel %vm5437, %v8669, %v8668
      %v8671 = vrot.slane %v8575, 4
      %v8672 = vsel %vm5440, %v8671, %v8670
      %v8673 = vrot.slane %v8576, 3
      %v8674 = vsel %vm5443, %v8673, %v8672
      %v8675 = vrot.slane %v8577, 2
      %v8676 = vsel %vm5446, %v8675, %v8674
      %v8677 = vrot.slane %v8578, 1
      %v8678 = vsel %vm5449, %v8677, %v8676
      %v8679 = vrot.slane %v8580, 7
      %v8680 = vsel %vm5431, %v8679, %v8579
      %v8681 = vrot.slane %v8581, 6
      %v8682 = vsel %vm5434, %v8681, %v8680
      %v8683 = vrot.slane %v8582, 5
      %v8684 = vsel %vm5437, %v8683, %v8682
      %v8685 = vrot.slane %v8583, 4
      %v8686 = vsel %vm5440, %v8685, %v8684
      %v8687 = vrot.slane %v8584, 3
      %v8688 = vsel %vm5443, %v8687, %v8686
      %v8689 = vrot.slane %v8585, 2
      %v8690 = vsel %vm5446, %v8689, %v8688
      %v8691 = vrot.slane %v8586, 1
      %v8692 = vsel %vm5449, %v8691, %v8690
      %v8693 = vrot.slane %v8588, 7
      %v8694 = vsel %vm5431, %v8693, %v8587
      %v8695 = vrot.slane %v8589, 6
      %v8696 = vsel %vm5434, %v8695, %v8694
      %v8697 = vrot.slane %v8590, 5
      %v8698 = vsel %vm5437, %v8697, %v8696
      %v8699 = vrot.slane %v8591, 4
      %v8700 = vsel %vm5440, %v8699, %v8698
      %v8701 = vrot.slane %v8592, 3
      %v8702 = vsel %vm5443, %v8701, %v8700
      %v8703 = vrot.slane %v8593, 2
      %v8704 = vsel %vm5446, %v8703, %v8702
      %v8705 = vrot.slane %v8594, 1
      %v8706 = vsel %vm5449, %v8705, %v8704
      %v8707 = vpack.c.b16 %v8622, %v8608
      %v8708 = vpack.c.b16 %v8650, %v8636
      %v8709 = vpack.c.b16 %v8678, %v8664
      %v8710 = vpack.c.b16 %v8706, %v8692
      %v8715 = vunpack.c.l.b16 %v8456
      %v8716 = vunpack.c.l.b16 %v8457
      %v8717 = vunpack.c.l.b16 %v8458
      %v8718 = vunpack.c.l.b16 %v8459
      %v8719 = vpack.c.b16 %v8716, %v8715
      %v8720 = vpack.c.b16 %v8718, %v8717
      %v8724 = vsel %vm640, %v8707, 0
      %v8727 = vsel %vm640, %v8708, 0
      %v8730 = vsel %vm640, %v8709, 0
      %v8733 = vsel %vm640, %v8710, 0
      %8735 = vmatprep.subr.bf16.mxu0 0
      %8736 = vmatpush1.bf16.msra.mxu0 0
      %8737 = vmatprep.subr.bf16.mxu0 0
      %8738 = vmatpush1.bf16.msra.mxu0 0
      %8739 = vmatprep.subr.bf16.mxu0 0
      %8740 = vmatpush1.bf16.msra.mxu0 0
      %8741 = vmatprep.subr.bf16.mxu0 0
      %8742 = vmatpush1.bf16.msra.mxu0 0
      %8743 = vmatprep.subr.bf16.mxu0 0
      %8744 = vmatpush1.bf16.msra.mxu0 0
      %8745 = vmatprep.subr.bf16.mxu0 0
      %8746 = vmatpush1.bf16.msra.mxu0 0
      %8747 = vmatprep.subr.bf16.mxu0 0
      %8748 = vmatpush1.bf16.msra.mxu0 %v8720
      %8749 = vmatprep.subr.bf16.mxu0 0
      %8750 = vmatpush1.bf16.msra.mxu0 %v8719
      %8751 = vmatprep.subr.bf16.mxu0 0
      %8752 = vmatpush2.bf16.msra.mxu0 0
      %8753 = vmatprep.subr.bf16.mxu0 0
      %8754 = vmatpush2.bf16.msra.mxu0 0
      %8755 = vmatprep.subr.bf16.mxu0 0
      %8756 = vmatpush2.bf16.msra.mxu0 0
      %8757 = vmatprep.subr.bf16.mxu0 0
      %8758 = vmatpush2.bf16.msra.mxu0 0
      %8759 = vmatprep.subr.bf16.mxu0 0
      %8760 = vmatpush2.bf16.msra.mxu0 0
      %8761 = vmatprep.subr.bf16.mxu0 0
      %8762 = vmatpush2.bf16.msra.mxu0 0
      %8763 = vmatprep.subr.bf16.mxu0 0
      %8764 = vmatpush2.bf16.msra.mxu0 0
      %8765 = vmatprep.subr.bf16.mxu0 0
      %8766 = vmatpush2.bf16.msra.mxu0 0
      %8767 = vmatprep.mubr.bf16.mxu0 0
      %8768 = vmatmul.mubr.bf16.gmra.mxu0 %v8724
      %v8769 = vpop.f32.mrf.mxu0
      %v8770 = vadd.f32 %v8465, %v8769
      %v8771 = vpop.f32.mrf.mxu0
      %v8772 = vpop.f32.mrf.mxu0
      %v8773 = vadd.f32 %v8465, %v8772
      %v8774 = vpop.f32.mrf.mxu0
      %8775 = vmatprep.mubr.bf16.mxu0 0
      %8776 = vmatmul.mubr.bf16.gmra.mxu0 %v8727
      %v8777 = vpop.f32.mrf.mxu0
      %v8778 = vadd.f32 %v8465, %v8777
      %v8779 = vpop.f32.mrf.mxu0
      %v8780 = vpop.f32.mrf.mxu0
      %v8781 = vadd.f32 %v8465, %v8780
      %v8782 = vpop.f32.mrf.mxu0
      %8783 = vmatprep.mubr.bf16.mxu0 0
      %8784 = vmatmul.mubr.bf16.gmra.mxu0 %v8730
      %v8785 = vpop.f32.mrf.mxu0
      %v8786 = vadd.f32 %v8465, %v8785
      %v8787 = vpop.f32.mrf.mxu0
      %v8788 = vpop.f32.mrf.mxu0
      %v8789 = vadd.f32 %v8465, %v8788
      %v8790 = vpop.f32.mrf.mxu0
      %8791 = vmatprep.mubr.bf16.mxu0 0
      %8792 = vmatmul.mubr.bf16.gmra.mxu0 %v8733
      %v8793 = vpop.f32.mrf.mxu0
      %v8794 = vadd.f32 %v8465, %v8793
      %v8795 = vpop.f32.mrf.mxu0
      %v8796 = vpop.f32.mrf.mxu0
      %v8797 = vadd.f32 %v8465, %v8796
      %v8798 = vpop.f32.mrf.mxu0
      %8799 = vdwg.mxu0
      %8800 = vst.msk [vmem:[%s586] sm:$0xff] %vm640, %v8770
      %8801 = vst.msk [vmem:[%s586 + $0x8] sm:$0xff] %vm640, %v8773
      %8802 = vst.msk [vmem:[%s586 + $0x10] sm:$0xff] %vm640, %v8778
      %8803 = vst.msk [vmem:[%s586 + $0x18] sm:$0xff] %vm640, %v8781
      %8804 = vst.msk [vmem:[%s586 + $0x20] sm:$0xff] %vm640, %v8786
      %8805 = vst.msk [vmem:[%s586 + $0x28] sm:$0xff] %vm640, %v8789
      %8806 = vst.msk [vmem:[%s586 + $0x30] sm:$0xff] %vm640, %v8794
      %8807 = vst.msk [vmem:[%s586 + $0x38] sm:$0xff] %vm640, %v8797
      %s8808 = smul.u32 8, %s29
      %p8809 = scmp.lt.s32.totalorder %s28, 1
      %s8810 = scalar_select %p8809, %s28, 1
      %p8811 = scmp.lt.s32.totalorder %s8808, 7
      %s8812 = scalar_select %p8811, %s8808, 7
      %s8813 = smul.addr %s8810, 8
      %s8814 = sadd.s32 %s8812, %s8813
      %s8815 = smul.addr %s8814, 8
      %s8816 = scalar_lea.vmem %s13, %s8815
      // Predicated region
      $region73: #{cluster_attention_forward.1} parent=71 // pred_check
        %p8817 = pneg %p357
      $region74: #{cluster_attention_forward.1} parent=71 // pred_check_branch
        %8819 = sbr.rel (%p8817) target = $region76
      $region75: #{cluster_attention_forward.1} parent=71 // pred_region
        %s8820 = smul.u32 8, %s29
      $region76: #{cluster_attention_forward.1} parent=71 // pred_fallthru
        _
    $region72: #{cluster_attention_forward.1} parent=5 // pred_fallthru
      _
    %p8821 = scmp.le.s32.totalorder 2, %s19
    // Predicated region
    $region77: #{cluster_attention_forward.1} parent=5 // pred_check
      %p8822 = pneg %p8821
    $region78: #{cluster_attention_forward.1} parent=5 // pred_check_branch
      %8824 = sbr.rel (%p8822) target = $region80
    $region79: #{cluster_attention_forward.1} parent=5 // pred_region
      %s8825 = ssub.s32 %s19, 2
      // Predicated region
      $region81: #{cluster_attention_forward.1} parent=79 // pred_check
        %p8826 = pneg %p363
      $region82: #{cluster_attention_forward.1} parent=79 // pred_check_branch
        %8828 = sbr.rel (%p8826) target = $region84
      $region83: #{cluster_attention_forward.1} parent=79 // pred_region
        %s8829 = smul.u32 8, %s31
        %p8830 = scmp.lt.s32.totalorder %s30, 1
        %s8831 = scalar_select %p8830, %s30, 1
        %p8832 = scmp.lt.s32.totalorder %s8829, 7
        %s8833 = scalar_select %p8832, %s8829, 7
        %s8834 = smul.addr %s8831, 8
        %s8835 = sadd.s32 %s8833, %s8834
        %s8836 = smul.addr %s8835, 8
        %s8837 = scalar_lea.vmem %s13, %s8836
      $region84: #{cluster_attention_forward.1} parent=79 // pred_fallthru
        _
    $region80: #{cluster_attention_forward.1} parent=5 // pred_fallthru
      _
  $region6: #{cluster_attention_forward.1} parent=0 // loop_footer
    %s23 = sadd.s32 1, %s19
  $region7: #{cluster_attention_forward.1} parent=0 // loop_footer_branch
    %18 = sbr.rel target = $region3
  $region8: #{cluster_attention_forward.1} parent=0 // loop_exit
    _

</llo_original>
